<compile_context>
chip_gen: v7x
topology: tpu7x:2x2x1
jax: 0.10.0
libtpu: 0.0.40
codegen_flags: <defaults>
</compile_context>

<pallas_src>
import functools

import jax
import jax.numpy as jnp
import numpy as np
from jax.experimental import pallas as pl
from jax.experimental.pallas import tpu as pltpu

_EPS = 1e-5
_LANE = 128


def _round_up(x, m):
    return (x + m - 1) // m * m


# ---------------------------------------------------------------------------
# Pass 1: conv1 (3x3) + downsample conv (1x1) for one image, fused im2col
#         matmuls, plus per-channel sum / sum-of-squares accumulation.
# ---------------------------------------------------------------------------
def _conv1_kernel(xpad_ref, w1_ref, wd_ref, y1_ref, d_ref, stats_ref, *, h, w):
    n = pl.program_id(0)
    cin = xpad_ref.shape[-1]
    cp = w1_ref.shape[-1]
    rows = h * w

    # im2col: read the 9 taps straight from the ref, concatenate along the
    # (lane-dense) channel axis -> one (rows, 9*cin) @ (9*cin, cp) MXU matmul.
    taps = []
    for di in range(3):
        for dj in range(3):
            taps.append(
                xpad_ref[:, di:di + h, dj:dj + w, :].reshape(rows, cin))
    patch = jnp.concatenate(taps, axis=-1)                      # (rows, 9*cin) bf16

    acc1 = jnp.dot(patch, w1_ref[...], preferred_element_type=jnp.float32)
    # 1x1 downsample conv (stride 1) reuses the center tap (di=1, dj=1).
    accd = jnp.dot(taps[4], wd_ref[...], preferred_element_type=jnp.float32)

    y1_ref[...] = acc1.reshape(1, h, w, cp)
    d_ref[...] = accd.reshape(1, h, w, cp)

    @pl.when(n == 0)
    def _():
        stats_ref[...] = jnp.zeros_like(stats_ref)

    upd = jnp.concatenate(
        [jnp.sum(acc1, axis=0, keepdims=True),
         jnp.sum(acc1 * acc1, axis=0, keepdims=True),
         jnp.sum(accd, axis=0, keepdims=True),
         jnp.sum(accd * accd, axis=0, keepdims=True),
         jnp.zeros((4, cp), jnp.float32)], axis=0)              # (8, cp)
    stats_ref[...] += upd


# ---------------------------------------------------------------------------
# Pass 2: bn1 (pre-folded scale/bias) + relu1, conv2 (3x3, im2col), plus bn2
#         statistics accumulation.  Padded halo lives in a persistent VMEM
#         scratch whose border is zeroed once at grid step 0.
# ---------------------------------------------------------------------------
def _conv2_kernel(y1_ref, s1_ref, b1_ref, w2_ref, z2_ref, stats_ref, ypad_ref,
                  *, h, w):
    n = pl.program_id(0)
    cp = w2_ref.shape[-1]
    rows = h * w

    @pl.when(n == 0)
    def _():
        # Zero once; only the interior is rewritten below, so the halo border
        # stays zero for every subsequent grid step.
        ypad_ref[...] = jnp.zeros_like(ypad_ref)
        stats_ref[...] = jnp.zeros_like(stats_ref)

    # bn1 apply is a single per-channel FMA (scale/bias folded in the wrapper).
    a = jnp.maximum(y1_ref[...] * s1_ref[...] + b1_ref[...], 0.0)  # (1,h,w,cp) f32
    ypad_ref[1:h + 1, 1:w + 1, :] = a.reshape(h, w, cp).astype(ypad_ref.dtype)

    taps = []
    for di in range(3):
        for dj in range(3):
            taps.append(ypad_ref[di:di + h, dj:dj + w, :].reshape(rows, cp))
    patch = jnp.concatenate(taps, axis=-1)                      # (rows, 9*cp) bf16
    acc2 = jnp.dot(patch, w2_ref[...], preferred_element_type=jnp.float32)

    z2_ref[...] = acc2.reshape(1, h, w, cp)

    upd = jnp.concatenate(
        [jnp.sum(acc2, axis=0, keepdims=True),
         jnp.sum(acc2 * acc2, axis=0, keepdims=True),
         jnp.zeros((6, cp), jnp.float32)], axis=0)              # (8, cp)
    stats_ref[...] += upd


# ---------------------------------------------------------------------------
# Pass 3: bn2 + bn_downsample + residual add + relu2 (elementwise, parallel).
# ---------------------------------------------------------------------------
def _residual_kernel(z2_ref, s2_ref, b2_ref, d_ref, sd_ref, bd_ref, out_ref):
    y = (z2_ref[...] * s2_ref[...] + b2_ref[...]) \
        + (d_ref[...] * sd_ref[...] + bd_ref[...])
    out_ref[...] = jnp.maximum(y, 0.0)


# ---------------------------------------------------------------------------
# Wrapper: NCHW in, NCHW out.  stride=1 with active downsample branch.
# ---------------------------------------------------------------------------
def basic_block_forward(x_nchw, params):
    n, cin, h, w = x_nchw.shape
    planes = params["w1"].shape[-1]
    cpi = _round_up(cin, _LANE)      # lane-padded input channels
    cp = _round_up(planes, _LANE)    # lane-padded output channels
    rows_total = n * h * w

    # ---- layout prep (NHWC, channel-padded, bf16 MXU operands) -------------
    x = jnp.transpose(x_nchw, (0, 2, 3, 1)).astype(jnp.float32)
    xpad = jnp.pad(x, ((0, 0), (1, 1), (1, 1), (0, cpi - cin))).astype(jnp.bfloat16)

    w1 = jnp.pad(params["w1"], ((0, 0), (0, 0), (0, cpi - cin), (0, cp - planes)))
    w1 = w1.reshape(9 * cpi, cp).astype(jnp.bfloat16)
    w2 = jnp.pad(params["w2"], ((0, 0), (0, 0), (0, cp - planes), (0, cp - planes)))
    w2 = w2.reshape(9 * cp, cp).astype(jnp.bfloat16)
    wd = jnp.pad(params["wd"], ((0, cpi - cin), (0, cp - planes))).astype(jnp.bfloat16)

    def padc(v):  # (1, planes) f32 -> (1, cp) f32, zero padded
        return jnp.pad(v.astype(jnp.float32), ((0, 0), (0, cp - planes)))

    g1, b1 = padc(params["g1"]), padc(params["b1"])
    g2, b2 = padc(params["g2"]), padc(params["b2"])
    gd, bd = padc(params["gd"]), padc(params["bd"])

    img_in = lambda c: pl.BlockSpec((1, h + 2, w + 2, c), lambda i: (i, 0, 0, 0))
    img = lambda c: pl.BlockSpec((1, h, w, c), lambda i: (i, 0, 0, 0))
    row = pl.BlockSpec((1, cp), lambda i: (0, 0))
    acc_spec = pl.BlockSpec((8, cp), lambda i: (0, 0))

    seq_params = pltpu.CompilerParams(
        dimension_semantics=("arbitrary",),           # stats accumulate over grid
        vmem_limit_bytes=32 * 1024 * 1024)
    par_params = pltpu.CompilerParams(
        dimension_semantics=("parallel",),            # v7x dual-TC friendly
        vmem_limit_bytes=32 * 1024 * 1024)

    # ---- pass 1: conv1 + downsample conv + BN1/BNd statistics ---------------
    y1_raw, d_raw, stats1 = pl.pallas_call(
        functools.partial(_conv1_kernel, h=h, w=w),
        grid=(n,),
        in_specs=[img_in(cpi),
                  pl.BlockSpec((9 * cpi, cp), lambda i: (0, 0)),
                  pl.BlockSpec((cpi, cp), lambda i: (0, 0))],
        out_specs=[img(cp), img(cp), acc_spec],
        out_shape=[jax.ShapeDtypeStruct((n, h, w, cp), jnp.float32),
                   jax.ShapeDtypeStruct((n, h, w, cp), jnp.float32),
                   jax.ShapeDtypeStruct((8, cp), jnp.float32)],
        compiler_params=seq_params,
    )(xpad, w1, wd)

    cnt = jnp.float32(rows_total)

    def fold(s, q, gamma, beta):
        mean = s / cnt
        var = jnp.maximum(q / cnt - mean * mean, 0.0)
        scale = gamma * jax.lax.rsqrt(var + _EPS)     # per-channel, hoisted
        bias = beta - mean * scale
        return scale, bias

    s1, bb1 = fold(stats1[0:1], stats1[1:2], g1, b1)
    sdd, bdd = fold(stats1[2:3], stats1[3:4], gd, bd)

    # ---- pass 2: bn1+relu, conv2, BN2 statistics ----------------------------
    z2_raw, stats2 = pl.pallas_call(
        functools.partial(_conv2_kernel, h=h, w=w),
        grid=(n,),
        in_specs=[img(cp), row, row,
                  pl.BlockSpec((9 * cp, cp), lambda i: (0, 0))],
        out_specs=[img(cp), acc_spec],
        out_shape=[jax.ShapeDtypeStruct((n, h, w, cp), jnp.float32),
                   jax.ShapeDtypeStruct((8, cp), jnp.float32)],
        scratch_shapes=[pltpu.VMEM((h + 2, w + 2, cp), jnp.bfloat16)],
        compiler_params=seq_params,
    )(y1_raw, s1, bb1, w2)

    s2, bb2 = fold(stats2[0:1], stats2[1:2], g2, b2)

    # ---- pass 3: bn2 + bnd + residual add + relu2 ----------------------------
    out_p = pl.pallas_call(
        _residual_kernel,
        grid=(n,),
        in_specs=[img(cp), row, row, img(cp), row, row],
        out_specs=img(cp),
        out_shape=jax.ShapeDtypeStruct((n, h, w, cp), jnp.float32),
        compiler_params=par_params,
    )(z2_raw, s2, bb2, d_raw, sdd, bdd)

    out = out_p[..., :planes]                         # drop lane padding
    return jnp.transpose(out, (0, 3, 1, 2))           # NHWC -> NCHW


# ------------------------------ reference (pure JAX) ------------------------
def ref_forward(x_nchw, params):
    # Mirrors the kernel's mixed-precision policy: conv operands rounded to
    # bf16 (MXU input dtype), accumulation and BatchNorm math in f32.
    bf = lambda t: t.astype(jnp.bfloat16).astype(jnp.float32)
    x = bf(jnp.transpose(x_nchw, (0, 2, 3, 1)).astype(jnp.float32))
    dn = ("NHWC", "HWIO", "NHWC")
    hp = jax.lax.Precision.HIGHEST

    def bn(y, g, b):
        m = jnp.mean(y, axis=(0, 1, 2), keepdims=True)
        v = jnp.mean((y - m) ** 2, axis=(0, 1, 2), keepdims=True)
        return (y - m) * jax.lax.rsqrt(v + _EPS) * g.reshape(1, 1, 1, -1) \
            + b.reshape(1, 1, 1, -1)

    y = jax.lax.conv_general_dilated(x, bf(params["w1"]), (1, 1), "SAME",
                                     dimension_numbers=dn, precision=hp)
    y = jnp.maximum(bn(y, params["g1"], params["b1"]), 0.0)
    y = jax.lax.conv_general_dilated(bf(y), bf(params["w2"]), (1, 1), "SAME",
                                     dimension_numbers=dn, precision=hp)
    y = bn(y, params["g2"], params["b2"])

    cin, planes = params["wd"].shape
    d = jax.lax.conv_general_dilated(x, bf(params["wd"]).reshape(1, 1, cin, planes),
                                     (1, 1), "SAME", dimension_numbers=dn,
                                     precision=hp)
    d = bn(d, params["gd"], params["bd"])

    out = jnp.maximum(y + d, 0.0)
    return jnp.transpose(out, (0, 3, 1, 2))


def init_params(key, in_planes, planes):
    ks = jax.random.split(key, 9)
    return {
        # conv weights stored HWIO (NHWC-friendly); no bias (bias=False).
        "w1": 0.1 * jax.random.normal(ks[0], (3, 3, in_planes, planes), jnp.float32),
        "w2": 0.1 * jax.random.normal(ks[1], (3, 3, planes, planes), jnp.float32),
        "wd": 0.1 * jax.random.normal(ks[2], (in_planes, planes), jnp.float32),
        # BatchNorm affine params as (1, planes) rows.
        "g1": 1.0 + 0.1 * jax.random.normal(ks[3], (1, planes), jnp.float32),
        "b1": 0.1 * jax.random.normal(ks[4], (1, planes), jnp.float32),
        "g2": 1.0 + 0.1 * jax.random.normal(ks[5], (1, planes), jnp.float32),
        "b2": 0.1 * jax.random.normal(ks[6], (1, planes), jnp.float32),
        "gd": 1.0 + 0.1 * jax.random.normal(ks[7], (1, planes), jnp.float32),
        "bd": 0.1 * jax.random.normal(ks[8], (1, planes), jnp.float32),
    }


if __name__ == "__main__":
    key = jax.random.PRNGKey(0)
    kx, kp = jax.random.split(key)

    N, C_IN, PLANES, H, W = 2, 4, 8, 16, 16           # stride=1, C_IN != PLANES
    x = jax.random.normal(kx, (N, C_IN, H, W), jnp.float32)
    params = init_params(kp, C_IN, PLANES)

    out = jax.jit(basic_block_forward)(x, params)
    out = jax.block_until_ready(out)

    ref = jax.block_until_ready(ref_forward(x, params))

    assert out.shape == (N, PLANES, H, W), out.shape
    np.testing.assert_allclose(np.asarray(out), np.asarray(ref),
                               rtol=1e-2, atol=1e-2)
    print("KERNEL_OK")
</pallas_src>

<mosaic_0001>
module attributes {stable_mosaic.version = 11 : i64} {
  func.func @_conv1_kernel(%arg0: i32, %arg1: memref<1x18x18x128xbf16, #tpu.memory_space<vmem>>, %arg2: memref<1152x128xbf16, #tpu.memory_space<vmem>>, %arg3: memref<128x128xbf16, #tpu.memory_space<vmem>>, %arg4: memref<1x16x16x128xf32, #tpu.memory_space<vmem>>, %arg5: memref<1x16x16x128xf32, #tpu.memory_space<vmem>>, %arg6: memref<8x128xf32, #tpu.memory_space<vmem>>) attributes {dimension_semantics = [#tpu.dimension_semantics<arbitrary>], iteration_bounds = array<i64: 2>, scalar_prefetch = 0 : i64, scratch_operands = 0 : i64, tpu.core_type = #tpu.core_type<tc>, window_params = [{transform_indices = @transform_0, window_bounds = array<i64: 1, 18, 18, 128>}, {pipeline_mode = #tpu.pipeline_mode<synchronous>, transform_indices = @transform_1, window_bounds = array<i64: 1152, 128>}, {pipeline_mode = #tpu.pipeline_mode<synchronous>, transform_indices = @transform_2, window_bounds = array<i64: 128, 128>}, {transform_indices = @transform_3, window_bounds = array<i64: 1, 16, 16, 128>}, {transform_indices = @transform_4, window_bounds = array<i64: 1, 16, 16, 128>}, {pipeline_mode = #tpu.pipeline_mode<synchronous>, transform_indices = @transform_5, window_bounds = array<i64: 8, 128>}]} {
    %c0 = arith.constant 0 : index
    %c0_0 = arith.constant 0 : index
    %c0_1 = arith.constant 0 : index
    %c0_2 = arith.constant 0 : index
    %0 = vector.load %arg1[%c0, %c0_0, %c0_1, %c0_2] : memref<1x18x18x128xbf16, #tpu.memory_space<vmem>>, vector<1x16x16x128xbf16>
    %1 = vector.shape_cast %0 : vector<1x16x16x128xbf16> to vector<256x128xbf16>
    %c0_3 = arith.constant 0 : index
    %c0_4 = arith.constant 0 : index
    %c1 = arith.constant 1 : index
    %c0_5 = arith.constant 0 : index
    %2 = vector.load %arg1[%c0_3, %c0_4, %c1, %c0_5] : memref<1x18x18x128xbf16, #tpu.memory_space<vmem>>, vector<1x16x16x128xbf16>
    %3 = vector.shape_cast %2 : vector<1x16x16x128xbf16> to vector<256x128xbf16>
    %c0_6 = arith.constant 0 : index
    %c0_7 = arith.constant 0 : index
    %c2 = arith.constant 2 : index
    %c0_8 = arith.constant 0 : index
    %4 = vector.load %arg1[%c0_6, %c0_7, %c2, %c0_8] : memref<1x18x18x128xbf16, #tpu.memory_space<vmem>>, vector<1x16x16x128xbf16>
    %5 = vector.shape_cast %4 : vector<1x16x16x128xbf16> to vector<256x128xbf16>
    %c0_9 = arith.constant 0 : index
    %c1_10 = arith.constant 1 : index
    %c0_11 = arith.constant 0 : index
    %c0_12 = arith.constant 0 : index
    %6 = vector.load %arg1[%c0_9, %c1_10, %c0_11, %c0_12] : memref<1x18x18x128xbf16, #tpu.memory_space<vmem>>, vector<1x16x16x128xbf16>
    %7 = vector.shape_cast %6 : vector<1x16x16x128xbf16> to vector<256x128xbf16>
    %c0_13 = arith.constant 0 : index
    %c1_14 = arith.constant 1 : index
    %c1_15 = arith.constant 1 : index
    %c0_16 = arith.constant 0 : index
    %8 = vector.load %arg1[%c0_13, %c1_14, %c1_15, %c0_16] : memref<1x18x18x128xbf16, #tpu.memory_space<vmem>>, vector<1x16x16x128xbf16>
    %9 = vector.shape_cast %8 : vector<1x16x16x128xbf16> to vector<256x128xbf16>
    %c0_17 = arith.constant 0 : index
    %c1_18 = arith.constant 1 : index
    %c2_19 = arith.constant 2 : index
    %c0_20 = arith.constant 0 : index
    %10 = vector.load %arg1[%c0_17, %c1_18, %c2_19, %c0_20] : memref<1x18x18x128xbf16, #tpu.memory_space<vmem>>, vector<1x16x16x128xbf16>
    %11 = vector.shape_cast %10 : vector<1x16x16x128xbf16> to vector<256x128xbf16>
    %c0_21 = arith.constant 0 : index
    %c2_22 = arith.constant 2 : index
    %c0_23 = arith.constant 0 : index
    %c0_24 = arith.constant 0 : index
    %12 = vector.load %arg1[%c0_21, %c2_22, %c0_23, %c0_24] : memref<1x18x18x128xbf16, #tpu.memory_space<vmem>>, vector<1x16x16x128xbf16>
    %13 = vector.shape_cast %12 : vector<1x16x16x128xbf16> to vector<256x128xbf16>
    %c0_25 = arith.constant 0 : index
    %c2_26 = arith.constant 2 : index
    %c1_27 = arith.constant 1 : index
    %c0_28 = arith.constant 0 : index
    %14 = vector.load %arg1[%c0_25, %c2_26, %c1_27, %c0_28] : memref<1x18x18x128xbf16, #tpu.memory_space<vmem>>, vector<1x16x16x128xbf16>
    %15 = vector.shape_cast %14 : vector<1x16x16x128xbf16> to vector<256x128xbf16>
    %c0_29 = arith.constant 0 : index
    %c2_30 = arith.constant 2 : index
    %c2_31 = arith.constant 2 : index
    %c0_32 = arith.constant 0 : index
    %16 = vector.load %arg1[%c0_29, %c2_30, %c2_31, %c0_32] : memref<1x18x18x128xbf16, #tpu.memory_space<vmem>>, vector<1x16x16x128xbf16>
    %17 = vector.shape_cast %16 : vector<1x16x16x128xbf16> to vector<256x128xbf16>
    %18 = tpu.concatenate %1, %3, %5, %7, %9, %11, %13, %15, %17 in 1 : vector<256x128xbf16>, vector<256x128xbf16>, vector<256x128xbf16>, vector<256x128xbf16>, vector<256x128xbf16>, vector<256x128xbf16>, vector<256x128xbf16>, vector<256x128xbf16>, vector<256x128xbf16> -> vector<256x1152xbf16>
    %c0_33 = arith.constant 0 : index
    %c0_34 = arith.constant 0 : index
    %19 = vector.load %arg2[%c0_33, %c0_34] : memref<1152x128xbf16, #tpu.memory_space<vmem>>, vector<1152x128xbf16>
    %cst = arith.constant dense<0.000000e+00> : vector<256x128xf32>
    %20 = tpu.matmul %18, %19, %cst {dimension_numbers = #tpu.dot_dimension_numbers<[1], [0], [0], [1], [0, 0, 1, 1], [], []>} : vector<256x1152xbf16>, vector<1152x128xbf16>, vector<256x128xf32> -> vector<256x128xf32>
    %c0_35 = arith.constant 0 : index
    %c0_36 = arith.constant 0 : index
    %21 = vector.load %arg3[%c0_35, %c0_36] : memref<128x128xbf16, #tpu.memory_space<vmem>>, vector<128x128xbf16>
    %cst_37 = arith.constant dense<0.000000e+00> : vector<256x128xf32>
    %22 = tpu.matmul %9, %21, %cst_37 {dimension_numbers = #tpu.dot_dimension_numbers<[1], [0], [0], [1], [0, 0, 1, 1], [], []>} : vector<256x128xbf16>, vector<128x128xbf16>, vector<256x128xf32> -> vector<256x128xf32>
    %23 = vector.shape_cast %20 : vector<256x128xf32> to vector<1x16x16x128xf32>
    %c0_38 = arith.constant 0 : index
    %c0_39 = arith.constant 0 : index
    %c0_40 = arith.constant 0 : index
    %c0_41 = arith.constant 0 : index
    %24 = vector.load %arg4[%c0_38, %c0_39, %c0_40, %c0_41] : memref<1x16x16x128xf32, #tpu.memory_space<vmem>>, vector<1x16x16x128xf32>
    tpu.vector_store %arg4[%c0_38, %c0_39, %c0_40, %c0_41], %23 {strides = array<i32>} : memref<1x16x16x128xf32, #tpu.memory_space<vmem>>, vector<1x16x16x128xf32>,
    %25 = vector.shape_cast %22 : vector<256x128xf32> to vector<1x16x16x128xf32>
    %c0_42 = arith.constant 0 : index
    %c0_43 = arith.constant 0 : index
    %c0_44 = arith.constant 0 : index
    %c0_45 = arith.constant 0 : index
    %26 = vector.load %arg5[%c0_42, %c0_43, %c0_44, %c0_45] : memref<1x16x16x128xf32, #tpu.memory_space<vmem>>, vector<1x16x16x128xf32>
    tpu.vector_store %arg5[%c0_42, %c0_43, %c0_44, %c0_45], %25 {strides = array<i32>} : memref<1x16x16x128xf32, #tpu.memory_space<vmem>>, vector<1x16x16x128xf32>,
    %c0_i32 = arith.constant 0 : i32
    %27 = arith.cmpi eq, %arg0, %c0_i32 : i32
    %28 = arith.extui %27 : i1 to i32
    %c0_i32_46 = arith.constant 0 : i32
    %29 = arith.cmpi ne, %28, %c0_i32_46 : i32
    scf.if %29 {
      %cst_56 = arith.constant 0.000000e+00 : f32
      %45 = vector.broadcast %cst_56 : f32 to vector<8x128xf32>
      %c0_57 = arith.constant 0 : index
      %c0_58 = arith.constant 0 : index
      %46 = vector.load %arg6[%c0_57, %c0_58] : memref<8x128xf32, #tpu.memory_space<vmem>>, vector<8x128xf32>
      tpu.vector_store %arg6[%c0_57, %c0_58], %45 {strides = array<i32>} : memref<8x128xf32, #tpu.memory_space<vmem>>, vector<8x128xf32>,
    } else {
    }
    %cst_47 = arith.constant dense<0.000000e+00> : vector<128xf32>
    %30 = vector.multi_reduction <add>, %20, %cst_47 [0] : vector<256x128xf32> to vector<128xf32>
    %31 = vector.shape_cast %30 : vector<128xf32> to vector<1x128xf32>
    %32 = arith.mulf %20, %20 : vector<256x128xf32>
    %cst_48 = arith.constant dense<0.000000e+00> : vector<128xf32>
    %33 = vector.multi_reduction <add>, %32, %cst_48 [0] : vector<256x128xf32> to vector<128xf32>
    %34 = vector.shape_cast %33 : vector<128xf32> to vector<1x128xf32>
    %cst_49 = arith.constant dense<0.000000e+00> : vector<128xf32>
    %35 = vector.multi_reduction <add>, %22, %cst_49 [0] : vector<256x128xf32> to vector<128xf32>
    %36 = vector.shape_cast %35 : vector<128xf32> to vector<1x128xf32>
    %37 = arith.mulf %22, %22 : vector<256x128xf32>
    %cst_50 = arith.constant dense<0.000000e+00> : vector<128xf32>
    %38 = vector.multi_reduction <add>, %37, %cst_50 [0] : vector<256x128xf32> to vector<128xf32>
    %39 = vector.shape_cast %38 : vector<128xf32> to vector<1x128xf32>
    %cst_51 = arith.constant 0.000000e+00 : f32
    %40 = vector.broadcast %cst_51 : f32 to vector<4x128xf32>
    %41 = tpu.concatenate %31, %34, %36, %39, %40 in 0 : vector<1x128xf32>, vector<1x128xf32>, vector<1x128xf32>, vector<1x128xf32>, vector<4x128xf32> -> vector<8x128xf32>
    %c0_52 = arith.constant 0 : index
    %c0_53 = arith.constant 0 : index
    %42 = vector.load %arg6[%c0_52, %c0_53] : memref<8x128xf32, #tpu.memory_space<vmem>>, vector<8x128xf32>
    %43 = arith.addf %42, %41 : vector<8x128xf32>
    %c0_54 = arith.constant 0 : index
    %c0_55 = arith.constant 0 : index
    %44 = vector.load %arg6[%c0_54, %c0_55] : memref<8x128xf32, #tpu.memory_space<vmem>>, vector<8x128xf32>
    tpu.vector_store %arg6[%c0_54, %c0_55], %43 {strides = array<i32>} : memref<8x128xf32, #tpu.memory_space<vmem>>, vector<8x128xf32>,
    return
  }
  func.func @transform_0(%arg0: i32) -> (i32, i32, i32, i32) {
    %c0_i32 = arith.constant 0 : i32
    %c0_i32_0 = arith.constant 0 : i32
    %c0_i32_1 = arith.constant 0 : i32
    %c0_i32_2 = arith.constant 0 : i32
    return %arg0, %c0_i32, %c0_i32_0, %c0_i32_1 : i32, i32, i32, i32
  }
  func.func @transform_1(%arg0: i32) -> (i32, i32) {
    %c0_i32 = arith.constant 0 : i32
    %c0_i32_0 = arith.constant 0 : i32
    %c0_i32_1 = arith.constant 0 : i32
    return %c0_i32, %c0_i32_0 : i32, i32
  }
  func.func @transform_2(%arg0: i32) -> (i32, i32) {
    %c0_i32 = arith.constant 0 : i32
    %c0_i32_0 = arith.constant 0 : i32
    %c0_i32_1 = arith.constant 0 : i32
    return %c0_i32, %c0_i32_0 : i32, i32
  }
  func.func @transform_3(%arg0: i32) -> (i32, i32, i32, i32) {
    %c0_i32 = arith.constant 0 : i32
    %c0_i32_0 = arith.constant 0 : i32
    %c0_i32_1 = arith.constant 0 : i32
    %c0_i32_2 = arith.constant 0 : i32
    return %arg0, %c0_i32, %c0_i32_0, %c0_i32_1 : i32, i32, i32, i32
  }
  func.func @transform_4(%arg0: i32) -> (i32, i32, i32, i32) {
    %c0_i32 = arith.constant 0 : i32
    %c0_i32_0 = arith.constant 0 : i32
    %c0_i32_1 = arith.constant 0 : i32
    %c0_i32_2 = arith.constant 0 : i32
    return %arg0, %c0_i32, %c0_i32_0, %c0_i32_1 : i32, i32, i32, i32
  }
  func.func @transform_5(%arg0: i32) -> (i32, i32) {
    %c0_i32 = arith.constant 0 : i32
    %c0_i32_0 = arith.constant 0 : i32
    %c0_i32_1 = arith.constant 0 : i32
    return %c0_i32, %c0_i32_0 : i32, i32
  }
}

module attributes {stable_mosaic.version = 11 : i64} {
  func.func @_residual_kernel(%arg0: i32, %arg1: memref<1x16x16x128xf32, #tpu.memory_space<vmem>>, %arg2: memref<1x128xf32, #tpu.memory_space<vmem>>, %arg3: memref<1x128xf32, #tpu.memory_space<vmem>>, %arg4: memref<1x16x16x128xf32, #tpu.memory_space<vmem>>, %arg5: memref<1x128xf32, #tpu.memory_space<vmem>>, %arg6: memref<1x128xf32, #tpu.memory_space<vmem>>, %arg7: memref<1x16x16x128xf32, #tpu.memory_space<vmem>>) attributes {dimension_semantics = [#tpu.dimension_semantics<parallel>], iteration_bounds = array<i64: 2>, scalar_prefetch = 0 : i64, scratch_operands = 0 : i64, tpu.core_type = #tpu.core_type<tc>, window_params = [{transform_indices = @transform_0, window_bounds = array<i64: 1, 16, 16, 128>}, {pipeline_mode = #tpu.pipeline_mode<synchronous>, transform_indices = @transform_1, window_bounds = array<i64: 1, 128>}, {pipeline_mode = #tpu.pipeline_mode<synchronous>, transform_indices = @transform_2, window_bounds = array<i64: 1, 128>}, {transform_indices = @transform_3, window_bounds = array<i64: 1, 16, 16, 128>}, {pipeline_mode = #tpu.pipeline_mode<synchronous>, transform_indices = @transform_4, window_bounds = array<i64: 1, 128>}, {pipeline_mode = #tpu.pipeline_mode<synchronous>, transform_indices = @transform_5, window_bounds = array<i64: 1, 128>}, {transform_indices = @transform_6, window_bounds = array<i64: 1, 16, 16, 128>}]} {
    %c0 = arith.constant 0 : index
    %c0_0 = arith.constant 0 : index
    %c0_1 = arith.constant 0 : index
    %c0_2 = arith.constant 0 : index
    %0 = vector.load %arg1[%c0, %c0_0, %c0_1, %c0_2] : memref<1x16x16x128xf32, #tpu.memory_space<vmem>>, vector<1x16x16x128xf32>
    %c0_3 = arith.constant 0 : index
    %c0_4 = arith.constant 0 : index
    %1 = vector.load %arg2[%c0_3, %c0_4] : memref<1x128xf32, #tpu.memory_space<vmem>>, vector<1x128xf32>
    %2 = vector.shape_cast %1 : vector<1x128xf32> to vector<1x1x1x128xf32>
    %3 = vector.broadcast %2 : vector<1x1x1x128xf32> to vector<1x16x16x128xf32>
    %4 = arith.mulf %0, %3 : vector<1x16x16x128xf32>
    %c0_5 = arith.constant 0 : index
    %c0_6 = arith.constant 0 : index
    %5 = vector.load %arg3[%c0_5, %c0_6] : memref<1x128xf32, #tpu.memory_space<vmem>>, vector<1x128xf32>
    %6 = vector.shape_cast %5 : vector<1x128xf32> to vector<1x1x1x128xf32>
    %7 = vector.broadcast %6 : vector<1x1x1x128xf32> to vector<1x16x16x128xf32>
    %8 = arith.addf %4, %7 : vector<1x16x16x128xf32>
    %c0_7 = arith.constant 0 : index
    %c0_8 = arith.constant 0 : index
    %c0_9 = arith.constant 0 : index
    %c0_10 = arith.constant 0 : index
    %9 = vector.load %arg4[%c0_7, %c0_8, %c0_9, %c0_10] : memref<1x16x16x128xf32, #tpu.memory_space<vmem>>, vector<1x16x16x128xf32>
    %c0_11 = arith.constant 0 : index
    %c0_12 = arith.constant 0 : index
    %10 = vector.load %arg5[%c0_11, %c0_12] : memref<1x128xf32, #tpu.memory_space<vmem>>, vector<1x128xf32>
    %11 = vector.shape_cast %10 : vector<1x128xf32> to vector<1x1x1x128xf32>
    %12 = vector.broadcast %11 : vector<1x1x1x128xf32> to vector<1x16x16x128xf32>
    %13 = arith.mulf %9, %12 : vector<1x16x16x128xf32>
    %c0_13 = arith.constant 0 : index
    %c0_14 = arith.constant 0 : index
    %14 = vector.load %arg6[%c0_13, %c0_14] : memref<1x128xf32, #tpu.memory_space<vmem>>, vector<1x128xf32>
    %15 = vector.shape_cast %14 : vector<1x128xf32> to vector<1x1x1x128xf32>
    %16 = vector.broadcast %15 : vector<1x1x1x128xf32> to vector<1x16x16x128xf32>
    %17 = arith.addf %13, %16 : vector<1x16x16x128xf32>
    %18 = arith.addf %8, %17 : vector<1x16x16x128xf32>
    %cst = arith.constant 0.000000e+00 : f32
    %19 = vector.broadcast %cst : f32 to vector<1x16x16x128xf32>
    %20 = arith.maximumf %18, %19 : vector<1x16x16x128xf32>
    %c0_15 = arith.constant 0 : index
    %c0_16 = arith.constant 0 : index
    %c0_17 = arith.constant 0 : index
    %c0_18 = arith.constant 0 : index
    %21 = vector.load %arg7[%c0_15, %c0_16, %c0_17, %c0_18] : memref<1x16x16x128xf32, #tpu.memory_space<vmem>>, vector<1x16x16x128xf32>
    tpu.vector_store %arg7[%c0_15, %c0_16, %c0_17, %c0_18], %20 {strides = array<i32>} : memref<1x16x16x128xf32, #tpu.memory_space<vmem>>, vector<1x16x16x128xf32>,
    return
  }
  func.func @transform_0(%arg0: i32) -> (i32, i32, i32, i32) {
    %c0_i32 = arith.constant 0 : i32
    %c0_i32_0 = arith.constant 0 : i32
    %c0_i32_1 = arith.constant 0 : i32
    %c0_i32_2 = arith.constant 0 : i32
    return %arg0, %c0_i32, %c0_i32_0, %c0_i32_1 : i32, i32, i32, i32
  }
  func.func @transform_1(%arg0: i32) -> (i32, i32) {
    %c0_i32 = arith.constant 0 : i32
    %c0_i32_0 = arith.constant 0 : i32
    %c0_i32_1 = arith.constant 0 : i32
    return %c0_i32, %c0_i32_0 : i32, i32
  }
  func.func @transform_2(%arg0: i32) -> (i32, i32) {
    %c0_i32 = arith.constant 0 : i32
    %c0_i32_0 = arith.constant 0 : i32
    %c0_i32_1 = arith.constant 0 : i32
    return %c0_i32, %c0_i32_0 : i32, i32
  }
  func.func @transform_3(%arg0: i32) -> (i32, i32, i32, i32) {
    %c0_i32 = arith.constant 0 : i32
    %c0_i32_0 = arith.constant 0 : i32
    %c0_i32_1 = arith.constant 0 : i32
    %c0_i32_2 = arith.constant 0 : i32
    return %arg0, %c0_i32, %c0_i32_0, %c0_i32_1 : i32, i32, i32, i32
  }
  func.func @transform_4(%arg0: i32) -> (i32, i32) {
    %c0_i32 = arith.constant 0 : i32
    %c0_i32_0 = arith.constant 0 : i32
    %c0_i32_1 = arith.constant 0 : i32
    return %c0_i32, %c0_i32_0 : i32, i32
  }
  func.func @transform_5(%arg0: i32) -> (i32, i32) {
    %c0_i32 = arith.constant 0 : i32
    %c0_i32_0 = arith.constant 0 : i32
    %c0_i32_1 = arith.constant 0 : i32
    return %c0_i32, %c0_i32_0 : i32, i32
  }
  func.func @transform_6(%arg0: i32) -> (i32, i32, i32, i32) {
    %c0_i32 = arith.constant 0 : i32
    %c0_i32_0 = arith.constant 0 : i32
    %c0_i32_1 = arith.constant 0 : i32
    %c0_i32_2 = arith.constant 0 : i32
    return %arg0, %c0_i32, %c0_i32_0, %c0_i32_1 : i32, i32, i32, i32
  }
}

module attributes {stable_mosaic.version = 11 : i64} {
  func.func @_conv2_kernel(%arg0: i32, %arg1: memref<1x16x16x128xf32, #tpu.memory_space<vmem>>, %arg2: memref<1x128xf32, #tpu.memory_space<vmem>>, %arg3: memref<1x128xf32, #tpu.memory_space<vmem>>, %arg4: memref<1152x128xbf16, #tpu.memory_space<vmem>>, %arg5: memref<1x16x16x128xf32, #tpu.memory_space<vmem>>, %arg6: memref<8x128xf32, #tpu.memory_space<vmem>>, %arg7: memref<18x18x128xbf16, #tpu.memory_space<vmem>>) attributes {dimension_semantics = [#tpu.dimension_semantics<arbitrary>], iteration_bounds = array<i64: 2>, scalar_prefetch = 0 : i64, scratch_operands = 1 : i64, tpu.core_type = #tpu.core_type<tc>, window_params = [{transform_indices = @transform_0, window_bounds = array<i64: 1, 16, 16, 128>}, {pipeline_mode = #tpu.pipeline_mode<synchronous>, transform_indices = @transform_1, window_bounds = array<i64: 1, 128>}, {pipeline_mode = #tpu.pipeline_mode<synchronous>, transform_indices = @transform_2, window_bounds = array<i64: 1, 128>}, {pipeline_mode = #tpu.pipeline_mode<synchronous>, transform_indices = @transform_3, window_bounds = array<i64: 1152, 128>}, {transform_indices = @transform_4, window_bounds = array<i64: 1, 16, 16, 128>}, {pipeline_mode = #tpu.pipeline_mode<synchronous>, transform_indices = @transform_5, window_bounds = array<i64: 8, 128>}]} {
    %c0_i32 = arith.constant 0 : i32
    %0 = arith.cmpi eq, %arg0, %c0_i32 : i32
    %1 = arith.extui %0 : i1 to i32
    %c0_i32_0 = arith.constant 0 : i32
    %2 = arith.cmpi ne, %1, %c0_i32_0 : i32
    scf.if %2 {
      %cst_50 = arith.constant 0.000000e+00 : bf16
      %50 = vector.broadcast %cst_50 : bf16 to vector<18x18x128xbf16>
      %c0_51 = arith.constant 0 : index
      %c0_52 = arith.constant 0 : index
      %c0_53 = arith.constant 0 : index
      %51 = vector.load %arg7[%c0_51, %c0_52, %c0_53] : memref<18x18x128xbf16, #tpu.memory_space<vmem>>, vector<18x18x128xbf16>
      tpu.vector_store %arg7[%c0_51, %c0_52, %c0_53], %50 {strides = array<i32>} : memref<18x18x128xbf16, #tpu.memory_space<vmem>>, vector<18x18x128xbf16>,
      %cst_54 = arith.constant 0.000000e+00 : f32
      %52 = vector.broadcast %cst_54 : f32 to vector<8x128xf32>
      %c0_55 = arith.constant 0 : index
      %c0_56 = arith.constant 0 : index
      %53 = vector.load %arg6[%c0_55, %c0_56] : memref<8x128xf32, #tpu.memory_space<vmem>>, vector<8x128xf32>
      tpu.vector_store %arg6[%c0_55, %c0_56], %52 {strides = array<i32>} : memref<8x128xf32, #tpu.memory_space<vmem>>, vector<8x128xf32>,
    } else {
    }
    %c0 = arith.constant 0 : index
    %c0_1 = arith.constant 0 : index
    %c0_2 = arith.constant 0 : index
    %c0_3 = arith.constant 0 : index
    %3 = vector.load %arg1[%c0, %c0_1, %c0_2, %c0_3] : memref<1x16x16x128xf32, #tpu.memory_space<vmem>>, vector<1x16x16x128xf32>
    %c0_4 = arith.constant 0 : index
    %c0_5 = arith.constant 0 : index
    %4 = vector.load %arg2[%c0_4, %c0_5] : memref<1x128xf32, #tpu.memory_space<vmem>>, vector<1x128xf32>
    %5 = vector.shape_cast %4 : vector<1x128xf32> to vector<1x1x1x128xf32>
    %6 = vector.broadcast %5 : vector<1x1x1x128xf32> to vector<1x16x16x128xf32>
    %7 = arith.mulf %3, %6 : vector<1x16x16x128xf32>
    %c0_6 = arith.constant 0 : index
    %c0_7 = arith.constant 0 : index
    %8 = vector.load %arg3[%c0_6, %c0_7] : memref<1x128xf32, #tpu.memory_space<vmem>>, vector<1x128xf32>
    %9 = vector.shape_cast %8 : vector<1x128xf32> to vector<1x1x1x128xf32>
    %10 = vector.broadcast %9 : vector<1x1x1x128xf32> to vector<1x16x16x128xf32>
    %11 = arith.addf %7, %10 : vector<1x16x16x128xf32>
    %cst = arith.constant 0.000000e+00 : f32
    %12 = vector.broadcast %cst : f32 to vector<1x16x16x128xf32>
    %13 = arith.maximumf %11, %12 : vector<1x16x16x128xf32>
    %14 = vector.shape_cast %13 : vector<1x16x16x128xf32> to vector<16x16x128xf32>
    %15 = arith.truncf %14 : vector<16x16x128xf32> to vector<16x16x128xbf16>
    %c1 = arith.constant 1 : index
    %c1_8 = arith.constant 1 : index
    %c0_9 = arith.constant 0 : index
    %16 = vector.load %arg7[%c1, %c1_8, %c0_9] : memref<18x18x128xbf16, #tpu.memory_space<vmem>>, vector<16x16x128xbf16>
    tpu.vector_store %arg7[%c1, %c1_8, %c0_9], %15 {strides = array<i32>} : memref<18x18x128xbf16, #tpu.memory_space<vmem>>, vector<16x16x128xbf16>,
    %c0_10 = arith.constant 0 : index
    %c0_11 = arith.constant 0 : index
    %c0_12 = arith.constant 0 : index
    %17 = vector.load %arg7[%c0_10, %c0_11, %c0_12] : memref<18x18x128xbf16, #tpu.memory_space<vmem>>, vector<16x16x128xbf16>
    %18 = vector.shape_cast %17 : vector<16x16x128xbf16> to vector<256x128xbf16>
    %c0_13 = arith.constant 0 : index
    %c1_14 = arith.constant 1 : index
    %c0_15 = arith.constant 0 : index
    %19 = vector.load %arg7[%c0_13, %c1_14, %c0_15] : memref<18x18x128xbf16, #tpu.memory_space<vmem>>, vector<16x16x128xbf16>
    %20 = vector.shape_cast %19 : vector<16x16x128xbf16> to vector<256x128xbf16>
    %c0_16 = arith.constant 0 : index
    %c2 = arith.constant 2 : index
    %c0_17 = arith.constant 0 : index
    %21 = vector.load %arg7[%c0_16, %c2, %c0_17] : memref<18x18x128xbf16, #tpu.memory_space<vmem>>, vector<16x16x128xbf16>
    %22 = vector.shape_cast %21 : vector<16x16x128xbf16> to vector<256x128xbf16>
    %c1_18 = arith.constant 1 : index
    %c0_19 = arith.constant 0 : index
    %c0_20 = arith.constant 0 : index
    %23 = vector.load %arg7[%c1_18, %c0_19, %c0_20] : memref<18x18x128xbf16, #tpu.memory_space<vmem>>, vector<16x16x128xbf16>
    %24 = vector.shape_cast %23 : vector<16x16x128xbf16> to vector<256x128xbf16>
    %c1_21 = arith.constant 1 : index
    %c1_22 = arith.constant 1 : index
    %c0_23 = arith.constant 0 : index
    %25 = vector.load %arg7[%c1_21, %c1_22, %c0_23] : memref<18x18x128xbf16, #tpu.memory_space<vmem>>, vector<16x16x128xbf16>
    %26 = vector.shape_cast %25 : vector<16x16x128xbf16> to vector<256x128xbf16>
    %c1_24 = arith.constant 1 : index
    %c2_25 = arith.constant 2 : index
    %c0_26 = arith.constant 0 : index
    %27 = vector.load %arg7[%c1_24, %c2_25, %c0_26] : memref<18x18x128xbf16, #tpu.memory_space<vmem>>, vector<16x16x128xbf16>
    %28 = vector.shape_cast %27 : vector<16x16x128xbf16> to vector<256x128xbf16>
    %c2_27 = arith.constant 2 : index
    %c0_28 = arith.constant 0 : index
    %c0_29 = arith.constant 0 : index
    %29 = vector.load %arg7[%c2_27, %c0_28, %c0_29] : memref<18x18x128xbf16, #tpu.memory_space<vmem>>, vector<16x16x128xbf16>
    %30 = vector.shape_cast %29 : vector<16x16x128xbf16> to vector<256x128xbf16>
    %c2_30 = arith.constant 2 : index
    %c1_31 = arith.constant 1 : index
    %c0_32 = arith.constant 0 : index
    %31 = vector.load %arg7[%c2_30, %c1_31, %c0_32] : memref<18x18x128xbf16, #tpu.memory_space<vmem>>, vector<16x16x128xbf16>
    %32 = vector.shape_cast %31 : vector<16x16x128xbf16> to vector<256x128xbf16>
    %c2_33 = arith.constant 2 : index
    %c2_34 = arith.constant 2 : index
    %c0_35 = arith.constant 0 : index
    %33 = vector.load %arg7[%c2_33, %c2_34, %c0_35] : memref<18x18x128xbf16, #tpu.memory_space<vmem>>, vector<16x16x128xbf16>
    %34 = vector.shape_cast %33 : vector<16x16x128xbf16> to vector<256x128xbf16>
    %35 = tpu.concatenate %18, %20, %22, %24, %26, %28, %30, %32, %34 in 1 : vector<256x128xbf16>, vector<256x128xbf16>, vector<256x128xbf16>, vector<256x128xbf16>, vector<256x128xbf16>, vector<256x128xbf16>, vector<256x128xbf16>, vector<256x128xbf16>, vector<256x128xbf16> -> vector<256x1152xbf16>
    %c0_36 = arith.constant 0 : index
    %c0_37 = arith.constant 0 : index
    %36 = vector.load %arg4[%c0_36, %c0_37] : memref<1152x128xbf16, #tpu.memory_space<vmem>>, vector<1152x128xbf16>
    %cst_38 = arith.constant dense<0.000000e+00> : vector<256x128xf32>
    %37 = tpu.matmul %35, %36, %cst_38 {dimension_numbers = #tpu.dot_dimension_numbers<[1], [0], [0], [1], [0, 0, 1, 1], [], []>} : vector<256x1152xbf16>, vector<1152x128xbf16>, vector<256x128xf32> -> vector<256x128xf32>
    %38 = vector.shape_cast %37 : vector<256x128xf32> to vector<1x16x16x128xf32>
    %c0_39 = arith.constant 0 : index
    %c0_40 = arith.constant 0 : index
    %c0_41 = arith.constant 0 : index
    %c0_42 = arith.constant 0 : index
    %39 = vector.load %arg5[%c0_39, %c0_40, %c0_41, %c0_42] : memref<1x16x16x128xf32, #tpu.memory_space<vmem>>, vector<1x16x16x128xf32>
    tpu.vector_store %arg5[%c0_39, %c0_40, %c0_41, %c0_42], %38 {strides = array<i32>} : memref<1x16x16x128xf32, #tpu.memory_space<vmem>>, vector<1x16x16x128xf32>,
    %cst_43 = arith.constant dense<0.000000e+00> : vector<128xf32>
    %40 = vector.multi_reduction <add>, %37, %cst_43 [0] : vector<256x128xf32> to vector<128xf32>
    %41 = vector.shape_cast %40 : vector<128xf32> to vector<1x128xf32>
    %42 = arith.mulf %37, %37 : vector<256x128xf32>
    %cst_44 = arith.constant dense<0.000000e+00> : vector<128xf32>
    %43 = vector.multi_reduction <add>, %42, %cst_44 [0] : vector<256x128xf32> to vector<128xf32>
    %44 = vector.shape_cast %43 : vector<128xf32> to vector<1x128xf32>
    %cst_45 = arith.constant 0.000000e+00 : f32
    %45 = vector.broadcast %cst_45 : f32 to vector<6x128xf32>
    %46 = tpu.concatenate %41, %44, %45 in 0 : vector<1x128xf32>, vector<1x128xf32>, vector<6x128xf32> -> vector<8x128xf32>
    %c0_46 = arith.constant 0 : index
    %c0_47 = arith.constant 0 : index
    %47 = vector.load %arg6[%c0_46, %c0_47] : memref<8x128xf32, #tpu.memory_space<vmem>>, vector<8x128xf32>
    %48 = arith.addf %47, %46 : vector<8x128xf32>
    %c0_48 = arith.constant 0 : index
    %c0_49 = arith.constant 0 : index
    %49 = vector.load %arg6[%c0_48, %c0_49] : memref<8x128xf32, #tpu.memory_space<vmem>>, vector<8x128xf32>
    tpu.vector_store %arg6[%c0_48, %c0_49], %48 {strides = array<i32>} : memref<8x128xf32, #tpu.memory_space<vmem>>, vector<8x128xf32>,
    return
  }
  func.func @transform_0(%arg0: i32) -> (i32, i32, i32, i32) {
    %c0_i32 = arith.constant 0 : i32
    %c0_i32_0 = arith.constant 0 : i32
    %c0_i32_1 = arith.constant 0 : i32
    %c0_i32_2 = arith.constant 0 : i32
    return %arg0, %c0_i32, %c0_i32_0, %c0_i32_1 : i32, i32, i32, i32
  }
  func.func @transform_1(%arg0: i32) -> (i32, i32) {
    %c0_i32 = arith.constant 0 : i32
    %c0_i32_0 = arith.constant 0 : i32
    %c0_i32_1 = arith.constant 0 : i32
    return %c0_i32, %c0_i32_0 : i32, i32
  }
  func.func @transform_2(%arg0: i32) -> (i32, i32) {
    %c0_i32 = arith.constant 0 : i32
    %c0_i32_0 = arith.constant 0 : i32
    %c0_i32_1 = arith.constant 0 : i32
    return %c0_i32, %c0_i32_0 : i32, i32
  }
  func.func @transform_3(%arg0: i32) -> (i32, i32) {
    %c0_i32 = arith.constant 0 : i32
    %c0_i32_0 = arith.constant 0 : i32
    %c0_i32_1 = arith.constant 0 : i32
    return %c0_i32, %c0_i32_0 : i32, i32
  }
  func.func @transform_4(%arg0: i32) -> (i32, i32, i32, i32) {
    %c0_i32 = arith.constant 0 : i32
    %c0_i32_0 = arith.constant 0 : i32
    %c0_i32_1 = arith.constant 0 : i32
    %c0_i32_2 = arith.constant 0 : i32
    return %arg0, %c0_i32, %c0_i32_0, %c0_i32_1 : i32, i32, i32, i32
  }
  func.func @transform_5(%arg0: i32) -> (i32, i32) {
    %c0_i32 = arith.constant 0 : i32
    %c0_i32_0 = arith.constant 0 : i32
    %c0_i32_1 = arith.constant 0 : i32
    return %c0_i32, %c0_i32_0 : i32, i32
  }
}

</mosaic_0001>

<llo_original>
// kernel: basic_block_forward.5
$region0: #{basic_block_forward.5}
  #allocation0 [shape = 'u32[]', space=smem, size = 0x4, offset = 0x4, fixed_abs, tag = 'smem constant byte address 0x4 - core index']
  #allocation1 [shape = 'u32[144,128]{1,0:T(1,128)}', space=vmem, size = 0x12000, scoped, tag = 'internal scratch']
  %s0 = inlined_call_operand.vmem [shape: f32[2,16,16,128], index: 0, kind: input, shape index: {}]
  %s1 = inlined_call_operand.vmem [shape: f32[1,128], index: 1, kind: input, shape index: {}]
  %s2 = inlined_call_operand.vmem [shape: f32[1,128], index: 2, kind: input, shape index: {}]
  %s3 = inlined_call_operand.vmem [shape: f32[2,16,16,128], index: 3, kind: input, shape index: {}]
  %s4 = inlined_call_operand.vmem [shape: f32[1,128], index: 4, kind: input, shape index: {}]
  %s5 = inlined_call_operand.vmem [shape: f32[1,128], index: 5, kind: input, shape index: {}]
  %s6 = inlined_call_operand.vmem [shape: f32[2,16,16,128], index: 6, kind: output, shape index: {}]
  %s7 = sld [smem:[#allocation0]]
  $region57: #{basic_block_forward.5} parent=0
    _
  %s9 = ssub.s32 1, %s7
  %s10 = scalar_select 0, %s9, %s7
  loop: start=0, step=1, limit=4
  $region2: #{basic_block_forward.5} parent=0 // loop_pre_header
    _
  $region3: #{basic_block_forward.5} parent=0 // loop_header
    %s12 = sphi 0, %s16
    %p13 = scmp.ge.s32.totalorder %s12, 4
    %s22 = sphi 0, %s24
    %s25 = sphi 0, %s22
    %s26 = sphi 0, %s25
    %s42 = sphi 0, %s26
    %s46 = sphi 0, %s46
    %s48 = sphi 0, %s46
    %s49 = sphi 0, %s48
    %s63 = sphi 0, %s49
    %s67 = sphi 0, %s67
    %s69 = sphi 0, %s67
    %s70 = sphi 0, %s69
    %s84 = sphi 0, %s70
    %s90 = sphi 0, %s92
    %s93 = sphi 0, %s90
    %s94 = sphi 0, %s93
    %s110 = sphi 0, %s94
    %s114 = sphi 0, %s114
    %s116 = sphi 0, %s114
    %s117 = sphi 0, %s116
    %s131 = sphi 0, %s117
    %s135 = sphi 0, %s135
    %s137 = sphi 0, %s135
    %s138 = sphi 0, %s137
    %s152 = sphi 0, %s138
    %s158 = sphi 0, %s160
    %s161 = sphi 0, %s158
    %s162 = sphi 0, %s161
    %s178 = sphi 0, %s162
  $region4: #{basic_block_forward.5} parent=0 // loop_header_branch
    %15 = sbr.rel (%p13) target = $region8
  $region5: #{basic_block_forward.5} parent=0 // loop_body
    %s17 = ssub.s32 %s12, 1
    %s18 = ssub.s32 %s12, 2
    %s19 = sadd.s32 %s12, 1
    %s20 = ssub.s32 %s12, %s19
    %p21 = scmp.eq.s32.totalorder %s20, 0
    %s23 = sadd.s32 %s22, 1
    %s24 = scalar_select %p21, %s22, %s23
    %p27 = pneg %p21
    %p28 = scmp.eq.s32.totalorder %s12, 1
    %p29 = por %p27, %p28
    %p30 = scmp.ne.s32.totalorder %s22, %s25
    %p31 = scmp.eq.s32.totalorder %s12, 0
    %p32 = por %p30, %p31
    %p33 = scmp.ne.s32.totalorder %s22, %s25
    %p34 = scmp.eq.s32.totalorder %s17, 1
    %p35 = por %p33, %p34
    %p36 = scmp.ne.s32.totalorder %s25, %s26
    %p37 = scmp.eq.s32.totalorder %s17, 0
    %p38 = por %p36, %p37
    %p39 = scmp.ne.s32.totalorder %s25, %s26
    %p40 = scmp.eq.s32.totalorder %s18, 1
    %p41 = por %p39, %p40
    %p43 = scmp.ne.s32.totalorder %s26, %s42
    %p44 = scmp.eq.s32.totalorder %s18, 0
    %p45 = por %p43, %p44
    %s47 = sadd.s32 %s46, 1
    %p50 = scmp.eq.s32.totalorder %s12, 1
    %p51 = scmp.ne.s32.totalorder %s46, %s48
    %p52 = scmp.eq.s32.totalorder %s12, 0
    %p53 = por %p51, %p52
    %p54 = scmp.ne.s32.totalorder %s46, %s48
    %p55 = scmp.eq.s32.totalorder %s17, 1
    %p56 = por %p54, %p55
    %p57 = scmp.ne.s32.totalorder %s48, %s49
    %p58 = scmp.eq.s32.totalorder %s17, 0
    %p59 = por %p57, %p58
    %p60 = scmp.ne.s32.totalorder %s48, %s49
    %p61 = scmp.eq.s32.totalorder %s18, 1
    %p62 = por %p60, %p61
    %p64 = scmp.ne.s32.totalorder %s49, %s63
    %p65 = scmp.eq.s32.totalorder %s18, 0
    %p66 = por %p64, %p65
    %s68 = sadd.s32 %s67, 1
    %p71 = scmp.eq.s32.totalorder %s12, 1
    %p72 = scmp.ne.s32.totalorder %s67, %s69
    %p73 = scmp.eq.s32.totalorder %s12, 0
    %p74 = por %p72, %p73
    %p75 = scmp.ne.s32.totalorder %s67, %s69
    %p76 = scmp.eq.s32.totalorder %s17, 1
    %p77 = por %p75, %p76
    %p78 = scmp.ne.s32.totalorder %s69, %s70
    %p79 = scmp.eq.s32.totalorder %s17, 0
    %p80 = por %p78, %p79
    %p81 = scmp.ne.s32.totalorder %s69, %s70
    %p82 = scmp.eq.s32.totalorder %s18, 1
    %p83 = por %p81, %p82
    %p85 = scmp.ne.s32.totalorder %s70, %s84
    %p86 = scmp.eq.s32.totalorder %s18, 0
    %p87 = por %p85, %p86
    %s88 = ssub.s32 %s12, %s19
    %p89 = scmp.eq.s32.totalorder %s88, 0
    %s91 = sadd.s32 %s90, 1
    %s92 = scalar_select %p89, %s90, %s91
    %p95 = pneg %p89
    %p96 = scmp.eq.s32.totalorder %s12, 1
    %p97 = por %p95, %p96
    %p98 = scmp.ne.s32.totalorder %s90, %s93
    %p99 = scmp.eq.s32.totalorder %s12, 0
    %p100 = por %p98, %p99
    %p101 = scmp.ne.s32.totalorder %s90, %s93
    %p102 = scmp.eq.s32.totalorder %s17, 1
    %p103 = por %p101, %p102
    %p104 = scmp.ne.s32.totalorder %s93, %s94
    %p105 = scmp.eq.s32.totalorder %s17, 0
    %p106 = por %p104, %p105
    %p107 = scmp.ne.s32.totalorder %s93, %s94
    %p108 = scmp.eq.s32.totalorder %s18, 1
    %p109 = por %p107, %p108
    %p111 = scmp.ne.s32.totalorder %s94, %s110
    %p112 = scmp.eq.s32.totalorder %s18, 0
    %p113 = por %p111, %p112
    %s115 = sadd.s32 %s114, 1
    %p118 = scmp.eq.s32.totalorder %s12, 1
    %p119 = scmp.ne.s32.totalorder %s114, %s116
    %p120 = scmp.eq.s32.totalorder %s12, 0
    %p121 = por %p119, %p120
    %p122 = scmp.ne.s32.totalorder %s114, %s116
    %p123 = scmp.eq.s32.totalorder %s17, 1
    %p124 = por %p122, %p123
    %p125 = scmp.ne.s32.totalorder %s116, %s117
    %p126 = scmp.eq.s32.totalorder %s17, 0
    %p127 = por %p125, %p126
    %p128 = scmp.ne.s32.totalorder %s116, %s117
    %p129 = scmp.eq.s32.totalorder %s18, 1
    %p130 = por %p128, %p129
    %p132 = scmp.ne.s32.totalorder %s117, %s131
    %p133 = scmp.eq.s32.totalorder %s18, 0
    %p134 = por %p132, %p133
    %s136 = sadd.s32 %s135, 1
    %p139 = scmp.eq.s32.totalorder %s12, 1
    %p140 = scmp.ne.s32.totalorder %s135, %s137
    %p141 = scmp.eq.s32.totalorder %s12, 0
    %p142 = por %p140, %p141
    %p143 = scmp.ne.s32.totalorder %s135, %s137
    %p144 = scmp.eq.s32.totalorder %s17, 1
    %p145 = por %p143, %p144
    %p146 = scmp.ne.s32.totalorder %s137, %s138
    %p147 = scmp.eq.s32.totalorder %s17, 0
    %p148 = por %p146, %p147
    %p149 = scmp.ne.s32.totalorder %s137, %s138
    %p150 = scmp.eq.s32.totalorder %s18, 1
    %p151 = por %p149, %p150
    %p153 = scmp.ne.s32.totalorder %s138, %s152
    %p154 = scmp.eq.s32.totalorder %s18, 0
    %p155 = por %p153, %p154
    %s156 = ssub.s32 %s12, %s19
    %p157 = scmp.eq.s32.totalorder %s156, 0
    %s159 = sadd.s32 %s158, 1
    %s160 = scalar_select %p157, %s158, %s159
    %p163 = pneg %p157
    %p164 = scmp.eq.s32.totalorder %s12, 1
    %p165 = por %p163, %p164
    %p166 = scmp.ne.s32.totalorder %s158, %s161
    %p167 = scmp.eq.s32.totalorder %s12, 0
    %p168 = por %p166, %p167
    %p169 = scmp.ne.s32.totalorder %s158, %s161
    %p170 = scmp.eq.s32.totalorder %s17, 1
    %p171 = por %p169, %p170
    %p172 = scmp.ne.s32.totalorder %s161, %s162
    %p173 = scmp.eq.s32.totalorder %s17, 0
    %p174 = por %p172, %p173
    %p175 = scmp.ne.s32.totalorder %s161, %s162
    %p176 = scmp.eq.s32.totalorder %s18, 1
    %p177 = por %p175, %p176
    %p179 = scmp.ne.s32.totalorder %s162, %s178
    %p180 = scmp.eq.s32.totalorder %s18, 0
    %p181 = por %p179, %p180
    %p182 = scmp.le.s32.totalorder 1, %s12
    %p183 = scmp.lt.s32.totalorder %s12, 3
    %p184 = pnand %p182, %p183
    %p185 = pneg %p184
    // Predicated region
    $region9: #{basic_block_forward.5} parent=5 // pred_check
      _
    $region10: #{basic_block_forward.5} parent=5 // pred_check_branch
      %187 = sbr.rel (%p184) target = $region12
    $region11: #{basic_block_forward.5} parent=5 // pred_region
      %s188 = ssub.s32 %s12, 1
      // Predicated region
      $region13: #{basic_block_forward.5} parent=11 // pred_check
        %p189 = pneg %p59
      $region14: #{basic_block_forward.5} parent=11 // pred_check_branch
        %191 = sbr.rel (%p189) target = $region16
      $region15: #{basic_block_forward.5} parent=11 // pred_region
        _
      $region16: #{basic_block_forward.5} parent=11 // pred_fallthru
        _
      // Predicated region
      $region17: #{basic_block_forward.5} parent=11 // pred_check
        %p192 = pneg %p80
      $region18: #{basic_block_forward.5} parent=11 // pred_check_branch
        %194 = sbr.rel (%p192) target = $region20
      $region19: #{basic_block_forward.5} parent=11 // pred_region
        _
      $region20: #{basic_block_forward.5} parent=11 // pred_fallthru
        _
      // Predicated region
      $region21: #{basic_block_forward.5} parent=11 // pred_check
        %p195 = pneg %p127
      $region22: #{basic_block_forward.5} parent=11 // pred_check_branch
        %197 = sbr.rel (%p195) target = $region24
      $region23: #{basic_block_forward.5} parent=11 // pred_region
        _
      $region24: #{basic_block_forward.5} parent=11 // pred_fallthru
        _
      // Predicated region
      $region25: #{basic_block_forward.5} parent=11 // pred_check
        %p198 = pneg %p148
      $region26: #{basic_block_forward.5} parent=11 // pred_check_branch
        %200 = sbr.rel (%p198) target = $region28
      $region27: #{basic_block_forward.5} parent=11 // pred_region
        _
      $region28: #{basic_block_forward.5} parent=11 // pred_fallthru
        _
    $region12: #{basic_block_forward.5} parent=5 // pred_fallthru
      _
    %p201 = scmp.lt.s32.totalorder %s12, 2
    // Predicated region
    $region29: #{basic_block_forward.5} parent=5 // pred_check
      %p202 = pneg %p201
    $region30: #{basic_block_forward.5} parent=5 // pred_check_branch
      %204 = sbr.rel (%p202) target = $region32
    $region31: #{basic_block_forward.5} parent=5 // pred_region
      // Predicated region
      $region33: #{basic_block_forward.5} parent=31 // pred_check
        %p205 = pneg %p32
      $region34: #{basic_block_forward.5} parent=31 // pred_check_branch
        %207 = sbr.rel (%p205) target = $region36
      $region35: #{basic_block_forward.5} parent=31 // pred_region
        %p208 = scmp.lt.s32.totalorder %s12, 1
        %s209 = scalar_select %p208, %s12, 1
        %s210 = smul.addr %s209, 32
        %s211 = smul.addr %s210, 8
        %s212 = scalar_lea.vmem %s0, %s211
      $region36: #{basic_block_forward.5} parent=31 // pred_fallthru
        _
      // Predicated region
      $region37: #{basic_block_forward.5} parent=31 // pred_check
        %p213 = pneg %p100
      $region38: #{basic_block_forward.5} parent=31 // pred_check_branch
        %215 = sbr.rel (%p213) target = $region40
      $region39: #{basic_block_forward.5} parent=31 // pred_region
        %p216 = scmp.lt.s32.totalorder %s12, 1
        %s217 = scalar_select %p216, %s12, 1
        %s218 = smul.addr %s217, 32
        %s219 = smul.addr %s218, 8
        %s220 = scalar_lea.vmem %s3, %s219
      $region40: #{basic_block_forward.5} parent=31 // pred_fallthru
        _
    $region32: #{basic_block_forward.5} parent=5 // pred_fallthru
      _
    %p221 = scmp.le.s32.totalorder 1, %s12
    %p222 = scmp.lt.s32.totalorder %s12, 3
    %p223 = pnand %p221, %p222
    %p224 = pneg %p223
    // Predicated region
    $region41: #{basic_block_forward.5} parent=5 // pred_check
      _
    $region42: #{basic_block_forward.5} parent=5 // pred_check_branch
      %226 = sbr.rel (%p223) target = $region44
    $region43: #{basic_block_forward.5} parent=5 // pred_region
      %s227 = ssub.s32 %s12, 1
      %p228 = scmp.lt.s32.totalorder %s17, 1
      %s229 = scalar_select %p228, %s17, 1
      %s230 = smul.addr %s229, 32
      %s231 = smul.addr %s230, 8
      %s232 = scalar_lea.vmem %s0, %s231
      %p233 = pneg %p38
      %p234 = pneg %p35
      %p235 = pneg %p59
      %p236 = pneg %p56
      %p237 = pneg %p80
      %p238 = pneg %p77
      %p239 = scmp.lt.s32.totalorder %s17, 1
      %s240 = scalar_select %p239, %s17, 1
      %s241 = smul.addr %s240, 32
      %s242 = smul.addr %s241, 8
      %s243 = scalar_lea.vmem %s3, %s242
      %p244 = pneg %p106
      %p245 = pneg %p103
      %p246 = pneg %p127
      %p247 = pneg %p124
      %p248 = pneg %p148
      %p249 = pneg %p145
      %p250 = pneg %p174
      %p251 = pneg %p171
      %p252 = scmp.lt.s32.totalorder %s17, 1
      %s253 = scalar_select %p252, %s17, 1
      %s254 = smul.addr %s253, 32
      %s255 = smul.addr %s254, 8
      %s256 = scalar_lea.vmem %s6, %s255
      %p257 = scmp.lt.s32.totalorder %s17, 1
      %s258 = scalar_select %p257, %s17, 1
      %s259 = smul.addr %s258, 32
      %s260 = smul.addr %s259, 8
      %s261 = scalar_lea.vmem %s0, %s260
      %p262 = scmp.lt.s32.totalorder %s17, 1
      %s263 = scalar_select %p262, %s17, 1
      %s264 = smul.addr %s263, 32
      %s265 = smul.addr %s264, 8
      %s266 = scalar_lea.vmem %s3, %s265
      %p267 = scmp.lt.s32.totalorder %s17, 1
      %s268 = scalar_select %p267, %s17, 1
      %s269 = smul.addr %s268, 32
      %s270 = smul.addr %s269, 8
      %s271 = scalar_lea.vmem %s6, %s270
      %v272 = vld [vmem:[%s261] sm:$0xff]
      %v273 = vld [vmem:[%s261 + $0x8] sm:$0xff]
      %v274 = vld [vmem:[%s261 + $0x10] sm:$0xff]
      %v275 = vld [vmem:[%s261 + $0x18] sm:$0xff]
      %v276 = vld [vmem:[%s261 + $0x20] sm:$0xff]
      %v277 = vld [vmem:[%s261 + $0x28] sm:$0xff]
      %v278 = vld [vmem:[%s261 + $0x30] sm:$0xff]
      %v279 = vld [vmem:[%s261 + $0x38] sm:$0xff]
      %v280 = vld [vmem:[%s261 + $0x40] sm:$0xff]
      %v281 = vld [vmem:[%s261 + $0x48] sm:$0xff]
      %v282 = vld [vmem:[%s261 + $0x50] sm:$0xff]
      %v283 = vld [vmem:[%s261 + $0x58] sm:$0xff]
      %v284 = vld [vmem:[%s261 + $0x60] sm:$0xff]
      %v285 = vld [vmem:[%s261 + $0x68] sm:$0xff]
      %v286 = vld [vmem:[%s261 + $0x70] sm:$0xff]
      %v287 = vld [vmem:[%s261 + $0x78] sm:$0xff]
      %v288 = vld [vmem:[%s261 + $0x80] sm:$0xff]
      %v289 = vld [vmem:[%s261 + $0x88] sm:$0xff]
      %v290 = vld [vmem:[%s261 + $0x90] sm:$0xff]
      %v291 = vld [vmem:[%s261 + $0x98] sm:$0xff]
      %v292 = vld [vmem:[%s261 + $0xa0] sm:$0xff]
      %v293 = vld [vmem:[%s261 + $0xa8] sm:$0xff]
      %v294 = vld [vmem:[%s261 + $0xb0] sm:$0xff]
      %v295 = vld [vmem:[%s261 + $0xb8] sm:$0xff]
      %v296 = vld [vmem:[%s261 + $0xc0] sm:$0xff]
      %v297 = vld [vmem:[%s261 + $0xc8] sm:$0xff]
      %v298 = vld [vmem:[%s261 + $0xd0] sm:$0xff]
      %v299 = vld [vmem:[%s261 + $0xd8] sm:$0xff]
      %v300 = vld [vmem:[%s261 + $0xe0] sm:$0xff]
      %v301 = vld [vmem:[%s261 + $0xe8] sm:$0xff]
      %v302 = vld [vmem:[%s261 + $0xf0] sm:$0xff]
      %v303 = vld [vmem:[%s261 + $0xf8] sm:$0xff]
      %v304 = vld [vmem:[%s1] sm:$0x1]
      %v306 = vlaneseq
      %v307 = vshrl.u32 %v306, 7
      %v308 = vsub.s32 0, %v307
      %v309 = vrot.slane %v304, %v308
      %v311 = vmul.f32 %v272, %v309
      %v312 = vmul.f32 %v273, %v309
      %v313 = vmul.f32 %v274, %v309
      %v314 = vmul.f32 %v275, %v309
      %v315 = vmul.f32 %v276, %v309
      %v316 = vmul.f32 %v277, %v309
      %v317 = vmul.f32 %v278, %v309
      %v318 = vmul.f32 %v279, %v309
      %v319 = vmul.f32 %v280, %v309
      %v320 = vmul.f32 %v281, %v309
      %v321 = vmul.f32 %v282, %v309
      %v322 = vmul.f32 %v283, %v309
      %v323 = vmul.f32 %v284, %v309
      %v324 = vmul.f32 %v285, %v309
      %v325 = vmul.f32 %v286, %v309
      %v326 = vmul.f32 %v287, %v309
      %v327 = vmul.f32 %v288, %v309
      %v328 = vmul.f32 %v289, %v309
      %v329 = vmul.f32 %v290, %v309
      %v330 = vmul.f32 %v291, %v309
      %v331 = vmul.f32 %v292, %v309
      %v332 = vmul.f32 %v293, %v309
      %v333 = vmul.f32 %v294, %v309
      %v334 = vmul.f32 %v295, %v309
      %v335 = vmul.f32 %v296, %v309
      %v336 = vmul.f32 %v297, %v309
      %v337 = vmul.f32 %v298, %v309
      %v338 = vmul.f32 %v299, %v309
      %v339 = vmul.f32 %v300, %v309
      %v340 = vmul.f32 %v301, %v309
      %v341 = vmul.f32 %v302, %v309
      %v342 = vmul.f32 %v303, %v309
      %v343 = vld [vmem:[%s2] sm:$0x1]
      %v345 = vlaneseq
      %v346 = vshrl.u32 %v345, 7
      %v347 = vsub.s32 0, %v346
      %v348 = vrot.slane %v343, %v347
      %v350 = vadd.f32 %v311, %v348
      %v351 = vadd.f32 %v312, %v348
      %v352 = vadd.f32 %v313, %v348
      %v353 = vadd.f32 %v314, %v348
      %v354 = vadd.f32 %v315, %v348
      %v355 = vadd.f32 %v316, %v348
      %v356 = vadd.f32 %v317, %v348
      %v357 = vadd.f32 %v318, %v348
      %v358 = vadd.f32 %v319, %v348
      %v359 = vadd.f32 %v320, %v348
      %v360 = vadd.f32 %v321, %v348
      %v361 = vadd.f32 %v322, %v348
      %v362 = vadd.f32 %v323, %v348
      %v363 = vadd.f32 %v324, %v348
      %v364 = vadd.f32 %v325, %v348
      %v365 = vadd.f32 %v326, %v348
      %v366 = vadd.f32 %v327, %v348
      %v367 = vadd.f32 %v328, %v348
      %v368 = vadd.f32 %v329, %v348
      %v369 = vadd.f32 %v330, %v348
      %v370 = vadd.f32 %v331, %v348
      %v371 = vadd.f32 %v332, %v348
      %v372 = vadd.f32 %v333, %v348
      %v373 = vadd.f32 %v334, %v348
      %v374 = vadd.f32 %v335, %v348
      %v375 = vadd.f32 %v336, %v348
      %v376 = vadd.f32 %v337, %v348
      %v377 = vadd.f32 %v338, %v348
      %v378 = vadd.f32 %v339, %v348
      %v379 = vadd.f32 %v340, %v348
      %v380 = vadd.f32 %v341, %v348
      %v381 = vadd.f32 %v342, %v348
      %v382 = vld [vmem:[%s266] sm:$0xff]
      %v383 = vld [vmem:[%s266 + $0x8] sm:$0xff]
      %v384 = vld [vmem:[%s266 + $0x10] sm:$0xff]
      %v385 = vld [vmem:[%s266 + $0x18] sm:$0xff]
      %v386 = vld [vmem:[%s266 + $0x20] sm:$0xff]
      %v387 = vld [vmem:[%s266 + $0x28] sm:$0xff]
      %v388 = vld [vmem:[%s266 + $0x30] sm:$0xff]
      %v389 = vld [vmem:[%s266 + $0x38] sm:$0xff]
      %v390 = vld [vmem:[%s266 + $0x40] sm:$0xff]
      %v391 = vld [vmem:[%s266 + $0x48] sm:$0xff]
      %v392 = vld [vmem:[%s266 + $0x50] sm:$0xff]
      %v393 = vld [vmem:[%s266 + $0x58] sm:$0xff]
      %v394 = vld [vmem:[%s266 + $0x60] sm:$0xff]
      %v395 = vld [vmem:[%s266 + $0x68] sm:$0xff]
      %v396 = vld [vmem:[%s266 + $0x70] sm:$0xff]
      %v397 = vld [vmem:[%s266 + $0x78] sm:$0xff]
      %v398 = vld [vmem:[%s266 + $0x80] sm:$0xff]
      %v399 = vld [vmem:[%s266 + $0x88] sm:$0xff]
      %v400 = vld [vmem:[%s266 + $0x90] sm:$0xff]
      %v401 = vld [vmem:[%s266 + $0x98] sm:$0xff]
      %v402 = vld [vmem:[%s266 + $0xa0] sm:$0xff]
      %v403 = vld [vmem:[%s266 + $0xa8] sm:$0xff]
      %v404 = vld [vmem:[%s266 + $0xb0] sm:$0xff]
      %v405 = vld [vmem:[%s266 + $0xb8] sm:$0xff]
      %v406 = vld [vmem:[%s266 + $0xc0] sm:$0xff]
      %v407 = vld [vmem:[%s266 + $0xc8] sm:$0xff]
      %v408 = vld [vmem:[%s266 + $0xd0] sm:$0xff]
      %v409 = vld [vmem:[%s266 + $0xd8] sm:$0xff]
      %v410 = vld [vmem:[%s266 + $0xe0] sm:$0xff]
      %v411 = vld [vmem:[%s266 + $0xe8] sm:$0xff]
      %v412 = vld [vmem:[%s266 + $0xf0] sm:$0xff]
      %v413 = vld [vmem:[%s266 + $0xf8] sm:$0xff]
      %v414 = vld [vmem:[%s4] sm:$0x1]
      %v416 = vlaneseq
      %v417 = vshrl.u32 %v416, 7
      %v418 = vsub.s32 0, %v417
      %v419 = vrot.slane %v414, %v418
      %v421 = vmul.f32 %v382, %v419
      %v422 = vmul.f32 %v383, %v419
      %v423 = vmul.f32 %v384, %v419
      %v424 = vmul.f32 %v385, %v419
      %v425 = vmul.f32 %v386, %v419
      %v426 = vmul.f32 %v387, %v419
      %v427 = vmul.f32 %v388, %v419
      %v428 = vmul.f32 %v389, %v419
      %v429 = vmul.f32 %v390, %v419
      %v430 = vmul.f32 %v391, %v419
      %v431 = vmul.f32 %v392, %v419
      %v432 = vmul.f32 %v393, %v419
      %v433 = vmul.f32 %v394, %v419
      %v434 = vmul.f32 %v395, %v419
      %v435 = vmul.f32 %v396, %v419
      %v436 = vmul.f32 %v397, %v419
      %v437 = vmul.f32 %v398, %v419
      %v438 = vmul.f32 %v399, %v419
      %v439 = vmul.f32 %v400, %v419
      %v440 = vmul.f32 %v401, %v419
      %v441 = vmul.f32 %v402, %v419
      %v442 = vmul.f32 %v403, %v419
      %v443 = vmul.f32 %v404, %v419
      %v444 = vmul.f32 %v405, %v419
      %v445 = vmul.f32 %v406, %v419
      %v446 = vmul.f32 %v407, %v419
      %v447 = vmul.f32 %v408, %v419
      %v448 = vmul.f32 %v409, %v419
      %v449 = vmul.f32 %v410, %v419
      %v450 = vmul.f32 %v411, %v419
      %v451 = vmul.f32 %v412, %v419
      %v452 = vmul.f32 %v413, %v419
      %v453 = vld [vmem:[%s5] sm:$0x1]
      %v455 = vlaneseq
      %v456 = vshrl.u32 %v455, 7
      %v457 = vsub.s32 0, %v456
      %v458 = vrot.slane %v453, %v457
      %v460 = vadd.f32 %v421, %v458
      %v461 = vadd.f32 %v422, %v458
      %v462 = vadd.f32 %v423, %v458
      %v463 = vadd.f32 %v424, %v458
      %v464 = vadd.f32 %v425, %v458
      %v465 = vadd.f32 %v426, %v458
      %v466 = vadd.f32 %v427, %v458
      %v467 = vadd.f32 %v428, %v458
      %v468 = vadd.f32 %v429, %v458
      %v469 = vadd.f32 %v430, %v458
      %v470 = vadd.f32 %v431, %v458
      %v471 = vadd.f32 %v432, %v458
      %v472 = vadd.f32 %v433, %v458
      %v473 = vadd.f32 %v434, %v458
      %v474 = vadd.f32 %v435, %v458
      %v475 = vadd.f32 %v436, %v458
      %v476 = vadd.f32 %v437, %v458
      %v477 = vadd.f32 %v438, %v458
      %v478 = vadd.f32 %v439, %v458
      %v479 = vadd.f32 %v440, %v458
      %v480 = vadd.f32 %v441, %v458
      %v481 = vadd.f32 %v442, %v458
      %v482 = vadd.f32 %v443, %v458
      %v483 = vadd.f32 %v444, %v458
      %v484 = vadd.f32 %v445, %v458
      %v485 = vadd.f32 %v446, %v458
      %v486 = vadd.f32 %v447, %v458
      %v487 = vadd.f32 %v448, %v458
      %v488 = vadd.f32 %v449, %v458
      %v489 = vadd.f32 %v450, %v458
      %v490 = vadd.f32 %v451, %v458
      %v491 = vadd.f32 %v452, %v458
      %v492 = vadd.f32 %v350, %v460
      %v493 = vadd.f32 %v351, %v461
      %v494 = vadd.f32 %v352, %v462
      %v495 = vadd.f32 %v353, %v463
      %v496 = vadd.f32 %v354, %v464
      %v497 = vadd.f32 %v355, %v465
      %v498 = vadd.f32 %v356, %v466
      %v499 = vadd.f32 %v357, %v467
      %v500 = vadd.f32 %v358, %v468
      %v501 = vadd.f32 %v359, %v469
      %v502 = vadd.f32 %v360, %v470
      %v503 = vadd.f32 %v361, %v471
      %v504 = vadd.f32 %v362, %v472
      %v505 = vadd.f32 %v363, %v473
      %v506 = vadd.f32 %v364, %v474
      %v507 = vadd.f32 %v365, %v475
      %v508 = vadd.f32 %v366, %v476
      %v509 = vadd.f32 %v367, %v477
      %v510 = vadd.f32 %v368, %v478
      %v511 = vadd.f32 %v369, %v479
      %v512 = vadd.f32 %v370, %v480
      %v513 = vadd.f32 %v371, %v481
      %v514 = vadd.f32 %v372, %v482
      %v515 = vadd.f32 %v373, %v483
      %v516 = vadd.f32 %v374, %v484
      %v517 = vadd.f32 %v375, %v485
      %v518 = vadd.f32 %v376, %v486
      %v519 = vadd.f32 %v377, %v487
      %v520 = vadd.f32 %v378, %v488
      %v521 = vadd.f32 %v379, %v489
      %v522 = vadd.f32 %v380, %v490
      %v523 = vadd.f32 %v381, %v491
      %v524 = vmax.f32 %v492, 0.0
      %v525 = vmax.f32 %v493, 0.0
      %v526 = vmax.f32 %v494, 0.0
      %v527 = vmax.f32 %v495, 0.0
      %v528 = vmax.f32 %v496, 0.0
      %v529 = vmax.f32 %v497, 0.0
      %v530 = vmax.f32 %v498, 0.0
      %v531 = vmax.f32 %v499, 0.0
      %v532 = vmax.f32 %v500, 0.0
      %v533 = vmax.f32 %v501, 0.0
      %v534 = vmax.f32 %v502, 0.0
      %v535 = vmax.f32 %v503, 0.0
      %v536 = vmax.f32 %v504, 0.0
      %v537 = vmax.f32 %v505, 0.0
      %v538 = vmax.f32 %v506, 0.0
      %v539 = vmax.f32 %v507, 0.0
      %v540 = vmax.f32 %v508, 0.0
      %v541 = vmax.f32 %v509, 0.0
      %v542 = vmax.f32 %v510, 0.0
      %v543 = vmax.f32 %v511, 0.0
      %v544 = vmax.f32 %v512, 0.0
      %v545 = vmax.f32 %v513, 0.0
      %v546 = vmax.f32 %v514, 0.0
      %v547 = vmax.f32 %v515, 0.0
      %v548 = vmax.f32 %v516, 0.0
      %v549 = vmax.f32 %v517, 0.0
      %v550 = vmax.f32 %v518, 0.0
      %v551 = vmax.f32 %v519, 0.0
      %v552 = vmax.f32 %v520, 0.0
      %v553 = vmax.f32 %v521, 0.0
      %v554 = vmax.f32 %v522, 0.0
      %v555 = vmax.f32 %v523, 0.0
      %556 = vst [vmem:[%s271] sm:$0xff] %v524
      %557 = vst [vmem:[%s271 + $0x8] sm:$0xff] %v525
      %558 = vst [vmem:[%s271 + $0x10] sm:$0xff] %v526
      %559 = vst [vmem:[%s271 + $0x18] sm:$0xff] %v527
      %560 = vst [vmem:[%s271 + $0x20] sm:$0xff] %v528
      %561 = vst [vmem:[%s271 + $0x28] sm:$0xff] %v529
      %562 = vst [vmem:[%s271 + $0x30] sm:$0xff] %v530
      %563 = vst [vmem:[%s271 + $0x38] sm:$0xff] %v531
      %564 = vst [vmem:[%s271 + $0x40] sm:$0xff] %v532
      %565 = vst [vmem:[%s271 + $0x48] sm:$0xff] %v533
      %566 = vst [vmem:[%s271 + $0x50] sm:$0xff] %v534
      %567 = vst [vmem:[%s271 + $0x58] sm:$0xff] %v535
      %568 = vst [vmem:[%s271 + $0x60] sm:$0xff] %v536
      %569 = vst [vmem:[%s271 + $0x68] sm:$0xff] %v537
      %570 = vst [vmem:[%s271 + $0x70] sm:$0xff] %v538
      %571 = vst [vmem:[%s271 + $0x78] sm:$0xff] %v539
      %572 = vst [vmem:[%s271 + $0x80] sm:$0xff] %v540
      %573 = vst [vmem:[%s271 + $0x88] sm:$0xff] %v541
      %574 = vst [vmem:[%s271 + $0x90] sm:$0xff] %v542
      %575 = vst [vmem:[%s271 + $0x98] sm:$0xff] %v543
      %576 = vst [vmem:[%s271 + $0xa0] sm:$0xff] %v544
      %577 = vst [vmem:[%s271 + $0xa8] sm:$0xff] %v545
      %578 = vst [vmem:[%s271 + $0xb0] sm:$0xff] %v546
      %579 = vst [vmem:[%s271 + $0xb8] sm:$0xff] %v547
      %580 = vst [vmem:[%s271 + $0xc0] sm:$0xff] %v548
      %581 = vst [vmem:[%s271 + $0xc8] sm:$0xff] %v549
      %582 = vst [vmem:[%s271 + $0xd0] sm:$0xff] %v550
      %583 = vst [vmem:[%s271 + $0xd8] sm:$0xff] %v551
      %584 = vst [vmem:[%s271 + $0xe0] sm:$0xff] %v552
      %585 = vst [vmem:[%s271 + $0xe8] sm:$0xff] %v553
      %586 = vst [vmem:[%s271 + $0xf0] sm:$0xff] %v554
      %587 = vst [vmem:[%s271 + $0xf8] sm:$0xff] %v555
      %p588 = scmp.lt.s32.totalorder %s17, 1
      %s589 = scalar_select %p588, %s17, 1
      %s590 = smul.addr %s589, 32
      %s591 = smul.addr %s590, 8
      %s592 = scalar_lea.vmem %s6, %s591
      // Predicated region
      $region45: #{basic_block_forward.5} parent=43 // pred_check
        %p593 = pneg %p171
      $region46: #{basic_block_forward.5} parent=43 // pred_check_branch
        %595 = sbr.rel (%p593) target = $region48
      $region47: #{basic_block_forward.5} parent=43 // pred_region
        _
      $region48: #{basic_block_forward.5} parent=43 // pred_fallthru
        _
    $region44: #{basic_block_forward.5} parent=5 // pred_fallthru
      _
    %p596 = scmp.le.s32.totalorder 2, %s12
    // Predicated region
    $region49: #{basic_block_forward.5} parent=5 // pred_check
      %p597 = pneg %p596
    $region50: #{basic_block_forward.5} parent=5 // pred_check_branch
      %599 = sbr.rel (%p597) target = $region52
    $region51: #{basic_block_forward.5} parent=5 // pred_region
      %s600 = ssub.s32 %s12, 2
      // Predicated region
      $region53: #{basic_block_forward.5} parent=51 // pred_check
        %p601 = pneg %p177
      $region54: #{basic_block_forward.5} parent=51 // pred_check_branch
        %603 = sbr.rel (%p601) target = $region56
      $region55: #{basic_block_forward.5} parent=51 // pred_region
        %p604 = scmp.lt.s32.totalorder %s18, 1
        %s605 = scalar_select %p604, %s18, 1
        %s606 = smul.addr %s605, 32
        %s607 = smul.addr %s606, 8
        %s608 = scalar_lea.vmem %s6, %s607
      $region56: #{basic_block_forward.5} parent=51 // pred_fallthru
        _
    $region52: #{basic_block_forward.5} parent=5 // pred_fallthru
      _
  $region6: #{basic_block_forward.5} parent=0 // loop_footer
    %s16 = sadd.s32 1, %s12
  $region7: #{basic_block_forward.5} parent=0 // loop_footer_branch
    %11 = sbr.rel target = $region3
  $region8: #{basic_block_forward.5} parent=0 // loop_exit
    _

// kernel: basic_block_forward.3
$region0: #{basic_block_forward.3}
  #allocation0 [shape = 'u32[]', space=smem, size = 0x4, offset = 0x4, fixed_abs, tag = 'smem constant byte address 0x4 - core index']
  #allocation1 [shape = 'u32[144,128]{1,0:T(1,128)}', space=vmem, size = 0x12000, scoped, tag = 'internal scratch']
  %s0 = inlined_call_operand.vmem [shape: bf16[2,18,18,128], index: 0, kind: input, shape index: {}]
  %s1 = inlined_call_operand.vmem [shape: bf16[1152,128], index: 1, kind: input, shape index: {}]
  %s2 = inlined_call_operand.vmem [shape: bf16[128,128], index: 2, kind: input, shape index: {}]
  %s3 = inlined_call_operand.vmem [shape: f32[2,16,16,128], index: 3, kind: output, shape index: {0}]
  %s4 = inlined_call_operand.vmem [shape: f32[2,16,16,128], index: 4, kind: output, shape index: {1}]
  %s5 = inlined_call_operand.vmem [shape: f32[8,128], index: 5, kind: output, shape index: {2}]
  %6 = xla_tuple %s3, %s4, %s5
  %s7 = sld [smem:[#allocation0]]
  $region65: #{basic_block_forward.3} parent=0
    _
  %s9 = ssub.s32 1, %s7
  %s10 = scalar_select 0, %s9, %s7
  loop: start=0, step=1, limit=4
  $region2: #{basic_block_forward.3} parent=0 // loop_pre_header
    _
  $region3: #{basic_block_forward.3} parent=0 // loop_header
    %s12 = sphi 0, %s16
    %p13 = scmp.ge.s32.totalorder %s12, 4
    %s22 = sphi 0, %s24
    %s25 = sphi 0, %s22
    %s26 = sphi 0, %s25
    %s42 = sphi 0, %s26
    %s46 = sphi 0, %s46
    %s48 = sphi 0, %s46
    %s49 = sphi 0, %s48
    %s63 = sphi 0, %s49
    %s67 = sphi 0, %s67
    %s69 = sphi 0, %s67
    %s70 = sphi 0, %s69
    %s84 = sphi 0, %s70
    %s90 = sphi 0, %s92
    %s93 = sphi 0, %s90
    %s94 = sphi 0, %s93
    %s110 = sphi 0, %s94
    %s116 = sphi 0, %s118
    %s119 = sphi 0, %s116
    %s120 = sphi 0, %s119
    %s136 = sphi 0, %s120
    %s140 = sphi 0, %s140
    %s142 = sphi 0, %s140
    %s143 = sphi 0, %s142
    %s157 = sphi 0, %s143
  $region4: #{basic_block_forward.3} parent=0 // loop_header_branch
    %15 = sbr.rel (%p13) target = $region8
  $region5: #{basic_block_forward.3} parent=0 // loop_body
    %s17 = ssub.s32 %s12, 1
    %s18 = ssub.s32 %s12, 2
    %s19 = sadd.s32 %s12, 1
    %s20 = ssub.s32 %s12, %s19
    %p21 = scmp.eq.s32.totalorder %s20, 0
    %s23 = sadd.s32 %s22, 1
    %s24 = scalar_select %p21, %s22, %s23
    %p27 = pneg %p21
    %p28 = scmp.eq.s32.totalorder %s12, 1
    %p29 = por %p27, %p28
    %p30 = scmp.ne.s32.totalorder %s22, %s25
    %p31 = scmp.eq.s32.totalorder %s12, 0
    %p32 = por %p30, %p31
    %p33 = scmp.ne.s32.totalorder %s22, %s25
    %p34 = scmp.eq.s32.totalorder %s17, 1
    %p35 = por %p33, %p34
    %p36 = scmp.ne.s32.totalorder %s25, %s26
    %p37 = scmp.eq.s32.totalorder %s17, 0
    %p38 = por %p36, %p37
    %p39 = scmp.ne.s32.totalorder %s25, %s26
    %p40 = scmp.eq.s32.totalorder %s18, 1
    %p41 = por %p39, %p40
    %p43 = scmp.ne.s32.totalorder %s26, %s42
    %p44 = scmp.eq.s32.totalorder %s18, 0
    %p45 = por %p43, %p44
    %s47 = sadd.s32 %s46, 1
    %p50 = scmp.eq.s32.totalorder %s12, 1
    %p51 = scmp.ne.s32.totalorder %s46, %s48
    %p52 = scmp.eq.s32.totalorder %s12, 0
    %p53 = por %p51, %p52
    %p54 = scmp.ne.s32.totalorder %s46, %s48
    %p55 = scmp.eq.s32.totalorder %s17, 1
    %p56 = por %p54, %p55
    %p57 = scmp.ne.s32.totalorder %s48, %s49
    %p58 = scmp.eq.s32.totalorder %s17, 0
    %p59 = por %p57, %p58
    %p60 = scmp.ne.s32.totalorder %s48, %s49
    %p61 = scmp.eq.s32.totalorder %s18, 1
    %p62 = por %p60, %p61
    %p64 = scmp.ne.s32.totalorder %s49, %s63
    %p65 = scmp.eq.s32.totalorder %s18, 0
    %p66 = por %p64, %p65
    %s68 = sadd.s32 %s67, 1
    %p71 = scmp.eq.s32.totalorder %s12, 1
    %p72 = scmp.ne.s32.totalorder %s67, %s69
    %p73 = scmp.eq.s32.totalorder %s12, 0
    %p74 = por %p72, %p73
    %p75 = scmp.ne.s32.totalorder %s67, %s69
    %p76 = scmp.eq.s32.totalorder %s17, 1
    %p77 = por %p75, %p76
    %p78 = scmp.ne.s32.totalorder %s69, %s70
    %p79 = scmp.eq.s32.totalorder %s17, 0
    %p80 = por %p78, %p79
    %p81 = scmp.ne.s32.totalorder %s69, %s70
    %p82 = scmp.eq.s32.totalorder %s18, 1
    %p83 = por %p81, %p82
    %p85 = scmp.ne.s32.totalorder %s70, %s84
    %p86 = scmp.eq.s32.totalorder %s18, 0
    %p87 = por %p85, %p86
    %s88 = ssub.s32 %s12, %s19
    %p89 = scmp.eq.s32.totalorder %s88, 0
    %s91 = sadd.s32 %s90, 1
    %s92 = scalar_select %p89, %s90, %s91
    %p95 = pneg %p89
    %p96 = scmp.eq.s32.totalorder %s12, 1
    %p97 = por %p95, %p96
    %p98 = scmp.ne.s32.totalorder %s90, %s93
    %p99 = scmp.eq.s32.totalorder %s12, 0
    %p100 = por %p98, %p99
    %p101 = scmp.ne.s32.totalorder %s90, %s93
    %p102 = scmp.eq.s32.totalorder %s17, 1
    %p103 = por %p101, %p102
    %p104 = scmp.ne.s32.totalorder %s93, %s94
    %p105 = scmp.eq.s32.totalorder %s17, 0
    %p106 = por %p104, %p105
    %p107 = scmp.ne.s32.totalorder %s93, %s94
    %p108 = scmp.eq.s32.totalorder %s18, 1
    %p109 = por %p107, %p108
    %p111 = scmp.ne.s32.totalorder %s94, %s110
    %p112 = scmp.eq.s32.totalorder %s18, 0
    %p113 = por %p111, %p112
    %s114 = ssub.s32 %s12, %s19
    %p115 = scmp.eq.s32.totalorder %s114, 0
    %s117 = sadd.s32 %s116, 1
    %s118 = scalar_select %p115, %s116, %s117
    %p121 = pneg %p115
    %p122 = scmp.eq.s32.totalorder %s12, 1
    %p123 = por %p121, %p122
    %p124 = scmp.ne.s32.totalorder %s116, %s119
    %p125 = scmp.eq.s32.totalorder %s12, 0
    %p126 = por %p124, %p125
    %p127 = scmp.ne.s32.totalorder %s116, %s119
    %p128 = scmp.eq.s32.totalorder %s17, 1
    %p129 = por %p127, %p128
    %p130 = scmp.ne.s32.totalorder %s119, %s120
    %p131 = scmp.eq.s32.totalorder %s17, 0
    %p132 = por %p130, %p131
    %p133 = scmp.ne.s32.totalorder %s119, %s120
    %p134 = scmp.eq.s32.totalorder %s18, 1
    %p135 = por %p133, %p134
    %p137 = scmp.ne.s32.totalorder %s120, %s136
    %p138 = scmp.eq.s32.totalorder %s18, 0
    %p139 = por %p137, %p138
    %s141 = sadd.s32 %s140, 1
    %p144 = scmp.eq.s32.totalorder %s12, 1
    %p145 = scmp.ne.s32.totalorder %s140, %s142
    %p146 = scmp.eq.s32.totalorder %s12, 0
    %p147 = por %p145, %p146
    %p148 = scmp.ne.s32.totalorder %s140, %s142
    %p149 = scmp.eq.s32.totalorder %s17, 1
    %p150 = por %p148, %p149
    %p151 = scmp.ne.s32.totalorder %s142, %s143
    %p152 = scmp.eq.s32.totalorder %s17, 0
    %p153 = por %p151, %p152
    %p154 = scmp.ne.s32.totalorder %s142, %s143
    %p155 = scmp.eq.s32.totalorder %s18, 1
    %p156 = por %p154, %p155
    %p158 = scmp.ne.s32.totalorder %s143, %s157
    %p159 = scmp.eq.s32.totalorder %s18, 0
    %p160 = por %p158, %p159
    %p161 = scmp.le.s32.totalorder 1, %s12
    %p162 = scmp.lt.s32.totalorder %s12, 3
    %p163 = pnand %p161, %p162
    %p164 = pneg %p163
    // Predicated region
    $region9: #{basic_block_forward.3} parent=5 // pred_check
      _
    $region10: #{basic_block_forward.3} parent=5 // pred_check_branch
      %166 = sbr.rel (%p163) target = $region12
    $region11: #{basic_block_forward.3} parent=5 // pred_region
      %s167 = ssub.s32 %s12, 1
      // Predicated region
      $region13: #{basic_block_forward.3} parent=11 // pred_check
        %p168 = pneg %p59
      $region14: #{basic_block_forward.3} parent=11 // pred_check_branch
        %170 = sbr.rel (%p168) target = $region16
      $region15: #{basic_block_forward.3} parent=11 // pred_region
        _
      $region16: #{basic_block_forward.3} parent=11 // pred_fallthru
        _
      // Predicated region
      $region17: #{basic_block_forward.3} parent=11 // pred_check
        %p171 = pneg %p80
      $region18: #{basic_block_forward.3} parent=11 // pred_check_branch
        %173 = sbr.rel (%p171) target = $region20
      $region19: #{basic_block_forward.3} parent=11 // pred_region
        _
      $region20: #{basic_block_forward.3} parent=11 // pred_fallthru
        _
    $region12: #{basic_block_forward.3} parent=5 // pred_fallthru
      _
    %p174 = scmp.lt.s32.totalorder %s12, 2
    // Predicated region
    $region21: #{basic_block_forward.3} parent=5 // pred_check
      %p175 = pneg %p174
    $region22: #{basic_block_forward.3} parent=5 // pred_check_branch
      %177 = sbr.rel (%p175) target = $region24
    $region23: #{basic_block_forward.3} parent=5 // pred_region
      // Predicated region
      $region25: #{basic_block_forward.3} parent=23 // pred_check
        %p178 = pneg %p32
      $region26: #{basic_block_forward.3} parent=23 // pred_check_branch
        %180 = sbr.rel (%p178) target = $region28
      $region27: #{basic_block_forward.3} parent=23 // pred_region
        %p181 = scmp.lt.s32.totalorder %s12, 1
        %s182 = scalar_select %p181, %s12, 1
        %s183 = smul.addr %s182, 54
        %s184 = smul.addr %s183, 4
        %s185 = scalar_lea.vmem %s0, %s184
      $region28: #{basic_block_forward.3} parent=23 // pred_fallthru
        _
    $region24: #{basic_block_forward.3} parent=5 // pred_fallthru
      _
    %p186 = scmp.le.s32.totalorder 1, %s12
    %p187 = scmp.lt.s32.totalorder %s12, 3
    %p188 = pnand %p186, %p187
    %p189 = pneg %p188
    // Predicated region
    $region29: #{basic_block_forward.3} parent=5 // pred_check
      _
    $region30: #{basic_block_forward.3} parent=5 // pred_check_branch
      %191 = sbr.rel (%p188) target = $region32
    $region31: #{basic_block_forward.3} parent=5 // pred_region
      %s192 = ssub.s32 %s12, 1
      %p193 = scmp.lt.s32.totalorder %s17, 1
      %s194 = scalar_select %p193, %s17, 1
      %s195 = smul.addr %s194, 54
      %s196 = smul.addr %s195, 4
      %s197 = scalar_lea.vmem %s0, %s196
      %p198 = pneg %p38
      %p199 = pneg %p35
      %p200 = pneg %p59
      %p201 = pneg %p56
      %p202 = pneg %p80
      %p203 = pneg %p77
      %p204 = pneg %p106
      %p205 = pneg %p103
      %p206 = scmp.lt.s32.totalorder %s17, 1
      %s207 = scalar_select %p206, %s17, 1
      %s208 = smul.addr %s207, 32
      %s209 = smul.addr %s208, 8
      %s210 = scalar_lea.vmem %s3, %s209
      %p211 = pneg %p132
      %p212 = pneg %p129
      %p213 = scmp.lt.s32.totalorder %s17, 1
      %s214 = scalar_select %p213, %s17, 1
      %s215 = smul.addr %s214, 32
      %s216 = smul.addr %s215, 8
      %s217 = scalar_lea.vmem %s4, %s216
      %p218 = pneg %p153
      %p219 = pneg %p150
      %p220 = scmp.lt.s32.totalorder %s17, 1
      %s221 = scalar_select %p220, %s17, 1
      %s222 = smul.addr %s221, 54
      %s223 = smul.addr %s222, 4
      %s224 = scalar_lea.vmem %s0, %s223
      %p225 = scmp.lt.s32.totalorder %s17, 1
      %s226 = scalar_select %p225, %s17, 1
      %s227 = smul.addr %s226, 32
      %s228 = smul.addr %s227, 8
      %s229 = scalar_lea.vmem %s3, %s228
      %p230 = scmp.lt.s32.totalorder %s17, 1
      %s231 = scalar_select %p230, %s17, 1
      %s232 = smul.addr %s231, 32
      %s233 = smul.addr %s232, 8
      %s234 = scalar_lea.vmem %s4, %s233
      %v236 = vld [vmem:[%s224] sm:$0xf]
      %v237 = vld [vmem:[%s224 + $0x4] sm:$0xf]
      %v238 = vld [vmem:[%s224 + $0xc] sm:$0xf]
      %v239 = vld [vmem:[%s224 + $0x10] sm:$0xf]
      %v240 = vld [vmem:[%s224 + $0x18] sm:$0xf]
      %v241 = vld [vmem:[%s224 + $0x1c] sm:$0xf]
      %v242 = vld [vmem:[%s224 + $0x24] sm:$0xf]
      %v243 = vld [vmem:[%s224 + $0x28] sm:$0xf]
      %v244 = vld [vmem:[%s224 + $0x30] sm:$0xf]
      %v245 = vld [vmem:[%s224 + $0x34] sm:$0xf]
      %v246 = vld [vmem:[%s224 + $0x3c] sm:$0xf]
      %v247 = vld [vmem:[%s224 + $0x40] sm:$0xf]
      %v248 = vld [vmem:[%s224 + $0x48] sm:$0xf]
      %v249 = vld [vmem:[%s224 + $0x4c] sm:$0xf]
      %v250 = vld [vmem:[%s224 + $0x54] sm:$0xf]
      %v251 = vld [vmem:[%s224 + $0x58] sm:$0xf]
      %v252 = vld [vmem:[%s224 + $0x60] sm:$0xf]
      %v253 = vld [vmem:[%s224 + $0x64] sm:$0xf]
      %v254 = vld [vmem:[%s224 + $0x6c] sm:$0xf]
      %v255 = vld [vmem:[%s224 + $0x70] sm:$0xf]
      %v256 = vld [vmem:[%s224 + $0x78] sm:$0xf]
      %v257 = vld [vmem:[%s224 + $0x7c] sm:$0xf]
      %v258 = vld [vmem:[%s224 + $0x84] sm:$0xf]
      %v259 = vld [vmem:[%s224 + $0x88] sm:$0xf]
      %v260 = vld [vmem:[%s224 + $0x90] sm:$0xf]
      %v261 = vld [vmem:[%s224 + $0x94] sm:$0xf]
      %v262 = vld [vmem:[%s224 + $0x9c] sm:$0xf]
      %v263 = vld [vmem:[%s224 + $0xa0] sm:$0xf]
      %v264 = vld [vmem:[%s224 + $0xa8] sm:$0xf]
      %v265 = vld [vmem:[%s224 + $0xac] sm:$0xf]
      %v266 = vld [vmem:[%s224 + $0xb4] sm:$0xf]
      %v267 = vld [vmem:[%s224 + $0xb8] sm:$0xf]
      %v268 = vld [vmem:[%s224 + $0x8] sm:$0x1]
      %v269 = vld [vmem:[%s224 + $0x14] sm:$0x1]
      %v270 = vld [vmem:[%s224 + $0x20] sm:$0x1]
      %v271 = vld [vmem:[%s224 + $0x2c] sm:$0x1]
      %v272 = vld [vmem:[%s224 + $0x38] sm:$0x1]
      %v273 = vld [vmem:[%s224 + $0x44] sm:$0x1]
      %v274 = vld [vmem:[%s224 + $0x50] sm:$0x1]
      %v275 = vld [vmem:[%s224 + $0x5c] sm:$0x1]
      %v276 = vld [vmem:[%s224 + $0x68] sm:$0x1]
      %v277 = vld [vmem:[%s224 + $0x74] sm:$0x1]
      %v278 = vld [vmem:[%s224 + $0x80] sm:$0x1]
      %v279 = vld [vmem:[%s224 + $0x8c] sm:$0x1]
      %v280 = vld [vmem:[%s224 + $0x98] sm:$0x1]
      %v281 = vld [vmem:[%s224 + $0xa4] sm:$0x1]
      %v282 = vld [vmem:[%s224 + $0xb0] sm:$0x1]
      %v283 = vld [vmem:[%s224 + $0xbc] sm:$0x1]
      %vm284 = vsmask.f32 3328
      %vm285 = vsmask.f32 7440
      %vm286 = vmor %vm284, %vm285
      %v288 = vshrl.u32 %v236, 16
      %v290 = vrot.slane %v288, 4
      %v291 = vshll.u32 %v236, 16
      %v293 = vrot.slane %v291, 5
      %v294 = vor.u32 %v290, %v293
      %v295 = vrot.slane %v294, 4
      %v297 = vshll.u32 %v237, 16
      %v299 = vrot.slane %v297, 5
      %v300 = vsel %vm286, %v295, %v299
      %v301 = vshrl.u32 %v237, 16
      %v303 = vrot.slane %v301, 4
      %v304 = vor.u32 %v303, %v299
      %v305 = vrot.slane %v304, 4
      %v307 = vshll.u32 %v268, 16
      %v309 = vrot.slane %v307, 5
      %v310 = vsel %vm286, %v305, %v309
      %v312 = vshrl.u32 %v238, 16
      %v314 = vrot.slane %v312, 4
      %v315 = vshll.u32 %v238, 16
      %v317 = vrot.slane %v315, 5
      %v318 = vor.u32 %v314, %v317
      %v319 = vrot.slane %v318, 4
      %v321 = vshll.u32 %v239, 16
      %v323 = vrot.slane %v321, 5
      %v324 = vsel %vm286, %v319, %v323
      %v325 = vshrl.u32 %v239, 16
      %v327 = vrot.slane %v325, 4
      %v328 = vor.u32 %v327, %v323
      %v329 = vrot.slane %v328, 4
      %v331 = vshll.u32 %v269, 16
      %v333 = vrot.slane %v331, 5
      %v334 = vsel %vm286, %v329, %v333
      %v336 = vshrl.u32 %v240, 16
      %v338 = vrot.slane %v336, 4
      %v339 = vshll.u32 %v240, 16
      %v341 = vrot.slane %v339, 5
      %v342 = vor.u32 %v338, %v341
      %v343 = vrot.slane %v342, 4
      %v345 = vshll.u32 %v241, 16
      %v347 = vrot.slane %v345, 5
      %v348 = vsel %vm286, %v343, %v347
      %v349 = vshrl.u32 %v241, 16
      %v351 = vrot.slane %v349, 4
      %v352 = vor.u32 %v351, %v347
      %v353 = vrot.slane %v352, 4
      %v355 = vshll.u32 %v270, 16
      %v357 = vrot.slane %v355, 5
      %v358 = vsel %vm286, %v353, %v357
      %v360 = vshrl.u32 %v242, 16
      %v362 = vrot.slane %v360, 4
      %v363 = vshll.u32 %v242, 16
      %v365 = vrot.slane %v363, 5
      %v366 = vor.u32 %v362, %v365
      %v367 = vrot.slane %v366, 4
      %v369 = vshll.u32 %v243, 16
      %v371 = vrot.slane %v369, 5
      %v372 = vsel %vm286, %v367, %v371
      %v373 = vshrl.u32 %v243, 16
      %v375 = vrot.slane %v373, 4
      %v376 = vor.u32 %v375, %v371
      %v377 = vrot.slane %v376, 4
      %v379 = vshll.u32 %v271, 16
      %v381 = vrot.slane %v379, 5
      %v382 = vsel %vm286, %v377, %v381
      %v384 = vshrl.u32 %v244, 16
      %v386 = vrot.slane %v384, 4
      %v387 = vshll.u32 %v244, 16
      %v389 = vrot.slane %v387, 5
      %v390 = vor.u32 %v386, %v389
      %v391 = vrot.slane %v390, 4
      %v393 = vshll.u32 %v245, 16
      %v395 = vrot.slane %v393, 5
      %v396 = vsel %vm286, %v391, %v395
      %v397 = vshrl.u32 %v245, 16
      %v399 = vrot.slane %v397, 4
      %v400 = vor.u32 %v399, %v395
      %v401 = vrot.slane %v400, 4
      %v403 = vshll.u32 %v272, 16
      %v405 = vrot.slane %v403, 5
      %v406 = vsel %vm286, %v401, %v405
      %v408 = vshrl.u32 %v246, 16
      %v410 = vrot.slane %v408, 4
      %v411 = vshll.u32 %v246, 16
      %v413 = vrot.slane %v411, 5
      %v414 = vor.u32 %v410, %v413
      %v415 = vrot.slane %v414, 4
      %v417 = vshll.u32 %v247, 16
      %v419 = vrot.slane %v417, 5
      %v420 = vsel %vm286, %v415, %v419
      %v421 = vshrl.u32 %v247, 16
      %v423 = vrot.slane %v421, 4
      %v424 = vor.u32 %v423, %v419
      %v425 = vrot.slane %v424, 4
      %v427 = vshll.u32 %v273, 16
      %v429 = vrot.slane %v427, 5
      %v430 = vsel %vm286, %v425, %v429
      %v432 = vshrl.u32 %v248, 16
      %v434 = vrot.slane %v432, 4
      %v435 = vshll.u32 %v248, 16
      %v437 = vrot.slane %v435, 5
      %v438 = vor.u32 %v434, %v437
      %v439 = vrot.slane %v438, 4
      %v441 = vshll.u32 %v249, 16
      %v443 = vrot.slane %v441, 5
      %v444 = vsel %vm286, %v439, %v443
      %v445 = vshrl.u32 %v249, 16
      %v447 = vrot.slane %v445, 4
      %v448 = vor.u32 %v447, %v443
      %v449 = vrot.slane %v448, 4
      %v451 = vshll.u32 %v274, 16
      %v453 = vrot.slane %v451, 5
      %v454 = vsel %vm286, %v449, %v453
      %v456 = vshrl.u32 %v250, 16
      %v458 = vrot.slane %v456, 4
      %v459 = vshll.u32 %v250, 16
      %v461 = vrot.slane %v459, 5
      %v462 = vor.u32 %v458, %v461
      %v463 = vrot.slane %v462, 4
      %v465 = vshll.u32 %v251, 16
      %v467 = vrot.slane %v465, 5
      %v468 = vsel %vm286, %v463, %v467
      %v469 = vshrl.u32 %v251, 16
      %v471 = vrot.slane %v469, 4
      %v472 = vor.u32 %v471, %v467
      %v473 = vrot.slane %v472, 4
      %v475 = vshll.u32 %v275, 16
      %v477 = vrot.slane %v475, 5
      %v478 = vsel %vm286, %v473, %v477
      %v480 = vshrl.u32 %v252, 16
      %v482 = vrot.slane %v480, 4
      %v483 = vshll.u32 %v252, 16
      %v485 = vrot.slane %v483, 5
      %v486 = vor.u32 %v482, %v485
      %v487 = vrot.slane %v486, 4
      %v489 = vshll.u32 %v253, 16
      %v491 = vrot.slane %v489, 5
      %v492 = vsel %vm286, %v487, %v491
      %v493 = vshrl.u32 %v253, 16
      %v495 = vrot.slane %v493, 4
      %v496 = vor.u32 %v495, %v491
      %v497 = vrot.slane %v496, 4
      %v499 = vshll.u32 %v276, 16
      %v501 = vrot.slane %v499, 5
      %v502 = vsel %vm286, %v497, %v501
      %v504 = vshrl.u32 %v254, 16
      %v506 = vrot.slane %v504, 4
      %v507 = vshll.u32 %v254, 16
      %v509 = vrot.slane %v507, 5
      %v510 = vor.u32 %v506, %v509
      %v511 = vrot.slane %v510, 4
      %v513 = vshll.u32 %v255, 16
      %v515 = vrot.slane %v513, 5
      %v516 = vsel %vm286, %v511, %v515
      %v517 = vshrl.u32 %v255, 16
      %v519 = vrot.slane %v517, 4
      %v520 = vor.u32 %v519, %v515
      %v521 = vrot.slane %v520, 4
      %v523 = vshll.u32 %v277, 16
      %v525 = vrot.slane %v523, 5
      %v526 = vsel %vm286, %v521, %v525
      %v528 = vshrl.u32 %v256, 16
      %v530 = vrot.slane %v528, 4
      %v531 = vshll.u32 %v256, 16
      %v533 = vrot.slane %v531, 5
      %v534 = vor.u32 %v530, %v533
      %v535 = vrot.slane %v534, 4
      %v537 = vshll.u32 %v257, 16
      %v539 = vrot.slane %v537, 5
      %v540 = vsel %vm286, %v535, %v539
      %v541 = vshrl.u32 %v257, 16
      %v543 = vrot.slane %v541, 4
      %v544 = vor.u32 %v543, %v539
      %v545 = vrot.slane %v544, 4
      %v547 = vshll.u32 %v278, 16
      %v549 = vrot.slane %v547, 5
      %v550 = vsel %vm286, %v545, %v549
      %v552 = vshrl.u32 %v258, 16
      %v554 = vrot.slane %v552, 4
      %v555 = vshll.u32 %v258, 16
      %v557 = vrot.slane %v555, 5
      %v558 = vor.u32 %v554, %v557
      %v559 = vrot.slane %v558, 4
      %v561 = vshll.u32 %v259, 16
      %v563 = vrot.slane %v561, 5
      %v564 = vsel %vm286, %v559, %v563
      %v565 = vshrl.u32 %v259, 16
      %v567 = vrot.slane %v565, 4
      %v568 = vor.u32 %v567, %v563
      %v569 = vrot.slane %v568, 4
      %v571 = vshll.u32 %v279, 16
      %v573 = vrot.slane %v571, 5
      %v574 = vsel %vm286, %v569, %v573
      %v576 = vshrl.u32 %v260, 16
      %v578 = vrot.slane %v576, 4
      %v579 = vshll.u32 %v260, 16
      %v581 = vrot.slane %v579, 5
      %v582 = vor.u32 %v578, %v581
      %v583 = vrot.slane %v582, 4
      %v585 = vshll.u32 %v261, 16
      %v587 = vrot.slane %v585, 5
      %v588 = vsel %vm286, %v583, %v587
      %v589 = vshrl.u32 %v261, 16
      %v591 = vrot.slane %v589, 4
      %v592 = vor.u32 %v591, %v587
      %v593 = vrot.slane %v592, 4
      %v595 = vshll.u32 %v280, 16
      %v597 = vrot.slane %v595, 5
      %v598 = vsel %vm286, %v593, %v597
      %v600 = vshrl.u32 %v262, 16
      %v602 = vrot.slane %v600, 4
      %v603 = vshll.u32 %v262, 16
      %v605 = vrot.slane %v603, 5
      %v606 = vor.u32 %v602, %v605
      %v607 = vrot.slane %v606, 4
      %v609 = vshll.u32 %v263, 16
      %v611 = vrot.slane %v609, 5
      %v612 = vsel %vm286, %v607, %v611
      %v613 = vshrl.u32 %v263, 16
      %v615 = vrot.slane %v613, 4
      %v616 = vor.u32 %v615, %v611
      %v617 = vrot.slane %v616, 4
      %v619 = vshll.u32 %v281, 16
      %v621 = vrot.slane %v619, 5
      %v622 = vsel %vm286, %v617, %v621
      %v624 = vshrl.u32 %v264, 16
      %v626 = vrot.slane %v624, 4
      %v627 = vshll.u32 %v264, 16
      %v629 = vrot.slane %v627, 5
      %v630 = vor.u32 %v626, %v629
      %v631 = vrot.slane %v630, 4
      %v633 = vshll.u32 %v265, 16
      %v635 = vrot.slane %v633, 5
      %v636 = vsel %vm286, %v631, %v635
      %v637 = vshrl.u32 %v265, 16
      %v639 = vrot.slane %v637, 4
      %v640 = vor.u32 %v639, %v635
      %v641 = vrot.slane %v640, 4
      %v643 = vshll.u32 %v282, 16
      %v645 = vrot.slane %v643, 5
      %v646 = vsel %vm286, %v641, %v645
      %v648 = vshrl.u32 %v266, 16
      %v650 = vrot.slane %v648, 4
      %v651 = vshll.u32 %v266, 16
      %v653 = vrot.slane %v651, 5
      %v654 = vor.u32 %v650, %v653
      %v655 = vrot.slane %v654, 4
      %v657 = vshll.u32 %v267, 16
      %v659 = vrot.slane %v657, 5
      %v660 = vsel %vm286, %v655, %v659
      %v661 = vshrl.u32 %v267, 16
      %v663 = vrot.slane %v661, 4
      %v664 = vor.u32 %v663, %v659
      %v665 = vrot.slane %v664, 4
      %v667 = vshll.u32 %v283, 16
      %v669 = vrot.slane %v667, 5
      %v670 = vsel %vm286, %v665, %v669
      %v671 = vld [vmem:[%s224] sm:$0xe]
      %v672 = vld [vmem:[%s224 + $0xc] sm:$0xe]
      %v673 = vld [vmem:[%s224 + $0x18] sm:$0xe]
      %v674 = vld [vmem:[%s224 + $0x24] sm:$0xe]
      %v675 = vld [vmem:[%s224 + $0x30] sm:$0xe]
      %v676 = vld [vmem:[%s224 + $0x3c] sm:$0xe]
      %v677 = vld [vmem:[%s224 + $0x48] sm:$0xe]
      %v678 = vld [vmem:[%s224 + $0x54] sm:$0xe]
      %v679 = vld [vmem:[%s224 + $0x60] sm:$0xe]
      %v680 = vld [vmem:[%s224 + $0x6c] sm:$0xe]
      %v681 = vld [vmem:[%s224 + $0x78] sm:$0xe]
      %v682 = vld [vmem:[%s224 + $0x84] sm:$0xe]
      %v683 = vld [vmem:[%s224 + $0x90] sm:$0xe]
      %v684 = vld [vmem:[%s224 + $0x9c] sm:$0xe]
      %v685 = vld [vmem:[%s224 + $0xa8] sm:$0xe]
      %v686 = vld [vmem:[%s224 + $0xb4] sm:$0xe]
      %vm735 = vcmask 1042432
      %vm736 = vcmask 1046532
      %vm737 = vmor %vm735, %vm736
      %v738 = vrot.slane %v671, 5
      %v739 = vrot.slane %v738, 4
      %v740 = vrot.slane %v237, 5
      %v741 = vsel %vm737, %v739, %v740
      %v742 = vrot.slane %v740, 4
      %v743 = vrot.slane %v268, 5
      %v744 = vsel %vm737, %v742, %v743
      %v745 = vrot.slane %v672, 5
      %v746 = vrot.slane %v745, 4
      %v747 = vrot.slane %v239, 5
      %v748 = vsel %vm737, %v746, %v747
      %v749 = vrot.slane %v747, 4
      %v750 = vrot.slane %v269, 5
      %v751 = vsel %vm737, %v749, %v750
      %v752 = vrot.slane %v673, 5
      %v753 = vrot.slane %v752, 4
      %v754 = vrot.slane %v241, 5
      %v755 = vsel %vm737, %v753, %v754
      %v756 = vrot.slane %v754, 4
      %v757 = vrot.slane %v270, 5
      %v758 = vsel %vm737, %v756, %v757
      %v759 = vrot.slane %v674, 5
      %v760 = vrot.slane %v759, 4
      %v761 = vrot.slane %v243, 5
      %v762 = vsel %vm737, %v760, %v761
      %v763 = vrot.slane %v761, 4
      %v764 = vrot.slane %v271, 5
      %v765 = vsel %vm737, %v763, %v764
      %v766 = vrot.slane %v675, 5
      %v767 = vrot.slane %v766, 4
      %v768 = vrot.slane %v245, 5
      %v769 = vsel %vm737, %v767, %v768
      %v770 = vrot.slane %v768, 4
      %v771 = vrot.slane %v272, 5
      %v772 = vsel %vm737, %v770, %v771
      %v773 = vrot.slane %v676, 5
      %v774 = vrot.slane %v773, 4
      %v775 = vrot.slane %v247, 5
      %v776 = vsel %vm737, %v774, %v775
      %v777 = vrot.slane %v775, 4
      %v778 = vrot.slane %v273, 5
      %v779 = vsel %vm737, %v777, %v778
      %v780 = vrot.slane %v677, 5
      %v781 = vrot.slane %v780, 4
      %v782 = vrot.slane %v249, 5
      %v783 = vsel %vm737, %v781, %v782
      %v784 = vrot.slane %v782, 4
      %v785 = vrot.slane %v274, 5
      %v786 = vsel %vm737, %v784, %v785
      %v787 = vrot.slane %v678, 5
      %v788 = vrot.slane %v787, 4
      %v789 = vrot.slane %v251, 5
      %v790 = vsel %vm737, %v788, %v789
      %v791 = vrot.slane %v789, 4
      %v792 = vrot.slane %v275, 5
      %v793 = vsel %vm737, %v791, %v792
      %v794 = vrot.slane %v679, 5
      %v795 = vrot.slane %v794, 4
      %v796 = vrot.slane %v253, 5
      %v797 = vsel %vm737, %v795, %v796
      %v798 = vrot.slane %v796, 4
      %v799 = vrot.slane %v276, 5
      %v800 = vsel %vm737, %v798, %v799
      %v801 = vrot.slane %v680, 5
      %v802 = vrot.slane %v801, 4
      %v803 = vrot.slane %v255, 5
      %v804 = vsel %vm737, %v802, %v803
      %v805 = vrot.slane %v803, 4
      %v806 = vrot.slane %v277, 5
      %v807 = vsel %vm737, %v805, %v806
      %v808 = vrot.slane %v681, 5
      %v809 = vrot.slane %v808, 4
      %v810 = vrot.slane %v257, 5
      %v811 = vsel %vm737, %v809, %v810
      %v812 = vrot.slane %v810, 4
      %v813 = vrot.slane %v278, 5
      %v814 = vsel %vm737, %v812, %v813
      %v815 = vrot.slane %v682, 5
      %v816 = vrot.slane %v815, 4
      %v817 = vrot.slane %v259, 5
      %v818 = vsel %vm737, %v816, %v817
      %v819 = vrot.slane %v817, 4
      %v820 = vrot.slane %v279, 5
      %v821 = vsel %vm737, %v819, %v820
      %v822 = vrot.slane %v683, 5
      %v823 = vrot.slane %v822, 4
      %v824 = vrot.slane %v261, 5
      %v825 = vsel %vm737, %v823, %v824
      %v826 = vrot.slane %v824, 4
      %v827 = vrot.slane %v280, 5
      %v828 = vsel %vm737, %v826, %v827
      %v829 = vrot.slane %v684, 5
      %v830 = vrot.slane %v829, 4
      %v831 = vrot.slane %v263, 5
      %v832 = vsel %vm737, %v830, %v831
      %v833 = vrot.slane %v831, 4
      %v834 = vrot.slane %v281, 5
      %v835 = vsel %vm737, %v833, %v834
      %v836 = vrot.slane %v685, 5
      %v837 = vrot.slane %v836, 4
      %v838 = vrot.slane %v265, 5
      %v839 = vsel %vm737, %v837, %v838
      %v840 = vrot.slane %v838, 4
      %v841 = vrot.slane %v282, 5
      %v842 = vsel %vm737, %v840, %v841
      %v843 = vrot.slane %v686, 5
      %v844 = vrot.slane %v843, 4
      %v845 = vrot.slane %v267, 5
      %v846 = vsel %vm737, %v844, %v845
      %v847 = vrot.slane %v845, 4
      %v848 = vrot.slane %v283, 5
      %v849 = vsel %vm737, %v847, %v848
      %s850 = scalar_lea.vmem %s224, 12
      %v851 = vld [vmem:[%s850] sm:$0xf]
      %v852 = vld [vmem:[%s850 + $0x4] sm:$0xf]
      %v853 = vld [vmem:[%s850 + $0xc] sm:$0xf]
      %v854 = vld [vmem:[%s850 + $0x10] sm:$0xf]
      %v855 = vld [vmem:[%s850 + $0x18] sm:$0xf]
      %v856 = vld [vmem:[%s850 + $0x1c] sm:$0xf]
      %v857 = vld [vmem:[%s850 + $0x24] sm:$0xf]
      %v858 = vld [vmem:[%s850 + $0x28] sm:$0xf]
      %v859 = vld [vmem:[%s850 + $0x30] sm:$0xf]
      %v860 = vld [vmem:[%s850 + $0x34] sm:$0xf]
      %v861 = vld [vmem:[%s850 + $0x3c] sm:$0xf]
      %v862 = vld [vmem:[%s850 + $0x40] sm:$0xf]
      %v863 = vld [vmem:[%s850 + $0x48] sm:$0xf]
      %v864 = vld [vmem:[%s850 + $0x4c] sm:$0xf]
      %v865 = vld [vmem:[%s850 + $0x54] sm:$0xf]
      %v866 = vld [vmem:[%s850 + $0x58] sm:$0xf]
      %v867 = vld [vmem:[%s850 + $0x60] sm:$0xf]
      %v868 = vld [vmem:[%s850 + $0x64] sm:$0xf]
      %v869 = vld [vmem:[%s850 + $0x6c] sm:$0xf]
      %v870 = vld [vmem:[%s850 + $0x70] sm:$0xf]
      %v871 = vld [vmem:[%s850 + $0x78] sm:$0xf]
      %v872 = vld [vmem:[%s850 + $0x7c] sm:$0xf]
      %v873 = vld [vmem:[%s850 + $0x84] sm:$0xf]
      %v874 = vld [vmem:[%s850 + $0x88] sm:$0xf]
      %v875 = vld [vmem:[%s850 + $0x90] sm:$0xf]
      %v876 = vld [vmem:[%s850 + $0x94] sm:$0xf]
      %v877 = vld [vmem:[%s850 + $0x9c] sm:$0xf]
      %v878 = vld [vmem:[%s850 + $0xa0] sm:$0xf]
      %v879 = vld [vmem:[%s850 + $0xa8] sm:$0xf]
      %v880 = vld [vmem:[%s850 + $0xac] sm:$0xf]
      %v881 = vld [vmem:[%s850 + $0xb4] sm:$0xf]
      %v882 = vld [vmem:[%s850 + $0xb8] sm:$0xf]
      %v883 = vld [vmem:[%s850 + $0x8] sm:$0x1]
      %v884 = vld [vmem:[%s850 + $0x14] sm:$0x1]
      %v885 = vld [vmem:[%s850 + $0x20] sm:$0x1]
      %v886 = vld [vmem:[%s850 + $0x2c] sm:$0x1]
      %v887 = vld [vmem:[%s850 + $0x38] sm:$0x1]
      %v888 = vld [vmem:[%s850 + $0x44] sm:$0x1]
      %v889 = vld [vmem:[%s850 + $0x50] sm:$0x1]
      %v890 = vld [vmem:[%s850 + $0x5c] sm:$0x1]
      %v891 = vld [vmem:[%s850 + $0x68] sm:$0x1]
      %v892 = vld [vmem:[%s850 + $0x74] sm:$0x1]
      %v893 = vld [vmem:[%s850 + $0x80] sm:$0x1]
      %v894 = vld [vmem:[%s850 + $0x8c] sm:$0x1]
      %v895 = vld [vmem:[%s850 + $0x98] sm:$0x1]
      %v896 = vld [vmem:[%s850 + $0xa4] sm:$0x1]
      %v897 = vld [vmem:[%s850 + $0xb0] sm:$0x1]
      %v898 = vld [vmem:[%s850 + $0xbc] sm:$0x1]
      %v900 = vshrl.u32 %v851, 16
      %v902 = vrot.slane %v900, 4
      %v903 = vshll.u32 %v851, 16
      %v905 = vrot.slane %v903, 5
      %v906 = vor.u32 %v902, %v905
      %v907 = vrot.slane %v906, 4
      %v909 = vshll.u32 %v852, 16
      %v911 = vrot.slane %v909, 5
      %v912 = vsel %vm286, %v907, %v911
      %v913 = vshrl.u32 %v852, 16
      %v915 = vrot.slane %v913, 4
      %v916 = vor.u32 %v915, %v911
      %v917 = vrot.slane %v916, 4
      %v919 = vshll.u32 %v883, 16
      %v921 = vrot.slane %v919, 5
      %v922 = vsel %vm286, %v917, %v921
      %v924 = vshrl.u32 %v853, 16
      %v926 = vrot.slane %v924, 4
      %v927 = vshll.u32 %v853, 16
      %v929 = vrot.slane %v927, 5
      %v930 = vor.u32 %v926, %v929
      %v931 = vrot.slane %v930, 4
      %v933 = vshll.u32 %v854, 16
      %v935 = vrot.slane %v933, 5
      %v936 = vsel %vm286, %v931, %v935
      %v937 = vshrl.u32 %v854, 16
      %v939 = vrot.slane %v937, 4
      %v940 = vor.u32 %v939, %v935
      %v941 = vrot.slane %v940, 4
      %v943 = vshll.u32 %v884, 16
      %v945 = vrot.slane %v943, 5
      %v946 = vsel %vm286, %v941, %v945
      %v948 = vshrl.u32 %v855, 16
      %v950 = vrot.slane %v948, 4
      %v951 = vshll.u32 %v855, 16
      %v953 = vrot.slane %v951, 5
      %v954 = vor.u32 %v950, %v953
      %v955 = vrot.slane %v954, 4
      %v957 = vshll.u32 %v856, 16
      %v959 = vrot.slane %v957, 5
      %v960 = vsel %vm286, %v955, %v959
      %v961 = vshrl.u32 %v856, 16
      %v963 = vrot.slane %v961, 4
      %v964 = vor.u32 %v963, %v959
      %v965 = vrot.slane %v964, 4
      %v967 = vshll.u32 %v885, 16
      %v969 = vrot.slane %v967, 5
      %v970 = vsel %vm286, %v965, %v969
      %v972 = vshrl.u32 %v857, 16
      %v974 = vrot.slane %v972, 4
      %v975 = vshll.u32 %v857, 16
      %v977 = vrot.slane %v975, 5
      %v978 = vor.u32 %v974, %v977
      %v979 = vrot.slane %v978, 4
      %v981 = vshll.u32 %v858, 16
      %v983 = vrot.slane %v981, 5
      %v984 = vsel %vm286, %v979, %v983
      %v985 = vshrl.u32 %v858, 16
      %v987 = vrot.slane %v985, 4
      %v988 = vor.u32 %v987, %v983
      %v989 = vrot.slane %v988, 4
      %v991 = vshll.u32 %v886, 16
      %v993 = vrot.slane %v991, 5
      %v994 = vsel %vm286, %v989, %v993
      %v996 = vshrl.u32 %v859, 16
      %v998 = vrot.slane %v996, 4
      %v999 = vshll.u32 %v859, 16
      %v1001 = vrot.slane %v999, 5
      %v1002 = vor.u32 %v998, %v1001
      %v1003 = vrot.slane %v1002, 4
      %v1005 = vshll.u32 %v860, 16
      %v1007 = vrot.slane %v1005, 5
      %v1008 = vsel %vm286, %v1003, %v1007
      %v1009 = vshrl.u32 %v860, 16
      %v1011 = vrot.slane %v1009, 4
      %v1012 = vor.u32 %v1011, %v1007
      %v1013 = vrot.slane %v1012, 4
      %v1015 = vshll.u32 %v887, 16
      %v1017 = vrot.slane %v1015, 5
      %v1018 = vsel %vm286, %v1013, %v1017
      %v1020 = vshrl.u32 %v861, 16
      %v1022 = vrot.slane %v1020, 4
      %v1023 = vshll.u32 %v861, 16
      %v1025 = vrot.slane %v1023, 5
      %v1026 = vor.u32 %v1022, %v1025
      %v1027 = vrot.slane %v1026, 4
      %v1029 = vshll.u32 %v862, 16
      %v1031 = vrot.slane %v1029, 5
      %v1032 = vsel %vm286, %v1027, %v1031
      %v1033 = vshrl.u32 %v862, 16
      %v1035 = vrot.slane %v1033, 4
      %v1036 = vor.u32 %v1035, %v1031
      %v1037 = vrot.slane %v1036, 4
      %v1039 = vshll.u32 %v888, 16
      %v1041 = vrot.slane %v1039, 5
      %v1042 = vsel %vm286, %v1037, %v1041
      %v1044 = vshrl.u32 %v863, 16
      %v1046 = vrot.slane %v1044, 4
      %v1047 = vshll.u32 %v863, 16
      %v1049 = vrot.slane %v1047, 5
      %v1050 = vor.u32 %v1046, %v1049
      %v1051 = vrot.slane %v1050, 4
      %v1053 = vshll.u32 %v864, 16
      %v1055 = vrot.slane %v1053, 5
      %v1056 = vsel %vm286, %v1051, %v1055
      %v1057 = vshrl.u32 %v864, 16
      %v1059 = vrot.slane %v1057, 4
      %v1060 = vor.u32 %v1059, %v1055
      %v1061 = vrot.slane %v1060, 4
      %v1063 = vshll.u32 %v889, 16
      %v1065 = vrot.slane %v1063, 5
      %v1066 = vsel %vm286, %v1061, %v1065
      %v1068 = vshrl.u32 %v865, 16
      %v1070 = vrot.slane %v1068, 4
      %v1071 = vshll.u32 %v865, 16
      %v1073 = vrot.slane %v1071, 5
      %v1074 = vor.u32 %v1070, %v1073
      %v1075 = vrot.slane %v1074, 4
      %v1077 = vshll.u32 %v866, 16
      %v1079 = vrot.slane %v1077, 5
      %v1080 = vsel %vm286, %v1075, %v1079
      %v1081 = vshrl.u32 %v866, 16
      %v1083 = vrot.slane %v1081, 4
      %v1084 = vor.u32 %v1083, %v1079
      %v1085 = vrot.slane %v1084, 4
      %v1087 = vshll.u32 %v890, 16
      %v1089 = vrot.slane %v1087, 5
      %v1090 = vsel %vm286, %v1085, %v1089
      %v1092 = vshrl.u32 %v867, 16
      %v1094 = vrot.slane %v1092, 4
      %v1095 = vshll.u32 %v867, 16
      %v1097 = vrot.slane %v1095, 5
      %v1098 = vor.u32 %v1094, %v1097
      %v1099 = vrot.slane %v1098, 4
      %v1101 = vshll.u32 %v868, 16
      %v1103 = vrot.slane %v1101, 5
      %v1104 = vsel %vm286, %v1099, %v1103
      %v1105 = vshrl.u32 %v868, 16
      %v1107 = vrot.slane %v1105, 4
      %v1108 = vor.u32 %v1107, %v1103
      %v1109 = vrot.slane %v1108, 4
      %v1111 = vshll.u32 %v891, 16
      %v1113 = vrot.slane %v1111, 5
      %v1114 = vsel %vm286, %v1109, %v1113
      %v1116 = vshrl.u32 %v869, 16
      %v1118 = vrot.slane %v1116, 4
      %v1119 = vshll.u32 %v869, 16
      %v1121 = vrot.slane %v1119, 5
      %v1122 = vor.u32 %v1118, %v1121
      %v1123 = vrot.slane %v1122, 4
      %v1125 = vshll.u32 %v870, 16
      %v1127 = vrot.slane %v1125, 5
      %v1128 = vsel %vm286, %v1123, %v1127
      %v1129 = vshrl.u32 %v870, 16
      %v1131 = vrot.slane %v1129, 4
      %v1132 = vor.u32 %v1131, %v1127
      %v1133 = vrot.slane %v1132, 4
      %v1135 = vshll.u32 %v892, 16
      %v1137 = vrot.slane %v1135, 5
      %v1138 = vsel %vm286, %v1133, %v1137
      %v1140 = vshrl.u32 %v871, 16
      %v1142 = vrot.slane %v1140, 4
      %v1143 = vshll.u32 %v871, 16
      %v1145 = vrot.slane %v1143, 5
      %v1146 = vor.u32 %v1142, %v1145
      %v1147 = vrot.slane %v1146, 4
      %v1149 = vshll.u32 %v872, 16
      %v1151 = vrot.slane %v1149, 5
      %v1152 = vsel %vm286, %v1147, %v1151
      %v1153 = vshrl.u32 %v872, 16
      %v1155 = vrot.slane %v1153, 4
      %v1156 = vor.u32 %v1155, %v1151
      %v1157 = vrot.slane %v1156, 4
      %v1159 = vshll.u32 %v893, 16
      %v1161 = vrot.slane %v1159, 5
      %v1162 = vsel %vm286, %v1157, %v1161
      %v1164 = vshrl.u32 %v873, 16
      %v1166 = vrot.slane %v1164, 4
      %v1167 = vshll.u32 %v873, 16
      %v1169 = vrot.slane %v1167, 5
      %v1170 = vor.u32 %v1166, %v1169
      %v1171 = vrot.slane %v1170, 4
      %v1173 = vshll.u32 %v874, 16
      %v1175 = vrot.slane %v1173, 5
      %v1176 = vsel %vm286, %v1171, %v1175
      %v1177 = vshrl.u32 %v874, 16
      %v1179 = vrot.slane %v1177, 4
      %v1180 = vor.u32 %v1179, %v1175
      %v1181 = vrot.slane %v1180, 4
      %v1183 = vshll.u32 %v894, 16
      %v1185 = vrot.slane %v1183, 5
      %v1186 = vsel %vm286, %v1181, %v1185
      %v1188 = vshrl.u32 %v875, 16
      %v1190 = vrot.slane %v1188, 4
      %v1191 = vshll.u32 %v875, 16
      %v1193 = vrot.slane %v1191, 5
      %v1194 = vor.u32 %v1190, %v1193
      %v1195 = vrot.slane %v1194, 4
      %v1197 = vshll.u32 %v876, 16
      %v1199 = vrot.slane %v1197, 5
      %v1200 = vsel %vm286, %v1195, %v1199
      %v1201 = vshrl.u32 %v876, 16
      %v1203 = vrot.slane %v1201, 4
      %v1204 = vor.u32 %v1203, %v1199
      %v1205 = vrot.slane %v1204, 4
      %v1207 = vshll.u32 %v895, 16
      %v1209 = vrot.slane %v1207, 5
      %v1210 = vsel %vm286, %v1205, %v1209
      %v1212 = vshrl.u32 %v877, 16
      %v1214 = vrot.slane %v1212, 4
      %v1215 = vshll.u32 %v877, 16
      %v1217 = vrot.slane %v1215, 5
      %v1218 = vor.u32 %v1214, %v1217
      %v1219 = vrot.slane %v1218, 4
      %v1221 = vshll.u32 %v878, 16
      %v1223 = vrot.slane %v1221, 5
      %v1224 = vsel %vm286, %v1219, %v1223
      %v1225 = vshrl.u32 %v878, 16
      %v1227 = vrot.slane %v1225, 4
      %v1228 = vor.u32 %v1227, %v1223
      %v1229 = vrot.slane %v1228, 4
      %v1231 = vshll.u32 %v896, 16
      %v1233 = vrot.slane %v1231, 5
      %v1234 = vsel %vm286, %v1229, %v1233
      %v1236 = vshrl.u32 %v879, 16
      %v1238 = vrot.slane %v1236, 4
      %v1239 = vshll.u32 %v879, 16
      %v1241 = vrot.slane %v1239, 5
      %v1242 = vor.u32 %v1238, %v1241
      %v1243 = vrot.slane %v1242, 4
      %v1245 = vshll.u32 %v880, 16
      %v1247 = vrot.slane %v1245, 5
      %v1248 = vsel %vm286, %v1243, %v1247
      %v1249 = vshrl.u32 %v880, 16
      %v1251 = vrot.slane %v1249, 4
      %v1252 = vor.u32 %v1251, %v1247
      %v1253 = vrot.slane %v1252, 4
      %v1255 = vshll.u32 %v897, 16
      %v1257 = vrot.slane %v1255, 5
      %v1258 = vsel %vm286, %v1253, %v1257
      %v1260 = vshrl.u32 %v881, 16
      %v1262 = vrot.slane %v1260, 4
      %v1263 = vshll.u32 %v881, 16
      %v1265 = vrot.slane %v1263, 5
      %v1266 = vor.u32 %v1262, %v1265
      %v1267 = vrot.slane %v1266, 4
      %v1269 = vshll.u32 %v882, 16
      %v1271 = vrot.slane %v1269, 5
      %v1272 = vsel %vm286, %v1267, %v1271
      %v1273 = vshrl.u32 %v882, 16
      %v1275 = vrot.slane %v1273, 4
      %v1276 = vor.u32 %v1275, %v1271
      %v1277 = vrot.slane %v1276, 4
      %v1279 = vshll.u32 %v898, 16
      %v1281 = vrot.slane %v1279, 5
      %v1282 = vsel %vm286, %v1277, %v1281
      %v1283 = vld [vmem:[%s850] sm:$0xe]
      %v1284 = vld [vmem:[%s850 + $0xc] sm:$0xe]
      %v1285 = vld [vmem:[%s850 + $0x18] sm:$0xe]
      %v1286 = vld [vmem:[%s850 + $0x24] sm:$0xe]
      %v1287 = vld [vmem:[%s850 + $0x30] sm:$0xe]
      %v1288 = vld [vmem:[%s850 + $0x3c] sm:$0xe]
      %v1289 = vld [vmem:[%s850 + $0x48] sm:$0xe]
      %v1290 = vld [vmem:[%s850 + $0x54] sm:$0xe]
      %v1291 = vld [vmem:[%s850 + $0x60] sm:$0xe]
      %v1292 = vld [vmem:[%s850 + $0x6c] sm:$0xe]
      %v1293 = vld [vmem:[%s850 + $0x78] sm:$0xe]
      %v1294 = vld [vmem:[%s850 + $0x84] sm:$0xe]
      %v1295 = vld [vmem:[%s850 + $0x90] sm:$0xe]
      %v1296 = vld [vmem:[%s850 + $0x9c] sm:$0xe]
      %v1297 = vld [vmem:[%s850 + $0xa8] sm:$0xe]
      %v1298 = vld [vmem:[%s850 + $0xb4] sm:$0xe]
      %v1347 = vrot.slane %v1283, 5
      %v1348 = vrot.slane %v1347, 4
      %v1349 = vrot.slane %v852, 5
      %v1350 = vsel %vm737, %v1348, %v1349
      %v1351 = vrot.slane %v1349, 4
      %v1352 = vrot.slane %v883, 5
      %v1353 = vsel %vm737, %v1351, %v1352
      %v1354 = vrot.slane %v1284, 5
      %v1355 = vrot.slane %v1354, 4
      %v1356 = vrot.slane %v854, 5
      %v1357 = vsel %vm737, %v1355, %v1356
      %v1358 = vrot.slane %v1356, 4
      %v1359 = vrot.slane %v884, 5
      %v1360 = vsel %vm737, %v1358, %v1359
      %v1361 = vrot.slane %v1285, 5
      %v1362 = vrot.slane %v1361, 4
      %v1363 = vrot.slane %v856, 5
      %v1364 = vsel %vm737, %v1362, %v1363
      %v1365 = vrot.slane %v1363, 4
      %v1366 = vrot.slane %v885, 5
      %v1367 = vsel %vm737, %v1365, %v1366
      %v1368 = vrot.slane %v1286, 5
      %v1369 = vrot.slane %v1368, 4
      %v1370 = vrot.slane %v858, 5
      %v1371 = vsel %vm737, %v1369, %v1370
      %v1372 = vrot.slane %v1370, 4
      %v1373 = vrot.slane %v886, 5
      %v1374 = vsel %vm737, %v1372, %v1373
      %v1375 = vrot.slane %v1287, 5
      %v1376 = vrot.slane %v1375, 4
      %v1377 = vrot.slane %v860, 5
      %v1378 = vsel %vm737, %v1376, %v1377
      %v1379 = vrot.slane %v1377, 4
      %v1380 = vrot.slane %v887, 5
      %v1381 = vsel %vm737, %v1379, %v1380
      %v1382 = vrot.slane %v1288, 5
      %v1383 = vrot.slane %v1382, 4
      %v1384 = vrot.slane %v862, 5
      %v1385 = vsel %vm737, %v1383, %v1384
      %v1386 = vrot.slane %v1384, 4
      %v1387 = vrot.slane %v888, 5
      %v1388 = vsel %vm737, %v1386, %v1387
      %v1389 = vrot.slane %v1289, 5
      %v1390 = vrot.slane %v1389, 4
      %v1391 = vrot.slane %v864, 5
      %v1392 = vsel %vm737, %v1390, %v1391
      %v1393 = vrot.slane %v1391, 4
      %v1394 = vrot.slane %v889, 5
      %v1395 = vsel %vm737, %v1393, %v1394
      %v1396 = vrot.slane %v1290, 5
      %v1397 = vrot.slane %v1396, 4
      %v1398 = vrot.slane %v866, 5
      %v1399 = vsel %vm737, %v1397, %v1398
      %v1400 = vrot.slane %v1398, 4
      %v1401 = vrot.slane %v890, 5
      %v1402 = vsel %vm737, %v1400, %v1401
      %v1403 = vrot.slane %v1291, 5
      %v1404 = vrot.slane %v1403, 4
      %v1405 = vrot.slane %v868, 5
      %v1406 = vsel %vm737, %v1404, %v1405
      %v1407 = vrot.slane %v1405, 4
      %v1408 = vrot.slane %v891, 5
      %v1409 = vsel %vm737, %v1407, %v1408
      %v1410 = vrot.slane %v1292, 5
      %v1411 = vrot.slane %v1410, 4
      %v1412 = vrot.slane %v870, 5
      %v1413 = vsel %vm737, %v1411, %v1412
      %v1414 = vrot.slane %v1412, 4
      %v1415 = vrot.slane %v892, 5
      %v1416 = vsel %vm737, %v1414, %v1415
      %v1417 = vrot.slane %v1293, 5
      %v1418 = vrot.slane %v1417, 4
      %v1419 = vrot.slane %v872, 5
      %v1420 = vsel %vm737, %v1418, %v1419
      %v1421 = vrot.slane %v1419, 4
      %v1422 = vrot.slane %v893, 5
      %v1423 = vsel %vm737, %v1421, %v1422
      %v1424 = vrot.slane %v1294, 5
      %v1425 = vrot.slane %v1424, 4
      %v1426 = vrot.slane %v874, 5
      %v1427 = vsel %vm737, %v1425, %v1426
      %v1428 = vrot.slane %v1426, 4
      %v1429 = vrot.slane %v894, 5
      %v1430 = vsel %vm737, %v1428, %v1429
      %v1431 = vrot.slane %v1295, 5
      %v1432 = vrot.slane %v1431, 4
      %v1433 = vrot.slane %v876, 5
      %v1434 = vsel %vm737, %v1432, %v1433
      %v1435 = vrot.slane %v1433, 4
      %v1436 = vrot.slane %v895, 5
      %v1437 = vsel %vm737, %v1435, %v1436
      %v1438 = vrot.slane %v1296, 5
      %v1439 = vrot.slane %v1438, 4
      %v1440 = vrot.slane %v878, 5
      %v1441 = vsel %vm737, %v1439, %v1440
      %v1442 = vrot.slane %v1440, 4
      %v1443 = vrot.slane %v896, 5
      %v1444 = vsel %vm737, %v1442, %v1443
      %v1445 = vrot.slane %v1297, 5
      %v1446 = vrot.slane %v1445, 4
      %v1447 = vrot.slane %v880, 5
      %v1448 = vsel %vm737, %v1446, %v1447
      %v1449 = vrot.slane %v1447, 4
      %v1450 = vrot.slane %v897, 5
      %v1451 = vsel %vm737, %v1449, %v1450
      %v1452 = vrot.slane %v1298, 5
      %v1453 = vrot.slane %v1452, 4
      %v1454 = vrot.slane %v882, 5
      %v1455 = vsel %vm737, %v1453, %v1454
      %v1456 = vrot.slane %v1454, 4
      %v1457 = vrot.slane %v898, 5
      %v1458 = vsel %vm737, %v1456, %v1457
      %s1459 = scalar_lea.vmem %s224, 24
      %v1460 = vld [vmem:[%s1459] sm:$0xf]
      %v1461 = vld [vmem:[%s1459 + $0x4] sm:$0xf]
      %v1462 = vld [vmem:[%s1459 + $0xc] sm:$0xf]
      %v1463 = vld [vmem:[%s1459 + $0x10] sm:$0xf]
      %v1464 = vld [vmem:[%s1459 + $0x18] sm:$0xf]
      %v1465 = vld [vmem:[%s1459 + $0x1c] sm:$0xf]
      %v1466 = vld [vmem:[%s1459 + $0x24] sm:$0xf]
      %v1467 = vld [vmem:[%s1459 + $0x28] sm:$0xf]
      %v1468 = vld [vmem:[%s1459 + $0x30] sm:$0xf]
      %v1469 = vld [vmem:[%s1459 + $0x34] sm:$0xf]
      %v1470 = vld [vmem:[%s1459 + $0x3c] sm:$0xf]
      %v1471 = vld [vmem:[%s1459 + $0x40] sm:$0xf]
      %v1472 = vld [vmem:[%s1459 + $0x48] sm:$0xf]
      %v1473 = vld [vmem:[%s1459 + $0x4c] sm:$0xf]
      %v1474 = vld [vmem:[%s1459 + $0x54] sm:$0xf]
      %v1475 = vld [vmem:[%s1459 + $0x58] sm:$0xf]
      %v1476 = vld [vmem:[%s1459 + $0x60] sm:$0xf]
      %v1477 = vld [vmem:[%s1459 + $0x64] sm:$0xf]
      %v1478 = vld [vmem:[%s1459 + $0x6c] sm:$0xf]
      %v1479 = vld [vmem:[%s1459 + $0x70] sm:$0xf]
      %v1480 = vld [vmem:[%s1459 + $0x78] sm:$0xf]
      %v1481 = vld [vmem:[%s1459 + $0x7c] sm:$0xf]
      %v1482 = vld [vmem:[%s1459 + $0x84] sm:$0xf]
      %v1483 = vld [vmem:[%s1459 + $0x88] sm:$0xf]
      %v1484 = vld [vmem:[%s1459 + $0x90] sm:$0xf]
      %v1485 = vld [vmem:[%s1459 + $0x94] sm:$0xf]
      %v1486 = vld [vmem:[%s1459 + $0x9c] sm:$0xf]
      %v1487 = vld [vmem:[%s1459 + $0xa0] sm:$0xf]
      %v1488 = vld [vmem:[%s1459 + $0xa8] sm:$0xf]
      %v1489 = vld [vmem:[%s1459 + $0xac] sm:$0xf]
      %v1490 = vld [vmem:[%s1459 + $0xb4] sm:$0xf]
      %v1491 = vld [vmem:[%s1459 + $0xb8] sm:$0xf]
      %v1492 = vld [vmem:[%s1459 + $0x8] sm:$0x1]
      %v1493 = vld [vmem:[%s1459 + $0x14] sm:$0x1]
      %v1494 = vld [vmem:[%s1459 + $0x20] sm:$0x1]
      %v1495 = vld [vmem:[%s1459 + $0x2c] sm:$0x1]
      %v1496 = vld [vmem:[%s1459 + $0x38] sm:$0x1]
      %v1497 = vld [vmem:[%s1459 + $0x44] sm:$0x1]
      %v1498 = vld [vmem:[%s1459 + $0x50] sm:$0x1]
      %v1499 = vld [vmem:[%s1459 + $0x5c] sm:$0x1]
      %v1500 = vld [vmem:[%s1459 + $0x68] sm:$0x1]
      %v1501 = vld [vmem:[%s1459 + $0x74] sm:$0x1]
      %v1502 = vld [vmem:[%s1459 + $0x80] sm:$0x1]
      %v1503 = vld [vmem:[%s1459 + $0x8c] sm:$0x1]
      %v1504 = vld [vmem:[%s1459 + $0x98] sm:$0x1]
      %v1505 = vld [vmem:[%s1459 + $0xa4] sm:$0x1]
      %v1506 = vld [vmem:[%s1459 + $0xb0] sm:$0x1]
      %v1507 = vld [vmem:[%s1459 + $0xbc] sm:$0x1]
      %v1509 = vshrl.u32 %v1460, 16
      %v1511 = vrot.slane %v1509, 4
      %v1512 = vshll.u32 %v1460, 16
      %v1514 = vrot.slane %v1512, 5
      %v1515 = vor.u32 %v1511, %v1514
      %v1516 = vrot.slane %v1515, 4
      %v1518 = vshll.u32 %v1461, 16
      %v1520 = vrot.slane %v1518, 5
      %v1521 = vsel %vm286, %v1516, %v1520
      %v1522 = vshrl.u32 %v1461, 16
      %v1524 = vrot.slane %v1522, 4
      %v1525 = vor.u32 %v1524, %v1520
      %v1526 = vrot.slane %v1525, 4
      %v1528 = vshll.u32 %v1492, 16
      %v1530 = vrot.slane %v1528, 5
      %v1531 = vsel %vm286, %v1526, %v1530
      %v1533 = vshrl.u32 %v1462, 16
      %v1535 = vrot.slane %v1533, 4
      %v1536 = vshll.u32 %v1462, 16
      %v1538 = vrot.slane %v1536, 5
      %v1539 = vor.u32 %v1535, %v1538
      %v1540 = vrot.slane %v1539, 4
      %v1542 = vshll.u32 %v1463, 16
      %v1544 = vrot.slane %v1542, 5
      %v1545 = vsel %vm286, %v1540, %v1544
      %v1546 = vshrl.u32 %v1463, 16
      %v1548 = vrot.slane %v1546, 4
      %v1549 = vor.u32 %v1548, %v1544
      %v1550 = vrot.slane %v1549, 4
      %v1552 = vshll.u32 %v1493, 16
      %v1554 = vrot.slane %v1552, 5
      %v1555 = vsel %vm286, %v1550, %v1554
      %v1557 = vshrl.u32 %v1464, 16
      %v1559 = vrot.slane %v1557, 4
      %v1560 = vshll.u32 %v1464, 16
      %v1562 = vrot.slane %v1560, 5
      %v1563 = vor.u32 %v1559, %v1562
      %v1564 = vrot.slane %v1563, 4
      %v1566 = vshll.u32 %v1465, 16
      %v1568 = vrot.slane %v1566, 5
      %v1569 = vsel %vm286, %v1564, %v1568
      %v1570 = vshrl.u32 %v1465, 16
      %v1572 = vrot.slane %v1570, 4
      %v1573 = vor.u32 %v1572, %v1568
      %v1574 = vrot.slane %v1573, 4
      %v1576 = vshll.u32 %v1494, 16
      %v1578 = vrot.slane %v1576, 5
      %v1579 = vsel %vm286, %v1574, %v1578
      %v1581 = vshrl.u32 %v1466, 16
      %v1583 = vrot.slane %v1581, 4
      %v1584 = vshll.u32 %v1466, 16
      %v1586 = vrot.slane %v1584, 5
      %v1587 = vor.u32 %v1583, %v1586
      %v1588 = vrot.slane %v1587, 4
      %v1590 = vshll.u32 %v1467, 16
      %v1592 = vrot.slane %v1590, 5
      %v1593 = vsel %vm286, %v1588, %v1592
      %v1594 = vshrl.u32 %v1467, 16
      %v1596 = vrot.slane %v1594, 4
      %v1597 = vor.u32 %v1596, %v1592
      %v1598 = vrot.slane %v1597, 4
      %v1600 = vshll.u32 %v1495, 16
      %v1602 = vrot.slane %v1600, 5
      %v1603 = vsel %vm286, %v1598, %v1602
      %v1605 = vshrl.u32 %v1468, 16
      %v1607 = vrot.slane %v1605, 4
      %v1608 = vshll.u32 %v1468, 16
      %v1610 = vrot.slane %v1608, 5
      %v1611 = vor.u32 %v1607, %v1610
      %v1612 = vrot.slane %v1611, 4
      %v1614 = vshll.u32 %v1469, 16
      %v1616 = vrot.slane %v1614, 5
      %v1617 = vsel %vm286, %v1612, %v1616
      %v1618 = vshrl.u32 %v1469, 16
      %v1620 = vrot.slane %v1618, 4
      %v1621 = vor.u32 %v1620, %v1616
      %v1622 = vrot.slane %v1621, 4
      %v1624 = vshll.u32 %v1496, 16
      %v1626 = vrot.slane %v1624, 5
      %v1627 = vsel %vm286, %v1622, %v1626
      %v1629 = vshrl.u32 %v1470, 16
      %v1631 = vrot.slane %v1629, 4
      %v1632 = vshll.u32 %v1470, 16
      %v1634 = vrot.slane %v1632, 5
      %v1635 = vor.u32 %v1631, %v1634
      %v1636 = vrot.slane %v1635, 4
      %v1638 = vshll.u32 %v1471, 16
      %v1640 = vrot.slane %v1638, 5
      %v1641 = vsel %vm286, %v1636, %v1640
      %v1642 = vshrl.u32 %v1471, 16
      %v1644 = vrot.slane %v1642, 4
      %v1645 = vor.u32 %v1644, %v1640
      %v1646 = vrot.slane %v1645, 4
      %v1648 = vshll.u32 %v1497, 16
      %v1650 = vrot.slane %v1648, 5
      %v1651 = vsel %vm286, %v1646, %v1650
      %v1653 = vshrl.u32 %v1472, 16
      %v1655 = vrot.slane %v1653, 4
      %v1656 = vshll.u32 %v1472, 16
      %v1658 = vrot.slane %v1656, 5
      %v1659 = vor.u32 %v1655, %v1658
      %v1660 = vrot.slane %v1659, 4
      %v1662 = vshll.u32 %v1473, 16
      %v1664 = vrot.slane %v1662, 5
      %v1665 = vsel %vm286, %v1660, %v1664
      %v1666 = vshrl.u32 %v1473, 16
      %v1668 = vrot.slane %v1666, 4
      %v1669 = vor.u32 %v1668, %v1664
      %v1670 = vrot.slane %v1669, 4
      %v1672 = vshll.u32 %v1498, 16
      %v1674 = vrot.slane %v1672, 5
      %v1675 = vsel %vm286, %v1670, %v1674
      %v1677 = vshrl.u32 %v1474, 16
      %v1679 = vrot.slane %v1677, 4
      %v1680 = vshll.u32 %v1474, 16
      %v1682 = vrot.slane %v1680, 5
      %v1683 = vor.u32 %v1679, %v1682
      %v1684 = vrot.slane %v1683, 4
      %v1686 = vshll.u32 %v1475, 16
      %v1688 = vrot.slane %v1686, 5
      %v1689 = vsel %vm286, %v1684, %v1688
      %v1690 = vshrl.u32 %v1475, 16
      %v1692 = vrot.slane %v1690, 4
      %v1693 = vor.u32 %v1692, %v1688
      %v1694 = vrot.slane %v1693, 4
      %v1696 = vshll.u32 %v1499, 16
      %v1698 = vrot.slane %v1696, 5
      %v1699 = vsel %vm286, %v1694, %v1698
      %v1701 = vshrl.u32 %v1476, 16
      %v1703 = vrot.slane %v1701, 4
      %v1704 = vshll.u32 %v1476, 16
      %v1706 = vrot.slane %v1704, 5
      %v1707 = vor.u32 %v1703, %v1706
      %v1708 = vrot.slane %v1707, 4
      %v1710 = vshll.u32 %v1477, 16
      %v1712 = vrot.slane %v1710, 5
      %v1713 = vsel %vm286, %v1708, %v1712
      %v1714 = vshrl.u32 %v1477, 16
      %v1716 = vrot.slane %v1714, 4
      %v1717 = vor.u32 %v1716, %v1712
      %v1718 = vrot.slane %v1717, 4
      %v1720 = vshll.u32 %v1500, 16
      %v1722 = vrot.slane %v1720, 5
      %v1723 = vsel %vm286, %v1718, %v1722
      %v1725 = vshrl.u32 %v1478, 16
      %v1727 = vrot.slane %v1725, 4
      %v1728 = vshll.u32 %v1478, 16
      %v1730 = vrot.slane %v1728, 5
      %v1731 = vor.u32 %v1727, %v1730
      %v1732 = vrot.slane %v1731, 4
      %v1734 = vshll.u32 %v1479, 16
      %v1736 = vrot.slane %v1734, 5
      %v1737 = vsel %vm286, %v1732, %v1736
      %v1738 = vshrl.u32 %v1479, 16
      %v1740 = vrot.slane %v1738, 4
      %v1741 = vor.u32 %v1740, %v1736
      %v1742 = vrot.slane %v1741, 4
      %v1744 = vshll.u32 %v1501, 16
      %v1746 = vrot.slane %v1744, 5
      %v1747 = vsel %vm286, %v1742, %v1746
      %v1749 = vshrl.u32 %v1480, 16
      %v1751 = vrot.slane %v1749, 4
      %v1752 = vshll.u32 %v1480, 16
      %v1754 = vrot.slane %v1752, 5
      %v1755 = vor.u32 %v1751, %v1754
      %v1756 = vrot.slane %v1755, 4
      %v1758 = vshll.u32 %v1481, 16
      %v1760 = vrot.slane %v1758, 5
      %v1761 = vsel %vm286, %v1756, %v1760
      %v1762 = vshrl.u32 %v1481, 16
      %v1764 = vrot.slane %v1762, 4
      %v1765 = vor.u32 %v1764, %v1760
      %v1766 = vrot.slane %v1765, 4
      %v1768 = vshll.u32 %v1502, 16
      %v1770 = vrot.slane %v1768, 5
      %v1771 = vsel %vm286, %v1766, %v1770
      %v1773 = vshrl.u32 %v1482, 16
      %v1775 = vrot.slane %v1773, 4
      %v1776 = vshll.u32 %v1482, 16
      %v1778 = vrot.slane %v1776, 5
      %v1779 = vor.u32 %v1775, %v1778
      %v1780 = vrot.slane %v1779, 4
      %v1782 = vshll.u32 %v1483, 16
      %v1784 = vrot.slane %v1782, 5
      %v1785 = vsel %vm286, %v1780, %v1784
      %v1786 = vshrl.u32 %v1483, 16
      %v1788 = vrot.slane %v1786, 4
      %v1789 = vor.u32 %v1788, %v1784
      %v1790 = vrot.slane %v1789, 4
      %v1792 = vshll.u32 %v1503, 16
      %v1794 = vrot.slane %v1792, 5
      %v1795 = vsel %vm286, %v1790, %v1794
      %v1797 = vshrl.u32 %v1484, 16
      %v1799 = vrot.slane %v1797, 4
      %v1800 = vshll.u32 %v1484, 16
      %v1802 = vrot.slane %v1800, 5
      %v1803 = vor.u32 %v1799, %v1802
      %v1804 = vrot.slane %v1803, 4
      %v1806 = vshll.u32 %v1485, 16
      %v1808 = vrot.slane %v1806, 5
      %v1809 = vsel %vm286, %v1804, %v1808
      %v1810 = vshrl.u32 %v1485, 16
      %v1812 = vrot.slane %v1810, 4
      %v1813 = vor.u32 %v1812, %v1808
      %v1814 = vrot.slane %v1813, 4
      %v1816 = vshll.u32 %v1504, 16
      %v1818 = vrot.slane %v1816, 5
      %v1819 = vsel %vm286, %v1814, %v1818
      %v1821 = vshrl.u32 %v1486, 16
      %v1823 = vrot.slane %v1821, 4
      %v1824 = vshll.u32 %v1486, 16
      %v1826 = vrot.slane %v1824, 5
      %v1827 = vor.u32 %v1823, %v1826
      %v1828 = vrot.slane %v1827, 4
      %v1830 = vshll.u32 %v1487, 16
      %v1832 = vrot.slane %v1830, 5
      %v1833 = vsel %vm286, %v1828, %v1832
      %v1834 = vshrl.u32 %v1487, 16
      %v1836 = vrot.slane %v1834, 4
      %v1837 = vor.u32 %v1836, %v1832
      %v1838 = vrot.slane %v1837, 4
      %v1840 = vshll.u32 %v1505, 16
      %v1842 = vrot.slane %v1840, 5
      %v1843 = vsel %vm286, %v1838, %v1842
      %v1845 = vshrl.u32 %v1488, 16
      %v1847 = vrot.slane %v1845, 4
      %v1848 = vshll.u32 %v1488, 16
      %v1850 = vrot.slane %v1848, 5
      %v1851 = vor.u32 %v1847, %v1850
      %v1852 = vrot.slane %v1851, 4
      %v1854 = vshll.u32 %v1489, 16
      %v1856 = vrot.slane %v1854, 5
      %v1857 = vsel %vm286, %v1852, %v1856
      %v1858 = vshrl.u32 %v1489, 16
      %v1860 = vrot.slane %v1858, 4
      %v1861 = vor.u32 %v1860, %v1856
      %v1862 = vrot.slane %v1861, 4
      %v1864 = vshll.u32 %v1506, 16
      %v1866 = vrot.slane %v1864, 5
      %v1867 = vsel %vm286, %v1862, %v1866
      %v1869 = vshrl.u32 %v1490, 16
      %v1871 = vrot.slane %v1869, 4
      %v1872 = vshll.u32 %v1490, 16
      %v1874 = vrot.slane %v1872, 5
      %v1875 = vor.u32 %v1871, %v1874
      %v1876 = vrot.slane %v1875, 4
      %v1878 = vshll.u32 %v1491, 16
      %v1880 = vrot.slane %v1878, 5
      %v1881 = vsel %vm286, %v1876, %v1880
      %v1882 = vshrl.u32 %v1491, 16
      %v1884 = vrot.slane %v1882, 4
      %v1885 = vor.u32 %v1884, %v1880
      %v1886 = vrot.slane %v1885, 4
      %v1888 = vshll.u32 %v1507, 16
      %v1890 = vrot.slane %v1888, 5
      %v1891 = vsel %vm286, %v1886, %v1890
      %v1892 = vld [vmem:[%s1459] sm:$0xe]
      %v1893 = vld [vmem:[%s1459 + $0xc] sm:$0xe]
      %v1894 = vld [vmem:[%s1459 + $0x18] sm:$0xe]
      %v1895 = vld [vmem:[%s1459 + $0x24] sm:$0xe]
      %v1896 = vld [vmem:[%s1459 + $0x30] sm:$0xe]
      %v1897 = vld [vmem:[%s1459 + $0x3c] sm:$0xe]
      %v1898 = vld [vmem:[%s1459 + $0x48] sm:$0xe]
      %v1899 = vld [vmem:[%s1459 + $0x54] sm:$0xe]
      %v1900 = vld [vmem:[%s1459 + $0x60] sm:$0xe]
      %v1901 = vld [vmem:[%s1459 + $0x6c] sm:$0xe]
      %v1902 = vld [vmem:[%s1459 + $0x78] sm:$0xe]
      %v1903 = vld [vmem:[%s1459 + $0x84] sm:$0xe]
      %v1904 = vld [vmem:[%s1459 + $0x90] sm:$0xe]
      %v1905 = vld [vmem:[%s1459 + $0x9c] sm:$0xe]
      %v1906 = vld [vmem:[%s1459 + $0xa8] sm:$0xe]
      %v1907 = vld [vmem:[%s1459 + $0xb4] sm:$0xe]
      %v1956 = vrot.slane %v1892, 5
      %v1957 = vrot.slane %v1956, 4
      %v1958 = vrot.slane %v1461, 5
      %v1959 = vsel %vm737, %v1957, %v1958
      %v1960 = vrot.slane %v1958, 4
      %v1961 = vrot.slane %v1492, 5
      %v1962 = vsel %vm737, %v1960, %v1961
      %v1963 = vrot.slane %v1893, 5
      %v1964 = vrot.slane %v1963, 4
      %v1965 = vrot.slane %v1463, 5
      %v1966 = vsel %vm737, %v1964, %v1965
      %v1967 = vrot.slane %v1965, 4
      %v1968 = vrot.slane %v1493, 5
      %v1969 = vsel %vm737, %v1967, %v1968
      %v1970 = vrot.slane %v1894, 5
      %v1971 = vrot.slane %v1970, 4
      %v1972 = vrot.slane %v1465, 5
      %v1973 = vsel %vm737, %v1971, %v1972
      %v1974 = vrot.slane %v1972, 4
      %v1975 = vrot.slane %v1494, 5
      %v1976 = vsel %vm737, %v1974, %v1975
      %v1977 = vrot.slane %v1895, 5
      %v1978 = vrot.slane %v1977, 4
      %v1979 = vrot.slane %v1467, 5
      %v1980 = vsel %vm737, %v1978, %v1979
      %v1981 = vrot.slane %v1979, 4
      %v1982 = vrot.slane %v1495, 5
      %v1983 = vsel %vm737, %v1981, %v1982
      %v1984 = vrot.slane %v1896, 5
      %v1985 = vrot.slane %v1984, 4
      %v1986 = vrot.slane %v1469, 5
      %v1987 = vsel %vm737, %v1985, %v1986
      %v1988 = vrot.slane %v1986, 4
      %v1989 = vrot.slane %v1496, 5
      %v1990 = vsel %vm737, %v1988, %v1989
      %v1991 = vrot.slane %v1897, 5
      %v1992 = vrot.slane %v1991, 4
      %v1993 = vrot.slane %v1471, 5
      %v1994 = vsel %vm737, %v1992, %v1993
      %v1995 = vrot.slane %v1993, 4
      %v1996 = vrot.slane %v1497, 5
      %v1997 = vsel %vm737, %v1995, %v1996
      %v1998 = vrot.slane %v1898, 5
      %v1999 = vrot.slane %v1998, 4
      %v2000 = vrot.slane %v1473, 5
      %v2001 = vsel %vm737, %v1999, %v2000
      %v2002 = vrot.slane %v2000, 4
      %v2003 = vrot.slane %v1498, 5
      %v2004 = vsel %vm737, %v2002, %v2003
      %v2005 = vrot.slane %v1899, 5
      %v2006 = vrot.slane %v2005, 4
      %v2007 = vrot.slane %v1475, 5
      %v2008 = vsel %vm737, %v2006, %v2007
      %v2009 = vrot.slane %v2007, 4
      %v2010 = vrot.slane %v1499, 5
      %v2011 = vsel %vm737, %v2009, %v2010
      %v2012 = vrot.slane %v1900, 5
      %v2013 = vrot.slane %v2012, 4
      %v2014 = vrot.slane %v1477, 5
      %v2015 = vsel %vm737, %v2013, %v2014
      %v2016 = vrot.slane %v2014, 4
      %v2017 = vrot.slane %v1500, 5
      %v2018 = vsel %vm737, %v2016, %v2017
      %v2019 = vrot.slane %v1901, 5
      %v2020 = vrot.slane %v2019, 4
      %v2021 = vrot.slane %v1479, 5
      %v2022 = vsel %vm737, %v2020, %v2021
      %v2023 = vrot.slane %v2021, 4
      %v2024 = vrot.slane %v1501, 5
      %v2025 = vsel %vm737, %v2023, %v2024
      %v2026 = vrot.slane %v1902, 5
      %v2027 = vrot.slane %v2026, 4
      %v2028 = vrot.slane %v1481, 5
      %v2029 = vsel %vm737, %v2027, %v2028
      %v2030 = vrot.slane %v2028, 4
      %v2031 = vrot.slane %v1502, 5
      %v2032 = vsel %vm737, %v2030, %v2031
      %v2033 = vrot.slane %v1903, 5
      %v2034 = vrot.slane %v2033, 4
      %v2035 = vrot.slane %v1483, 5
      %v2036 = vsel %vm737, %v2034, %v2035
      %v2037 = vrot.slane %v2035, 4
      %v2038 = vrot.slane %v1503, 5
      %v2039 = vsel %vm737, %v2037, %v2038
      %v2040 = vrot.slane %v1904, 5
      %v2041 = vrot.slane %v2040, 4
      %v2042 = vrot.slane %v1485, 5
      %v2043 = vsel %vm737, %v2041, %v2042
      %v2044 = vrot.slane %v2042, 4
      %v2045 = vrot.slane %v1504, 5
      %v2046 = vsel %vm737, %v2044, %v2045
      %v2047 = vrot.slane %v1905, 5
      %v2048 = vrot.slane %v2047, 4
      %v2049 = vrot.slane %v1487, 5
      %v2050 = vsel %vm737, %v2048, %v2049
      %v2051 = vrot.slane %v2049, 4
      %v2052 = vrot.slane %v1505, 5
      %v2053 = vsel %vm737, %v2051, %v2052
      %v2054 = vrot.slane %v1906, 5
      %v2055 = vrot.slane %v2054, 4
      %v2056 = vrot.slane %v1489, 5
      %v2057 = vsel %vm737, %v2055, %v2056
      %v2058 = vrot.slane %v2056, 4
      %v2059 = vrot.slane %v1506, 5
      %v2060 = vsel %vm737, %v2058, %v2059
      %v2061 = vrot.slane %v1907, 5
      %v2062 = vrot.slane %v2061, 4
      %v2063 = vrot.slane %v1491, 5
      %v2064 = vsel %vm737, %v2062, %v2063
      %v2065 = vrot.slane %v2063, 4
      %v2066 = vrot.slane %v1507, 5
      %v2067 = vsel %vm737, %v2065, %v2066
      %v2084 = vunpack.c.l.b16 %v236
      %v2085 = vunpack.c.l.b16 %v237
      %v2086 = vunpack.c.l.b16 %v238
      %v2087 = vunpack.c.l.b16 %v239
      %v2088 = vunpack.c.l.b16 %v240
      %v2089 = vunpack.c.l.b16 %v241
      %v2090 = vunpack.c.l.b16 %v242
      %v2091 = vunpack.c.l.b16 %v243
      %v2092 = vunpack.c.l.b16 %v244
      %v2093 = vunpack.c.l.b16 %v245
      %v2094 = vunpack.c.l.b16 %v246
      %v2095 = vunpack.c.l.b16 %v247
      %v2096 = vunpack.c.l.b16 %v248
      %v2097 = vunpack.c.l.b16 %v249
      %v2098 = vunpack.c.l.b16 %v250
      %v2099 = vunpack.c.l.b16 %v251
      %v2100 = vunpack.c.l.b16 %v252
      %v2101 = vunpack.c.l.b16 %v253
      %v2102 = vunpack.c.l.b16 %v254
      %v2103 = vunpack.c.l.b16 %v255
      %v2104 = vunpack.c.l.b16 %v256
      %v2105 = vunpack.c.l.b16 %v257
      %v2106 = vunpack.c.l.b16 %v258
      %v2107 = vunpack.c.l.b16 %v259
      %v2108 = vunpack.c.l.b16 %v260
      %v2109 = vunpack.c.l.b16 %v261
      %v2110 = vunpack.c.l.b16 %v262
      %v2111 = vunpack.c.l.b16 %v263
      %v2112 = vunpack.c.l.b16 %v264
      %v2113 = vunpack.c.l.b16 %v265
      %v2114 = vunpack.c.l.b16 %v266
      %v2115 = vunpack.c.l.b16 %v267
      %v2116 = vpack.c.b16 %v2085, %v2084
      %v2117 = vpack.c.b16 %v2087, %v2086
      %v2118 = vpack.c.b16 %v2089, %v2088
      %v2119 = vpack.c.b16 %v2091, %v2090
      %v2120 = vpack.c.b16 %v2093, %v2092
      %v2121 = vpack.c.b16 %v2095, %v2094
      %v2122 = vpack.c.b16 %v2097, %v2096
      %v2123 = vpack.c.b16 %v2099, %v2098
      %v2124 = vpack.c.b16 %v2101, %v2100
      %v2125 = vpack.c.b16 %v2103, %v2102
      %v2126 = vpack.c.b16 %v2105, %v2104
      %v2127 = vpack.c.b16 %v2107, %v2106
      %v2128 = vpack.c.b16 %v2109, %v2108
      %v2129 = vpack.c.b16 %v2111, %v2110
      %v2130 = vpack.c.b16 %v2113, %v2112
      %v2131 = vpack.c.b16 %v2115, %v2114
      %v2148 = vunpack.c.l.b16 %v300
      %v2149 = vunpack.c.l.b16 %v310
      %v2150 = vunpack.c.l.b16 %v324
      %v2151 = vunpack.c.l.b16 %v334
      %v2152 = vunpack.c.l.b16 %v348
      %v2153 = vunpack.c.l.b16 %v358
      %v2154 = vunpack.c.l.b16 %v372
      %v2155 = vunpack.c.l.b16 %v382
      %v2156 = vunpack.c.l.b16 %v396
      %v2157 = vunpack.c.l.b16 %v406
      %v2158 = vunpack.c.l.b16 %v420
      %v2159 = vunpack.c.l.b16 %v430
      %v2160 = vunpack.c.l.b16 %v444
      %v2161 = vunpack.c.l.b16 %v454
      %v2162 = vunpack.c.l.b16 %v468
      %v2163 = vunpack.c.l.b16 %v478
      %v2164 = vunpack.c.l.b16 %v492
      %v2165 = vunpack.c.l.b16 %v502
      %v2166 = vunpack.c.l.b16 %v516
      %v2167 = vunpack.c.l.b16 %v526
      %v2168 = vunpack.c.l.b16 %v540
      %v2169 = vunpack.c.l.b16 %v550
      %v2170 = vunpack.c.l.b16 %v564
      %v2171 = vunpack.c.l.b16 %v574
      %v2172 = vunpack.c.l.b16 %v588
      %v2173 = vunpack.c.l.b16 %v598
      %v2174 = vunpack.c.l.b16 %v612
      %v2175 = vunpack.c.l.b16 %v622
      %v2176 = vunpack.c.l.b16 %v636
      %v2177 = vunpack.c.l.b16 %v646
      %v2178 = vunpack.c.l.b16 %v660
      %v2179 = vunpack.c.l.b16 %v670
      %v2180 = vpack.c.b16 %v2149, %v2148
      %v2181 = vpack.c.b16 %v2151, %v2150
      %v2182 = vpack.c.b16 %v2153, %v2152
      %v2183 = vpack.c.b16 %v2155, %v2154
      %v2184 = vpack.c.b16 %v2157, %v2156
      %v2185 = vpack.c.b16 %v2159, %v2158
      %v2186 = vpack.c.b16 %v2161, %v2160
      %v2187 = vpack.c.b16 %v2163, %v2162
      %v2188 = vpack.c.b16 %v2165, %v2164
      %v2189 = vpack.c.b16 %v2167, %v2166
      %v2190 = vpack.c.b16 %v2169, %v2168
      %v2191 = vpack.c.b16 %v2171, %v2170
      %v2192 = vpack.c.b16 %v2173, %v2172
      %v2193 = vpack.c.b16 %v2175, %v2174
      %v2194 = vpack.c.b16 %v2177, %v2176
      %v2195 = vpack.c.b16 %v2179, %v2178
      %v2212 = vunpack.c.l.b16 %v741
      %v2213 = vunpack.c.l.b16 %v744
      %v2214 = vunpack.c.l.b16 %v748
      %v2215 = vunpack.c.l.b16 %v751
      %v2216 = vunpack.c.l.b16 %v755
      %v2217 = vunpack.c.l.b16 %v758
      %v2218 = vunpack.c.l.b16 %v762
      %v2219 = vunpack.c.l.b16 %v765
      %v2220 = vunpack.c.l.b16 %v769
      %v2221 = vunpack.c.l.b16 %v772
      %v2222 = vunpack.c.l.b16 %v776
      %v2223 = vunpack.c.l.b16 %v779
      %v2224 = vunpack.c.l.b16 %v783
      %v2225 = vunpack.c.l.b16 %v786
      %v2226 = vunpack.c.l.b16 %v790
      %v2227 = vunpack.c.l.b16 %v793
      %v2228 = vunpack.c.l.b16 %v797
      %v2229 = vunpack.c.l.b16 %v800
      %v2230 = vunpack.c.l.b16 %v804
      %v2231 = vunpack.c.l.b16 %v807
      %v2232 = vunpack.c.l.b16 %v811
      %v2233 = vunpack.c.l.b16 %v814
      %v2234 = vunpack.c.l.b16 %v818
      %v2235 = vunpack.c.l.b16 %v821
      %v2236 = vunpack.c.l.b16 %v825
      %v2237 = vunpack.c.l.b16 %v828
      %v2238 = vunpack.c.l.b16 %v832
      %v2239 = vunpack.c.l.b16 %v835
      %v2240 = vunpack.c.l.b16 %v839
      %v2241 = vunpack.c.l.b16 %v842
      %v2242 = vunpack.c.l.b16 %v846
      %v2243 = vunpack.c.l.b16 %v849
      %v2244 = vpack.c.b16 %v2213, %v2212
      %v2245 = vpack.c.b16 %v2215, %v2214
      %v2246 = vpack.c.b16 %v2217, %v2216
      %v2247 = vpack.c.b16 %v2219, %v2218
      %v2248 = vpack.c.b16 %v2221, %v2220
      %v2249 = vpack.c.b16 %v2223, %v2222
      %v2250 = vpack.c.b16 %v2225, %v2224
      %v2251 = vpack.c.b16 %v2227, %v2226
      %v2252 = vpack.c.b16 %v2229, %v2228
      %v2253 = vpack.c.b16 %v2231, %v2230
      %v2254 = vpack.c.b16 %v2233, %v2232
      %v2255 = vpack.c.b16 %v2235, %v2234
      %v2256 = vpack.c.b16 %v2237, %v2236
      %v2257 = vpack.c.b16 %v2239, %v2238
      %v2258 = vpack.c.b16 %v2241, %v2240
      %v2259 = vpack.c.b16 %v2243, %v2242
      %v2292 = vunpack.c.l.b16 %v851
      %v2293 = vunpack.c.l.b16 %v852
      %v2294 = vunpack.c.l.b16 %v853
      %v2295 = vunpack.c.l.b16 %v854
      %v2296 = vunpack.c.l.b16 %v855
      %v2297 = vunpack.c.l.b16 %v856
      %v2298 = vunpack.c.l.b16 %v857
      %v2299 = vunpack.c.l.b16 %v858
      %v2300 = vunpack.c.l.b16 %v859
      %v2301 = vunpack.c.l.b16 %v860
      %v2302 = vunpack.c.l.b16 %v861
      %v2303 = vunpack.c.l.b16 %v862
      %v2304 = vunpack.c.l.b16 %v863
      %v2305 = vunpack.c.l.b16 %v864
      %v2306 = vunpack.c.l.b16 %v865
      %v2307 = vunpack.c.l.b16 %v866
      %v2308 = vunpack.c.l.b16 %v867
      %v2309 = vunpack.c.l.b16 %v868
      %v2310 = vunpack.c.l.b16 %v869
      %v2311 = vunpack.c.l.b16 %v870
      %v2312 = vunpack.c.l.b16 %v871
      %v2313 = vunpack.c.l.b16 %v872
      %v2314 = vunpack.c.l.b16 %v873
      %v2315 = vunpack.c.l.b16 %v874
      %v2316 = vunpack.c.l.b16 %v875
      %v2317 = vunpack.c.l.b16 %v876
      %v2318 = vunpack.c.l.b16 %v877
      %v2319 = vunpack.c.l.b16 %v878
      %v2320 = vunpack.c.l.b16 %v879
      %v2321 = vunpack.c.l.b16 %v880
      %v2322 = vunpack.c.l.b16 %v881
      %v2323 = vunpack.c.l.b16 %v882
      %v2324 = vpack.c.b16 %v2293, %v2292
      %v2325 = vpack.c.b16 %v2295, %v2294
      %v2326 = vpack.c.b16 %v2297, %v2296
      %v2327 = vpack.c.b16 %v2299, %v2298
      %v2328 = vpack.c.b16 %v2301, %v2300
      %v2329 = vpack.c.b16 %v2303, %v2302
      %v2330 = vpack.c.b16 %v2305, %v2304
      %v2331 = vpack.c.b16 %v2307, %v2306
      %v2332 = vpack.c.b16 %v2309, %v2308
      %v2333 = vpack.c.b16 %v2311, %v2310
      %v2334 = vpack.c.b16 %v2313, %v2312
      %v2335 = vpack.c.b16 %v2315, %v2314
      %v2336 = vpack.c.b16 %v2317, %v2316
      %v2337 = vpack.c.b16 %v2319, %v2318
      %v2338 = vpack.c.b16 %v2321, %v2320
      %v2339 = vpack.c.b16 %v2323, %v2322
      %v2356 = vunpack.c.l.b16 %v912
      %v2357 = vunpack.c.l.b16 %v922
      %v2358 = vunpack.c.l.b16 %v936
      %v2359 = vunpack.c.l.b16 %v946
      %v2360 = vunpack.c.l.b16 %v960
      %v2361 = vunpack.c.l.b16 %v970
      %v2362 = vunpack.c.l.b16 %v984
      %v2363 = vunpack.c.l.b16 %v994
      %v2364 = vunpack.c.l.b16 %v1008
      %v2365 = vunpack.c.l.b16 %v1018
      %v2366 = vunpack.c.l.b16 %v1032
      %v2367 = vunpack.c.l.b16 %v1042
      %v2368 = vunpack.c.l.b16 %v1056
      %v2369 = vunpack.c.l.b16 %v1066
      %v2370 = vunpack.c.l.b16 %v1080
      %v2371 = vunpack.c.l.b16 %v1090
      %v2372 = vunpack.c.l.b16 %v1104
      %v2373 = vunpack.c.l.b16 %v1114
      %v2374 = vunpack.c.l.b16 %v1128
      %v2375 = vunpack.c.l.b16 %v1138
      %v2376 = vunpack.c.l.b16 %v1152
      %v2377 = vunpack.c.l.b16 %v1162
      %v2378 = vunpack.c.l.b16 %v1176
      %v2379 = vunpack.c.l.b16 %v1186
      %v2380 = vunpack.c.l.b16 %v1200
      %v2381 = vunpack.c.l.b16 %v1210
      %v2382 = vunpack.c.l.b16 %v1224
      %v2383 = vunpack.c.l.b16 %v1234
      %v2384 = vunpack.c.l.b16 %v1248
      %v2385 = vunpack.c.l.b16 %v1258
      %v2386 = vunpack.c.l.b16 %v1272
      %v2387 = vunpack.c.l.b16 %v1282
      %v2388 = vpack.c.b16 %v2357, %v2356
      %v2389 = vpack.c.b16 %v2359, %v2358
      %v2390 = vpack.c.b16 %v2361, %v2360
      %v2391 = vpack.c.b16 %v2363, %v2362
      %v2392 = vpack.c.b16 %v2365, %v2364
      %v2393 = vpack.c.b16 %v2367, %v2366
      %v2394 = vpack.c.b16 %v2369, %v2368
      %v2395 = vpack.c.b16 %v2371, %v2370
      %v2396 = vpack.c.b16 %v2373, %v2372
      %v2397 = vpack.c.b16 %v2375, %v2374
      %v2398 = vpack.c.b16 %v2377, %v2376
      %v2399 = vpack.c.b16 %v2379, %v2378
      %v2400 = vpack.c.b16 %v2381, %v2380
      %v2401 = vpack.c.b16 %v2383, %v2382
      %v2402 = vpack.c.b16 %v2385, %v2384
      %v2403 = vpack.c.b16 %v2387, %v2386
      %v2420 = vunpack.c.l.b16 %v1350
      %v2421 = vunpack.c.l.b16 %v1353
      %v2422 = vunpack.c.l.b16 %v1357
      %v2423 = vunpack.c.l.b16 %v1360
      %v2424 = vunpack.c.l.b16 %v1364
      %v2425 = vunpack.c.l.b16 %v1367
      %v2426 = vunpack.c.l.b16 %v1371
      %v2427 = vunpack.c.l.b16 %v1374
      %v2428 = vunpack.c.l.b16 %v1378
      %v2429 = vunpack.c.l.b16 %v1381
      %v2430 = vunpack.c.l.b16 %v1385
      %v2431 = vunpack.c.l.b16 %v1388
      %v2432 = vunpack.c.l.b16 %v1392
      %v2433 = vunpack.c.l.b16 %v1395
      %v2434 = vunpack.c.l.b16 %v1399
      %v2435 = vunpack.c.l.b16 %v1402
      %v2436 = vunpack.c.l.b16 %v1406
      %v2437 = vunpack.c.l.b16 %v1409
      %v2438 = vunpack.c.l.b16 %v1413
      %v2439 = vunpack.c.l.b16 %v1416
      %v2440 = vunpack.c.l.b16 %v1420
      %v2441 = vunpack.c.l.b16 %v1423
      %v2442 = vunpack.c.l.b16 %v1427
      %v2443 = vunpack.c.l.b16 %v1430
      %v2444 = vunpack.c.l.b16 %v1434
      %v2445 = vunpack.c.l.b16 %v1437
      %v2446 = vunpack.c.l.b16 %v1441
      %v2447 = vunpack.c.l.b16 %v1444
      %v2448 = vunpack.c.l.b16 %v1448
      %v2449 = vunpack.c.l.b16 %v1451
      %v2450 = vunpack.c.l.b16 %v1455
      %v2451 = vunpack.c.l.b16 %v1458
      %v2452 = vpack.c.b16 %v2421, %v2420
      %v2453 = vpack.c.b16 %v2423, %v2422
      %v2454 = vpack.c.b16 %v2425, %v2424
      %v2455 = vpack.c.b16 %v2427, %v2426
      %v2456 = vpack.c.b16 %v2429, %v2428
      %v2457 = vpack.c.b16 %v2431, %v2430
      %v2458 = vpack.c.b16 %v2433, %v2432
      %v2459 = vpack.c.b16 %v2435, %v2434
      %v2460 = vpack.c.b16 %v2437, %v2436
      %v2461 = vpack.c.b16 %v2439, %v2438
      %v2462 = vpack.c.b16 %v2441, %v2440
      %v2463 = vpack.c.b16 %v2443, %v2442
      %v2464 = vpack.c.b16 %v2445, %v2444
      %v2465 = vpack.c.b16 %v2447, %v2446
      %v2466 = vpack.c.b16 %v2449, %v2448
      %v2467 = vpack.c.b16 %v2451, %v2450
      %v2500 = vunpack.c.l.b16 %v1460
      %v2501 = vunpack.c.l.b16 %v1461
      %v2502 = vunpack.c.l.b16 %v1462
      %v2503 = vunpack.c.l.b16 %v1463
      %v2504 = vunpack.c.l.b16 %v1464
      %v2505 = vunpack.c.l.b16 %v1465
      %v2506 = vunpack.c.l.b16 %v1466
      %v2507 = vunpack.c.l.b16 %v1467
      %v2508 = vunpack.c.l.b16 %v1468
      %v2509 = vunpack.c.l.b16 %v1469
      %v2510 = vunpack.c.l.b16 %v1470
      %v2511 = vunpack.c.l.b16 %v1471
      %v2512 = vunpack.c.l.b16 %v1472
      %v2513 = vunpack.c.l.b16 %v1473
      %v2514 = vunpack.c.l.b16 %v1474
      %v2515 = vunpack.c.l.b16 %v1475
      %v2516 = vunpack.c.l.b16 %v1476
      %v2517 = vunpack.c.l.b16 %v1477
      %v2518 = vunpack.c.l.b16 %v1478
      %v2519 = vunpack.c.l.b16 %v1479
      %v2520 = vunpack.c.l.b16 %v1480
      %v2521 = vunpack.c.l.b16 %v1481
      %v2522 = vunpack.c.l.b16 %v1482
      %v2523 = vunpack.c.l.b16 %v1483
      %v2524 = vunpack.c.l.b16 %v1484
      %v2525 = vunpack.c.l.b16 %v1485
      %v2526 = vunpack.c.l.b16 %v1486
      %v2527 = vunpack.c.l.b16 %v1487
      %v2528 = vunpack.c.l.b16 %v1488
      %v2529 = vunpack.c.l.b16 %v1489
      %v2530 = vunpack.c.l.b16 %v1490
      %v2531 = vunpack.c.l.b16 %v1491
      %v2532 = vpack.c.b16 %v2501, %v2500
      %v2533 = vpack.c.b16 %v2503, %v2502
      %v2534 = vpack.c.b16 %v2505, %v2504
      %v2535 = vpack.c.b16 %v2507, %v2506
      %v2536 = vpack.c.b16 %v2509, %v2508
      %v2537 = vpack.c.b16 %v2511, %v2510
      %v2538 = vpack.c.b16 %v2513, %v2512
      %v2539 = vpack.c.b16 %v2515, %v2514
      %v2540 = vpack.c.b16 %v2517, %v2516
      %v2541 = vpack.c.b16 %v2519, %v2518
      %v2542 = vpack.c.b16 %v2521, %v2520
      %v2543 = vpack.c.b16 %v2523, %v2522
      %v2544 = vpack.c.b16 %v2525, %v2524
      %v2545 = vpack.c.b16 %v2527, %v2526
      %v2546 = vpack.c.b16 %v2529, %v2528
      %v2547 = vpack.c.b16 %v2531, %v2530
      %v2564 = vunpack.c.l.b16 %v1521
      %v2565 = vunpack.c.l.b16 %v1531
      %v2566 = vunpack.c.l.b16 %v1545
      %v2567 = vunpack.c.l.b16 %v1555
      %v2568 = vunpack.c.l.b16 %v1569
      %v2569 = vunpack.c.l.b16 %v1579
      %v2570 = vunpack.c.l.b16 %v1593
      %v2571 = vunpack.c.l.b16 %v1603
      %v2572 = vunpack.c.l.b16 %v1617
      %v2573 = vunpack.c.l.b16 %v1627
      %v2574 = vunpack.c.l.b16 %v1641
      %v2575 = vunpack.c.l.b16 %v1651
      %v2576 = vunpack.c.l.b16 %v1665
      %v2577 = vunpack.c.l.b16 %v1675
      %v2578 = vunpack.c.l.b16 %v1689
      %v2579 = vunpack.c.l.b16 %v1699
      %v2580 = vunpack.c.l.b16 %v1713
      %v2581 = vunpack.c.l.b16 %v1723
      %v2582 = vunpack.c.l.b16 %v1737
      %v2583 = vunpack.c.l.b16 %v1747
      %v2584 = vunpack.c.l.b16 %v1761
      %v2585 = vunpack.c.l.b16 %v1771
      %v2586 = vunpack.c.l.b16 %v1785
      %v2587 = vunpack.c.l.b16 %v1795
      %v2588 = vunpack.c.l.b16 %v1809
      %v2589 = vunpack.c.l.b16 %v1819
      %v2590 = vunpack.c.l.b16 %v1833
      %v2591 = vunpack.c.l.b16 %v1843
      %v2592 = vunpack.c.l.b16 %v1857
      %v2593 = vunpack.c.l.b16 %v1867
      %v2594 = vunpack.c.l.b16 %v1881
      %v2595 = vunpack.c.l.b16 %v1891
      %v2596 = vpack.c.b16 %v2565, %v2564
      %v2597 = vpack.c.b16 %v2567, %v2566
      %v2598 = vpack.c.b16 %v2569, %v2568
      %v2599 = vpack.c.b16 %v2571, %v2570
      %v2600 = vpack.c.b16 %v2573, %v2572
      %v2601 = vpack.c.b16 %v2575, %v2574
      %v2602 = vpack.c.b16 %v2577, %v2576
      %v2603 = vpack.c.b16 %v2579, %v2578
      %v2604 = vpack.c.b16 %v2581, %v2580
      %v2605 = vpack.c.b16 %v2583, %v2582
      %v2606 = vpack.c.b16 %v2585, %v2584
      %v2607 = vpack.c.b16 %v2587, %v2586
      %v2608 = vpack.c.b16 %v2589, %v2588
      %v2609 = vpack.c.b16 %v2591, %v2590
      %v2610 = vpack.c.b16 %v2593, %v2592
      %v2611 = vpack.c.b16 %v2595, %v2594
      %v2628 = vunpack.c.l.b16 %v1959
      %v2629 = vunpack.c.l.b16 %v1962
      %v2630 = vunpack.c.l.b16 %v1966
      %v2631 = vunpack.c.l.b16 %v1969
      %v2632 = vunpack.c.l.b16 %v1973
      %v2633 = vunpack.c.l.b16 %v1976
      %v2634 = vunpack.c.l.b16 %v1980
      %v2635 = vunpack.c.l.b16 %v1983
      %v2636 = vunpack.c.l.b16 %v1987
      %v2637 = vunpack.c.l.b16 %v1990
      %v2638 = vunpack.c.l.b16 %v1994
      %v2639 = vunpack.c.l.b16 %v1997
      %v2640 = vunpack.c.l.b16 %v2001
      %v2641 = vunpack.c.l.b16 %v2004
      %v2642 = vunpack.c.l.b16 %v2008
      %v2643 = vunpack.c.l.b16 %v2011
      %v2644 = vunpack.c.l.b16 %v2015
      %v2645 = vunpack.c.l.b16 %v2018
      %v2646 = vunpack.c.l.b16 %v2022
      %v2647 = vunpack.c.l.b16 %v2025
      %v2648 = vunpack.c.l.b16 %v2029
      %v2649 = vunpack.c.l.b16 %v2032
      %v2650 = vunpack.c.l.b16 %v2036
      %v2651 = vunpack.c.l.b16 %v2039
      %v2652 = vunpack.c.l.b16 %v2043
      %v2653 = vunpack.c.l.b16 %v2046
      %v2654 = vunpack.c.l.b16 %v2050
      %v2655 = vunpack.c.l.b16 %v2053
      %v2656 = vunpack.c.l.b16 %v2057
      %v2657 = vunpack.c.l.b16 %v2060
      %v2658 = vunpack.c.l.b16 %v2064
      %v2659 = vunpack.c.l.b16 %v2067
      %v2660 = vpack.c.b16 %v2629, %v2628
      %v2661 = vpack.c.b16 %v2631, %v2630
      %v2662 = vpack.c.b16 %v2633, %v2632
      %v2663 = vpack.c.b16 %v2635, %v2634
      %v2664 = vpack.c.b16 %v2637, %v2636
      %v2665 = vpack.c.b16 %v2639, %v2638
      %v2666 = vpack.c.b16 %v2641, %v2640
      %v2667 = vpack.c.b16 %v2643, %v2642
      %v2668 = vpack.c.b16 %v2645, %v2644
      %v2669 = vpack.c.b16 %v2647, %v2646
      %v2670 = vpack.c.b16 %v2649, %v2648
      %v2671 = vpack.c.b16 %v2651, %v2650
      %v2672 = vpack.c.b16 %v2653, %v2652
      %v2673 = vpack.c.b16 %v2655, %v2654
      %v2674 = vpack.c.b16 %v2657, %v2656
      %v2675 = vpack.c.b16 %v2659, %v2658
      %v2692 = vld [vmem:[%s1] sm:$0xf]
      %v2693 = vld [vmem:[%s1 + $0x4] sm:$0xf]
      %v2694 = vld [vmem:[%s1 + $0x8] sm:$0xf]
      %v2695 = vld [vmem:[%s1 + $0xc] sm:$0xf]
      %v2696 = vld [vmem:[%s1 + $0x10] sm:$0xf]
      %v2697 = vld [vmem:[%s1 + $0x14] sm:$0xf]
      %v2698 = vld [vmem:[%s1 + $0x18] sm:$0xf]
      %v2699 = vld [vmem:[%s1 + $0x1c] sm:$0xf]
      %v2700 = vld [vmem:[%s1 + $0x20] sm:$0xf]
      %v2701 = vld [vmem:[%s1 + $0x24] sm:$0xf]
      %v2702 = vld [vmem:[%s1 + $0x28] sm:$0xf]
      %v2703 = vld [vmem:[%s1 + $0x2c] sm:$0xf]
      %v2704 = vld [vmem:[%s1 + $0x30] sm:$0xf]
      %v2705 = vld [vmem:[%s1 + $0x34] sm:$0xf]
      %v2706 = vld [vmem:[%s1 + $0x38] sm:$0xf]
      %v2707 = vld [vmem:[%s1 + $0x3c] sm:$0xf]
      %v2708 = vld [vmem:[%s1 + $0x40] sm:$0xf]
      %v2709 = vld [vmem:[%s1 + $0x44] sm:$0xf]
      %v2710 = vld [vmem:[%s1 + $0x48] sm:$0xf]
      %v2711 = vld [vmem:[%s1 + $0x4c] sm:$0xf]
      %v2712 = vld [vmem:[%s1 + $0x50] sm:$0xf]
      %v2713 = vld [vmem:[%s1 + $0x54] sm:$0xf]
      %v2714 = vld [vmem:[%s1 + $0x58] sm:$0xf]
      %v2715 = vld [vmem:[%s1 + $0x5c] sm:$0xf]
      %v2716 = vld [vmem:[%s1 + $0x60] sm:$0xf]
      %v2717 = vld [vmem:[%s1 + $0x64] sm:$0xf]
      %v2718 = vld [vmem:[%s1 + $0x68] sm:$0xf]
      %v2719 = vld [vmem:[%s1 + $0x6c] sm:$0xf]
      %v2720 = vld [vmem:[%s1 + $0x70] sm:$0xf]
      %v2721 = vld [vmem:[%s1 + $0x74] sm:$0xf]
      %v2722 = vld [vmem:[%s1 + $0x78] sm:$0xf]
      %v2723 = vld [vmem:[%s1 + $0x7c] sm:$0xf]
      %v2724 = vld [vmem:[%s1 + $0x80] sm:$0xf]
      %v2725 = vld [vmem:[%s1 + $0x84] sm:$0xf]
      %v2726 = vld [vmem:[%s1 + $0x88] sm:$0xf]
      %v2727 = vld [vmem:[%s1 + $0x8c] sm:$0xf]
      %v2728 = vld [vmem:[%s1 + $0x90] sm:$0xf]
      %v2729 = vld [vmem:[%s1 + $0x94] sm:$0xf]
      %v2730 = vld [vmem:[%s1 + $0x98] sm:$0xf]
      %v2731 = vld [vmem:[%s1 + $0x9c] sm:$0xf]
      %v2732 = vld [vmem:[%s1 + $0xa0] sm:$0xf]
      %v2733 = vld [vmem:[%s1 + $0xa4] sm:$0xf]
      %v2734 = vld [vmem:[%s1 + $0xa8] sm:$0xf]
      %v2735 = vld [vmem:[%s1 + $0xac] sm:$0xf]
      %v2736 = vld [vmem:[%s1 + $0xb0] sm:$0xf]
      %v2737 = vld [vmem:[%s1 + $0xb4] sm:$0xf]
      %v2738 = vld [vmem:[%s1 + $0xb8] sm:$0xf]
      %v2739 = vld [vmem:[%s1 + $0xbc] sm:$0xf]
      %v2740 = vld [vmem:[%s1 + $0xc0] sm:$0xf]
      %v2741 = vld [vmem:[%s1 + $0xc4] sm:$0xf]
      %v2742 = vld [vmem:[%s1 + $0xc8] sm:$0xf]
      %v2743 = vld [vmem:[%s1 + $0xcc] sm:$0xf]
      %v2744 = vld [vmem:[%s1 + $0xd0] sm:$0xf]
      %v2745 = vld [vmem:[%s1 + $0xd4] sm:$0xf]
      %v2746 = vld [vmem:[%s1 + $0xd8] sm:$0xf]
      %v2747 = vld [vmem:[%s1 + $0xdc] sm:$0xf]
      %v2748 = vld [vmem:[%s1 + $0xe0] sm:$0xf]
      %v2749 = vld [vmem:[%s1 + $0xe4] sm:$0xf]
      %v2750 = vld [vmem:[%s1 + $0xe8] sm:$0xf]
      %v2751 = vld [vmem:[%s1 + $0xec] sm:$0xf]
      %v2752 = vld [vmem:[%s1 + $0xf0] sm:$0xf]
      %v2753 = vld [vmem:[%s1 + $0xf4] sm:$0xf]
      %v2754 = vld [vmem:[%s1 + $0xf8] sm:$0xf]
      %v2755 = vld [vmem:[%s1 + $0xfc] sm:$0xf]
      %v2756 = vld [vmem:[%s1 + $0x100] sm:$0xf]
      %v2757 = vld [vmem:[%s1 + $0x104] sm:$0xf]
      %v2758 = vld [vmem:[%s1 + $0x108] sm:$0xf]
      %v2759 = vld [vmem:[%s1 + $0x10c] sm:$0xf]
      %v2760 = vld [vmem:[%s1 + $0x110] sm:$0xf]
      %v2761 = vld [vmem:[%s1 + $0x114] sm:$0xf]
      %v2762 = vld [vmem:[%s1 + $0x118] sm:$0xf]
      %v2763 = vld [vmem:[%s1 + $0x11c] sm:$0xf]
      %v2764 = vld [vmem:[%s1 + $0x120] sm:$0xf]
      %v2765 = vld [vmem:[%s1 + $0x124] sm:$0xf]
      %v2766 = vld [vmem:[%s1 + $0x128] sm:$0xf]
      %v2767 = vld [vmem:[%s1 + $0x12c] sm:$0xf]
      %v2768 = vld [vmem:[%s1 + $0x130] sm:$0xf]
      %v2769 = vld [vmem:[%s1 + $0x134] sm:$0xf]
      %v2770 = vld [vmem:[%s1 + $0x138] sm:$0xf]
      %v2771 = vld [vmem:[%s1 + $0x13c] sm:$0xf]
      %v2772 = vld [vmem:[%s1 + $0x140] sm:$0xf]
      %v2773 = vld [vmem:[%s1 + $0x144] sm:$0xf]
      %v2774 = vld [vmem:[%s1 + $0x148] sm:$0xf]
      %v2775 = vld [vmem:[%s1 + $0x14c] sm:$0xf]
      %v2776 = vld [vmem:[%s1 + $0x150] sm:$0xf]
      %v2777 = vld [vmem:[%s1 + $0x154] sm:$0xf]
      %v2778 = vld [vmem:[%s1 + $0x158] sm:$0xf]
      %v2779 = vld [vmem:[%s1 + $0x15c] sm:$0xf]
      %v2780 = vld [vmem:[%s1 + $0x160] sm:$0xf]
      %v2781 = vld [vmem:[%s1 + $0x164] sm:$0xf]
      %v2782 = vld [vmem:[%s1 + $0x168] sm:$0xf]
      %v2783 = vld [vmem:[%s1 + $0x16c] sm:$0xf]
      %v2784 = vld [vmem:[%s1 + $0x170] sm:$0xf]
      %v2785 = vld [vmem:[%s1 + $0x174] sm:$0xf]
      %v2786 = vld [vmem:[%s1 + $0x178] sm:$0xf]
      %v2787 = vld [vmem:[%s1 + $0x17c] sm:$0xf]
      %v2788 = vld [vmem:[%s1 + $0x180] sm:$0xf]
      %v2789 = vld [vmem:[%s1 + $0x184] sm:$0xf]
      %v2790 = vld [vmem:[%s1 + $0x188] sm:$0xf]
      %v2791 = vld [vmem:[%s1 + $0x18c] sm:$0xf]
      %v2792 = vld [vmem:[%s1 + $0x190] sm:$0xf]
      %v2793 = vld [vmem:[%s1 + $0x194] sm:$0xf]
      %v2794 = vld [vmem:[%s1 + $0x198] sm:$0xf]
      %v2795 = vld [vmem:[%s1 + $0x19c] sm:$0xf]
      %v2796 = vld [vmem:[%s1 + $0x1a0] sm:$0xf]
      %v2797 = vld [vmem:[%s1 + $0x1a4] sm:$0xf]
      %v2798 = vld [vmem:[%s1 + $0x1a8] sm:$0xf]
      %v2799 = vld [vmem:[%s1 + $0x1ac] sm:$0xf]
      %v2800 = vld [vmem:[%s1 + $0x1b0] sm:$0xf]
      %v2801 = vld [vmem:[%s1 + $0x1b4] sm:$0xf]
      %v2802 = vld [vmem:[%s1 + $0x1b8] sm:$0xf]
      %v2803 = vld [vmem:[%s1 + $0x1bc] sm:$0xf]
      %v2804 = vld [vmem:[%s1 + $0x1c0] sm:$0xf]
      %v2805 = vld [vmem:[%s1 + $0x1c4] sm:$0xf]
      %v2806 = vld [vmem:[%s1 + $0x1c8] sm:$0xf]
      %v2807 = vld [vmem:[%s1 + $0x1cc] sm:$0xf]
      %v2808 = vld [vmem:[%s1 + $0x1d0] sm:$0xf]
      %v2809 = vld [vmem:[%s1 + $0x1d4] sm:$0xf]
      %v2810 = vld [vmem:[%s1 + $0x1d8] sm:$0xf]
      %v2811 = vld [vmem:[%s1 + $0x1dc] sm:$0xf]
      %v2812 = vld [vmem:[%s1 + $0x1e0] sm:$0xf]
      %v2813 = vld [vmem:[%s1 + $0x1e4] sm:$0xf]
      %v2814 = vld [vmem:[%s1 + $0x1e8] sm:$0xf]
      %v2815 = vld [vmem:[%s1 + $0x1ec] sm:$0xf]
      %v2816 = vld [vmem:[%s1 + $0x1f0] sm:$0xf]
      %v2817 = vld [vmem:[%s1 + $0x1f4] sm:$0xf]
      %v2818 = vld [vmem:[%s1 + $0x1f8] sm:$0xf]
      %v2819 = vld [vmem:[%s1 + $0x1fc] sm:$0xf]
      %v2820 = vld [vmem:[%s1 + $0x200] sm:$0xf]
      %v2821 = vld [vmem:[%s1 + $0x204] sm:$0xf]
      %v2822 = vld [vmem:[%s1 + $0x208] sm:$0xf]
      %v2823 = vld [vmem:[%s1 + $0x20c] sm:$0xf]
      %v2824 = vld [vmem:[%s1 + $0x210] sm:$0xf]
      %v2825 = vld [vmem:[%s1 + $0x214] sm:$0xf]
      %v2826 = vld [vmem:[%s1 + $0x218] sm:$0xf]
      %v2827 = vld [vmem:[%s1 + $0x21c] sm:$0xf]
      %v2828 = vld [vmem:[%s1 + $0x220] sm:$0xf]
      %v2829 = vld [vmem:[%s1 + $0x224] sm:$0xf]
      %v2830 = vld [vmem:[%s1 + $0x228] sm:$0xf]
      %v2831 = vld [vmem:[%s1 + $0x22c] sm:$0xf]
      %v2832 = vld [vmem:[%s1 + $0x230] sm:$0xf]
      %v2833 = vld [vmem:[%s1 + $0x234] sm:$0xf]
      %v2834 = vld [vmem:[%s1 + $0x238] sm:$0xf]
      %v2835 = vld [vmem:[%s1 + $0x23c] sm:$0xf]
      %v2980 = vunpack.c.l.b16 %v2692
      %v2981 = vunpack.c.l.b16 %v2693
      %v2982 = vunpack.c.l.b16 %v2694
      %v2983 = vunpack.c.l.b16 %v2695
      %v2984 = vunpack.c.l.b16 %v2696
      %v2985 = vunpack.c.l.b16 %v2697
      %v2986 = vunpack.c.l.b16 %v2698
      %v2987 = vunpack.c.l.b16 %v2699
      %v2988 = vunpack.c.l.b16 %v2700
      %v2989 = vunpack.c.l.b16 %v2701
      %v2990 = vunpack.c.l.b16 %v2702
      %v2991 = vunpack.c.l.b16 %v2703
      %v2992 = vunpack.c.l.b16 %v2704
      %v2993 = vunpack.c.l.b16 %v2705
      %v2994 = vunpack.c.l.b16 %v2706
      %v2995 = vunpack.c.l.b16 %v2707
      %v2996 = vunpack.c.l.b16 %v2708
      %v2997 = vunpack.c.l.b16 %v2709
      %v2998 = vunpack.c.l.b16 %v2710
      %v2999 = vunpack.c.l.b16 %v2711
      %v3000 = vunpack.c.l.b16 %v2712
      %v3001 = vunpack.c.l.b16 %v2713
      %v3002 = vunpack.c.l.b16 %v2714
      %v3003 = vunpack.c.l.b16 %v2715
      %v3004 = vunpack.c.l.b16 %v2716
      %v3005 = vunpack.c.l.b16 %v2717
      %v3006 = vunpack.c.l.b16 %v2718
      %v3007 = vunpack.c.l.b16 %v2719
      %v3008 = vunpack.c.l.b16 %v2720
      %v3009 = vunpack.c.l.b16 %v2721
      %v3010 = vunpack.c.l.b16 %v2722
      %v3011 = vunpack.c.l.b16 %v2723
      %v3012 = vunpack.c.l.b16 %v2724
      %v3013 = vunpack.c.l.b16 %v2725
      %v3014 = vunpack.c.l.b16 %v2726
      %v3015 = vunpack.c.l.b16 %v2727
      %v3016 = vunpack.c.l.b16 %v2728
      %v3017 = vunpack.c.l.b16 %v2729
      %v3018 = vunpack.c.l.b16 %v2730
      %v3019 = vunpack.c.l.b16 %v2731
      %v3020 = vunpack.c.l.b16 %v2732
      %v3021 = vunpack.c.l.b16 %v2733
      %v3022 = vunpack.c.l.b16 %v2734
      %v3023 = vunpack.c.l.b16 %v2735
      %v3024 = vunpack.c.l.b16 %v2736
      %v3025 = vunpack.c.l.b16 %v2737
      %v3026 = vunpack.c.l.b16 %v2738
      %v3027 = vunpack.c.l.b16 %v2739
      %v3028 = vunpack.c.l.b16 %v2740
      %v3029 = vunpack.c.l.b16 %v2741
      %v3030 = vunpack.c.l.b16 %v2742
      %v3031 = vunpack.c.l.b16 %v2743
      %v3032 = vunpack.c.l.b16 %v2744
      %v3033 = vunpack.c.l.b16 %v2745
      %v3034 = vunpack.c.l.b16 %v2746
      %v3035 = vunpack.c.l.b16 %v2747
      %v3036 = vunpack.c.l.b16 %v2748
      %v3037 = vunpack.c.l.b16 %v2749
      %v3038 = vunpack.c.l.b16 %v2750
      %v3039 = vunpack.c.l.b16 %v2751
      %v3040 = vunpack.c.l.b16 %v2752
      %v3041 = vunpack.c.l.b16 %v2753
      %v3042 = vunpack.c.l.b16 %v2754
      %v3043 = vunpack.c.l.b16 %v2755
      %v3044 = vunpack.c.l.b16 %v2756
      %v3045 = vunpack.c.l.b16 %v2757
      %v3046 = vunpack.c.l.b16 %v2758
      %v3047 = vunpack.c.l.b16 %v2759
      %v3048 = vunpack.c.l.b16 %v2760
      %v3049 = vunpack.c.l.b16 %v2761
      %v3050 = vunpack.c.l.b16 %v2762
      %v3051 = vunpack.c.l.b16 %v2763
      %v3052 = vunpack.c.l.b16 %v2764
      %v3053 = vunpack.c.l.b16 %v2765
      %v3054 = vunpack.c.l.b16 %v2766
      %v3055 = vunpack.c.l.b16 %v2767
      %v3056 = vunpack.c.l.b16 %v2768
      %v3057 = vunpack.c.l.b16 %v2769
      %v3058 = vunpack.c.l.b16 %v2770
      %v3059 = vunpack.c.l.b16 %v2771
      %v3060 = vunpack.c.l.b16 %v2772
      %v3061 = vunpack.c.l.b16 %v2773
      %v3062 = vunpack.c.l.b16 %v2774
      %v3063 = vunpack.c.l.b16 %v2775
      %v3064 = vunpack.c.l.b16 %v2776
      %v3065 = vunpack.c.l.b16 %v2777
      %v3066 = vunpack.c.l.b16 %v2778
      %v3067 = vunpack.c.l.b16 %v2779
      %v3068 = vunpack.c.l.b16 %v2780
      %v3069 = vunpack.c.l.b16 %v2781
      %v3070 = vunpack.c.l.b16 %v2782
      %v3071 = vunpack.c.l.b16 %v2783
      %v3072 = vunpack.c.l.b16 %v2784
      %v3073 = vunpack.c.l.b16 %v2785
      %v3074 = vunpack.c.l.b16 %v2786
      %v3075 = vunpack.c.l.b16 %v2787
      %v3076 = vunpack.c.l.b16 %v2788
      %v3077 = vunpack.c.l.b16 %v2789
      %v3078 = vunpack.c.l.b16 %v2790
      %v3079 = vunpack.c.l.b16 %v2791
      %v3080 = vunpack.c.l.b16 %v2792
      %v3081 = vunpack.c.l.b16 %v2793
      %v3082 = vunpack.c.l.b16 %v2794
      %v3083 = vunpack.c.l.b16 %v2795
      %v3084 = vunpack.c.l.b16 %v2796
      %v3085 = vunpack.c.l.b16 %v2797
      %v3086 = vunpack.c.l.b16 %v2798
      %v3087 = vunpack.c.l.b16 %v2799
      %v3088 = vunpack.c.l.b16 %v2800
      %v3089 = vunpack.c.l.b16 %v2801
      %v3090 = vunpack.c.l.b16 %v2802
      %v3091 = vunpack.c.l.b16 %v2803
      %v3092 = vunpack.c.l.b16 %v2804
      %v3093 = vunpack.c.l.b16 %v2805
      %v3094 = vunpack.c.l.b16 %v2806
      %v3095 = vunpack.c.l.b16 %v2807
      %v3096 = vunpack.c.l.b16 %v2808
      %v3097 = vunpack.c.l.b16 %v2809
      %v3098 = vunpack.c.l.b16 %v2810
      %v3099 = vunpack.c.l.b16 %v2811
      %v3100 = vunpack.c.l.b16 %v2812
      %v3101 = vunpack.c.l.b16 %v2813
      %v3102 = vunpack.c.l.b16 %v2814
      %v3103 = vunpack.c.l.b16 %v2815
      %v3104 = vunpack.c.l.b16 %v2816
      %v3105 = vunpack.c.l.b16 %v2817
      %v3106 = vunpack.c.l.b16 %v2818
      %v3107 = vunpack.c.l.b16 %v2819
      %v3108 = vunpack.c.l.b16 %v2820
      %v3109 = vunpack.c.l.b16 %v2821
      %v3110 = vunpack.c.l.b16 %v2822
      %v3111 = vunpack.c.l.b16 %v2823
      %v3112 = vunpack.c.l.b16 %v2824
      %v3113 = vunpack.c.l.b16 %v2825
      %v3114 = vunpack.c.l.b16 %v2826
      %v3115 = vunpack.c.l.b16 %v2827
      %v3116 = vunpack.c.l.b16 %v2828
      %v3117 = vunpack.c.l.b16 %v2829
      %v3118 = vunpack.c.l.b16 %v2830
      %v3119 = vunpack.c.l.b16 %v2831
      %v3120 = vunpack.c.l.b16 %v2832
      %v3121 = vunpack.c.l.b16 %v2833
      %v3122 = vunpack.c.l.b16 %v2834
      %v3123 = vunpack.c.l.b16 %v2835
      %v3124 = vpack.c.b16 %v2981, %v2980
      %v3125 = vpack.c.b16 %v2983, %v2982
      %v3126 = vpack.c.b16 %v2985, %v2984
      %v3127 = vpack.c.b16 %v2987, %v2986
      %v3128 = vpack.c.b16 %v2989, %v2988
      %v3129 = vpack.c.b16 %v2991, %v2990
      %v3130 = vpack.c.b16 %v2993, %v2992
      %v3131 = vpack.c.b16 %v2995, %v2994
      %v3132 = vpack.c.b16 %v2997, %v2996
      %v3133 = vpack.c.b16 %v2999, %v2998
      %v3134 = vpack.c.b16 %v3001, %v3000
      %v3135 = vpack.c.b16 %v3003, %v3002
      %v3136 = vpack.c.b16 %v3005, %v3004
      %v3137 = vpack.c.b16 %v3007, %v3006
      %v3138 = vpack.c.b16 %v3009, %v3008
      %v3139 = vpack.c.b16 %v3011, %v3010
      %v3140 = vpack.c.b16 %v3013, %v3012
      %v3141 = vpack.c.b16 %v3015, %v3014
      %v3142 = vpack.c.b16 %v3017, %v3016
      %v3143 = vpack.c.b16 %v3019, %v3018
      %v3144 = vpack.c.b16 %v3021, %v3020
      %v3145 = vpack.c.b16 %v3023, %v3022
      %v3146 = vpack.c.b16 %v3025, %v3024
      %v3147 = vpack.c.b16 %v3027, %v3026
      %v3148 = vpack.c.b16 %v3029, %v3028
      %v3149 = vpack.c.b16 %v3031, %v3030
      %v3150 = vpack.c.b16 %v3033, %v3032
      %v3151 = vpack.c.b16 %v3035, %v3034
      %v3152 = vpack.c.b16 %v3037, %v3036
      %v3153 = vpack.c.b16 %v3039, %v3038
      %v3154 = vpack.c.b16 %v3041, %v3040
      %v3155 = vpack.c.b16 %v3043, %v3042
      %v3156 = vpack.c.b16 %v3045, %v3044
      %v3157 = vpack.c.b16 %v3047, %v3046
      %v3158 = vpack.c.b16 %v3049, %v3048
      %v3159 = vpack.c.b16 %v3051, %v3050
      %v3160 = vpack.c.b16 %v3053, %v3052
      %v3161 = vpack.c.b16 %v3055, %v3054
      %v3162 = vpack.c.b16 %v3057, %v3056
      %v3163 = vpack.c.b16 %v3059, %v3058
      %v3164 = vpack.c.b16 %v3061, %v3060
      %v3165 = vpack.c.b16 %v3063, %v3062
      %v3166 = vpack.c.b16 %v3065, %v3064
      %v3167 = vpack.c.b16 %v3067, %v3066
      %v3168 = vpack.c.b16 %v3069, %v3068
      %v3169 = vpack.c.b16 %v3071, %v3070
      %v3170 = vpack.c.b16 %v3073, %v3072
      %v3171 = vpack.c.b16 %v3075, %v3074
      %v3172 = vpack.c.b16 %v3077, %v3076
      %v3173 = vpack.c.b16 %v3079, %v3078
      %v3174 = vpack.c.b16 %v3081, %v3080
      %v3175 = vpack.c.b16 %v3083, %v3082
      %v3176 = vpack.c.b16 %v3085, %v3084
      %v3177 = vpack.c.b16 %v3087, %v3086
      %v3178 = vpack.c.b16 %v3089, %v3088
      %v3179 = vpack.c.b16 %v3091, %v3090
      %v3180 = vpack.c.b16 %v3093, %v3092
      %v3181 = vpack.c.b16 %v3095, %v3094
      %v3182 = vpack.c.b16 %v3097, %v3096
      %v3183 = vpack.c.b16 %v3099, %v3098
      %v3184 = vpack.c.b16 %v3101, %v3100
      %v3185 = vpack.c.b16 %v3103, %v3102
      %v3186 = vpack.c.b16 %v3105, %v3104
      %v3187 = vpack.c.b16 %v3107, %v3106
      %v3188 = vpack.c.b16 %v3109, %v3108
      %v3189 = vpack.c.b16 %v3111, %v3110
      %v3190 = vpack.c.b16 %v3113, %v3112
      %v3191 = vpack.c.b16 %v3115, %v3114
      %v3192 = vpack.c.b16 %v3117, %v3116
      %v3193 = vpack.c.b16 %v3119, %v3118
      %v3194 = vpack.c.b16 %v3121, %v3120
      %v3195 = vpack.c.b16 %v3123, %v3122
      %3268 = vmatprep.subr.bf16.mxu0 0
      %3269 = vmatpush1.bf16.msra.mxu0 %v3124
      %3270 = vmatprep.subr.bf16.mxu0 0
      %3271 = vmatpush1.bf16.msra.mxu0 %v3125
      %3272 = vmatprep.subr.bf16.mxu0 0
      %3273 = vmatpush1.bf16.msra.mxu0 %v3126
      %3274 = vmatprep.subr.bf16.mxu0 0
      %3275 = vmatpush1.bf16.msra.mxu0 %v3127
      %3276 = vmatprep.subr.bf16.mxu0 0
      %3277 = vmatpush1.bf16.msra.mxu0 %v3128
      %3278 = vmatprep.subr.bf16.mxu0 0
      %3279 = vmatpush1.bf16.msra.mxu0 %v3129
      %3280 = vmatprep.subr.bf16.mxu0 0
      %3281 = vmatpush1.bf16.msra.mxu0 %v3130
      %3282 = vmatprep.subr.bf16.mxu0 0
      %3283 = vmatpush1.bf16.msra.mxu0 %v3131
      %3284 = vmatprep.subr.bf16.mxu0 0
      %3285 = vmatpush1.bf16.msra.mxu0 %v3132
      %3286 = vmatprep.subr.bf16.mxu0 0
      %3287 = vmatpush1.bf16.msra.mxu0 %v3133
      %3288 = vmatprep.subr.bf16.mxu0 0
      %3289 = vmatpush1.bf16.msra.mxu0 %v3134
      %3290 = vmatprep.subr.bf16.mxu0 0
      %3291 = vmatpush1.bf16.msra.mxu0 %v3135
      %3292 = vmatprep.subr.bf16.mxu0 0
      %3293 = vmatpush1.bf16.msra.mxu0 %v3136
      %3294 = vmatprep.subr.bf16.mxu0 0
      %3295 = vmatpush1.bf16.msra.mxu0 %v3137
      %3296 = vmatprep.subr.bf16.mxu0 0
      %3297 = vmatpush1.bf16.msra.mxu0 %v3138
      %3298 = vmatprep.subr.bf16.mxu0 0
      %3299 = vmatpush1.bf16.msra.mxu0 %v3139
      %3300 = vmatprep.mubr.bf16.mxu0 %v2180
      %3301 = vmatmul.mubr.bf16.gmra.mrb[0].mxu0 %v2116
      %v3302 = vpop.f32.mrb[0].mxu0
      %v3303 = vadd.f32 0.0, %v3302
      %v3304 = vpop.f32.mrb[0].mxu0
      %v3305 = vpop.f32.mrb[0].mxu0
      %v3306 = vadd.f32 0.0, %v3305
      %v3307 = vpop.f32.mrb[0].mxu0
      %3308 = vmatprep.mubr.bf16.mxu0 %v2181
      %3309 = vmatmul.mubr.bf16.gmra.mrb[0].mxu0 %v2117
      %v3310 = vpop.f32.mrb[0].mxu0
      %v3311 = vadd.f32 0.0, %v3310
      %v3312 = vpop.f32.mrb[0].mxu0
      %v3313 = vpop.f32.mrb[0].mxu0
      %v3314 = vadd.f32 0.0, %v3313
      %v3315 = vpop.f32.mrb[0].mxu0
      %3316 = vmatprep.mubr.bf16.mxu0 %v2182
      %3317 = vmatmul.mubr.bf16.gmra.mrb[0].mxu0 %v2118
      %v3318 = vpop.f32.mrb[0].mxu0
      %v3319 = vadd.f32 0.0, %v3318
      %v3320 = vpop.f32.mrb[0].mxu0
      %v3321 = vpop.f32.mrb[0].mxu0
      %v3322 = vadd.f32 0.0, %v3321
      %v3323 = vpop.f32.mrb[0].mxu0
      %3324 = vmatprep.mubr.bf16.mxu0 %v2183
      %3325 = vmatmul.mubr.bf16.gmra.mrb[0].mxu0 %v2119
      %v3326 = vpop.f32.mrb[0].mxu0
      %v3327 = vadd.f32 0.0, %v3326
      %v3328 = vpop.f32.mrb[0].mxu0
      %v3329 = vpop.f32.mrb[0].mxu0
      %v3330 = vadd.f32 0.0, %v3329
      %v3331 = vpop.f32.mrb[0].mxu0
      %3332 = vmatprep.mubr.bf16.mxu0 %v2184
      %3333 = vmatmul.mubr.bf16.gmra.mrb[0].mxu0 %v2120
      %v3334 = vpop.f32.mrb[0].mxu0
      %v3335 = vadd.f32 0.0, %v3334
      %v3336 = vpop.f32.mrb[0].mxu0
      %v3337 = vpop.f32.mrb[0].mxu0
      %v3338 = vadd.f32 0.0, %v3337
      %v3339 = vpop.f32.mrb[0].mxu0
      %3340 = vmatprep.mubr.bf16.mxu0 %v2185
      %3341 = vmatmul.mubr.bf16.gmra.mrb[0].mxu0 %v2121
      %v3342 = vpop.f32.mrb[0].mxu0
      %v3343 = vadd.f32 0.0, %v3342
      %v3344 = vpop.f32.mrb[0].mxu0
      %v3345 = vpop.f32.mrb[0].mxu0
      %v3346 = vadd.f32 0.0, %v3345
      %v3347 = vpop.f32.mrb[0].mxu0
      %3348 = vmatprep.mubr.bf16.mxu0 %v2186
      %3349 = vmatmul.mubr.bf16.gmra.mrb[0].mxu0 %v2122
      %v3350 = vpop.f32.mrb[0].mxu0
      %v3351 = vadd.f32 0.0, %v3350
      %v3352 = vpop.f32.mrb[0].mxu0
      %v3353 = vpop.f32.mrb[0].mxu0
      %v3354 = vadd.f32 0.0, %v3353
      %v3355 = vpop.f32.mrb[0].mxu0
      %3356 = vmatprep.mubr.bf16.mxu0 %v2187
      %3357 = vmatmul.mubr.bf16.gmra.mrb[0].mxu0 %v2123
      %v3358 = vpop.f32.mrb[0].mxu0
      %v3359 = vadd.f32 0.0, %v3358
      %v3360 = vpop.f32.mrb[0].mxu0
      %v3361 = vpop.f32.mrb[0].mxu0
      %v3362 = vadd.f32 0.0, %v3361
      %v3363 = vpop.f32.mrb[0].mxu0
      %3364 = vmatprep.mubr.bf16.mxu0 %v2188
      %3365 = vmatmul.mubr.bf16.gmra.mrb[0].mxu0 %v2124
      %v3366 = vpop.f32.mrb[0].mxu0
      %v3367 = vadd.f32 0.0, %v3366
      %v3368 = vpop.f32.mrb[0].mxu0
      %v3369 = vpop.f32.mrb[0].mxu0
      %v3370 = vadd.f32 0.0, %v3369
      %v3371 = vpop.f32.mrb[0].mxu0
      %3372 = vmatprep.mubr.bf16.mxu0 %v2189
      %3373 = vmatmul.mubr.bf16.gmra.mrb[0].mxu0 %v2125
      %v3374 = vpop.f32.mrb[0].mxu0
      %v3375 = vadd.f32 0.0, %v3374
      %v3376 = vpop.f32.mrb[0].mxu0
      %v3377 = vpop.f32.mrb[0].mxu0
      %v3378 = vadd.f32 0.0, %v3377
      %v3379 = vpop.f32.mrb[0].mxu0
      %3380 = vmatprep.mubr.bf16.mxu0 %v2190
      %3381 = vmatmul.mubr.bf16.gmra.mrb[0].mxu0 %v2126
      %v3382 = vpop.f32.mrb[0].mxu0
      %v3383 = vadd.f32 0.0, %v3382
      %v3384 = vpop.f32.mrb[0].mxu0
      %v3385 = vpop.f32.mrb[0].mxu0
      %v3386 = vadd.f32 0.0, %v3385
      %v3387 = vpop.f32.mrb[0].mxu0
      %3388 = vmatprep.mubr.bf16.mxu0 %v2191
      %3389 = vmatmul.mubr.bf16.gmra.mrb[0].mxu0 %v2127
      %v3390 = vpop.f32.mrb[0].mxu0
      %v3391 = vadd.f32 0.0, %v3390
      %v3392 = vpop.f32.mrb[0].mxu0
      %v3393 = vpop.f32.mrb[0].mxu0
      %v3394 = vadd.f32 0.0, %v3393
      %v3395 = vpop.f32.mrb[0].mxu0
      %3396 = vmatprep.mubr.bf16.mxu0 %v2192
      %3397 = vmatmul.mubr.bf16.gmra.mrb[0].mxu0 %v2128
      %v3398 = vpop.f32.mrb[0].mxu0
      %v3399 = vadd.f32 0.0, %v3398
      %v3400 = vpop.f32.mrb[0].mxu0
      %v3401 = vpop.f32.mrb[0].mxu0
      %v3402 = vadd.f32 0.0, %v3401
      %v3403 = vpop.f32.mrb[0].mxu0
      %3404 = vmatprep.mubr.bf16.mxu0 %v2193
      %3405 = vmatmul.mubr.bf16.gmra.mrb[0].mxu0 %v2129
      %v3406 = vpop.f32.mrb[0].mxu0
      %v3407 = vadd.f32 0.0, %v3406
      %v3408 = vpop.f32.mrb[0].mxu0
      %v3409 = vpop.f32.mrb[0].mxu0
      %v3410 = vadd.f32 0.0, %v3409
      %v3411 = vpop.f32.mrb[0].mxu0
      %3412 = vmatprep.mubr.bf16.mxu0 %v2194
      %3413 = vmatmul.mubr.bf16.gmra.mrb[0].mxu0 %v2130
      %v3414 = vpop.f32.mrb[0].mxu0
      %v3415 = vadd.f32 0.0, %v3414
      %v3416 = vpop.f32.mrb[0].mxu0
      %v3417 = vpop.f32.mrb[0].mxu0
      %v3418 = vadd.f32 0.0, %v3417
      %v3419 = vpop.f32.mrb[0].mxu0
      %3420 = vmatprep.mubr.bf16.mxu0 %v2195
      %3421 = vmatmul.mubr.bf16.gmra.mrb[0].mxu0 %v2131
      %v3422 = vpop.f32.mrb[0].mxu0
      %v3423 = vadd.f32 0.0, %v3422
      %v3424 = vpop.f32.mrb[0].mxu0
      %v3425 = vpop.f32.mrb[0].mxu0
      %v3426 = vadd.f32 0.0, %v3425
      %v3427 = vpop.f32.mrb[0].mxu0
      %3428 = vdwg.mxu0
      %3429 = vmatprep.subr.bf16.mxu0 0
      %3430 = vmatpush1.bf16.msra.mxu0 %v3140
      %3431 = vmatprep.subr.bf16.mxu0 0
      %3432 = vmatpush1.bf16.msra.mxu0 %v3141
      %3433 = vmatprep.subr.bf16.mxu0 0
      %3434 = vmatpush1.bf16.msra.mxu0 %v3142
      %3435 = vmatprep.subr.bf16.mxu0 0
      %3436 = vmatpush1.bf16.msra.mxu0 %v3143
      %3437 = vmatprep.subr.bf16.mxu0 0
      %3438 = vmatpush1.bf16.msra.mxu0 %v3144
      %3439 = vmatprep.subr.bf16.mxu0 0
      %3440 = vmatpush1.bf16.msra.mxu0 %v3145
      %3441 = vmatprep.subr.bf16.mxu0 0
      %3442 = vmatpush1.bf16.msra.mxu0 %v3146
      %3443 = vmatprep.subr.bf16.mxu0 0
      %3444 = vmatpush1.bf16.msra.mxu0 %v3147
      %3445 = vmatprep.subr.bf16.mxu0 0
      %3446 = vmatpush1.bf16.msra.mxu0 %v3148
      %3447 = vmatprep.subr.bf16.mxu0 0
      %3448 = vmatpush1.bf16.msra.mxu0 %v3149
      %3449 = vmatprep.subr.bf16.mxu0 0
      %3450 = vmatpush1.bf16.msra.mxu0 %v3150
      %3451 = vmatprep.subr.bf16.mxu0 0
      %3452 = vmatpush1.bf16.msra.mxu0 %v3151
      %3453 = vmatprep.subr.bf16.mxu0 0
      %3454 = vmatpush1.bf16.msra.mxu0 %v3152
      %3455 = vmatprep.subr.bf16.mxu0 0
      %3456 = vmatpush1.bf16.msra.mxu0 %v3153
      %3457 = vmatprep.subr.bf16.mxu0 0
      %3458 = vmatpush1.bf16.msra.mxu0 %v3154
      %3459 = vmatprep.subr.bf16.mxu0 0
      %3460 = vmatpush1.bf16.msra.mxu0 %v3155
      %3461 = vmatprep.mubr.bf16.mxu0 %v2324
      %3462 = vmatmul.mubr.bf16.gmra.mrb[0].mxu0 %v2244
      %v3463 = vpop.f32.mrb[0].mxu0
      %v3464 = vadd.f32 %v3303, %v3463
      %v3465 = vpop.f32.mrb[0].mxu0
      %v3466 = vpop.f32.mrb[0].mxu0
      %v3467 = vadd.f32 %v3306, %v3466
      %v3468 = vpop.f32.mrb[0].mxu0
      %3469 = vmatprep.mubr.bf16.mxu0 %v2325
      %3470 = vmatmul.mubr.bf16.gmra.mrb[0].mxu0 %v2245
      %v3471 = vpop.f32.mrb[0].mxu0
      %v3472 = vadd.f32 %v3311, %v3471
      %v3473 = vpop.f32.mrb[0].mxu0
      %v3474 = vpop.f32.mrb[0].mxu0
      %v3475 = vadd.f32 %v3314, %v3474
      %v3476 = vpop.f32.mrb[0].mxu0
      %3477 = vmatprep.mubr.bf16.mxu0 %v2326
      %3478 = vmatmul.mubr.bf16.gmra.mrb[0].mxu0 %v2246
      %v3479 = vpop.f32.mrb[0].mxu0
      %v3480 = vadd.f32 %v3319, %v3479
      %v3481 = vpop.f32.mrb[0].mxu0
      %v3482 = vpop.f32.mrb[0].mxu0
      %v3483 = vadd.f32 %v3322, %v3482
      %v3484 = vpop.f32.mrb[0].mxu0
      %3485 = vmatprep.mubr.bf16.mxu0 %v2327
      %3486 = vmatmul.mubr.bf16.gmra.mrb[0].mxu0 %v2247
      %v3487 = vpop.f32.mrb[0].mxu0
      %v3488 = vadd.f32 %v3327, %v3487
      %v3489 = vpop.f32.mrb[0].mxu0
      %v3490 = vpop.f32.mrb[0].mxu0
      %v3491 = vadd.f32 %v3330, %v3490
      %v3492 = vpop.f32.mrb[0].mxu0
      %3493 = vmatprep.mubr.bf16.mxu0 %v2328
      %3494 = vmatmul.mubr.bf16.gmra.mrb[0].mxu0 %v2248
      %v3495 = vpop.f32.mrb[0].mxu0
      %v3496 = vadd.f32 %v3335, %v3495
      %v3497 = vpop.f32.mrb[0].mxu0
      %v3498 = vpop.f32.mrb[0].mxu0
      %v3499 = vadd.f32 %v3338, %v3498
      %v3500 = vpop.f32.mrb[0].mxu0
      %3501 = vmatprep.mubr.bf16.mxu0 %v2329
      %3502 = vmatmul.mubr.bf16.gmra.mrb[0].mxu0 %v2249
      %v3503 = vpop.f32.mrb[0].mxu0
      %v3504 = vadd.f32 %v3343, %v3503
      %v3505 = vpop.f32.mrb[0].mxu0
      %v3506 = vpop.f32.mrb[0].mxu0
      %v3507 = vadd.f32 %v3346, %v3506
      %v3508 = vpop.f32.mrb[0].mxu0
      %3509 = vmatprep.mubr.bf16.mxu0 %v2330
      %3510 = vmatmul.mubr.bf16.gmra.mrb[0].mxu0 %v2250
      %v3511 = vpop.f32.mrb[0].mxu0
      %v3512 = vadd.f32 %v3351, %v3511
      %v3513 = vpop.f32.mrb[0].mxu0
      %v3514 = vpop.f32.mrb[0].mxu0
      %v3515 = vadd.f32 %v3354, %v3514
      %v3516 = vpop.f32.mrb[0].mxu0
      %3517 = vmatprep.mubr.bf16.mxu0 %v2331
      %3518 = vmatmul.mubr.bf16.gmra.mrb[0].mxu0 %v2251
      %v3519 = vpop.f32.mrb[0].mxu0
      %v3520 = vadd.f32 %v3359, %v3519
      %v3521 = vpop.f32.mrb[0].mxu0
      %v3522 = vpop.f32.mrb[0].mxu0
      %v3523 = vadd.f32 %v3362, %v3522
      %v3524 = vpop.f32.mrb[0].mxu0
      %3525 = vmatprep.mubr.bf16.mxu0 %v2332
      %3526 = vmatmul.mubr.bf16.gmra.mrb[0].mxu0 %v2252
      %v3527 = vpop.f32.mrb[0].mxu0
      %v3528 = vadd.f32 %v3367, %v3527
      %v3529 = vpop.f32.mrb[0].mxu0
      %v3530 = vpop.f32.mrb[0].mxu0
      %v3531 = vadd.f32 %v3370, %v3530
      %v3532 = vpop.f32.mrb[0].mxu0
      %3533 = vmatprep.mubr.bf16.mxu0 %v2333
      %3534 = vmatmul.mubr.bf16.gmra.mrb[0].mxu0 %v2253
      %v3535 = vpop.f32.mrb[0].mxu0
      %v3536 = vadd.f32 %v3375, %v3535
      %v3537 = vpop.f32.mrb[0].mxu0
      %v3538 = vpop.f32.mrb[0].mxu0
      %v3539 = vadd.f32 %v3378, %v3538
      %v3540 = vpop.f32.mrb[0].mxu0
      %3541 = vmatprep.mubr.bf16.mxu0 %v2334
      %3542 = vmatmul.mubr.bf16.gmra.mrb[0].mxu0 %v2254
      %v3543 = vpop.f32.mrb[0].mxu0
      %v3544 = vadd.f32 %v3383, %v3543
      %v3545 = vpop.f32.mrb[0].mxu0
      %v3546 = vpop.f32.mrb[0].mxu0
      %v3547 = vadd.f32 %v3386, %v3546
      %v3548 = vpop.f32.mrb[0].mxu0
      %3549 = vmatprep.mubr.bf16.mxu0 %v2335
      %3550 = vmatmul.mubr.bf16.gmra.mrb[0].mxu0 %v2255
      %v3551 = vpop.f32.mrb[0].mxu0
      %v3552 = vadd.f32 %v3391, %v3551
      %v3553 = vpop.f32.mrb[0].mxu0
      %v3554 = vpop.f32.mrb[0].mxu0
      %v3555 = vadd.f32 %v3394, %v3554
      %v3556 = vpop.f32.mrb[0].mxu0
      %3557 = vmatprep.mubr.bf16.mxu0 %v2336
      %3558 = vmatmul.mubr.bf16.gmra.mrb[0].mxu0 %v2256
      %v3559 = vpop.f32.mrb[0].mxu0
      %v3560 = vadd.f32 %v3399, %v3559
      %v3561 = vpop.f32.mrb[0].mxu0
      %v3562 = vpop.f32.mrb[0].mxu0
      %v3563 = vadd.f32 %v3402, %v3562
      %v3564 = vpop.f32.mrb[0].mxu0
      %3565 = vmatprep.mubr.bf16.mxu0 %v2337
      %3566 = vmatmul.mubr.bf16.gmra.mrb[0].mxu0 %v2257
      %v3567 = vpop.f32.mrb[0].mxu0
      %v3568 = vadd.f32 %v3407, %v3567
      %v3569 = vpop.f32.mrb[0].mxu0
      %v3570 = vpop.f32.mrb[0].mxu0
      %v3571 = vadd.f32 %v3410, %v3570
      %v3572 = vpop.f32.mrb[0].mxu0
      %3573 = vmatprep.mubr.bf16.mxu0 %v2338
      %3574 = vmatmul.mubr.bf16.gmra.mrb[0].mxu0 %v2258
      %v3575 = vpop.f32.mrb[0].mxu0
      %v3576 = vadd.f32 %v3415, %v3575
      %v3577 = vpop.f32.mrb[0].mxu0
      %v3578 = vpop.f32.mrb[0].mxu0
      %v3579 = vadd.f32 %v3418, %v3578
      %v3580 = vpop.f32.mrb[0].mxu0
      %3581 = vmatprep.mubr.bf16.mxu0 %v2339
      %3582 = vmatmul.mubr.bf16.gmra.mrb[0].mxu0 %v2259
      %v3583 = vpop.f32.mrb[0].mxu0
      %v3584 = vadd.f32 %v3423, %v3583
      %v3585 = vpop.f32.mrb[0].mxu0
      %v3586 = vpop.f32.mrb[0].mxu0
      %v3587 = vadd.f32 %v3426, %v3586
      %v3588 = vpop.f32.mrb[0].mxu0
      %3589 = vdwg.mxu0
      %3590 = vmatprep.subr.bf16.mxu0 0
      %3591 = vmatpush1.bf16.msra.mxu0 %v3156
      %3592 = vmatprep.subr.bf16.mxu0 0
      %3593 = vmatpush1.bf16.msra.mxu0 %v3157
      %3594 = vmatprep.subr.bf16.mxu0 0
      %3595 = vmatpush1.bf16.msra.mxu0 %v3158
      %3596 = vmatprep.subr.bf16.mxu0 0
      %3597 = vmatpush1.bf16.msra.mxu0 %v3159
      %3598 = vmatprep.subr.bf16.mxu0 0
      %3599 = vmatpush1.bf16.msra.mxu0 %v3160
      %3600 = vmatprep.subr.bf16.mxu0 0
      %3601 = vmatpush1.bf16.msra.mxu0 %v3161
      %3602 = vmatprep.subr.bf16.mxu0 0
      %3603 = vmatpush1.bf16.msra.mxu0 %v3162
      %3604 = vmatprep.subr.bf16.mxu0 0
      %3605 = vmatpush1.bf16.msra.mxu0 %v3163
      %3606 = vmatprep.subr.bf16.mxu0 0
      %3607 = vmatpush1.bf16.msra.mxu0 %v3164
      %3608 = vmatprep.subr.bf16.mxu0 0
      %3609 = vmatpush1.bf16.msra.mxu0 %v3165
      %3610 = vmatprep.subr.bf16.mxu0 0
      %3611 = vmatpush1.bf16.msra.mxu0 %v3166
      %3612 = vmatprep.subr.bf16.mxu0 0
      %3613 = vmatpush1.bf16.msra.mxu0 %v3167
      %3614 = vmatprep.subr.bf16.mxu0 0
      %3615 = vmatpush1.bf16.msra.mxu0 %v3168
      %3616 = vmatprep.subr.bf16.mxu0 0
      %3617 = vmatpush1.bf16.msra.mxu0 %v3169
      %3618 = vmatprep.subr.bf16.mxu0 0
      %3619 = vmatpush1.bf16.msra.mxu0 %v3170
      %3620 = vmatprep.subr.bf16.mxu0 0
      %3621 = vmatpush1.bf16.msra.mxu0 %v3171
      %3622 = vmatprep.mubr.bf16.mxu0 %v2452
      %3623 = vmatmul.mubr.bf16.gmra.mrb[0].mxu0 %v2388
      %v3624 = vpop.f32.mrb[0].mxu0
      %v3625 = vadd.f32 %v3464, %v3624
      %v3626 = vpop.f32.mrb[0].mxu0
      %v3627 = vpop.f32.mrb[0].mxu0
      %v3628 = vadd.f32 %v3467, %v3627
      %v3629 = vpop.f32.mrb[0].mxu0
      %3630 = vmatprep.mubr.bf16.mxu0 %v2453
      %3631 = vmatmul.mubr.bf16.gmra.mrb[0].mxu0 %v2389
      %v3632 = vpop.f32.mrb[0].mxu0
      %v3633 = vadd.f32 %v3472, %v3632
      %v3634 = vpop.f32.mrb[0].mxu0
      %v3635 = vpop.f32.mrb[0].mxu0
      %v3636 = vadd.f32 %v3475, %v3635
      %v3637 = vpop.f32.mrb[0].mxu0
      %3638 = vmatprep.mubr.bf16.mxu0 %v2454
      %3639 = vmatmul.mubr.bf16.gmra.mrb[0].mxu0 %v2390
      %v3640 = vpop.f32.mrb[0].mxu0
      %v3641 = vadd.f32 %v3480, %v3640
      %v3642 = vpop.f32.mrb[0].mxu0
      %v3643 = vpop.f32.mrb[0].mxu0
      %v3644 = vadd.f32 %v3483, %v3643
      %v3645 = vpop.f32.mrb[0].mxu0
      %3646 = vmatprep.mubr.bf16.mxu0 %v2455
      %3647 = vmatmul.mubr.bf16.gmra.mrb[0].mxu0 %v2391
      %v3648 = vpop.f32.mrb[0].mxu0
      %v3649 = vadd.f32 %v3488, %v3648
      %v3650 = vpop.f32.mrb[0].mxu0
      %v3651 = vpop.f32.mrb[0].mxu0
      %v3652 = vadd.f32 %v3491, %v3651
      %v3653 = vpop.f32.mrb[0].mxu0
      %3654 = vmatprep.mubr.bf16.mxu0 %v2456
      %3655 = vmatmul.mubr.bf16.gmra.mrb[0].mxu0 %v2392
      %v3656 = vpop.f32.mrb[0].mxu0
      %v3657 = vadd.f32 %v3496, %v3656
      %v3658 = vpop.f32.mrb[0].mxu0
      %v3659 = vpop.f32.mrb[0].mxu0
      %v3660 = vadd.f32 %v3499, %v3659
      %v3661 = vpop.f32.mrb[0].mxu0
      %3662 = vmatprep.mubr.bf16.mxu0 %v2457
      %3663 = vmatmul.mubr.bf16.gmra.mrb[0].mxu0 %v2393
      %v3664 = vpop.f32.mrb[0].mxu0
      %v3665 = vadd.f32 %v3504, %v3664
      %v3666 = vpop.f32.mrb[0].mxu0
      %v3667 = vpop.f32.mrb[0].mxu0
      %v3668 = vadd.f32 %v3507, %v3667
      %v3669 = vpop.f32.mrb[0].mxu0
      %3670 = vmatprep.mubr.bf16.mxu0 %v2458
      %3671 = vmatmul.mubr.bf16.gmra.mrb[0].mxu0 %v2394
      %v3672 = vpop.f32.mrb[0].mxu0
      %v3673 = vadd.f32 %v3512, %v3672
      %v3674 = vpop.f32.mrb[0].mxu0
      %v3675 = vpop.f32.mrb[0].mxu0
      %v3676 = vadd.f32 %v3515, %v3675
      %v3677 = vpop.f32.mrb[0].mxu0
      %3678 = vmatprep.mubr.bf16.mxu0 %v2459
      %3679 = vmatmul.mubr.bf16.gmra.mrb[0].mxu0 %v2395
      %v3680 = vpop.f32.mrb[0].mxu0
      %v3681 = vadd.f32 %v3520, %v3680
      %v3682 = vpop.f32.mrb[0].mxu0
      %v3683 = vpop.f32.mrb[0].mxu0
      %v3684 = vadd.f32 %v3523, %v3683
      %v3685 = vpop.f32.mrb[0].mxu0
      %3686 = vmatprep.mubr.bf16.mxu0 %v2460
      %3687 = vmatmul.mubr.bf16.gmra.mrb[0].mxu0 %v2396
      %v3688 = vpop.f32.mrb[0].mxu0
      %v3689 = vadd.f32 %v3528, %v3688
      %v3690 = vpop.f32.mrb[0].mxu0
      %v3691 = vpop.f32.mrb[0].mxu0
      %v3692 = vadd.f32 %v3531, %v3691
      %v3693 = vpop.f32.mrb[0].mxu0
      %3694 = vmatprep.mubr.bf16.mxu0 %v2461
      %3695 = vmatmul.mubr.bf16.gmra.mrb[0].mxu0 %v2397
      %v3696 = vpop.f32.mrb[0].mxu0
      %v3697 = vadd.f32 %v3536, %v3696
      %v3698 = vpop.f32.mrb[0].mxu0
      %v3699 = vpop.f32.mrb[0].mxu0
      %v3700 = vadd.f32 %v3539, %v3699
      %v3701 = vpop.f32.mrb[0].mxu0
      %3702 = vmatprep.mubr.bf16.mxu0 %v2462
      %3703 = vmatmul.mubr.bf16.gmra.mrb[0].mxu0 %v2398
      %v3704 = vpop.f32.mrb[0].mxu0
      %v3705 = vadd.f32 %v3544, %v3704
      %v3706 = vpop.f32.mrb[0].mxu0
      %v3707 = vpop.f32.mrb[0].mxu0
      %v3708 = vadd.f32 %v3547, %v3707
      %v3709 = vpop.f32.mrb[0].mxu0
      %3710 = vmatprep.mubr.bf16.mxu0 %v2463
      %3711 = vmatmul.mubr.bf16.gmra.mrb[0].mxu0 %v2399
      %v3712 = vpop.f32.mrb[0].mxu0
      %v3713 = vadd.f32 %v3552, %v3712
      %v3714 = vpop.f32.mrb[0].mxu0
      %v3715 = vpop.f32.mrb[0].mxu0
      %v3716 = vadd.f32 %v3555, %v3715
      %v3717 = vpop.f32.mrb[0].mxu0
      %3718 = vmatprep.mubr.bf16.mxu0 %v2464
      %3719 = vmatmul.mubr.bf16.gmra.mrb[0].mxu0 %v2400
      %v3720 = vpop.f32.mrb[0].mxu0
      %v3721 = vadd.f32 %v3560, %v3720
      %v3722 = vpop.f32.mrb[0].mxu0
      %v3723 = vpop.f32.mrb[0].mxu0
      %v3724 = vadd.f32 %v3563, %v3723
      %v3725 = vpop.f32.mrb[0].mxu0
      %3726 = vmatprep.mubr.bf16.mxu0 %v2465
      %3727 = vmatmul.mubr.bf16.gmra.mrb[0].mxu0 %v2401
      %v3728 = vpop.f32.mrb[0].mxu0
      %v3729 = vadd.f32 %v3568, %v3728
      %v3730 = vpop.f32.mrb[0].mxu0
      %v3731 = vpop.f32.mrb[0].mxu0
      %v3732 = vadd.f32 %v3571, %v3731
      %v3733 = vpop.f32.mrb[0].mxu0
      %3734 = vmatprep.mubr.bf16.mxu0 %v2466
      %3735 = vmatmul.mubr.bf16.gmra.mrb[0].mxu0 %v2402
      %v3736 = vpop.f32.mrb[0].mxu0
      %v3737 = vadd.f32 %v3576, %v3736
      %v3738 = vpop.f32.mrb[0].mxu0
      %v3739 = vpop.f32.mrb[0].mxu0
      %v3740 = vadd.f32 %v3579, %v3739
      %v3741 = vpop.f32.mrb[0].mxu0
      %3742 = vmatprep.mubr.bf16.mxu0 %v2467
      %3743 = vmatmul.mubr.bf16.gmra.mrb[0].mxu0 %v2403
      %v3744 = vpop.f32.mrb[0].mxu0
      %v3745 = vadd.f32 %v3584, %v3744
      %v3746 = vpop.f32.mrb[0].mxu0
      %v3747 = vpop.f32.mrb[0].mxu0
      %v3748 = vadd.f32 %v3587, %v3747
      %v3749 = vpop.f32.mrb[0].mxu0
      %3750 = vdwg.mxu0
      %3751 = vmatprep.subr.bf16.mxu0 0
      %3752 = vmatpush1.bf16.msra.mxu0 %v3172
      %3753 = vmatprep.subr.bf16.mxu0 0
      %3754 = vmatpush1.bf16.msra.mxu0 %v3173
      %3755 = vmatprep.subr.bf16.mxu0 0
      %3756 = vmatpush1.bf16.msra.mxu0 %v3174
      %3757 = vmatprep.subr.bf16.mxu0 0
      %3758 = vmatpush1.bf16.msra.mxu0 %v3175
      %3759 = vmatprep.subr.bf16.mxu0 0
      %3760 = vmatpush1.bf16.msra.mxu0 %v3176
      %3761 = vmatprep.subr.bf16.mxu0 0
      %3762 = vmatpush1.bf16.msra.mxu0 %v3177
      %3763 = vmatprep.subr.bf16.mxu0 0
      %3764 = vmatpush1.bf16.msra.mxu0 %v3178
      %3765 = vmatprep.subr.bf16.mxu0 0
      %3766 = vmatpush1.bf16.msra.mxu0 %v3179
      %3767 = vmatprep.subr.bf16.mxu0 0
      %3768 = vmatpush1.bf16.msra.mxu0 %v3180
      %3769 = vmatprep.subr.bf16.mxu0 0
      %3770 = vmatpush1.bf16.msra.mxu0 %v3181
      %3771 = vmatprep.subr.bf16.mxu0 0
      %3772 = vmatpush1.bf16.msra.mxu0 %v3182
      %3773 = vmatprep.subr.bf16.mxu0 0
      %3774 = vmatpush1.bf16.msra.mxu0 %v3183
      %3775 = vmatprep.subr.bf16.mxu0 0
      %3776 = vmatpush1.bf16.msra.mxu0 %v3184
      %3777 = vmatprep.subr.bf16.mxu0 0
      %3778 = vmatpush1.bf16.msra.mxu0 %v3185
      %3779 = vmatprep.subr.bf16.mxu0 0
      %3780 = vmatpush1.bf16.msra.mxu0 %v3186
      %3781 = vmatprep.subr.bf16.mxu0 0
      %3782 = vmatpush1.bf16.msra.mxu0 %v3187
      %3783 = vmatprep.mubr.bf16.mxu0 %v2596
      %3784 = vmatmul.mubr.bf16.gmra.mrb[0].mxu0 %v2532
      %v3785 = vpop.f32.mrb[0].mxu0
      %v3786 = vadd.f32 %v3625, %v3785
      %v3787 = vpop.f32.mrb[0].mxu0
      %v3788 = vpop.f32.mrb[0].mxu0
      %v3789 = vadd.f32 %v3628, %v3788
      %v3790 = vpop.f32.mrb[0].mxu0
      %3791 = vmatprep.mubr.bf16.mxu0 %v2597
      %3792 = vmatmul.mubr.bf16.gmra.mrb[0].mxu0 %v2533
      %v3793 = vpop.f32.mrb[0].mxu0
      %v3794 = vadd.f32 %v3633, %v3793
      %v3795 = vpop.f32.mrb[0].mxu0
      %v3796 = vpop.f32.mrb[0].mxu0
      %v3797 = vadd.f32 %v3636, %v3796
      %v3798 = vpop.f32.mrb[0].mxu0
      %3799 = vmatprep.mubr.bf16.mxu0 %v2598
      %3800 = vmatmul.mubr.bf16.gmra.mrb[0].mxu0 %v2534
      %v3801 = vpop.f32.mrb[0].mxu0
      %v3802 = vadd.f32 %v3641, %v3801
      %v3803 = vpop.f32.mrb[0].mxu0
      %v3804 = vpop.f32.mrb[0].mxu0
      %v3805 = vadd.f32 %v3644, %v3804
      %v3806 = vpop.f32.mrb[0].mxu0
      %3807 = vmatprep.mubr.bf16.mxu0 %v2599
      %3808 = vmatmul.mubr.bf16.gmra.mrb[0].mxu0 %v2535
      %v3809 = vpop.f32.mrb[0].mxu0
      %v3810 = vadd.f32 %v3649, %v3809
      %v3811 = vpop.f32.mrb[0].mxu0
      %v3812 = vpop.f32.mrb[0].mxu0
      %v3813 = vadd.f32 %v3652, %v3812
      %v3814 = vpop.f32.mrb[0].mxu0
      %3815 = vmatprep.mubr.bf16.mxu0 %v2600
      %3816 = vmatmul.mubr.bf16.gmra.mrb[0].mxu0 %v2536
      %v3817 = vpop.f32.mrb[0].mxu0
      %v3818 = vadd.f32 %v3657, %v3817
      %v3819 = vpop.f32.mrb[0].mxu0
      %v3820 = vpop.f32.mrb[0].mxu0
      %v3821 = vadd.f32 %v3660, %v3820
      %v3822 = vpop.f32.mrb[0].mxu0
      %3823 = vmatprep.mubr.bf16.mxu0 %v2601
      %3824 = vmatmul.mubr.bf16.gmra.mrb[0].mxu0 %v2537
      %v3825 = vpop.f32.mrb[0].mxu0
      %v3826 = vadd.f32 %v3665, %v3825
      %v3827 = vpop.f32.mrb[0].mxu0
      %v3828 = vpop.f32.mrb[0].mxu0
      %v3829 = vadd.f32 %v3668, %v3828
      %v3830 = vpop.f32.mrb[0].mxu0
      %3831 = vmatprep.mubr.bf16.mxu0 %v2602
      %3832 = vmatmul.mubr.bf16.gmra.mrb[0].mxu0 %v2538
      %v3833 = vpop.f32.mrb[0].mxu0
      %v3834 = vadd.f32 %v3673, %v3833
      %v3835 = vpop.f32.mrb[0].mxu0
      %v3836 = vpop.f32.mrb[0].mxu0
      %v3837 = vadd.f32 %v3676, %v3836
      %v3838 = vpop.f32.mrb[0].mxu0
      %3839 = vmatprep.mubr.bf16.mxu0 %v2603
      %3840 = vmatmul.mubr.bf16.gmra.mrb[0].mxu0 %v2539
      %v3841 = vpop.f32.mrb[0].mxu0
      %v3842 = vadd.f32 %v3681, %v3841
      %v3843 = vpop.f32.mrb[0].mxu0
      %v3844 = vpop.f32.mrb[0].mxu0
      %v3845 = vadd.f32 %v3684, %v3844
      %v3846 = vpop.f32.mrb[0].mxu0
      %3847 = vmatprep.mubr.bf16.mxu0 %v2604
      %3848 = vmatmul.mubr.bf16.gmra.mrb[0].mxu0 %v2540
      %v3849 = vpop.f32.mrb[0].mxu0
      %v3850 = vadd.f32 %v3689, %v3849
      %v3851 = vpop.f32.mrb[0].mxu0
      %v3852 = vpop.f32.mrb[0].mxu0
      %v3853 = vadd.f32 %v3692, %v3852
      %v3854 = vpop.f32.mrb[0].mxu0
      %3855 = vmatprep.mubr.bf16.mxu0 %v2605
      %3856 = vmatmul.mubr.bf16.gmra.mrb[0].mxu0 %v2541
      %v3857 = vpop.f32.mrb[0].mxu0
      %v3858 = vadd.f32 %v3697, %v3857
      %v3859 = vpop.f32.mrb[0].mxu0
      %v3860 = vpop.f32.mrb[0].mxu0
      %v3861 = vadd.f32 %v3700, %v3860
      %v3862 = vpop.f32.mrb[0].mxu0
      %3863 = vmatprep.mubr.bf16.mxu0 %v2606
      %3864 = vmatmul.mubr.bf16.gmra.mrb[0].mxu0 %v2542
      %v3865 = vpop.f32.mrb[0].mxu0
      %v3866 = vadd.f32 %v3705, %v3865
      %v3867 = vpop.f32.mrb[0].mxu0
      %v3868 = vpop.f32.mrb[0].mxu0
      %v3869 = vadd.f32 %v3708, %v3868
      %v3870 = vpop.f32.mrb[0].mxu0
      %3871 = vmatprep.mubr.bf16.mxu0 %v2607
      %3872 = vmatmul.mubr.bf16.gmra.mrb[0].mxu0 %v2543
      %v3873 = vpop.f32.mrb[0].mxu0
      %v3874 = vadd.f32 %v3713, %v3873
      %v3875 = vpop.f32.mrb[0].mxu0
      %v3876 = vpop.f32.mrb[0].mxu0
      %v3877 = vadd.f32 %v3716, %v3876
      %v3878 = vpop.f32.mrb[0].mxu0
      %3879 = vmatprep.mubr.bf16.mxu0 %v2608
      %3880 = vmatmul.mubr.bf16.gmra.mrb[0].mxu0 %v2544
      %v3881 = vpop.f32.mrb[0].mxu0
      %v3882 = vadd.f32 %v3721, %v3881
      %v3883 = vpop.f32.mrb[0].mxu0
      %v3884 = vpop.f32.mrb[0].mxu0
      %v3885 = vadd.f32 %v3724, %v3884
      %v3886 = vpop.f32.mrb[0].mxu0
      %3887 = vmatprep.mubr.bf16.mxu0 %v2609
      %3888 = vmatmul.mubr.bf16.gmra.mrb[0].mxu0 %v2545
      %v3889 = vpop.f32.mrb[0].mxu0
      %v3890 = vadd.f32 %v3729, %v3889
      %v3891 = vpop.f32.mrb[0].mxu0
      %v3892 = vpop.f32.mrb[0].mxu0
      %v3893 = vadd.f32 %v3732, %v3892
      %v3894 = vpop.f32.mrb[0].mxu0
      %3895 = vmatprep.mubr.bf16.mxu0 %v2610
      %3896 = vmatmul.mubr.bf16.gmra.mrb[0].mxu0 %v2546
      %v3897 = vpop.f32.mrb[0].mxu0
      %v3898 = vadd.f32 %v3737, %v3897
      %v3899 = vpop.f32.mrb[0].mxu0
      %v3900 = vpop.f32.mrb[0].mxu0
      %v3901 = vadd.f32 %v3740, %v3900
      %v3902 = vpop.f32.mrb[0].mxu0
      %3903 = vmatprep.mubr.bf16.mxu0 %v2611
      %3904 = vmatmul.mubr.bf16.gmra.mrb[0].mxu0 %v2547
      %v3905 = vpop.f32.mrb[0].mxu0
      %v3906 = vadd.f32 %v3745, %v3905
      %v3907 = vpop.f32.mrb[0].mxu0
      %v3908 = vpop.f32.mrb[0].mxu0
      %v3909 = vadd.f32 %v3748, %v3908
      %v3910 = vpop.f32.mrb[0].mxu0
      %3911 = vdwg.mxu0
      %3912 = vmatprep.subr.bf16.mxu0 0
      %3913 = vmatpush1.bf16.msra.mxu0 %v3188
      %3914 = vmatprep.subr.bf16.mxu0 0
      %3915 = vmatpush1.bf16.msra.mxu0 %v3189
      %3916 = vmatprep.subr.bf16.mxu0 0
      %3917 = vmatpush1.bf16.msra.mxu0 %v3190
      %3918 = vmatprep.subr.bf16.mxu0 0
      %3919 = vmatpush1.bf16.msra.mxu0 %v3191
      %3920 = vmatprep.subr.bf16.mxu0 0
      %3921 = vmatpush1.bf16.msra.mxu0 %v3192
      %3922 = vmatprep.subr.bf16.mxu0 0
      %3923 = vmatpush1.bf16.msra.mxu0 %v3193
      %3924 = vmatprep.subr.bf16.mxu0 0
      %3925 = vmatpush1.bf16.msra.mxu0 %v3194
      %3926 = vmatprep.subr.bf16.mxu0 0
      %3927 = vmatpush1.bf16.msra.mxu0 %v3195
      %3928 = vmatprep.subr.bf16.mxu0 0
      %3929 = vmatpush1.bf16.msra.mxu0 0
      %3930 = vmatprep.subr.bf16.mxu0 0
      %3931 = vmatpush1.bf16.msra.mxu0 0
      %3932 = vmatprep.subr.bf16.mxu0 0
      %3933 = vmatpush1.bf16.msra.mxu0 0
      %3934 = vmatprep.subr.bf16.mxu0 0
      %3935 = vmatpush1.bf16.msra.mxu0 0
      %3936 = vmatprep.subr.bf16.mxu0 0
      %3937 = vmatpush1.bf16.msra.mxu0 0
      %3938 = vmatprep.subr.bf16.mxu0 0
      %3939 = vmatpush1.bf16.msra.mxu0 0
      %3940 = vmatprep.subr.bf16.mxu0 0
      %3941 = vmatpush1.bf16.msra.mxu0 0
      %3942 = vmatprep.subr.bf16.mxu0 0
      %3943 = vmatpush1.bf16.msra.mxu0 0
      %3944 = vmatprep.mubr.bf16.mxu0 0
      %3945 = vmatmul.mubr.bf16.gmra.mrb[0].mxu0 %v2660
      %v3946 = vpop.f32.mrb[0].mxu0
      %v3947 = vadd.f32 %v3786, %v3946
      %v3948 = vpop.f32.mrb[0].mxu0
      %v3949 = vpop.f32.mrb[0].mxu0
      %v3950 = vadd.f32 %v3789, %v3949
      %v3951 = vpop.f32.mrb[0].mxu0
      %3952 = vmatprep.mubr.bf16.mxu0 0
      %3953 = vmatmul.mubr.bf16.gmra.mrb[0].mxu0 %v2661
      %v3954 = vpop.f32.mrb[0].mxu0
      %v3955 = vadd.f32 %v3794, %v3954
      %v3956 = vpop.f32.mrb[0].mxu0
      %v3957 = vpop.f32.mrb[0].mxu0
      %v3958 = vadd.f32 %v3797, %v3957
      %v3959 = vpop.f32.mrb[0].mxu0
      %3960 = vmatprep.mubr.bf16.mxu0 0
      %3961 = vmatmul.mubr.bf16.gmra.mrb[0].mxu0 %v2662
      %v3962 = vpop.f32.mrb[0].mxu0
      %v3963 = vadd.f32 %v3802, %v3962
      %v3964 = vpop.f32.mrb[0].mxu0
      %v3965 = vpop.f32.mrb[0].mxu0
      %v3966 = vadd.f32 %v3805, %v3965
      %v3967 = vpop.f32.mrb[0].mxu0
      %3968 = vmatprep.mubr.bf16.mxu0 0
      %3969 = vmatmul.mubr.bf16.gmra.mrb[0].mxu0 %v2663
      %v3970 = vpop.f32.mrb[0].mxu0
      %v3971 = vadd.f32 %v3810, %v3970
      %v3972 = vpop.f32.mrb[0].mxu0
      %v3973 = vpop.f32.mrb[0].mxu0
      %v3974 = vadd.f32 %v3813, %v3973
      %v3975 = vpop.f32.mrb[0].mxu0
      %3976 = vmatprep.mubr.bf16.mxu0 0
      %3977 = vmatmul.mubr.bf16.gmra.mrb[0].mxu0 %v2664
      %v3978 = vpop.f32.mrb[0].mxu0
      %v3979 = vadd.f32 %v3818, %v3978
      %v3980 = vpop.f32.mrb[0].mxu0
      %v3981 = vpop.f32.mrb[0].mxu0
      %v3982 = vadd.f32 %v3821, %v3981
      %v3983 = vpop.f32.mrb[0].mxu0
      %3984 = vmatprep.mubr.bf16.mxu0 0
      %3985 = vmatmul.mubr.bf16.gmra.mrb[0].mxu0 %v2665
      %v3986 = vpop.f32.mrb[0].mxu0
      %v3987 = vadd.f32 %v3826, %v3986
      %v3988 = vpop.f32.mrb[0].mxu0
      %v3989 = vpop.f32.mrb[0].mxu0
      %v3990 = vadd.f32 %v3829, %v3989
      %v3991 = vpop.f32.mrb[0].mxu0
      %3992 = vmatprep.mubr.bf16.mxu0 0
      %3993 = vmatmul.mubr.bf16.gmra.mrb[0].mxu0 %v2666
      %v3994 = vpop.f32.mrb[0].mxu0
      %v3995 = vadd.f32 %v3834, %v3994
      %v3996 = vpop.f32.mrb[0].mxu0
      %v3997 = vpop.f32.mrb[0].mxu0
      %v3998 = vadd.f32 %v3837, %v3997
      %v3999 = vpop.f32.mrb[0].mxu0
      %4000 = vmatprep.mubr.bf16.mxu0 0
      %4001 = vmatmul.mubr.bf16.gmra.mrb[0].mxu0 %v2667
      %v4002 = vpop.f32.mrb[0].mxu0
      %v4003 = vadd.f32 %v3842, %v4002
      %v4004 = vpop.f32.mrb[0].mxu0
      %v4005 = vpop.f32.mrb[0].mxu0
      %v4006 = vadd.f32 %v3845, %v4005
      %v4007 = vpop.f32.mrb[0].mxu0
      %4008 = vmatprep.mubr.bf16.mxu0 0
      %4009 = vmatmul.mubr.bf16.gmra.mrb[0].mxu0 %v2668
      %v4010 = vpop.f32.mrb[0].mxu0
      %v4011 = vadd.f32 %v3850, %v4010
      %v4012 = vpop.f32.mrb[0].mxu0
      %v4013 = vpop.f32.mrb[0].mxu0
      %v4014 = vadd.f32 %v3853, %v4013
      %v4015 = vpop.f32.mrb[0].mxu0
      %4016 = vmatprep.mubr.bf16.mxu0 0
      %4017 = vmatmul.mubr.bf16.gmra.mrb[0].mxu0 %v2669
      %v4018 = vpop.f32.mrb[0].mxu0
      %v4019 = vadd.f32 %v3858, %v4018
      %v4020 = vpop.f32.mrb[0].mxu0
      %v4021 = vpop.f32.mrb[0].mxu0
      %v4022 = vadd.f32 %v3861, %v4021
      %v4023 = vpop.f32.mrb[0].mxu0
      %4024 = vmatprep.mubr.bf16.mxu0 0
      %4025 = vmatmul.mubr.bf16.gmra.mrb[0].mxu0 %v2670
      %v4026 = vpop.f32.mrb[0].mxu0
      %v4027 = vadd.f32 %v3866, %v4026
      %v4028 = vpop.f32.mrb[0].mxu0
      %v4029 = vpop.f32.mrb[0].mxu0
      %v4030 = vadd.f32 %v3869, %v4029
      %v4031 = vpop.f32.mrb[0].mxu0
      %4032 = vmatprep.mubr.bf16.mxu0 0
      %4033 = vmatmul.mubr.bf16.gmra.mrb[0].mxu0 %v2671
      %v4034 = vpop.f32.mrb[0].mxu0
      %v4035 = vadd.f32 %v3874, %v4034
      %v4036 = vpop.f32.mrb[0].mxu0
      %v4037 = vpop.f32.mrb[0].mxu0
      %v4038 = vadd.f32 %v3877, %v4037
      %v4039 = vpop.f32.mrb[0].mxu0
      %4040 = vmatprep.mubr.bf16.mxu0 0
      %4041 = vmatmul.mubr.bf16.gmra.mrb[0].mxu0 %v2672
      %v4042 = vpop.f32.mrb[0].mxu0
      %v4043 = vadd.f32 %v3882, %v4042
      %v4044 = vpop.f32.mrb[0].mxu0
      %v4045 = vpop.f32.mrb[0].mxu0
      %v4046 = vadd.f32 %v3885, %v4045
      %v4047 = vpop.f32.mrb[0].mxu0
      %4048 = vmatprep.mubr.bf16.mxu0 0
      %4049 = vmatmul.mubr.bf16.gmra.mrb[0].mxu0 %v2673
      %v4050 = vpop.f32.mrb[0].mxu0
      %v4051 = vadd.f32 %v3890, %v4050
      %v4052 = vpop.f32.mrb[0].mxu0
      %v4053 = vpop.f32.mrb[0].mxu0
      %v4054 = vadd.f32 %v3893, %v4053
      %v4055 = vpop.f32.mrb[0].mxu0
      %4056 = vmatprep.mubr.bf16.mxu0 0
      %4057 = vmatmul.mubr.bf16.gmra.mrb[0].mxu0 %v2674
      %v4058 = vpop.f32.mrb[0].mxu0
      %v4059 = vadd.f32 %v3898, %v4058
      %v4060 = vpop.f32.mrb[0].mxu0
      %v4061 = vpop.f32.mrb[0].mxu0
      %v4062 = vadd.f32 %v3901, %v4061
      %v4063 = vpop.f32.mrb[0].mxu0
      %4064 = vmatprep.mubr.bf16.mxu0 0
      %4065 = vmatmul.mubr.bf16.gmra.mrb[0].mxu0 %v2675
      %v4066 = vpop.f32.mrb[0].mxu0
      %v4067 = vadd.f32 %v3906, %v4066
      %v4068 = vpop.f32.mrb[0].mxu0
      %v4069 = vpop.f32.mrb[0].mxu0
      %v4070 = vadd.f32 %v3909, %v4069
      %v4071 = vpop.f32.mrb[0].mxu0
      %4072 = vdwg.mxu0
      %v4073 = vld [vmem:[%s2] sm:$0xf]
      %v4074 = vld [vmem:[%s2 + $0x4] sm:$0xf]
      %v4075 = vld [vmem:[%s2 + $0x8] sm:$0xf]
      %v4076 = vld [vmem:[%s2 + $0xc] sm:$0xf]
      %v4077 = vld [vmem:[%s2 + $0x10] sm:$0xf]
      %v4078 = vld [vmem:[%s2 + $0x14] sm:$0xf]
      %v4079 = vld [vmem:[%s2 + $0x18] sm:$0xf]
      %v4080 = vld [vmem:[%s2 + $0x1c] sm:$0xf]
      %v4081 = vld [vmem:[%s2 + $0x20] sm:$0xf]
      %v4082 = vld [vmem:[%s2 + $0x24] sm:$0xf]
      %v4083 = vld [vmem:[%s2 + $0x28] sm:$0xf]
      %v4084 = vld [vmem:[%s2 + $0x2c] sm:$0xf]
      %v4085 = vld [vmem:[%s2 + $0x30] sm:$0xf]
      %v4086 = vld [vmem:[%s2 + $0x34] sm:$0xf]
      %v4087 = vld [vmem:[%s2 + $0x38] sm:$0xf]
      %v4088 = vld [vmem:[%s2 + $0x3c] sm:$0xf]
      %v4105 = vunpack.c.l.b16 %v4073
      %v4106 = vunpack.c.l.b16 %v4074
      %v4107 = vunpack.c.l.b16 %v4075
      %v4108 = vunpack.c.l.b16 %v4076
      %v4109 = vunpack.c.l.b16 %v4077
      %v4110 = vunpack.c.l.b16 %v4078
      %v4111 = vunpack.c.l.b16 %v4079
      %v4112 = vunpack.c.l.b16 %v4080
      %v4113 = vunpack.c.l.b16 %v4081
      %v4114 = vunpack.c.l.b16 %v4082
      %v4115 = vunpack.c.l.b16 %v4083
      %v4116 = vunpack.c.l.b16 %v4084
      %v4117 = vunpack.c.l.b16 %v4085
      %v4118 = vunpack.c.l.b16 %v4086
      %v4119 = vunpack.c.l.b16 %v4087
      %v4120 = vunpack.c.l.b16 %v4088
      %v4121 = vpack.c.b16 %v4106, %v4105
      %v4122 = vpack.c.b16 %v4108, %v4107
      %v4123 = vpack.c.b16 %v4110, %v4109
      %v4124 = vpack.c.b16 %v4112, %v4111
      %v4125 = vpack.c.b16 %v4114, %v4113
      %v4126 = vpack.c.b16 %v4116, %v4115
      %v4127 = vpack.c.b16 %v4118, %v4117
      %v4128 = vpack.c.b16 %v4120, %v4119
      %4137 = vmatprep.subr.bf16.mxu0 0
      %4138 = vmatpush1.bf16.msra.mxu0 %v4121
      %4139 = vmatprep.subr.bf16.mxu0 0
      %4140 = vmatpush1.bf16.msra.mxu0 %v4122
      %4141 = vmatprep.subr.bf16.mxu0 0
      %4142 = vmatpush1.bf16.msra.mxu0 %v4123
      %4143 = vmatprep.subr.bf16.mxu0 0
      %4144 = vmatpush1.bf16.msra.mxu0 %v4124
      %4145 = vmatprep.subr.bf16.mxu0 0
      %4146 = vmatpush1.bf16.msra.mxu0 %v4125
      %4147 = vmatprep.subr.bf16.mxu0 0
      %4148 = vmatpush1.bf16.msra.mxu0 %v4126
      %4149 = vmatprep.subr.bf16.mxu0 0
      %4150 = vmatpush1.bf16.msra.mxu0 %v4127
      %4151 = vmatprep.subr.bf16.mxu0 0
      %4152 = vmatpush1.bf16.msra.mxu0 %v4128
      %4153 = vmatprep.subr.bf16.mxu0 0
      %4154 = vmatpush1.bf16.msra.mxu0 0
      %4155 = vmatprep.subr.bf16.mxu0 0
      %4156 = vmatpush1.bf16.msra.mxu0 0
      %4157 = vmatprep.subr.bf16.mxu0 0
      %4158 = vmatpush1.bf16.msra.mxu0 0
      %4159 = vmatprep.subr.bf16.mxu0 0
      %4160 = vmatpush1.bf16.msra.mxu0 0
      %4161 = vmatprep.subr.bf16.mxu0 0
      %4162 = vmatpush1.bf16.msra.mxu0 0
      %4163 = vmatprep.subr.bf16.mxu0 0
      %4164 = vmatpush1.bf16.msra.mxu0 0
      %4165 = vmatprep.subr.bf16.mxu0 0
      %4166 = vmatpush1.bf16.msra.mxu0 0
      %4167 = vmatprep.subr.bf16.mxu0 0
      %4168 = vmatpush1.bf16.msra.mxu0 0
      %4169 = vmatprep.mubr.bf16.mxu0 0
      %4170 = vmatmul.mubr.bf16.gmra.mrb[0].mxu0 %v2388
      %v4171 = vpop.f32.mrb[0].mxu0
      %v4172 = vadd.f32 0.0, %v4171
      %v4173 = vpop.f32.mrb[0].mxu0
      %v4174 = vpop.f32.mrb[0].mxu0
      %v4175 = vadd.f32 0.0, %v4174
      %v4176 = vpop.f32.mrb[0].mxu0
      %4177 = vmatprep.mubr.bf16.mxu0 0
      %4178 = vmatmul.mubr.bf16.gmra.mrb[0].mxu0 %v2389
      %v4179 = vpop.f32.mrb[0].mxu0
      %v4180 = vadd.f32 0.0, %v4179
      %v4181 = vpop.f32.mrb[0].mxu0
      %v4182 = vpop.f32.mrb[0].mxu0
      %v4183 = vadd.f32 0.0, %v4182
      %v4184 = vpop.f32.mrb[0].mxu0
      %4185 = vmatprep.mubr.bf16.mxu0 0
      %4186 = vmatmul.mubr.bf16.gmra.mrb[0].mxu0 %v2390
      %v4187 = vpop.f32.mrb[0].mxu0
      %v4188 = vadd.f32 0.0, %v4187
      %v4189 = vpop.f32.mrb[0].mxu0
      %v4190 = vpop.f32.mrb[0].mxu0
      %v4191 = vadd.f32 0.0, %v4190
      %v4192 = vpop.f32.mrb[0].mxu0
      %4193 = vmatprep.mubr.bf16.mxu0 0
      %4194 = vmatmul.mubr.bf16.gmra.mrb[0].mxu0 %v2391
      %v4195 = vpop.f32.mrb[0].mxu0
      %v4196 = vadd.f32 0.0, %v4195
      %v4197 = vpop.f32.mrb[0].mxu0
      %v4198 = vpop.f32.mrb[0].mxu0
      %v4199 = vadd.f32 0.0, %v4198
      %v4200 = vpop.f32.mrb[0].mxu0
      %4201 = vmatprep.mubr.bf16.mxu0 0
      %4202 = vmatmul.mubr.bf16.gmra.mrb[0].mxu0 %v2392
      %v4203 = vpop.f32.mrb[0].mxu0
      %v4204 = vadd.f32 0.0, %v4203
      %v4205 = vpop.f32.mrb[0].mxu0
      %v4206 = vpop.f32.mrb[0].mxu0
      %v4207 = vadd.f32 0.0, %v4206
      %v4208 = vpop.f32.mrb[0].mxu0
      %4209 = vmatprep.mubr.bf16.mxu0 0
      %4210 = vmatmul.mubr.bf16.gmra.mrb[0].mxu0 %v2393
      %v4211 = vpop.f32.mrb[0].mxu0
      %v4212 = vadd.f32 0.0, %v4211
      %v4213 = vpop.f32.mrb[0].mxu0
      %v4214 = vpop.f32.mrb[0].mxu0
      %v4215 = vadd.f32 0.0, %v4214
      %v4216 = vpop.f32.mrb[0].mxu0
      %4217 = vmatprep.mubr.bf16.mxu0 0
      %4218 = vmatmul.mubr.bf16.gmra.mrb[0].mxu0 %v2394
      %v4219 = vpop.f32.mrb[0].mxu0
      %v4220 = vadd.f32 0.0, %v4219
      %v4221 = vpop.f32.mrb[0].mxu0
      %v4222 = vpop.f32.mrb[0].mxu0
      %v4223 = vadd.f32 0.0, %v4222
      %v4224 = vpop.f32.mrb[0].mxu0
      %4225 = vmatprep.mubr.bf16.mxu0 0
      %4226 = vmatmul.mubr.bf16.gmra.mrb[0].mxu0 %v2395
      %v4227 = vpop.f32.mrb[0].mxu0
      %v4228 = vadd.f32 0.0, %v4227
      %v4229 = vpop.f32.mrb[0].mxu0
      %v4230 = vpop.f32.mrb[0].mxu0
      %v4231 = vadd.f32 0.0, %v4230
      %v4232 = vpop.f32.mrb[0].mxu0
      %4233 = vmatprep.mubr.bf16.mxu0 0
      %4234 = vmatmul.mubr.bf16.gmra.mrb[0].mxu0 %v2396
      %v4235 = vpop.f32.mrb[0].mxu0
      %v4236 = vadd.f32 0.0, %v4235
      %v4237 = vpop.f32.mrb[0].mxu0
      %v4238 = vpop.f32.mrb[0].mxu0
      %v4239 = vadd.f32 0.0, %v4238
      %v4240 = vpop.f32.mrb[0].mxu0
      %4241 = vmatprep.mubr.bf16.mxu0 0
      %4242 = vmatmul.mubr.bf16.gmra.mrb[0].mxu0 %v2397
      %v4243 = vpop.f32.mrb[0].mxu0
      %v4244 = vadd.f32 0.0, %v4243
      %v4245 = vpop.f32.mrb[0].mxu0
      %v4246 = vpop.f32.mrb[0].mxu0
      %v4247 = vadd.f32 0.0, %v4246
      %v4248 = vpop.f32.mrb[0].mxu0
      %4249 = vmatprep.mubr.bf16.mxu0 0
      %4250 = vmatmul.mubr.bf16.gmra.mrb[0].mxu0 %v2398
      %v4251 = vpop.f32.mrb[0].mxu0
      %v4252 = vadd.f32 0.0, %v4251
      %v4253 = vpop.f32.mrb[0].mxu0
      %v4254 = vpop.f32.mrb[0].mxu0
      %v4255 = vadd.f32 0.0, %v4254
      %v4256 = vpop.f32.mrb[0].mxu0
      %4257 = vmatprep.mubr.bf16.mxu0 0
      %4258 = vmatmul.mubr.bf16.gmra.mrb[0].mxu0 %v2399
      %v4259 = vpop.f32.mrb[0].mxu0
      %v4260 = vadd.f32 0.0, %v4259
      %v4261 = vpop.f32.mrb[0].mxu0
      %v4262 = vpop.f32.mrb[0].mxu0
      %v4263 = vadd.f32 0.0, %v4262
      %v4264 = vpop.f32.mrb[0].mxu0
      %4265 = vmatprep.mubr.bf16.mxu0 0
      %4266 = vmatmul.mubr.bf16.gmra.mrb[0].mxu0 %v2400
      %v4267 = vpop.f32.mrb[0].mxu0
      %v4268 = vadd.f32 0.0, %v4267
      %v4269 = vpop.f32.mrb[0].mxu0
      %v4270 = vpop.f32.mrb[0].mxu0
      %v4271 = vadd.f32 0.0, %v4270
      %v4272 = vpop.f32.mrb[0].mxu0
      %4273 = vmatprep.mubr.bf16.mxu0 0
      %4274 = vmatmul.mubr.bf16.gmra.mrb[0].mxu0 %v2401
      %v4275 = vpop.f32.mrb[0].mxu0
      %v4276 = vadd.f32 0.0, %v4275
      %v4277 = vpop.f32.mrb[0].mxu0
      %v4278 = vpop.f32.mrb[0].mxu0
      %v4279 = vadd.f32 0.0, %v4278
      %v4280 = vpop.f32.mrb[0].mxu0
      %4281 = vmatprep.mubr.bf16.mxu0 0
      %4282 = vmatmul.mubr.bf16.gmra.mrb[0].mxu0 %v2402
      %v4283 = vpop.f32.mrb[0].mxu0
      %v4284 = vadd.f32 0.0, %v4283
      %v4285 = vpop.f32.mrb[0].mxu0
      %v4286 = vpop.f32.mrb[0].mxu0
      %v4287 = vadd.f32 0.0, %v4286
      %v4288 = vpop.f32.mrb[0].mxu0
      %4289 = vmatprep.mubr.bf16.mxu0 0
      %4290 = vmatmul.mubr.bf16.gmra.mrb[0].mxu0 %v2403
      %v4291 = vpop.f32.mrb[0].mxu0
      %v4292 = vadd.f32 0.0, %v4291
      %v4293 = vpop.f32.mrb[0].mxu0
      %v4294 = vpop.f32.mrb[0].mxu0
      %v4295 = vadd.f32 0.0, %v4294
      %v4296 = vpop.f32.mrb[0].mxu0
      %4297 = vdwg.mxu0
      %4298 = vst [vmem:[%s229] sm:$0xff] %v3947
      %4299 = vst [vmem:[%s229 + $0x8] sm:$0xff] %v3950
      %4300 = vst [vmem:[%s229 + $0x10] sm:$0xff] %v3955
      %4301 = vst [vmem:[%s229 + $0x18] sm:$0xff] %v3958
      %4302 = vst [vmem:[%s229 + $0x20] sm:$0xff] %v3963
      %4303 = vst [vmem:[%s229 + $0x28] sm:$0xff] %v3966
      %4304 = vst [vmem:[%s229 + $0x30] sm:$0xff] %v3971
      %4305 = vst [vmem:[%s229 + $0x38] sm:$0xff] %v3974
      %4306 = vst [vmem:[%s229 + $0x40] sm:$0xff] %v3979
      %4307 = vst [vmem:[%s229 + $0x48] sm:$0xff] %v3982
      %4308 = vst [vmem:[%s229 + $0x50] sm:$0xff] %v3987
      %4309 = vst [vmem:[%s229 + $0x58] sm:$0xff] %v3990
      %4310 = vst [vmem:[%s229 + $0x60] sm:$0xff] %v3995
      %4311 = vst [vmem:[%s229 + $0x68] sm:$0xff] %v3998
      %4312 = vst [vmem:[%s229 + $0x70] sm:$0xff] %v4003
      %4313 = vst [vmem:[%s229 + $0x78] sm:$0xff] %v4006
      %4314 = vst [vmem:[%s229 + $0x80] sm:$0xff] %v4011
      %4315 = vst [vmem:[%s229 + $0x88] sm:$0xff] %v4014
      %4316 = vst [vmem:[%s229 + $0x90] sm:$0xff] %v4019
      %4317 = vst [vmem:[%s229 + $0x98] sm:$0xff] %v4022
      %4318 = vst [vmem:[%s229 + $0xa0] sm:$0xff] %v4027
      %4319 = vst [vmem:[%s229 + $0xa8] sm:$0xff] %v4030
      %4320 = vst [vmem:[%s229 + $0xb0] sm:$0xff] %v4035
      %4321 = vst [vmem:[%s229 + $0xb8] sm:$0xff] %v4038
      %4322 = vst [vmem:[%s229 + $0xc0] sm:$0xff] %v4043
      %4323 = vst [vmem:[%s229 + $0xc8] sm:$0xff] %v4046
      %4324 = vst [vmem:[%s229 + $0xd0] sm:$0xff] %v4051
      %4325 = vst [vmem:[%s229 + $0xd8] sm:$0xff] %v4054
      %4326 = vst [vmem:[%s229 + $0xe0] sm:$0xff] %v4059
      %4327 = vst [vmem:[%s229 + $0xe8] sm:$0xff] %v4062
      %4328 = vst [vmem:[%s229 + $0xf0] sm:$0xff] %v4067
      %4329 = vst [vmem:[%s229 + $0xf8] sm:$0xff] %v4070
      %4330 = vst [vmem:[%s234] sm:$0xff] %v4172
      %4331 = vst [vmem:[%s234 + $0x8] sm:$0xff] %v4175
      %4332 = vst [vmem:[%s234 + $0x10] sm:$0xff] %v4180
      %4333 = vst [vmem:[%s234 + $0x18] sm:$0xff] %v4183
      %4334 = vst [vmem:[%s234 + $0x20] sm:$0xff] %v4188
      %4335 = vst [vmem:[%s234 + $0x28] sm:$0xff] %v4191
      %4336 = vst [vmem:[%s234 + $0x30] sm:$0xff] %v4196
      %4337 = vst [vmem:[%s234 + $0x38] sm:$0xff] %v4199
      %4338 = vst [vmem:[%s234 + $0x40] sm:$0xff] %v4204
      %4339 = vst [vmem:[%s234 + $0x48] sm:$0xff] %v4207
      %4340 = vst [vmem:[%s234 + $0x50] sm:$0xff] %v4212
      %4341 = vst [vmem:[%s234 + $0x58] sm:$0xff] %v4215
      %4342 = vst [vmem:[%s234 + $0x60] sm:$0xff] %v4220
      %4343 = vst [vmem:[%s234 + $0x68] sm:$0xff] %v4223
      %4344 = vst [vmem:[%s234 + $0x70] sm:$0xff] %v4228
      %4345 = vst [vmem:[%s234 + $0x78] sm:$0xff] %v4231
      %4346 = vst [vmem:[%s234 + $0x80] sm:$0xff] %v4236
      %4347 = vst [vmem:[%s234 + $0x88] sm:$0xff] %v4239
      %4348 = vst [vmem:[%s234 + $0x90] sm:$0xff] %v4244
      %4349 = vst [vmem:[%s234 + $0x98] sm:$0xff] %v4247
      %4350 = vst [vmem:[%s234 + $0xa0] sm:$0xff] %v4252
      %4351 = vst [vmem:[%s234 + $0xa8] sm:$0xff] %v4255
      %4352 = vst [vmem:[%s234 + $0xb0] sm:$0xff] %v4260
      %4353 = vst [vmem:[%s234 + $0xb8] sm:$0xff] %v4263
      %4354 = vst [vmem:[%s234 + $0xc0] sm:$0xff] %v4268
      %4355 = vst [vmem:[%s234 + $0xc8] sm:$0xff] %v4271
      %4356 = vst [vmem:[%s234 + $0xd0] sm:$0xff] %v4276
      %4357 = vst [vmem:[%s234 + $0xd8] sm:$0xff] %v4279
      %4358 = vst [vmem:[%s234 + $0xe0] sm:$0xff] %v4284
      %4359 = vst [vmem:[%s234 + $0xe8] sm:$0xff] %v4287
      %4360 = vst [vmem:[%s234 + $0xf0] sm:$0xff] %v4292
      %4361 = vst [vmem:[%s234 + $0xf8] sm:$0xff] %v4295
      %p4362 = scmp.eq.s32.totalorder %s17, 0
      // Predicated region
      $region33: #{basic_block_forward.3} parent=31 // pred_check
        %p4363 = pneg %p4362
      $region34: #{basic_block_forward.3} parent=31 // pred_check_branch
        %4365 = sbr.rel (%p4363) target = $region36
      $region35: #{basic_block_forward.3} parent=31 // pred_region
        %4366 = vst [vmem:[%s5] sm:$0xff] 0.0
      $region36: #{basic_block_forward.3} parent=31 // pred_fallthru
        _
      %v4367 = vadd.f32 %v3947, %v3950
      %v4368 = vadd.f32 %v4367, %v3955
      %v4369 = vadd.f32 %v4368, %v3958
      %v4370 = vadd.f32 %v4369, %v3963
      %v4371 = vadd.f32 %v4370, %v3966
      %v4372 = vadd.f32 %v4371, %v3971
      %v4373 = vadd.f32 %v4372, %v3974
      %v4374 = vadd.f32 %v4373, %v3979
      %v4375 = vadd.f32 %v4374, %v3982
      %v4376 = vadd.f32 %v4375, %v3987
      %v4377 = vadd.f32 %v4376, %v3990
      %v4378 = vadd.f32 %v4377, %v3995
      %v4379 = vadd.f32 %v4378, %v3998
      %v4380 = vadd.f32 %v4379, %v4003
      %v4381 = vadd.f32 %v4380, %v4006
      %v4382 = vadd.f32 %v4381, %v4011
      %v4383 = vadd.f32 %v4382, %v4014
      %v4384 = vadd.f32 %v4383, %v4019
      %v4385 = vadd.f32 %v4384, %v4022
      %v4386 = vadd.f32 %v4385, %v4027
      %v4387 = vadd.f32 %v4386, %v4030
      %v4388 = vadd.f32 %v4387, %v4035
      %v4389 = vadd.f32 %v4388, %v4038
      %v4390 = vadd.f32 %v4389, %v4043
      %v4391 = vadd.f32 %v4390, %v4046
      %v4392 = vadd.f32 %v4391, %v4051
      %v4393 = vadd.f32 %v4392, %v4054
      %v4394 = vadd.f32 %v4393, %v4059
      %v4395 = vadd.f32 %v4394, %v4062
      %v4396 = vadd.f32 %v4395, %v4067
      %v4397 = vadd.f32 %v4396, %v4070
      %v4398 = vrot.slane %v4397, 4
      %v4399 = vadd.f32 %v4397, %v4398
      %v4400 = vrot.slane %v4399, 2
      %v4401 = vadd.f32 %v4399, %v4400
      %v4402 = vrot.slane %v4401, 1
      %v4403 = vadd.f32 %v4401, %v4402
      %v4404 = vmul.f32 %v3947, %v3947
      %v4405 = vmul.f32 %v3950, %v3950
      %v4406 = vmul.f32 %v3955, %v3955
      %v4407 = vmul.f32 %v3958, %v3958
      %v4408 = vmul.f32 %v3963, %v3963
      %v4409 = vmul.f32 %v3966, %v3966
      %v4410 = vmul.f32 %v3971, %v3971
      %v4411 = vmul.f32 %v3974, %v3974
      %v4412 = vmul.f32 %v3979, %v3979
      %v4413 = vmul.f32 %v3982, %v3982
      %v4414 = vmul.f32 %v3987, %v3987
      %v4415 = vmul.f32 %v3990, %v3990
      %v4416 = vmul.f32 %v3995, %v3995
      %v4417 = vmul.f32 %v3998, %v3998
      %v4418 = vmul.f32 %v4003, %v4003
      %v4419 = vmul.f32 %v4006, %v4006
      %v4420 = vmul.f32 %v4011, %v4011
      %v4421 = vmul.f32 %v4014, %v4014
      %v4422 = vmul.f32 %v4019, %v4019
      %v4423 = vmul.f32 %v4022, %v4022
      %v4424 = vmul.f32 %v4027, %v4027
      %v4425 = vmul.f32 %v4030, %v4030
      %v4426 = vmul.f32 %v4035, %v4035
      %v4427 = vmul.f32 %v4038, %v4038
      %v4428 = vmul.f32 %v4043, %v4043
      %v4429 = vmul.f32 %v4046, %v4046
      %v4430 = vmul.f32 %v4051, %v4051
      %v4431 = vmul.f32 %v4054, %v4054
      %v4432 = vmul.f32 %v4059, %v4059
      %v4433 = vmul.f32 %v4062, %v4062
      %v4434 = vmul.f32 %v4067, %v4067
      %v4435 = vmul.f32 %v4070, %v4070
      %v4436 = vadd.f32 %v4404, %v4405
      %v4437 = vadd.f32 %v4436, %v4406
      %v4438 = vadd.f32 %v4437, %v4407
      %v4439 = vadd.f32 %v4438, %v4408
      %v4440 = vadd.f32 %v4439, %v4409
      %v4441 = vadd.f32 %v4440, %v4410
      %v4442 = vadd.f32 %v4441, %v4411
      %v4443 = vadd.f32 %v4442, %v4412
      %v4444 = vadd.f32 %v4443, %v4413
      %v4445 = vadd.f32 %v4444, %v4414
      %v4446 = vadd.f32 %v4445, %v4415
      %v4447 = vadd.f32 %v4446, %v4416
      %v4448 = vadd.f32 %v4447, %v4417
      %v4449 = vadd.f32 %v4448, %v4418
      %v4450 = vadd.f32 %v4449, %v4419
      %v4451 = vadd.f32 %v4450, %v4420
      %v4452 = vadd.f32 %v4451, %v4421
      %v4453 = vadd.f32 %v4452, %v4422
      %v4454 = vadd.f32 %v4453, %v4423
      %v4455 = vadd.f32 %v4454, %v4424
      %v4456 = vadd.f32 %v4455, %v4425
      %v4457 = vadd.f32 %v4456, %v4426
      %v4458 = vadd.f32 %v4457, %v4427
      %v4459 = vadd.f32 %v4458, %v4428
      %v4460 = vadd.f32 %v4459, %v4429
      %v4461 = vadd.f32 %v4460, %v4430
      %v4462 = vadd.f32 %v4461, %v4431
      %v4463 = vadd.f32 %v4462, %v4432
      %v4464 = vadd.f32 %v4463, %v4433
      %v4465 = vadd.f32 %v4464, %v4434
      %v4466 = vadd.f32 %v4465, %v4435
      %v4467 = vrot.slane %v4466, 4
      %v4468 = vadd.f32 %v4466, %v4467
      %v4469 = vrot.slane %v4468, 2
      %v4470 = vadd.f32 %v4468, %v4469
      %v4471 = vrot.slane %v4470, 1
      %v4472 = vadd.f32 %v4470, %v4471
      %v4473 = vadd.f32 %v4172, %v4175
      %v4474 = vadd.f32 %v4473, %v4180
      %v4475 = vadd.f32 %v4474, %v4183
      %v4476 = vadd.f32 %v4475, %v4188
      %v4477 = vadd.f32 %v4476, %v4191
      %v4478 = vadd.f32 %v4477, %v4196
      %v4479 = vadd.f32 %v4478, %v4199
      %v4480 = vadd.f32 %v4479, %v4204
      %v4481 = vadd.f32 %v4480, %v4207
      %v4482 = vadd.f32 %v4481, %v4212
      %v4483 = vadd.f32 %v4482, %v4215
      %v4484 = vadd.f32 %v4483, %v4220
      %v4485 = vadd.f32 %v4484, %v4223
      %v4486 = vadd.f32 %v4485, %v4228
      %v4487 = vadd.f32 %v4486, %v4231
      %v4488 = vadd.f32 %v4487, %v4236
      %v4489 = vadd.f32 %v4488, %v4239
      %v4490 = vadd.f32 %v4489, %v4244
      %v4491 = vadd.f32 %v4490, %v4247
      %v4492 = vadd.f32 %v4491, %v4252
      %v4493 = vadd.f32 %v4492, %v4255
      %v4494 = vadd.f32 %v4493, %v4260
      %v4495 = vadd.f32 %v4494, %v4263
      %v4496 = vadd.f32 %v4495, %v4268
      %v4497 = vadd.f32 %v4496, %v4271
      %v4498 = vadd.f32 %v4497, %v4276
      %v4499 = vadd.f32 %v4498, %v4279
      %v4500 = vadd.f32 %v4499, %v4284
      %v4501 = vadd.f32 %v4500, %v4287
      %v4502 = vadd.f32 %v4501, %v4292
      %v4503 = vadd.f32 %v4502, %v4295
      %v4504 = vrot.slane %v4503, 4
      %v4505 = vadd.f32 %v4503, %v4504
      %v4506 = vrot.slane %v4505, 2
      %v4507 = vadd.f32 %v4505, %v4506
      %v4508 = vrot.slane %v4507, 1
      %v4509 = vadd.f32 %v4507, %v4508
      %v4510 = vmul.f32 %v4172, %v4172
      %v4511 = vmul.f32 %v4175, %v4175
      %v4512 = vmul.f32 %v4180, %v4180
      %v4513 = vmul.f32 %v4183, %v4183
      %v4514 = vmul.f32 %v4188, %v4188
      %v4515 = vmul.f32 %v4191, %v4191
      %v4516 = vmul.f32 %v4196, %v4196
      %v4517 = vmul.f32 %v4199, %v4199
      %v4518 = vmul.f32 %v4204, %v4204
      %v4519 = vmul.f32 %v4207, %v4207
      %v4520 = vmul.f32 %v4212, %v4212
      %v4521 = vmul.f32 %v4215, %v4215
      %v4522 = vmul.f32 %v4220, %v4220
      %v4523 = vmul.f32 %v4223, %v4223
      %v4524 = vmul.f32 %v4228, %v4228
      %v4525 = vmul.f32 %v4231, %v4231
      %v4526 = vmul.f32 %v4236, %v4236
      %v4527 = vmul.f32 %v4239, %v4239
      %v4528 = vmul.f32 %v4244, %v4244
      %v4529 = vmul.f32 %v4247, %v4247
      %v4530 = vmul.f32 %v4252, %v4252
      %v4531 = vmul.f32 %v4255, %v4255
      %v4532 = vmul.f32 %v4260, %v4260
      %v4533 = vmul.f32 %v4263, %v4263
      %v4534 = vmul.f32 %v4268, %v4268
      %v4535 = vmul.f32 %v4271, %v4271
      %v4536 = vmul.f32 %v4276, %v4276
      %v4537 = vmul.f32 %v4279, %v4279
      %v4538 = vmul.f32 %v4284, %v4284
      %v4539 = vmul.f32 %v4287, %v4287
      %v4540 = vmul.f32 %v4292, %v4292
      %v4541 = vmul.f32 %v4295, %v4295
      %v4542 = vadd.f32 %v4510, %v4511
      %v4543 = vadd.f32 %v4542, %v4512
      %v4544 = vadd.f32 %v4543, %v4513
      %v4545 = vadd.f32 %v4544, %v4514
      %v4546 = vadd.f32 %v4545, %v4515
      %v4547 = vadd.f32 %v4546, %v4516
      %v4548 = vadd.f32 %v4547, %v4517
      %v4549 = vadd.f32 %v4548, %v4518
      %v4550 = vadd.f32 %v4549, %v4519
      %v4551 = vadd.f32 %v4550, %v4520
      %v4552 = vadd.f32 %v4551, %v4521
      %v4553 = vadd.f32 %v4552, %v4522
      %v4554 = vadd.f32 %v4553, %v4523
      %v4555 = vadd.f32 %v4554, %v4524
      %v4556 = vadd.f32 %v4555, %v4525
      %v4557 = vadd.f32 %v4556, %v4526
      %v4558 = vadd.f32 %v4557, %v4527
      %v4559 = vadd.f32 %v4558, %v4528
      %v4560 = vadd.f32 %v4559, %v4529
      %v4561 = vadd.f32 %v4560, %v4530
      %v4562 = vadd.f32 %v4561, %v4531
      %v4563 = vadd.f32 %v4562, %v4532
      %v4564 = vadd.f32 %v4563, %v4533
      %v4565 = vadd.f32 %v4564, %v4534
      %v4566 = vadd.f32 %v4565, %v4535
      %v4567 = vadd.f32 %v4566, %v4536
      %v4568 = vadd.f32 %v4567, %v4537
      %v4569 = vadd.f32 %v4568, %v4538
      %v4570 = vadd.f32 %v4569, %v4539
      %v4571 = vadd.f32 %v4570, %v4540
      %v4572 = vadd.f32 %v4571, %v4541
      %v4573 = vrot.slane %v4572, 4
      %v4574 = vadd.f32 %v4572, %v4573
      %v4575 = vrot.slane %v4574, 2
      %v4576 = vadd.f32 %v4574, %v4575
      %v4577 = vrot.slane %v4576, 1
      %v4578 = vadd.f32 %v4576, %v4577
      %vm4579 = vcmask 1040384
      %v4580 = vsel %vm4579, %v4403, %v4472
      %vm4581 = vcmask 1041408
      %v4582 = vsel %vm4581, %v4580, %v4509
      %vm4583 = vcmask 1042432
      %v4584 = vsel %vm4583, %v4582, %v4578
      %vm4585 = vcmask 1043456
      %v4586 = vsel %vm4585, %v4584, 0.0
      %v4587 = vld [vmem:[%s5] sm:$0xff]
      %v4588 = vadd.f32 %v4587, %v4586
      %4589 = vst [vmem:[%s5] sm:$0xff] %v4588
      %p4590 = scmp.lt.s32.totalorder %s17, 1
      %s4591 = scalar_select %p4590, %s17, 1
      %s4592 = smul.addr %s4591, 32
      %s4593 = smul.addr %s4592, 8
      %s4594 = scalar_lea.vmem %s3, %s4593
      %p4595 = scmp.lt.s32.totalorder %s17, 1
      %s4596 = scalar_select %p4595, %s17, 1
      %s4597 = smul.addr %s4596, 32
      %s4598 = smul.addr %s4597, 8
      %s4599 = scalar_lea.vmem %s4, %s4598
      // Predicated region
      $region37: #{basic_block_forward.3} parent=31 // pred_check
        %p4600 = pneg %p103
      $region38: #{basic_block_forward.3} parent=31 // pred_check_branch
        %4602 = sbr.rel (%p4600) target = $region40
      $region39: #{basic_block_forward.3} parent=31 // pred_region
        _
      $region40: #{basic_block_forward.3} parent=31 // pred_fallthru
        _
      // Predicated region
      $region41: #{basic_block_forward.3} parent=31 // pred_check
        %p4603 = pneg %p129
      $region42: #{basic_block_forward.3} parent=31 // pred_check_branch
        %4605 = sbr.rel (%p4603) target = $region44
      $region43: #{basic_block_forward.3} parent=31 // pred_region
        _
      $region44: #{basic_block_forward.3} parent=31 // pred_fallthru
        _
      // Predicated region
      $region45: #{basic_block_forward.3} parent=31 // pred_check
        %p4606 = pneg %p150
      $region46: #{basic_block_forward.3} parent=31 // pred_check_branch
        %4608 = sbr.rel (%p4606) target = $region48
      $region47: #{basic_block_forward.3} parent=31 // pred_region
        _
      $region48: #{basic_block_forward.3} parent=31 // pred_fallthru
        _
      // Predicated region
      $region49: #{basic_block_forward.3} parent=31 // pred_check
        %p4609 = pneg %p150
      $region50: #{basic_block_forward.3} parent=31 // pred_check_branch
        %4611 = sbr.rel (%p4609) target = $region52
      $region51: #{basic_block_forward.3} parent=31 // pred_region
        _
      $region52: #{basic_block_forward.3} parent=31 // pred_fallthru
        _
    $region32: #{basic_block_forward.3} parent=5 // pred_fallthru
      _
    %p4612 = scmp.le.s32.totalorder 2, %s12
    // Predicated region
    $region53: #{basic_block_forward.3} parent=5 // pred_check
      %p4613 = pneg %p4612
    $region54: #{basic_block_forward.3} parent=5 // pred_check_branch
      %4615 = sbr.rel (%p4613) target = $region56
    $region55: #{basic_block_forward.3} parent=5 // pred_region
      %s4616 = ssub.s32 %s12, 2
      // Predicated region
      $region57: #{basic_block_forward.3} parent=55 // pred_check
        %p4617 = pneg %p109
      $region58: #{basic_block_forward.3} parent=55 // pred_check_branch
        %4619 = sbr.rel (%p4617) target = $region60
      $region59: #{basic_block_forward.3} parent=55 // pred_region
        %p4620 = scmp.lt.s32.totalorder %s18, 1
        %s4621 = scalar_select %p4620, %s18, 1
        %s4622 = smul.addr %s4621, 32
        %s4623 = smul.addr %s4622, 8
        %s4624 = scalar_lea.vmem %s3, %s4623
      $region60: #{basic_block_forward.3} parent=55 // pred_fallthru
        _
      // Predicated region
      $region61: #{basic_block_forward.3} parent=55 // pred_check
        %p4625 = pneg %p135
      $region62: #{basic_block_forward.3} parent=55 // pred_check_branch
        %4627 = sbr.rel (%p4625) target = $region64
      $region63: #{basic_block_forward.3} parent=55 // pred_region
        %p4628 = scmp.lt.s32.totalorder %s18, 1
        %s4629 = scalar_select %p4628, %s18, 1
        %s4630 = smul.addr %s4629, 32
        %s4631 = smul.addr %s4630, 8
        %s4632 = scalar_lea.vmem %s4, %s4631
      $region64: #{basic_block_forward.3} parent=55 // pred_fallthru
        _
    $region56: #{basic_block_forward.3} parent=5 // pred_fallthru
      _
  $region6: #{basic_block_forward.3} parent=0 // loop_footer
    %s16 = sadd.s32 1, %s12
  $region7: #{basic_block_forward.3} parent=0 // loop_footer_branch
    %11 = sbr.rel target = $region3
  $region8: #{basic_block_forward.3} parent=0 // loop_exit
    _

// kernel: basic_block_forward.4
$region0: #{basic_block_forward.4}
  #allocation0 [shape = 'u32[]', space=smem, size = 0x4, offset = 0x4, fixed_abs, tag = 'smem constant byte address 0x4 - core index']
  #allocation1 [shape = 'u32[144,128]{1,0:T(1,128)}', space=vmem, size = 0x12000, scoped, tag = 'internal scratch']
  #allocation2 [shape = 'bf16[18,18,128]{2,1,0:T(8,128)(2,1)}', space=vmem, size = 0x1b000, scoped, tag = 'scratch operand']
  %s0 = inlined_call_operand.vmem [shape: f32[2,16,16,128], index: 0, kind: input, shape index: {}]
  %s1 = inlined_call_operand.vmem [shape: f32[1,128], index: 1, kind: input, shape index: {}]
  %s2 = inlined_call_operand.vmem [shape: f32[1,128], index: 2, kind: input, shape index: {}]
  %s3 = inlined_call_operand.vmem [shape: bf16[1152,128], index: 3, kind: input, shape index: {}]
  %s4 = inlined_call_operand.vmem [shape: f32[2,16,16,128], index: 4, kind: output, shape index: {0}]
  %s5 = inlined_call_operand.vmem [shape: f32[8,128], index: 5, kind: output, shape index: {1}]
  %6 = xla_tuple %s4, %s5
  %s7 = sld [smem:[#allocation0]]
  $region61: #{basic_block_forward.4} parent=0
    _
  %s9 = ssub.s32 1, %s7
  %s10 = scalar_select 0, %s9, %s7
  loop: start=0, step=1, limit=4
  $region2: #{basic_block_forward.4} parent=0 // loop_pre_header
    _
  $region3: #{basic_block_forward.4} parent=0 // loop_header
    %s12 = sphi 0, %s16
    %p13 = scmp.ge.s32.totalorder %s12, 4
    %s22 = sphi 0, %s24
    %s25 = sphi 0, %s22
    %s26 = sphi 0, %s25
    %s42 = sphi 0, %s26
    %s46 = sphi 0, %s46
    %s48 = sphi 0, %s46
    %s49 = sphi 0, %s48
    %s63 = sphi 0, %s49
    %s67 = sphi 0, %s67
    %s69 = sphi 0, %s67
    %s70 = sphi 0, %s69
    %s84 = sphi 0, %s70
    %s88 = sphi 0, %s88
    %s90 = sphi 0, %s88
    %s91 = sphi 0, %s90
    %s105 = sphi 0, %s91
    %s111 = sphi 0, %s113
    %s114 = sphi 0, %s111
    %s115 = sphi 0, %s114
    %s131 = sphi 0, %s115
    %s135 = sphi 0, %s135
    %s137 = sphi 0, %s135
    %s138 = sphi 0, %s137
    %s152 = sphi 0, %s138
  $region4: #{basic_block_forward.4} parent=0 // loop_header_branch
    %15 = sbr.rel (%p13) target = $region8
  $region5: #{basic_block_forward.4} parent=0 // loop_body
    %s17 = ssub.s32 %s12, 1
    %s18 = ssub.s32 %s12, 2
    %s19 = sadd.s32 %s12, 1
    %s20 = ssub.s32 %s12, %s19
    %p21 = scmp.eq.s32.totalorder %s20, 0
    %s23 = sadd.s32 %s22, 1
    %s24 = scalar_select %p21, %s22, %s23
    %p27 = pneg %p21
    %p28 = scmp.eq.s32.totalorder %s12, 1
    %p29 = por %p27, %p28
    %p30 = scmp.ne.s32.totalorder %s22, %s25
    %p31 = scmp.eq.s32.totalorder %s12, 0
    %p32 = por %p30, %p31
    %p33 = scmp.ne.s32.totalorder %s22, %s25
    %p34 = scmp.eq.s32.totalorder %s17, 1
    %p35 = por %p33, %p34
    %p36 = scmp.ne.s32.totalorder %s25, %s26
    %p37 = scmp.eq.s32.totalorder %s17, 0
    %p38 = por %p36, %p37
    %p39 = scmp.ne.s32.totalorder %s25, %s26
    %p40 = scmp.eq.s32.totalorder %s18, 1
    %p41 = por %p39, %p40
    %p43 = scmp.ne.s32.totalorder %s26, %s42
    %p44 = scmp.eq.s32.totalorder %s18, 0
    %p45 = por %p43, %p44
    %s47 = sadd.s32 %s46, 1
    %p50 = scmp.eq.s32.totalorder %s12, 1
    %p51 = scmp.ne.s32.totalorder %s46, %s48
    %p52 = scmp.eq.s32.totalorder %s12, 0
    %p53 = por %p51, %p52
    %p54 = scmp.ne.s32.totalorder %s46, %s48
    %p55 = scmp.eq.s32.totalorder %s17, 1
    %p56 = por %p54, %p55
    %p57 = scmp.ne.s32.totalorder %s48, %s49
    %p58 = scmp.eq.s32.totalorder %s17, 0
    %p59 = por %p57, %p58
    %p60 = scmp.ne.s32.totalorder %s48, %s49
    %p61 = scmp.eq.s32.totalorder %s18, 1
    %p62 = por %p60, %p61
    %p64 = scmp.ne.s32.totalorder %s49, %s63
    %p65 = scmp.eq.s32.totalorder %s18, 0
    %p66 = por %p64, %p65
    %s68 = sadd.s32 %s67, 1
    %p71 = scmp.eq.s32.totalorder %s12, 1
    %p72 = scmp.ne.s32.totalorder %s67, %s69
    %p73 = scmp.eq.s32.totalorder %s12, 0
    %p74 = por %p72, %p73
    %p75 = scmp.ne.s32.totalorder %s67, %s69
    %p76 = scmp.eq.s32.totalorder %s17, 1
    %p77 = por %p75, %p76
    %p78 = scmp.ne.s32.totalorder %s69, %s70
    %p79 = scmp.eq.s32.totalorder %s17, 0
    %p80 = por %p78, %p79
    %p81 = scmp.ne.s32.totalorder %s69, %s70
    %p82 = scmp.eq.s32.totalorder %s18, 1
    %p83 = por %p81, %p82
    %p85 = scmp.ne.s32.totalorder %s70, %s84
    %p86 = scmp.eq.s32.totalorder %s18, 0
    %p87 = por %p85, %p86
    %s89 = sadd.s32 %s88, 1
    %p92 = scmp.eq.s32.totalorder %s12, 1
    %p93 = scmp.ne.s32.totalorder %s88, %s90
    %p94 = scmp.eq.s32.totalorder %s12, 0
    %p95 = por %p93, %p94
    %p96 = scmp.ne.s32.totalorder %s88, %s90
    %p97 = scmp.eq.s32.totalorder %s17, 1
    %p98 = por %p96, %p97
    %p99 = scmp.ne.s32.totalorder %s90, %s91
    %p100 = scmp.eq.s32.totalorder %s17, 0
    %p101 = por %p99, %p100
    %p102 = scmp.ne.s32.totalorder %s90, %s91
    %p103 = scmp.eq.s32.totalorder %s18, 1
    %p104 = por %p102, %p103
    %p106 = scmp.ne.s32.totalorder %s91, %s105
    %p107 = scmp.eq.s32.totalorder %s18, 0
    %p108 = por %p106, %p107
    %s109 = ssub.s32 %s12, %s19
    %p110 = scmp.eq.s32.totalorder %s109, 0
    %s112 = sadd.s32 %s111, 1
    %s113 = scalar_select %p110, %s111, %s112
    %p116 = pneg %p110
    %p117 = scmp.eq.s32.totalorder %s12, 1
    %p118 = por %p116, %p117
    %p119 = scmp.ne.s32.totalorder %s111, %s114
    %p120 = scmp.eq.s32.totalorder %s12, 0
    %p121 = por %p119, %p120
    %p122 = scmp.ne.s32.totalorder %s111, %s114
    %p123 = scmp.eq.s32.totalorder %s17, 1
    %p124 = por %p122, %p123
    %p125 = scmp.ne.s32.totalorder %s114, %s115
    %p126 = scmp.eq.s32.totalorder %s17, 0
    %p127 = por %p125, %p126
    %p128 = scmp.ne.s32.totalorder %s114, %s115
    %p129 = scmp.eq.s32.totalorder %s18, 1
    %p130 = por %p128, %p129
    %p132 = scmp.ne.s32.totalorder %s115, %s131
    %p133 = scmp.eq.s32.totalorder %s18, 0
    %p134 = por %p132, %p133
    %s136 = sadd.s32 %s135, 1
    %p139 = scmp.eq.s32.totalorder %s12, 1
    %p140 = scmp.ne.s32.totalorder %s135, %s137
    %p141 = scmp.eq.s32.totalorder %s12, 0
    %p142 = por %p140, %p141
    %p143 = scmp.ne.s32.totalorder %s135, %s137
    %p144 = scmp.eq.s32.totalorder %s17, 1
    %p145 = por %p143, %p144
    %p146 = scmp.ne.s32.totalorder %s137, %s138
    %p147 = scmp.eq.s32.totalorder %s17, 0
    %p148 = por %p146, %p147
    %p149 = scmp.ne.s32.totalorder %s137, %s138
    %p150 = scmp.eq.s32.totalorder %s18, 1
    %p151 = por %p149, %p150
    %p153 = scmp.ne.s32.totalorder %s138, %s152
    %p154 = scmp.eq.s32.totalorder %s18, 0
    %p155 = por %p153, %p154
    %p156 = scmp.le.s32.totalorder 1, %s12
    %p157 = scmp.lt.s32.totalorder %s12, 3
    %p158 = pnand %p156, %p157
    %p159 = pneg %p158
    // Predicated region
    $region9: #{basic_block_forward.4} parent=5 // pred_check
      _
    $region10: #{basic_block_forward.4} parent=5 // pred_check_branch
      %161 = sbr.rel (%p158) target = $region12
    $region11: #{basic_block_forward.4} parent=5 // pred_region
      %s162 = ssub.s32 %s12, 1
      // Predicated region
      $region13: #{basic_block_forward.4} parent=11 // pred_check
        %p163 = pneg %p59
      $region14: #{basic_block_forward.4} parent=11 // pred_check_branch
        %165 = sbr.rel (%p163) target = $region16
      $region15: #{basic_block_forward.4} parent=11 // pred_region
        _
      $region16: #{basic_block_forward.4} parent=11 // pred_fallthru
        _
      // Predicated region
      $region17: #{basic_block_forward.4} parent=11 // pred_check
        %p166 = pneg %p80
      $region18: #{basic_block_forward.4} parent=11 // pred_check_branch
        %168 = sbr.rel (%p166) target = $region20
      $region19: #{basic_block_forward.4} parent=11 // pred_region
        _
      $region20: #{basic_block_forward.4} parent=11 // pred_fallthru
        _
      // Predicated region
      $region21: #{basic_block_forward.4} parent=11 // pred_check
        %p169 = pneg %p101
      $region22: #{basic_block_forward.4} parent=11 // pred_check_branch
        %171 = sbr.rel (%p169) target = $region24
      $region23: #{basic_block_forward.4} parent=11 // pred_region
        _
      $region24: #{basic_block_forward.4} parent=11 // pred_fallthru
        _
    $region12: #{basic_block_forward.4} parent=5 // pred_fallthru
      _
    %p172 = scmp.lt.s32.totalorder %s12, 2
    // Predicated region
    $region25: #{basic_block_forward.4} parent=5 // pred_check
      %p173 = pneg %p172
    $region26: #{basic_block_forward.4} parent=5 // pred_check_branch
      %175 = sbr.rel (%p173) target = $region28
    $region27: #{basic_block_forward.4} parent=5 // pred_region
      // Predicated region
      $region29: #{basic_block_forward.4} parent=27 // pred_check
        %p176 = pneg %p32
      $region30: #{basic_block_forward.4} parent=27 // pred_check_branch
        %178 = sbr.rel (%p176) target = $region32
      $region31: #{basic_block_forward.4} parent=27 // pred_region
        %p179 = scmp.lt.s32.totalorder %s12, 1
        %s180 = scalar_select %p179, %s12, 1
        %s181 = smul.addr %s180, 32
        %s182 = smul.addr %s181, 8
        %s183 = scalar_lea.vmem %s0, %s182
      $region32: #{basic_block_forward.4} parent=27 // pred_fallthru
        _
    $region28: #{basic_block_forward.4} parent=5 // pred_fallthru
      _
    %p184 = scmp.le.s32.totalorder 1, %s12
    %p185 = scmp.lt.s32.totalorder %s12, 3
    %p186 = pnand %p184, %p185
    %p187 = pneg %p186
    // Predicated region
    $region33: #{basic_block_forward.4} parent=5 // pred_check
      _
    $region34: #{basic_block_forward.4} parent=5 // pred_check_branch
      %189 = sbr.rel (%p186) target = $region36
    $region35: #{basic_block_forward.4} parent=5 // pred_region
      %s190 = ssub.s32 %s12, 1
      %p191 = scmp.lt.s32.totalorder %s17, 1
      %s192 = scalar_select %p191, %s17, 1
      %s193 = smul.addr %s192, 32
      %s194 = smul.addr %s193, 8
      %s195 = scalar_lea.vmem %s0, %s194
      %p196 = pneg %p38
      %p197 = pneg %p35
      %p198 = pneg %p59
      %p199 = pneg %p56
      %p200 = pneg %p80
      %p201 = pneg %p77
      %p202 = pneg %p101
      %p203 = pneg %p98
      %p204 = pneg %p127
      %p205 = pneg %p124
      %p206 = scmp.lt.s32.totalorder %s17, 1
      %s207 = scalar_select %p206, %s17, 1
      %s208 = smul.addr %s207, 32
      %s209 = smul.addr %s208, 8
      %s210 = scalar_lea.vmem %s4, %s209
      %p211 = pneg %p148
      %p212 = pneg %p145
      %p213 = scmp.lt.s32.totalorder %s17, 1
      %s214 = scalar_select %p213, %s17, 1
      %s215 = smul.addr %s214, 32
      %s216 = smul.addr %s215, 8
      %s217 = scalar_lea.vmem %s0, %s216
      %p218 = scmp.lt.s32.totalorder %s17, 1
      %s219 = scalar_select %p218, %s17, 1
      %s220 = smul.addr %s219, 32
      %s221 = smul.addr %s220, 8
      %s222 = scalar_lea.vmem %s4, %s221
      %p224 = scmp.eq.s32.totalorder %s17, 0
      // Predicated region
      $region37: #{basic_block_forward.4} parent=35 // pred_check
        %p225 = pneg %p224
      $region38: #{basic_block_forward.4} parent=35 // pred_check_branch
        %227 = sbr.rel (%p225) target = $region40
      $region39: #{basic_block_forward.4} parent=35 // pred_region
        %228 = vst [vmem:[#allocation2] sm:$0xf] 0
        %229 = vst [vmem:[#allocation2 + $0x4] sm:$0xf] 0
        %230 = vst [vmem:[#allocation2 + $0x8] sm:$0x1] 0
        %231 = vst [vmem:[#allocation2 + $0xc] sm:$0xf] 0
        %232 = vst [vmem:[#allocation2 + $0x10] sm:$0xf] 0
        %233 = vst [vmem:[#allocation2 + $0x14] sm:$0x1] 0
        %234 = vst [vmem:[#allocation2 + $0x18] sm:$0xf] 0
        %235 = vst [vmem:[#allocation2 + $0x1c] sm:$0xf] 0
        %236 = vst [vmem:[#allocation2 + $0x20] sm:$0x1] 0
        %237 = vst [vmem:[#allocation2 + $0x24] sm:$0xf] 0
        %238 = vst [vmem:[#allocation2 + $0x28] sm:$0xf] 0
        %239 = vst [vmem:[#allocation2 + $0x2c] sm:$0x1] 0
        %240 = vst [vmem:[#allocation2 + $0x30] sm:$0xf] 0
        %241 = vst [vmem:[#allocation2 + $0x34] sm:$0xf] 0
        %242 = vst [vmem:[#allocation2 + $0x38] sm:$0x1] 0
        %243 = vst [vmem:[#allocation2 + $0x3c] sm:$0xf] 0
        %244 = vst [vmem:[#allocation2 + $0x40] sm:$0xf] 0
        %245 = vst [vmem:[#allocation2 + $0x44] sm:$0x1] 0
        %246 = vst [vmem:[#allocation2 + $0x48] sm:$0xf] 0
        %247 = vst [vmem:[#allocation2 + $0x4c] sm:$0xf] 0
        %248 = vst [vmem:[#allocation2 + $0x50] sm:$0x1] 0
        %249 = vst [vmem:[#allocation2 + $0x54] sm:$0xf] 0
        %250 = vst [vmem:[#allocation2 + $0x58] sm:$0xf] 0
        %251 = vst [vmem:[#allocation2 + $0x5c] sm:$0x1] 0
        %252 = vst [vmem:[#allocation2 + $0x60] sm:$0xf] 0
        %253 = vst [vmem:[#allocation2 + $0x64] sm:$0xf] 0
        %254 = vst [vmem:[#allocation2 + $0x68] sm:$0x1] 0
        %255 = vst [vmem:[#allocation2 + $0x6c] sm:$0xf] 0
        %256 = vst [vmem:[#allocation2 + $0x70] sm:$0xf] 0
        %257 = vst [vmem:[#allocation2 + $0x74] sm:$0x1] 0
        %258 = vst [vmem:[#allocation2 + $0x78] sm:$0xf] 0
        %259 = vst [vmem:[#allocation2 + $0x7c] sm:$0xf] 0
        %260 = vst [vmem:[#allocation2 + $0x80] sm:$0x1] 0
        %261 = vst [vmem:[#allocation2 + $0x84] sm:$0xf] 0
        %262 = vst [vmem:[#allocation2 + $0x88] sm:$0xf] 0
        %263 = vst [vmem:[#allocation2 + $0x8c] sm:$0x1] 0
        %264 = vst [vmem:[#allocation2 + $0x90] sm:$0xf] 0
        %265 = vst [vmem:[#allocation2 + $0x94] sm:$0xf] 0
        %266 = vst [vmem:[#allocation2 + $0x98] sm:$0x1] 0
        %267 = vst [vmem:[#allocation2 + $0x9c] sm:$0xf] 0
        %268 = vst [vmem:[#allocation2 + $0xa0] sm:$0xf] 0
        %269 = vst [vmem:[#allocation2 + $0xa4] sm:$0x1] 0
        %270 = vst [vmem:[#allocation2 + $0xa8] sm:$0xf] 0
        %271 = vst [vmem:[#allocation2 + $0xac] sm:$0xf] 0
        %272 = vst [vmem:[#allocation2 + $0xb0] sm:$0x1] 0
        %273 = vst [vmem:[#allocation2 + $0xb4] sm:$0xf] 0
        %274 = vst [vmem:[#allocation2 + $0xb8] sm:$0xf] 0
        %275 = vst [vmem:[#allocation2 + $0xbc] sm:$0x1] 0
        %276 = vst [vmem:[#allocation2 + $0xc0] sm:$0xf] 0
        %277 = vst [vmem:[#allocation2 + $0xc4] sm:$0xf] 0
        %278 = vst [vmem:[#allocation2 + $0xc8] sm:$0x1] 0
        %279 = vst [vmem:[#allocation2 + $0xcc] sm:$0xf] 0
        %280 = vst [vmem:[#allocation2 + $0xd0] sm:$0xf] 0
        %281 = vst [vmem:[#allocation2 + $0xd4] sm:$0x1] 0
        %282 = vst [vmem:[%s5] sm:$0xff] 0.0
      $region40: #{basic_block_forward.4} parent=35 // pred_fallthru
        _
      %v283 = vld [vmem:[%s217] sm:$0xff]
      %v284 = vld [vmem:[%s217 + $0x8] sm:$0xff]
      %v285 = vld [vmem:[%s217 + $0x10] sm:$0xff]
      %v286 = vld [vmem:[%s217 + $0x18] sm:$0xff]
      %v287 = vld [vmem:[%s217 + $0x20] sm:$0xff]
      %v288 = vld [vmem:[%s217 + $0x28] sm:$0xff]
      %v289 = vld [vmem:[%s217 + $0x30] sm:$0xff]
      %v290 = vld [vmem:[%s217 + $0x38] sm:$0xff]
      %v291 = vld [vmem:[%s217 + $0x40] sm:$0xff]
      %v292 = vld [vmem:[%s217 + $0x48] sm:$0xff]
      %v293 = vld [vmem:[%s217 + $0x50] sm:$0xff]
      %v294 = vld [vmem:[%s217 + $0x58] sm:$0xff]
      %v295 = vld [vmem:[%s217 + $0x60] sm:$0xff]
      %v296 = vld [vmem:[%s217 + $0x68] sm:$0xff]
      %v297 = vld [vmem:[%s217 + $0x70] sm:$0xff]
      %v298 = vld [vmem:[%s217 + $0x78] sm:$0xff]
      %v299 = vld [vmem:[%s217 + $0x80] sm:$0xff]
      %v300 = vld [vmem:[%s217 + $0x88] sm:$0xff]
      %v301 = vld [vmem:[%s217 + $0x90] sm:$0xff]
      %v302 = vld [vmem:[%s217 + $0x98] sm:$0xff]
      %v303 = vld [vmem:[%s217 + $0xa0] sm:$0xff]
      %v304 = vld [vmem:[%s217 + $0xa8] sm:$0xff]
      %v305 = vld [vmem:[%s217 + $0xb0] sm:$0xff]
      %v306 = vld [vmem:[%s217 + $0xb8] sm:$0xff]
      %v307 = vld [vmem:[%s217 + $0xc0] sm:$0xff]
      %v308 = vld [vmem:[%s217 + $0xc8] sm:$0xff]
      %v309 = vld [vmem:[%s217 + $0xd0] sm:$0xff]
      %v310 = vld [vmem:[%s217 + $0xd8] sm:$0xff]
      %v311 = vld [vmem:[%s217 + $0xe0] sm:$0xff]
      %v312 = vld [vmem:[%s217 + $0xe8] sm:$0xff]
      %v313 = vld [vmem:[%s217 + $0xf0] sm:$0xff]
      %v314 = vld [vmem:[%s217 + $0xf8] sm:$0xff]
      %v315 = vld [vmem:[%s1] sm:$0x1]
      %v317 = vlaneseq
      %v318 = vshrl.u32 %v317, 7
      %v319 = vsub.s32 0, %v318
      %v320 = vrot.slane %v315, %v319
      %v322 = vmul.f32 %v283, %v320
      %v323 = vmul.f32 %v284, %v320
      %v324 = vmul.f32 %v285, %v320
      %v325 = vmul.f32 %v286, %v320
      %v326 = vmul.f32 %v287, %v320
      %v327 = vmul.f32 %v288, %v320
      %v328 = vmul.f32 %v289, %v320
      %v329 = vmul.f32 %v290, %v320
      %v330 = vmul.f32 %v291, %v320
      %v331 = vmul.f32 %v292, %v320
      %v332 = vmul.f32 %v293, %v320
      %v333 = vmul.f32 %v294, %v320
      %v334 = vmul.f32 %v295, %v320
      %v335 = vmul.f32 %v296, %v320
      %v336 = vmul.f32 %v297, %v320
      %v337 = vmul.f32 %v298, %v320
      %v338 = vmul.f32 %v299, %v320
      %v339 = vmul.f32 %v300, %v320
      %v340 = vmul.f32 %v301, %v320
      %v341 = vmul.f32 %v302, %v320
      %v342 = vmul.f32 %v303, %v320
      %v343 = vmul.f32 %v304, %v320
      %v344 = vmul.f32 %v305, %v320
      %v345 = vmul.f32 %v306, %v320
      %v346 = vmul.f32 %v307, %v320
      %v347 = vmul.f32 %v308, %v320
      %v348 = vmul.f32 %v309, %v320
      %v349 = vmul.f32 %v310, %v320
      %v350 = vmul.f32 %v311, %v320
      %v351 = vmul.f32 %v312, %v320
      %v352 = vmul.f32 %v313, %v320
      %v353 = vmul.f32 %v314, %v320
      %v354 = vld [vmem:[%s2] sm:$0x1]
      %v356 = vlaneseq
      %v357 = vshrl.u32 %v356, 7
      %v358 = vsub.s32 0, %v357
      %v359 = vrot.slane %v354, %v358
      %v361 = vadd.f32 %v322, %v359
      %v362 = vadd.f32 %v323, %v359
      %v363 = vadd.f32 %v324, %v359
      %v364 = vadd.f32 %v325, %v359
      %v365 = vadd.f32 %v326, %v359
      %v366 = vadd.f32 %v327, %v359
      %v367 = vadd.f32 %v328, %v359
      %v368 = vadd.f32 %v329, %v359
      %v369 = vadd.f32 %v330, %v359
      %v370 = vadd.f32 %v331, %v359
      %v371 = vadd.f32 %v332, %v359
      %v372 = vadd.f32 %v333, %v359
      %v373 = vadd.f32 %v334, %v359
      %v374 = vadd.f32 %v335, %v359
      %v375 = vadd.f32 %v336, %v359
      %v376 = vadd.f32 %v337, %v359
      %v377 = vadd.f32 %v338, %v359
      %v378 = vadd.f32 %v339, %v359
      %v379 = vadd.f32 %v340, %v359
      %v380 = vadd.f32 %v341, %v359
      %v381 = vadd.f32 %v342, %v359
      %v382 = vadd.f32 %v343, %v359
      %v383 = vadd.f32 %v344, %v359
      %v384 = vadd.f32 %v345, %v359
      %v385 = vadd.f32 %v346, %v359
      %v386 = vadd.f32 %v347, %v359
      %v387 = vadd.f32 %v348, %v359
      %v388 = vadd.f32 %v349, %v359
      %v389 = vadd.f32 %v350, %v359
      %v390 = vadd.f32 %v351, %v359
      %v391 = vadd.f32 %v352, %v359
      %v392 = vadd.f32 %v353, %v359
      %v393 = vmax.f32 %v361, 0.0
      %v394 = vmax.f32 %v362, 0.0
      %v395 = vmax.f32 %v363, 0.0
      %v396 = vmax.f32 %v364, 0.0
      %v397 = vmax.f32 %v365, 0.0
      %v398 = vmax.f32 %v366, 0.0
      %v399 = vmax.f32 %v367, 0.0
      %v400 = vmax.f32 %v368, 0.0
      %v401 = vmax.f32 %v369, 0.0
      %v402 = vmax.f32 %v370, 0.0
      %v403 = vmax.f32 %v371, 0.0
      %v404 = vmax.f32 %v372, 0.0
      %v405 = vmax.f32 %v373, 0.0
      %v406 = vmax.f32 %v374, 0.0
      %v407 = vmax.f32 %v375, 0.0
      %v408 = vmax.f32 %v376, 0.0
      %v409 = vmax.f32 %v377, 0.0
      %v410 = vmax.f32 %v378, 0.0
      %v411 = vmax.f32 %v379, 0.0
      %v412 = vmax.f32 %v380, 0.0
      %v413 = vmax.f32 %v381, 0.0
      %v414 = vmax.f32 %v382, 0.0
      %v415 = vmax.f32 %v383, 0.0
      %v416 = vmax.f32 %v384, 0.0
      %v417 = vmax.f32 %v385, 0.0
      %v418 = vmax.f32 %v386, 0.0
      %v419 = vmax.f32 %v387, 0.0
      %v420 = vmax.f32 %v388, 0.0
      %v421 = vmax.f32 %v389, 0.0
      %v422 = vmax.f32 %v390, 0.0
      %v423 = vmax.f32 %v391, 0.0
      %v424 = vmax.f32 %v392, 0.0
      %v425 = vpack.c.bf16 %v394, %v393
      %v426 = vpack.c.bf16 %v396, %v395
      %v427 = vpack.c.bf16 %v398, %v397
      %v428 = vpack.c.bf16 %v400, %v399
      %v429 = vpack.c.bf16 %v402, %v401
      %v430 = vpack.c.bf16 %v404, %v403
      %v431 = vpack.c.bf16 %v406, %v405
      %v432 = vpack.c.bf16 %v408, %v407
      %v433 = vpack.c.bf16 %v410, %v409
      %v434 = vpack.c.bf16 %v412, %v411
      %v435 = vpack.c.bf16 %v414, %v413
      %v436 = vpack.c.bf16 %v416, %v415
      %v437 = vpack.c.bf16 %v418, %v417
      %v438 = vpack.c.bf16 %v420, %v419
      %v439 = vpack.c.bf16 %v422, %v421
      %v440 = vpack.c.bf16 %v424, %v423
      %v457 = vunpack.c.l.b16 %v425
      %v458 = vunpack.c.h.b16 %v425
      %v459 = vunpack.c.l.b16 %v426
      %v460 = vunpack.c.h.b16 %v426
      %v461 = vunpack.c.l.b16 %v427
      %v462 = vunpack.c.h.b16 %v427
      %v463 = vunpack.c.l.b16 %v428
      %v464 = vunpack.c.h.b16 %v428
      %v465 = vunpack.c.l.b16 %v429
      %v466 = vunpack.c.h.b16 %v429
      %v467 = vunpack.c.l.b16 %v430
      %v468 = vunpack.c.h.b16 %v430
      %v469 = vunpack.c.l.b16 %v431
      %v470 = vunpack.c.h.b16 %v431
      %v471 = vunpack.c.l.b16 %v432
      %v472 = vunpack.c.h.b16 %v432
      %v473 = vunpack.c.l.b16 %v433
      %v474 = vunpack.c.h.b16 %v433
      %v475 = vunpack.c.l.b16 %v434
      %v476 = vunpack.c.h.b16 %v434
      %v477 = vunpack.c.l.b16 %v435
      %v478 = vunpack.c.h.b16 %v435
      %v479 = vunpack.c.l.b16 %v436
      %v480 = vunpack.c.h.b16 %v436
      %v481 = vunpack.c.l.b16 %v437
      %v482 = vunpack.c.h.b16 %v437
      %v483 = vunpack.c.l.b16 %v438
      %v484 = vunpack.c.h.b16 %v438
      %v485 = vunpack.c.l.b16 %v439
      %v486 = vunpack.c.h.b16 %v439
      %v487 = vunpack.c.l.b16 %v440
      %v488 = vunpack.c.h.b16 %v440
      %v489 = vpack.c.b16 %v457, %v457
      %v490 = vpack.c.b16 %v458, %v458
      %v491 = vpack.c.b16 %v459, %v459
      %v492 = vpack.c.b16 %v460, %v460
      %v493 = vpack.c.b16 %v461, %v461
      %v494 = vpack.c.b16 %v462, %v462
      %v495 = vpack.c.b16 %v463, %v463
      %v496 = vpack.c.b16 %v464, %v464
      %v497 = vpack.c.b16 %v465, %v465
      %v498 = vpack.c.b16 %v466, %v466
      %v499 = vpack.c.b16 %v467, %v467
      %v500 = vpack.c.b16 %v468, %v468
      %v501 = vpack.c.b16 %v469, %v469
      %v502 = vpack.c.b16 %v470, %v470
      %v503 = vpack.c.b16 %v471, %v471
      %v504 = vpack.c.b16 %v472, %v472
      %v505 = vpack.c.b16 %v473, %v473
      %v506 = vpack.c.b16 %v474, %v474
      %v507 = vpack.c.b16 %v475, %v475
      %v508 = vpack.c.b16 %v476, %v476
      %v509 = vpack.c.b16 %v477, %v477
      %v510 = vpack.c.b16 %v478, %v478
      %v511 = vpack.c.b16 %v479, %v479
      %v512 = vpack.c.b16 %v480, %v480
      %v513 = vpack.c.b16 %v481, %v481
      %v514 = vpack.c.b16 %v482, %v482
      %v515 = vpack.c.b16 %v483, %v483
      %v516 = vpack.c.b16 %v484, %v484
      %v517 = vpack.c.b16 %v485, %v485
      %v518 = vpack.c.b16 %v486, %v486
      %v519 = vpack.c.b16 %v487, %v487
      %v520 = vpack.c.b16 %v488, %v488
      %vm521 = vsmask.f32 256
      %vm522 = vsmask.f32 4368
      %vm523 = vmor %vm521, %vm522
      %v525 = vshrl.u32 %v489, 16
      %v527 = vrot.slane %v525, 7
      %v528 = vshll.u32 %v489, 16
      %v530 = vor.u32 %v527, %v528
      %v531 = vrot.slane %v527, 4
      %v533 = vshrl.u32 %v490, 16
      %v535 = vrot.slane %v533, 7
      %v536 = vshll.u32 %v490, 16
      %v538 = vor.u32 %v535, %v536
      %v539 = vsel %vm523, %v531, %v538
      %v540 = vrot.slane %v535, 4
      %v542 = vshrl.u32 %v491, 16
      %v544 = vrot.slane %v542, 7
      %v545 = vshll.u32 %v491, 16
      %v547 = vor.u32 %v544, %v545
      %v548 = vrot.slane %v544, 4
      %v550 = vshrl.u32 %v492, 16
      %v552 = vrot.slane %v550, 7
      %v553 = vshll.u32 %v492, 16
      %v555 = vor.u32 %v552, %v553
      %v556 = vsel %vm523, %v548, %v555
      %v557 = vrot.slane %v552, 4
      %v559 = vshrl.u32 %v493, 16
      %v561 = vrot.slane %v559, 7
      %v562 = vshll.u32 %v493, 16
      %v564 = vor.u32 %v561, %v562
      %v565 = vrot.slane %v561, 4
      %v567 = vshrl.u32 %v494, 16
      %v569 = vrot.slane %v567, 7
      %v570 = vshll.u32 %v494, 16
      %v572 = vor.u32 %v569, %v570
      %v573 = vsel %vm523, %v565, %v572
      %v574 = vrot.slane %v569, 4
      %v576 = vshrl.u32 %v495, 16
      %v578 = vrot.slane %v576, 7
      %v579 = vshll.u32 %v495, 16
      %v581 = vor.u32 %v578, %v579
      %v582 = vrot.slane %v578, 4
      %v584 = vshrl.u32 %v496, 16
      %v586 = vrot.slane %v584, 7
      %v587 = vshll.u32 %v496, 16
      %v589 = vor.u32 %v586, %v587
      %v590 = vsel %vm523, %v582, %v589
      %v591 = vrot.slane %v586, 4
      %v593 = vshrl.u32 %v497, 16
      %v595 = vrot.slane %v593, 7
      %v596 = vshll.u32 %v497, 16
      %v598 = vor.u32 %v595, %v596
      %v599 = vrot.slane %v595, 4
      %v601 = vshrl.u32 %v498, 16
      %v603 = vrot.slane %v601, 7
      %v604 = vshll.u32 %v498, 16
      %v606 = vor.u32 %v603, %v604
      %v607 = vsel %vm523, %v599, %v606
      %v608 = vrot.slane %v603, 4
      %v610 = vshrl.u32 %v499, 16
      %v612 = vrot.slane %v610, 7
      %v613 = vshll.u32 %v499, 16
      %v615 = vor.u32 %v612, %v613
      %v616 = vrot.slane %v612, 4
      %v618 = vshrl.u32 %v500, 16
      %v620 = vrot.slane %v618, 7
      %v621 = vshll.u32 %v500, 16
      %v623 = vor.u32 %v620, %v621
      %v624 = vsel %vm523, %v616, %v623
      %v625 = vrot.slane %v620, 4
      %v627 = vshrl.u32 %v501, 16
      %v629 = vrot.slane %v627, 7
      %v630 = vshll.u32 %v501, 16
      %v632 = vor.u32 %v629, %v630
      %v633 = vrot.slane %v629, 4
      %v635 = vshrl.u32 %v502, 16
      %v637 = vrot.slane %v635, 7
      %v638 = vshll.u32 %v502, 16
      %v640 = vor.u32 %v637, %v638
      %v641 = vsel %vm523, %v633, %v640
      %v642 = vrot.slane %v637, 4
      %v644 = vshrl.u32 %v503, 16
      %v646 = vrot.slane %v644, 7
      %v647 = vshll.u32 %v503, 16
      %v649 = vor.u32 %v646, %v647
      %v650 = vrot.slane %v646, 4
      %v652 = vshrl.u32 %v504, 16
      %v654 = vrot.slane %v652, 7
      %v655 = vshll.u32 %v504, 16
      %v657 = vor.u32 %v654, %v655
      %v658 = vsel %vm523, %v650, %v657
      %v659 = vrot.slane %v654, 4
      %v661 = vshrl.u32 %v505, 16
      %v663 = vrot.slane %v661, 7
      %v664 = vshll.u32 %v505, 16
      %v666 = vor.u32 %v663, %v664
      %v667 = vrot.slane %v663, 4
      %v669 = vshrl.u32 %v506, 16
      %v671 = vrot.slane %v669, 7
      %v672 = vshll.u32 %v506, 16
      %v674 = vor.u32 %v671, %v672
      %v675 = vsel %vm523, %v667, %v674
      %v676 = vrot.slane %v671, 4
      %v678 = vshrl.u32 %v507, 16
      %v680 = vrot.slane %v678, 7
      %v681 = vshll.u32 %v507, 16
      %v683 = vor.u32 %v680, %v681
      %v684 = vrot.slane %v680, 4
      %v686 = vshrl.u32 %v508, 16
      %v688 = vrot.slane %v686, 7
      %v689 = vshll.u32 %v508, 16
      %v691 = vor.u32 %v688, %v689
      %v692 = vsel %vm523, %v684, %v691
      %v693 = vrot.slane %v688, 4
      %v695 = vshrl.u32 %v509, 16
      %v697 = vrot.slane %v695, 7
      %v698 = vshll.u32 %v509, 16
      %v700 = vor.u32 %v697, %v698
      %v701 = vrot.slane %v697, 4
      %v703 = vshrl.u32 %v510, 16
      %v705 = vrot.slane %v703, 7
      %v706 = vshll.u32 %v510, 16
      %v708 = vor.u32 %v705, %v706
      %v709 = vsel %vm523, %v701, %v708
      %v710 = vrot.slane %v705, 4
      %v712 = vshrl.u32 %v511, 16
      %v714 = vrot.slane %v712, 7
      %v715 = vshll.u32 %v511, 16
      %v717 = vor.u32 %v714, %v715
      %v718 = vrot.slane %v714, 4
      %v720 = vshrl.u32 %v512, 16
      %v722 = vrot.slane %v720, 7
      %v723 = vshll.u32 %v512, 16
      %v725 = vor.u32 %v722, %v723
      %v726 = vsel %vm523, %v718, %v725
      %v727 = vrot.slane %v722, 4
      %v729 = vshrl.u32 %v513, 16
      %v731 = vrot.slane %v729, 7
      %v732 = vshll.u32 %v513, 16
      %v734 = vor.u32 %v731, %v732
      %v735 = vrot.slane %v731, 4
      %v737 = vshrl.u32 %v514, 16
      %v739 = vrot.slane %v737, 7
      %v740 = vshll.u32 %v514, 16
      %v742 = vor.u32 %v739, %v740
      %v743 = vsel %vm523, %v735, %v742
      %v744 = vrot.slane %v739, 4
      %v746 = vshrl.u32 %v515, 16
      %v748 = vrot.slane %v746, 7
      %v749 = vshll.u32 %v515, 16
      %v751 = vor.u32 %v748, %v749
      %v752 = vrot.slane %v748, 4
      %v754 = vshrl.u32 %v516, 16
      %v756 = vrot.slane %v754, 7
      %v757 = vshll.u32 %v516, 16
      %v759 = vor.u32 %v756, %v757
      %v760 = vsel %vm523, %v752, %v759
      %v761 = vrot.slane %v756, 4
      %v763 = vshrl.u32 %v517, 16
      %v765 = vrot.slane %v763, 7
      %v766 = vshll.u32 %v517, 16
      %v768 = vor.u32 %v765, %v766
      %v769 = vrot.slane %v765, 4
      %v771 = vshrl.u32 %v518, 16
      %v773 = vrot.slane %v771, 7
      %v774 = vshll.u32 %v518, 16
      %v776 = vor.u32 %v773, %v774
      %v777 = vsel %vm523, %v769, %v776
      %v778 = vrot.slane %v773, 4
      %v780 = vshrl.u32 %v519, 16
      %v782 = vrot.slane %v780, 7
      %v783 = vshll.u32 %v519, 16
      %v785 = vor.u32 %v782, %v783
      %v786 = vrot.slane %v782, 4
      %v788 = vshrl.u32 %v520, 16
      %v790 = vrot.slane %v788, 7
      %v791 = vshll.u32 %v520, 16
      %v793 = vor.u32 %v790, %v791
      %v794 = vsel %vm523, %v786, %v793
      %v795 = vrot.slane %v790, 4
      %s844 = scalar_lea.vmem [#allocation2], 12
      %vm845 = vcmask 1043456
      %vm846 = vsmask.f32 7938
      %vm847 = vmand %vm845, %vm846
      %v848 = vld [vmem:[%s844] sm:$0xf]
      %v849 = vsel %vm847, %v530, %v848
      %850 = vst [vmem:[%s844] sm:$0xf] %v849
      %851 = vst [vmem:[%s844 + $0x4] sm:$0xf] %v539
      %vm852 = vcmask 1040384
      %vm853 = vmand %vm852, %vm521
      %v854 = vld [vmem:[%s844 + $0x8] sm:$0x1]
      %v855 = vsel %vm853, %v540, %v854
      %856 = vst [vmem:[%s844 + $0x8] sm:$0x1] %v855
      %v857 = vld [vmem:[%s844 + $0xc] sm:$0xf]
      %v858 = vsel %vm847, %v547, %v857
      %859 = vst [vmem:[%s844 + $0xc] sm:$0xf] %v858
      %860 = vst [vmem:[%s844 + $0x10] sm:$0xf] %v556
      %v861 = vld [vmem:[%s844 + $0x14] sm:$0x1]
      %v862 = vsel %vm853, %v557, %v861
      %863 = vst [vmem:[%s844 + $0x14] sm:$0x1] %v862
      %v864 = vld [vmem:[%s844 + $0x18] sm:$0xf]
      %v865 = vsel %vm847, %v564, %v864
      %866 = vst [vmem:[%s844 + $0x18] sm:$0xf] %v865
      %867 = vst [vmem:[%s844 + $0x1c] sm:$0xf] %v573
      %v868 = vld [vmem:[%s844 + $0x20] sm:$0x1]
      %v869 = vsel %vm853, %v574, %v868
      %870 = vst [vmem:[%s844 + $0x20] sm:$0x1] %v869
      %v871 = vld [vmem:[%s844 + $0x24] sm:$0xf]
      %v872 = vsel %vm847, %v581, %v871
      %873 = vst [vmem:[%s844 + $0x24] sm:$0xf] %v872
      %874 = vst [vmem:[%s844 + $0x28] sm:$0xf] %v590
      %v875 = vld [vmem:[%s844 + $0x2c] sm:$0x1]
      %v876 = vsel %vm853, %v591, %v875
      %877 = vst [vmem:[%s844 + $0x2c] sm:$0x1] %v876
      %v878 = vld [vmem:[%s844 + $0x30] sm:$0xf]
      %v879 = vsel %vm847, %v598, %v878
      %880 = vst [vmem:[%s844 + $0x30] sm:$0xf] %v879
      %881 = vst [vmem:[%s844 + $0x34] sm:$0xf] %v607
      %v882 = vld [vmem:[%s844 + $0x38] sm:$0x1]
      %v883 = vsel %vm853, %v608, %v882
      %884 = vst [vmem:[%s844 + $0x38] sm:$0x1] %v883
      %v885 = vld [vmem:[%s844 + $0x3c] sm:$0xf]
      %v886 = vsel %vm847, %v615, %v885
      %887 = vst [vmem:[%s844 + $0x3c] sm:$0xf] %v886
      %888 = vst [vmem:[%s844 + $0x40] sm:$0xf] %v624
      %v889 = vld [vmem:[%s844 + $0x44] sm:$0x1]
      %v890 = vsel %vm853, %v625, %v889
      %891 = vst [vmem:[%s844 + $0x44] sm:$0x1] %v890
      %v892 = vld [vmem:[%s844 + $0x48] sm:$0xf]
      %v893 = vsel %vm847, %v632, %v892
      %894 = vst [vmem:[%s844 + $0x48] sm:$0xf] %v893
      %895 = vst [vmem:[%s844 + $0x4c] sm:$0xf] %v641
      %v896 = vld [vmem:[%s844 + $0x50] sm:$0x1]
      %v897 = vsel %vm853, %v642, %v896
      %898 = vst [vmem:[%s844 + $0x50] sm:$0x1] %v897
      %v899 = vld [vmem:[%s844 + $0x54] sm:$0xf]
      %v900 = vsel %vm847, %v649, %v899
      %901 = vst [vmem:[%s844 + $0x54] sm:$0xf] %v900
      %902 = vst [vmem:[%s844 + $0x58] sm:$0xf] %v658
      %v903 = vld [vmem:[%s844 + $0x5c] sm:$0x1]
      %v904 = vsel %vm853, %v659, %v903
      %905 = vst [vmem:[%s844 + $0x5c] sm:$0x1] %v904
      %v906 = vld [vmem:[%s844 + $0x60] sm:$0xf]
      %v907 = vsel %vm847, %v666, %v906
      %908 = vst [vmem:[%s844 + $0x60] sm:$0xf] %v907
      %909 = vst [vmem:[%s844 + $0x64] sm:$0xf] %v675
      %v910 = vld [vmem:[%s844 + $0x68] sm:$0x1]
      %v911 = vsel %vm853, %v676, %v910
      %912 = vst [vmem:[%s844 + $0x68] sm:$0x1] %v911
      %v913 = vld [vmem:[%s844 + $0x6c] sm:$0xf]
      %v914 = vsel %vm847, %v683, %v913
      %915 = vst [vmem:[%s844 + $0x6c] sm:$0xf] %v914
      %916 = vst [vmem:[%s844 + $0x70] sm:$0xf] %v692
      %v917 = vld [vmem:[%s844 + $0x74] sm:$0x1]
      %v918 = vsel %vm853, %v693, %v917
      %919 = vst [vmem:[%s844 + $0x74] sm:$0x1] %v918
      %v920 = vld [vmem:[%s844 + $0x78] sm:$0xf]
      %v921 = vsel %vm847, %v700, %v920
      %922 = vst [vmem:[%s844 + $0x78] sm:$0xf] %v921
      %923 = vst [vmem:[%s844 + $0x7c] sm:$0xf] %v709
      %v924 = vld [vmem:[%s844 + $0x80] sm:$0x1]
      %v925 = vsel %vm853, %v710, %v924
      %926 = vst [vmem:[%s844 + $0x80] sm:$0x1] %v925
      %v927 = vld [vmem:[%s844 + $0x84] sm:$0xf]
      %v928 = vsel %vm847, %v717, %v927
      %929 = vst [vmem:[%s844 + $0x84] sm:$0xf] %v928
      %930 = vst [vmem:[%s844 + $0x88] sm:$0xf] %v726
      %v931 = vld [vmem:[%s844 + $0x8c] sm:$0x1]
      %v932 = vsel %vm853, %v727, %v931
      %933 = vst [vmem:[%s844 + $0x8c] sm:$0x1] %v932
      %v934 = vld [vmem:[%s844 + $0x90] sm:$0xf]
      %v935 = vsel %vm847, %v734, %v934
      %936 = vst [vmem:[%s844 + $0x90] sm:$0xf] %v935
      %937 = vst [vmem:[%s844 + $0x94] sm:$0xf] %v743
      %v938 = vld [vmem:[%s844 + $0x98] sm:$0x1]
      %v939 = vsel %vm853, %v744, %v938
      %940 = vst [vmem:[%s844 + $0x98] sm:$0x1] %v939
      %v941 = vld [vmem:[%s844 + $0x9c] sm:$0xf]
      %v942 = vsel %vm847, %v751, %v941
      %943 = vst [vmem:[%s844 + $0x9c] sm:$0xf] %v942
      %944 = vst [vmem:[%s844 + $0xa0] sm:$0xf] %v760
      %v945 = vld [vmem:[%s844 + $0xa4] sm:$0x1]
      %v946 = vsel %vm853, %v761, %v945
      %947 = vst [vmem:[%s844 + $0xa4] sm:$0x1] %v946
      %v948 = vld [vmem:[%s844 + $0xa8] sm:$0xf]
      %v949 = vsel %vm847, %v768, %v948
      %950 = vst [vmem:[%s844 + $0xa8] sm:$0xf] %v949
      %951 = vst [vmem:[%s844 + $0xac] sm:$0xf] %v777
      %v952 = vld [vmem:[%s844 + $0xb0] sm:$0x1]
      %v953 = vsel %vm853, %v778, %v952
      %954 = vst [vmem:[%s844 + $0xb0] sm:$0x1] %v953
      %v955 = vld [vmem:[%s844 + $0xb4] sm:$0xf]
      %v956 = vsel %vm847, %v785, %v955
      %957 = vst [vmem:[%s844 + $0xb4] sm:$0xf] %v956
      %958 = vst [vmem:[%s844 + $0xb8] sm:$0xf] %v794
      %v959 = vld [vmem:[%s844 + $0xbc] sm:$0x1]
      %v960 = vsel %vm853, %v795, %v959
      %961 = vst [vmem:[%s844 + $0xbc] sm:$0x1] %v960
      %v962 = vld [vmem:[#allocation2] sm:$0xf]
      %v963 = vld [vmem:[#allocation2 + $0x4] sm:$0xf]
      %v964 = vld [vmem:[#allocation2 + $0xc] sm:$0xf]
      %v965 = vld [vmem:[#allocation2 + $0x10] sm:$0xf]
      %v966 = vld [vmem:[#allocation2 + $0x18] sm:$0xf]
      %v967 = vld [vmem:[#allocation2 + $0x1c] sm:$0xf]
      %v968 = vld [vmem:[#allocation2 + $0x24] sm:$0xf]
      %v969 = vld [vmem:[#allocation2 + $0x28] sm:$0xf]
      %v970 = vld [vmem:[#allocation2 + $0x30] sm:$0xf]
      %v971 = vld [vmem:[#allocation2 + $0x34] sm:$0xf]
      %v972 = vld [vmem:[#allocation2 + $0x3c] sm:$0xf]
      %v973 = vld [vmem:[#allocation2 + $0x40] sm:$0xf]
      %v974 = vld [vmem:[#allocation2 + $0x48] sm:$0xf]
      %v975 = vld [vmem:[#allocation2 + $0x4c] sm:$0xf]
      %v976 = vld [vmem:[#allocation2 + $0x54] sm:$0xf]
      %v977 = vld [vmem:[#allocation2 + $0x58] sm:$0xf]
      %v978 = vld [vmem:[#allocation2 + $0x60] sm:$0xf]
      %v979 = vld [vmem:[#allocation2 + $0x64] sm:$0xf]
      %v980 = vld [vmem:[#allocation2 + $0x6c] sm:$0xf]
      %v981 = vld [vmem:[#allocation2 + $0x70] sm:$0xf]
      %v982 = vld [vmem:[#allocation2 + $0x78] sm:$0xf]
      %v983 = vld [vmem:[#allocation2 + $0x7c] sm:$0xf]
      %v984 = vld [vmem:[#allocation2 + $0x84] sm:$0xf]
      %v985 = vld [vmem:[#allocation2 + $0x88] sm:$0xf]
      %v986 = vld [vmem:[#allocation2 + $0x90] sm:$0xf]
      %v987 = vld [vmem:[#allocation2 + $0x94] sm:$0xf]
      %v988 = vld [vmem:[#allocation2 + $0x9c] sm:$0xf]
      %v989 = vld [vmem:[#allocation2 + $0xa0] sm:$0xf]
      %v990 = vld [vmem:[#allocation2 + $0xa8] sm:$0xf]
      %v991 = vld [vmem:[#allocation2 + $0xac] sm:$0xf]
      %v992 = vld [vmem:[#allocation2 + $0xb4] sm:$0xf]
      %v993 = vld [vmem:[#allocation2 + $0xb8] sm:$0xf]
      %v994 = vld [vmem:[#allocation2 + $0x8] sm:$0x1]
      %v995 = vld [vmem:[#allocation2 + $0x14] sm:$0x1]
      %v996 = vld [vmem:[#allocation2 + $0x20] sm:$0x1]
      %v997 = vld [vmem:[#allocation2 + $0x2c] sm:$0x1]
      %v998 = vld [vmem:[#allocation2 + $0x38] sm:$0x1]
      %v999 = vld [vmem:[#allocation2 + $0x44] sm:$0x1]
      %v1000 = vld [vmem:[#allocation2 + $0x50] sm:$0x1]
      %v1001 = vld [vmem:[#allocation2 + $0x5c] sm:$0x1]
      %v1002 = vld [vmem:[#allocation2 + $0x68] sm:$0x1]
      %v1003 = vld [vmem:[#allocation2 + $0x74] sm:$0x1]
      %v1004 = vld [vmem:[#allocation2 + $0x80] sm:$0x1]
      %v1005 = vld [vmem:[#allocation2 + $0x8c] sm:$0x1]
      %v1006 = vld [vmem:[#allocation2 + $0x98] sm:$0x1]
      %v1007 = vld [vmem:[#allocation2 + $0xa4] sm:$0x1]
      %v1008 = vld [vmem:[#allocation2 + $0xb0] sm:$0x1]
      %v1009 = vld [vmem:[#allocation2 + $0xbc] sm:$0x1]
      %vm1010 = vsmask.f32 3328
      %vm1011 = vsmask.f32 7440
      %vm1012 = vmor %vm1010, %vm1011
      %v1014 = vshrl.u32 %v962, 16
      %v1016 = vrot.slane %v1014, 4
      %v1017 = vshll.u32 %v962, 16
      %v1019 = vrot.slane %v1017, 5
      %v1020 = vor.u32 %v1016, %v1019
      %v1021 = vrot.slane %v1020, 4
      %v1023 = vshll.u32 %v963, 16
      %v1025 = vrot.slane %v1023, 5
      %v1026 = vsel %vm1012, %v1021, %v1025
      %v1027 = vshrl.u32 %v963, 16
      %v1029 = vrot.slane %v1027, 4
      %v1030 = vor.u32 %v1029, %v1025
      %v1031 = vrot.slane %v1030, 4
      %v1033 = vshll.u32 %v994, 16
      %v1035 = vrot.slane %v1033, 5
      %v1036 = vsel %vm1012, %v1031, %v1035
      %v1038 = vshrl.u32 %v964, 16
      %v1040 = vrot.slane %v1038, 4
      %v1041 = vshll.u32 %v964, 16
      %v1043 = vrot.slane %v1041, 5
      %v1044 = vor.u32 %v1040, %v1043
      %v1045 = vrot.slane %v1044, 4
      %v1047 = vshll.u32 %v965, 16
      %v1049 = vrot.slane %v1047, 5
      %v1050 = vsel %vm1012, %v1045, %v1049
      %v1051 = vshrl.u32 %v965, 16
      %v1053 = vrot.slane %v1051, 4
      %v1054 = vor.u32 %v1053, %v1049
      %v1055 = vrot.slane %v1054, 4
      %v1057 = vshll.u32 %v995, 16
      %v1059 = vrot.slane %v1057, 5
      %v1060 = vsel %vm1012, %v1055, %v1059
      %v1062 = vshrl.u32 %v966, 16
      %v1064 = vrot.slane %v1062, 4
      %v1065 = vshll.u32 %v966, 16
      %v1067 = vrot.slane %v1065, 5
      %v1068 = vor.u32 %v1064, %v1067
      %v1069 = vrot.slane %v1068, 4
      %v1071 = vshll.u32 %v967, 16
      %v1073 = vrot.slane %v1071, 5
      %v1074 = vsel %vm1012, %v1069, %v1073
      %v1075 = vshrl.u32 %v967, 16
      %v1077 = vrot.slane %v1075, 4
      %v1078 = vor.u32 %v1077, %v1073
      %v1079 = vrot.slane %v1078, 4
      %v1081 = vshll.u32 %v996, 16
      %v1083 = vrot.slane %v1081, 5
      %v1084 = vsel %vm1012, %v1079, %v1083
      %v1086 = vshrl.u32 %v968, 16
      %v1088 = vrot.slane %v1086, 4
      %v1089 = vshll.u32 %v968, 16
      %v1091 = vrot.slane %v1089, 5
      %v1092 = vor.u32 %v1088, %v1091
      %v1093 = vrot.slane %v1092, 4
      %v1095 = vshll.u32 %v969, 16
      %v1097 = vrot.slane %v1095, 5
      %v1098 = vsel %vm1012, %v1093, %v1097
      %v1099 = vshrl.u32 %v969, 16
      %v1101 = vrot.slane %v1099, 4
      %v1102 = vor.u32 %v1101, %v1097
      %v1103 = vrot.slane %v1102, 4
      %v1105 = vshll.u32 %v997, 16
      %v1107 = vrot.slane %v1105, 5
      %v1108 = vsel %vm1012, %v1103, %v1107
      %v1110 = vshrl.u32 %v970, 16
      %v1112 = vrot.slane %v1110, 4
      %v1113 = vshll.u32 %v970, 16
      %v1115 = vrot.slane %v1113, 5
      %v1116 = vor.u32 %v1112, %v1115
      %v1117 = vrot.slane %v1116, 4
      %v1119 = vshll.u32 %v971, 16
      %v1121 = vrot.slane %v1119, 5
      %v1122 = vsel %vm1012, %v1117, %v1121
      %v1123 = vshrl.u32 %v971, 16
      %v1125 = vrot.slane %v1123, 4
      %v1126 = vor.u32 %v1125, %v1121
      %v1127 = vrot.slane %v1126, 4
      %v1129 = vshll.u32 %v998, 16
      %v1131 = vrot.slane %v1129, 5
      %v1132 = vsel %vm1012, %v1127, %v1131
      %v1134 = vshrl.u32 %v972, 16
      %v1136 = vrot.slane %v1134, 4
      %v1137 = vshll.u32 %v972, 16
      %v1139 = vrot.slane %v1137, 5
      %v1140 = vor.u32 %v1136, %v1139
      %v1141 = vrot.slane %v1140, 4
      %v1143 = vshll.u32 %v973, 16
      %v1145 = vrot.slane %v1143, 5
      %v1146 = vsel %vm1012, %v1141, %v1145
      %v1147 = vshrl.u32 %v973, 16
      %v1149 = vrot.slane %v1147, 4
      %v1150 = vor.u32 %v1149, %v1145
      %v1151 = vrot.slane %v1150, 4
      %v1153 = vshll.u32 %v999, 16
      %v1155 = vrot.slane %v1153, 5
      %v1156 = vsel %vm1012, %v1151, %v1155
      %v1158 = vshrl.u32 %v974, 16
      %v1160 = vrot.slane %v1158, 4
      %v1161 = vshll.u32 %v974, 16
      %v1163 = vrot.slane %v1161, 5
      %v1164 = vor.u32 %v1160, %v1163
      %v1165 = vrot.slane %v1164, 4
      %v1167 = vshll.u32 %v975, 16
      %v1169 = vrot.slane %v1167, 5
      %v1170 = vsel %vm1012, %v1165, %v1169
      %v1171 = vshrl.u32 %v975, 16
      %v1173 = vrot.slane %v1171, 4
      %v1174 = vor.u32 %v1173, %v1169
      %v1175 = vrot.slane %v1174, 4
      %v1177 = vshll.u32 %v1000, 16
      %v1179 = vrot.slane %v1177, 5
      %v1180 = vsel %vm1012, %v1175, %v1179
      %v1182 = vshrl.u32 %v976, 16
      %v1184 = vrot.slane %v1182, 4
      %v1185 = vshll.u32 %v976, 16
      %v1187 = vrot.slane %v1185, 5
      %v1188 = vor.u32 %v1184, %v1187
      %v1189 = vrot.slane %v1188, 4
      %v1191 = vshll.u32 %v977, 16
      %v1193 = vrot.slane %v1191, 5
      %v1194 = vsel %vm1012, %v1189, %v1193
      %v1195 = vshrl.u32 %v977, 16
      %v1197 = vrot.slane %v1195, 4
      %v1198 = vor.u32 %v1197, %v1193
      %v1199 = vrot.slane %v1198, 4
      %v1201 = vshll.u32 %v1001, 16
      %v1203 = vrot.slane %v1201, 5
      %v1204 = vsel %vm1012, %v1199, %v1203
      %v1206 = vshrl.u32 %v978, 16
      %v1208 = vrot.slane %v1206, 4
      %v1209 = vshll.u32 %v978, 16
      %v1211 = vrot.slane %v1209, 5
      %v1212 = vor.u32 %v1208, %v1211
      %v1213 = vrot.slane %v1212, 4
      %v1215 = vshll.u32 %v979, 16
      %v1217 = vrot.slane %v1215, 5
      %v1218 = vsel %vm1012, %v1213, %v1217
      %v1219 = vshrl.u32 %v979, 16
      %v1221 = vrot.slane %v1219, 4
      %v1222 = vor.u32 %v1221, %v1217
      %v1223 = vrot.slane %v1222, 4
      %v1225 = vshll.u32 %v1002, 16
      %v1227 = vrot.slane %v1225, 5
      %v1228 = vsel %vm1012, %v1223, %v1227
      %v1230 = vshrl.u32 %v980, 16
      %v1232 = vrot.slane %v1230, 4
      %v1233 = vshll.u32 %v980, 16
      %v1235 = vrot.slane %v1233, 5
      %v1236 = vor.u32 %v1232, %v1235
      %v1237 = vrot.slane %v1236, 4
      %v1239 = vshll.u32 %v981, 16
      %v1241 = vrot.slane %v1239, 5
      %v1242 = vsel %vm1012, %v1237, %v1241
      %v1243 = vshrl.u32 %v981, 16
      %v1245 = vrot.slane %v1243, 4
      %v1246 = vor.u32 %v1245, %v1241
      %v1247 = vrot.slane %v1246, 4
      %v1249 = vshll.u32 %v1003, 16
      %v1251 = vrot.slane %v1249, 5
      %v1252 = vsel %vm1012, %v1247, %v1251
      %v1254 = vshrl.u32 %v982, 16
      %v1256 = vrot.slane %v1254, 4
      %v1257 = vshll.u32 %v982, 16
      %v1259 = vrot.slane %v1257, 5
      %v1260 = vor.u32 %v1256, %v1259
      %v1261 = vrot.slane %v1260, 4
      %v1263 = vshll.u32 %v983, 16
      %v1265 = vrot.slane %v1263, 5
      %v1266 = vsel %vm1012, %v1261, %v1265
      %v1267 = vshrl.u32 %v983, 16
      %v1269 = vrot.slane %v1267, 4
      %v1270 = vor.u32 %v1269, %v1265
      %v1271 = vrot.slane %v1270, 4
      %v1273 = vshll.u32 %v1004, 16
      %v1275 = vrot.slane %v1273, 5
      %v1276 = vsel %vm1012, %v1271, %v1275
      %v1278 = vshrl.u32 %v984, 16
      %v1280 = vrot.slane %v1278, 4
      %v1281 = vshll.u32 %v984, 16
      %v1283 = vrot.slane %v1281, 5
      %v1284 = vor.u32 %v1280, %v1283
      %v1285 = vrot.slane %v1284, 4
      %v1287 = vshll.u32 %v985, 16
      %v1289 = vrot.slane %v1287, 5
      %v1290 = vsel %vm1012, %v1285, %v1289
      %v1291 = vshrl.u32 %v985, 16
      %v1293 = vrot.slane %v1291, 4
      %v1294 = vor.u32 %v1293, %v1289
      %v1295 = vrot.slane %v1294, 4
      %v1297 = vshll.u32 %v1005, 16
      %v1299 = vrot.slane %v1297, 5
      %v1300 = vsel %vm1012, %v1295, %v1299
      %v1302 = vshrl.u32 %v986, 16
      %v1304 = vrot.slane %v1302, 4
      %v1305 = vshll.u32 %v986, 16
      %v1307 = vrot.slane %v1305, 5
      %v1308 = vor.u32 %v1304, %v1307
      %v1309 = vrot.slane %v1308, 4
      %v1311 = vshll.u32 %v987, 16
      %v1313 = vrot.slane %v1311, 5
      %v1314 = vsel %vm1012, %v1309, %v1313
      %v1315 = vshrl.u32 %v987, 16
      %v1317 = vrot.slane %v1315, 4
      %v1318 = vor.u32 %v1317, %v1313
      %v1319 = vrot.slane %v1318, 4
      %v1321 = vshll.u32 %v1006, 16
      %v1323 = vrot.slane %v1321, 5
      %v1324 = vsel %vm1012, %v1319, %v1323
      %v1326 = vshrl.u32 %v988, 16
      %v1328 = vrot.slane %v1326, 4
      %v1329 = vshll.u32 %v988, 16
      %v1331 = vrot.slane %v1329, 5
      %v1332 = vor.u32 %v1328, %v1331
      %v1333 = vrot.slane %v1332, 4
      %v1335 = vshll.u32 %v989, 16
      %v1337 = vrot.slane %v1335, 5
      %v1338 = vsel %vm1012, %v1333, %v1337
      %v1339 = vshrl.u32 %v989, 16
      %v1341 = vrot.slane %v1339, 4
      %v1342 = vor.u32 %v1341, %v1337
      %v1343 = vrot.slane %v1342, 4
      %v1345 = vshll.u32 %v1007, 16
      %v1347 = vrot.slane %v1345, 5
      %v1348 = vsel %vm1012, %v1343, %v1347
      %v1350 = vshrl.u32 %v990, 16
      %v1352 = vrot.slane %v1350, 4
      %v1353 = vshll.u32 %v990, 16
      %v1355 = vrot.slane %v1353, 5
      %v1356 = vor.u32 %v1352, %v1355
      %v1357 = vrot.slane %v1356, 4
      %v1359 = vshll.u32 %v991, 16
      %v1361 = vrot.slane %v1359, 5
      %v1362 = vsel %vm1012, %v1357, %v1361
      %v1363 = vshrl.u32 %v991, 16
      %v1365 = vrot.slane %v1363, 4
      %v1366 = vor.u32 %v1365, %v1361
      %v1367 = vrot.slane %v1366, 4
      %v1369 = vshll.u32 %v1008, 16
      %v1371 = vrot.slane %v1369, 5
      %v1372 = vsel %vm1012, %v1367, %v1371
      %v1374 = vshrl.u32 %v992, 16
      %v1376 = vrot.slane %v1374, 4
      %v1377 = vshll.u32 %v992, 16
      %v1379 = vrot.slane %v1377, 5
      %v1380 = vor.u32 %v1376, %v1379
      %v1381 = vrot.slane %v1380, 4
      %v1383 = vshll.u32 %v993, 16
      %v1385 = vrot.slane %v1383, 5
      %v1386 = vsel %vm1012, %v1381, %v1385
      %v1387 = vshrl.u32 %v993, 16
      %v1389 = vrot.slane %v1387, 4
      %v1390 = vor.u32 %v1389, %v1385
      %v1391 = vrot.slane %v1390, 4
      %v1393 = vshll.u32 %v1009, 16
      %v1395 = vrot.slane %v1393, 5
      %v1396 = vsel %vm1012, %v1391, %v1395
      %v1397 = vld [vmem:[#allocation2] sm:$0xe]
      %v1398 = vld [vmem:[#allocation2 + $0xc] sm:$0xe]
      %v1399 = vld [vmem:[#allocation2 + $0x18] sm:$0xe]
      %v1400 = vld [vmem:[#allocation2 + $0x24] sm:$0xe]
      %v1401 = vld [vmem:[#allocation2 + $0x30] sm:$0xe]
      %v1402 = vld [vmem:[#allocation2 + $0x3c] sm:$0xe]
      %v1403 = vld [vmem:[#allocation2 + $0x48] sm:$0xe]
      %v1404 = vld [vmem:[#allocation2 + $0x54] sm:$0xe]
      %v1405 = vld [vmem:[#allocation2 + $0x60] sm:$0xe]
      %v1406 = vld [vmem:[#allocation2 + $0x6c] sm:$0xe]
      %v1407 = vld [vmem:[#allocation2 + $0x78] sm:$0xe]
      %v1408 = vld [vmem:[#allocation2 + $0x84] sm:$0xe]
      %v1409 = vld [vmem:[#allocation2 + $0x90] sm:$0xe]
      %v1410 = vld [vmem:[#allocation2 + $0x9c] sm:$0xe]
      %v1411 = vld [vmem:[#allocation2 + $0xa8] sm:$0xe]
      %v1412 = vld [vmem:[#allocation2 + $0xb4] sm:$0xe]
      %vm1461 = vcmask 1042432
      %vm1462 = vcmask 1046532
      %vm1463 = vmor %vm1461, %vm1462
      %v1464 = vrot.slane %v1397, 5
      %v1465 = vrot.slane %v1464, 4
      %v1466 = vrot.slane %v963, 5
      %v1467 = vsel %vm1463, %v1465, %v1466
      %v1468 = vrot.slane %v1466, 4
      %v1469 = vrot.slane %v994, 5
      %v1470 = vsel %vm1463, %v1468, %v1469
      %v1471 = vrot.slane %v1398, 5
      %v1472 = vrot.slane %v1471, 4
      %v1473 = vrot.slane %v965, 5
      %v1474 = vsel %vm1463, %v1472, %v1473
      %v1475 = vrot.slane %v1473, 4
      %v1476 = vrot.slane %v995, 5
      %v1477 = vsel %vm1463, %v1475, %v1476
      %v1478 = vrot.slane %v1399, 5
      %v1479 = vrot.slane %v1478, 4
      %v1480 = vrot.slane %v967, 5
      %v1481 = vsel %vm1463, %v1479, %v1480
      %v1482 = vrot.slane %v1480, 4
      %v1483 = vrot.slane %v996, 5
      %v1484 = vsel %vm1463, %v1482, %v1483
      %v1485 = vrot.slane %v1400, 5
      %v1486 = vrot.slane %v1485, 4
      %v1487 = vrot.slane %v969, 5
      %v1488 = vsel %vm1463, %v1486, %v1487
      %v1489 = vrot.slane %v1487, 4
      %v1490 = vrot.slane %v997, 5
      %v1491 = vsel %vm1463, %v1489, %v1490
      %v1492 = vrot.slane %v1401, 5
      %v1493 = vrot.slane %v1492, 4
      %v1494 = vrot.slane %v971, 5
      %v1495 = vsel %vm1463, %v1493, %v1494
      %v1496 = vrot.slane %v1494, 4
      %v1497 = vrot.slane %v998, 5
      %v1498 = vsel %vm1463, %v1496, %v1497
      %v1499 = vrot.slane %v1402, 5
      %v1500 = vrot.slane %v1499, 4
      %v1501 = vrot.slane %v973, 5
      %v1502 = vsel %vm1463, %v1500, %v1501
      %v1503 = vrot.slane %v1501, 4
      %v1504 = vrot.slane %v999, 5
      %v1505 = vsel %vm1463, %v1503, %v1504
      %v1506 = vrot.slane %v1403, 5
      %v1507 = vrot.slane %v1506, 4
      %v1508 = vrot.slane %v975, 5
      %v1509 = vsel %vm1463, %v1507, %v1508
      %v1510 = vrot.slane %v1508, 4
      %v1511 = vrot.slane %v1000, 5
      %v1512 = vsel %vm1463, %v1510, %v1511
      %v1513 = vrot.slane %v1404, 5
      %v1514 = vrot.slane %v1513, 4
      %v1515 = vrot.slane %v977, 5
      %v1516 = vsel %vm1463, %v1514, %v1515
      %v1517 = vrot.slane %v1515, 4
      %v1518 = vrot.slane %v1001, 5
      %v1519 = vsel %vm1463, %v1517, %v1518
      %v1520 = vrot.slane %v1405, 5
      %v1521 = vrot.slane %v1520, 4
      %v1522 = vrot.slane %v979, 5
      %v1523 = vsel %vm1463, %v1521, %v1522
      %v1524 = vrot.slane %v1522, 4
      %v1525 = vrot.slane %v1002, 5
      %v1526 = vsel %vm1463, %v1524, %v1525
      %v1527 = vrot.slane %v1406, 5
      %v1528 = vrot.slane %v1527, 4
      %v1529 = vrot.slane %v981, 5
      %v1530 = vsel %vm1463, %v1528, %v1529
      %v1531 = vrot.slane %v1529, 4
      %v1532 = vrot.slane %v1003, 5
      %v1533 = vsel %vm1463, %v1531, %v1532
      %v1534 = vrot.slane %v1407, 5
      %v1535 = vrot.slane %v1534, 4
      %v1536 = vrot.slane %v983, 5
      %v1537 = vsel %vm1463, %v1535, %v1536
      %v1538 = vrot.slane %v1536, 4
      %v1539 = vrot.slane %v1004, 5
      %v1540 = vsel %vm1463, %v1538, %v1539
      %v1541 = vrot.slane %v1408, 5
      %v1542 = vrot.slane %v1541, 4
      %v1543 = vrot.slane %v985, 5
      %v1544 = vsel %vm1463, %v1542, %v1543
      %v1545 = vrot.slane %v1543, 4
      %v1546 = vrot.slane %v1005, 5
      %v1547 = vsel %vm1463, %v1545, %v1546
      %v1548 = vrot.slane %v1409, 5
      %v1549 = vrot.slane %v1548, 4
      %v1550 = vrot.slane %v987, 5
      %v1551 = vsel %vm1463, %v1549, %v1550
      %v1552 = vrot.slane %v1550, 4
      %v1553 = vrot.slane %v1006, 5
      %v1554 = vsel %vm1463, %v1552, %v1553
      %v1555 = vrot.slane %v1410, 5
      %v1556 = vrot.slane %v1555, 4
      %v1557 = vrot.slane %v989, 5
      %v1558 = vsel %vm1463, %v1556, %v1557
      %v1559 = vrot.slane %v1557, 4
      %v1560 = vrot.slane %v1007, 5
      %v1561 = vsel %vm1463, %v1559, %v1560
      %v1562 = vrot.slane %v1411, 5
      %v1563 = vrot.slane %v1562, 4
      %v1564 = vrot.slane %v991, 5
      %v1565 = vsel %vm1463, %v1563, %v1564
      %v1566 = vrot.slane %v1564, 4
      %v1567 = vrot.slane %v1008, 5
      %v1568 = vsel %vm1463, %v1566, %v1567
      %v1569 = vrot.slane %v1412, 5
      %v1570 = vrot.slane %v1569, 4
      %v1571 = vrot.slane %v993, 5
      %v1572 = vsel %vm1463, %v1570, %v1571
      %v1573 = vrot.slane %v1571, 4
      %v1574 = vrot.slane %v1009, 5
      %v1575 = vsel %vm1463, %v1573, %v1574
      %v1576 = vld [vmem:[%s844] sm:$0xf]
      %v1577 = vld [vmem:[%s844 + $0x4] sm:$0xf]
      %v1578 = vld [vmem:[%s844 + $0xc] sm:$0xf]
      %v1579 = vld [vmem:[%s844 + $0x10] sm:$0xf]
      %v1580 = vld [vmem:[%s844 + $0x18] sm:$0xf]
      %v1581 = vld [vmem:[%s844 + $0x1c] sm:$0xf]
      %v1582 = vld [vmem:[%s844 + $0x24] sm:$0xf]
      %v1583 = vld [vmem:[%s844 + $0x28] sm:$0xf]
      %v1584 = vld [vmem:[%s844 + $0x30] sm:$0xf]
      %v1585 = vld [vmem:[%s844 + $0x34] sm:$0xf]
      %v1586 = vld [vmem:[%s844 + $0x3c] sm:$0xf]
      %v1587 = vld [vmem:[%s844 + $0x40] sm:$0xf]
      %v1588 = vld [vmem:[%s844 + $0x48] sm:$0xf]
      %v1589 = vld [vmem:[%s844 + $0x4c] sm:$0xf]
      %v1590 = vld [vmem:[%s844 + $0x54] sm:$0xf]
      %v1591 = vld [vmem:[%s844 + $0x58] sm:$0xf]
      %v1592 = vld [vmem:[%s844 + $0x60] sm:$0xf]
      %v1593 = vld [vmem:[%s844 + $0x64] sm:$0xf]
      %v1594 = vld [vmem:[%s844 + $0x6c] sm:$0xf]
      %v1595 = vld [vmem:[%s844 + $0x70] sm:$0xf]
      %v1596 = vld [vmem:[%s844 + $0x78] sm:$0xf]
      %v1597 = vld [vmem:[%s844 + $0x7c] sm:$0xf]
      %v1598 = vld [vmem:[%s844 + $0x84] sm:$0xf]
      %v1599 = vld [vmem:[%s844 + $0x88] sm:$0xf]
      %v1600 = vld [vmem:[%s844 + $0x90] sm:$0xf]
      %v1601 = vld [vmem:[%s844 + $0x94] sm:$0xf]
      %v1602 = vld [vmem:[%s844 + $0x9c] sm:$0xf]
      %v1603 = vld [vmem:[%s844 + $0xa0] sm:$0xf]
      %v1604 = vld [vmem:[%s844 + $0xa8] sm:$0xf]
      %v1605 = vld [vmem:[%s844 + $0xac] sm:$0xf]
      %v1606 = vld [vmem:[%s844 + $0xb4] sm:$0xf]
      %v1607 = vld [vmem:[%s844 + $0xb8] sm:$0xf]
      %v1608 = vld [vmem:[%s844 + $0x8] sm:$0x1]
      %v1609 = vld [vmem:[%s844 + $0x14] sm:$0x1]
      %v1610 = vld [vmem:[%s844 + $0x20] sm:$0x1]
      %v1611 = vld [vmem:[%s844 + $0x2c] sm:$0x1]
      %v1612 = vld [vmem:[%s844 + $0x38] sm:$0x1]
      %v1613 = vld [vmem:[%s844 + $0x44] sm:$0x1]
      %v1614 = vld [vmem:[%s844 + $0x50] sm:$0x1]
      %v1615 = vld [vmem:[%s844 + $0x5c] sm:$0x1]
      %v1616 = vld [vmem:[%s844 + $0x68] sm:$0x1]
      %v1617 = vld [vmem:[%s844 + $0x74] sm:$0x1]
      %v1618 = vld [vmem:[%s844 + $0x80] sm:$0x1]
      %v1619 = vld [vmem:[%s844 + $0x8c] sm:$0x1]
      %v1620 = vld [vmem:[%s844 + $0x98] sm:$0x1]
      %v1621 = vld [vmem:[%s844 + $0xa4] sm:$0x1]
      %v1622 = vld [vmem:[%s844 + $0xb0] sm:$0x1]
      %v1623 = vld [vmem:[%s844 + $0xbc] sm:$0x1]
      %v1625 = vshrl.u32 %v1576, 16
      %v1627 = vrot.slane %v1625, 4
      %v1628 = vshll.u32 %v1576, 16
      %v1630 = vrot.slane %v1628, 5
      %v1631 = vor.u32 %v1627, %v1630
      %v1632 = vrot.slane %v1631, 4
      %v1634 = vshll.u32 %v1577, 16
      %v1636 = vrot.slane %v1634, 5
      %v1637 = vsel %vm1012, %v1632, %v1636
      %v1638 = vshrl.u32 %v1577, 16
      %v1640 = vrot.slane %v1638, 4
      %v1641 = vor.u32 %v1640, %v1636
      %v1642 = vrot.slane %v1641, 4
      %v1644 = vshll.u32 %v1608, 16
      %v1646 = vrot.slane %v1644, 5
      %v1647 = vsel %vm1012, %v1642, %v1646
      %v1649 = vshrl.u32 %v1578, 16
      %v1651 = vrot.slane %v1649, 4
      %v1652 = vshll.u32 %v1578, 16
      %v1654 = vrot.slane %v1652, 5
      %v1655 = vor.u32 %v1651, %v1654
      %v1656 = vrot.slane %v1655, 4
      %v1658 = vshll.u32 %v1579, 16
      %v1660 = vrot.slane %v1658, 5
      %v1661 = vsel %vm1012, %v1656, %v1660
      %v1662 = vshrl.u32 %v1579, 16
      %v1664 = vrot.slane %v1662, 4
      %v1665 = vor.u32 %v1664, %v1660
      %v1666 = vrot.slane %v1665, 4
      %v1668 = vshll.u32 %v1609, 16
      %v1670 = vrot.slane %v1668, 5
      %v1671 = vsel %vm1012, %v1666, %v1670
      %v1673 = vshrl.u32 %v1580, 16
      %v1675 = vrot.slane %v1673, 4
      %v1676 = vshll.u32 %v1580, 16
      %v1678 = vrot.slane %v1676, 5
      %v1679 = vor.u32 %v1675, %v1678
      %v1680 = vrot.slane %v1679, 4
      %v1682 = vshll.u32 %v1581, 16
      %v1684 = vrot.slane %v1682, 5
      %v1685 = vsel %vm1012, %v1680, %v1684
      %v1686 = vshrl.u32 %v1581, 16
      %v1688 = vrot.slane %v1686, 4
      %v1689 = vor.u32 %v1688, %v1684
      %v1690 = vrot.slane %v1689, 4
      %v1692 = vshll.u32 %v1610, 16
      %v1694 = vrot.slane %v1692, 5
      %v1695 = vsel %vm1012, %v1690, %v1694
      %v1697 = vshrl.u32 %v1582, 16
      %v1699 = vrot.slane %v1697, 4
      %v1700 = vshll.u32 %v1582, 16
      %v1702 = vrot.slane %v1700, 5
      %v1703 = vor.u32 %v1699, %v1702
      %v1704 = vrot.slane %v1703, 4
      %v1706 = vshll.u32 %v1583, 16
      %v1708 = vrot.slane %v1706, 5
      %v1709 = vsel %vm1012, %v1704, %v1708
      %v1710 = vshrl.u32 %v1583, 16
      %v1712 = vrot.slane %v1710, 4
      %v1713 = vor.u32 %v1712, %v1708
      %v1714 = vrot.slane %v1713, 4
      %v1716 = vshll.u32 %v1611, 16
      %v1718 = vrot.slane %v1716, 5
      %v1719 = vsel %vm1012, %v1714, %v1718
      %v1721 = vshrl.u32 %v1584, 16
      %v1723 = vrot.slane %v1721, 4
      %v1724 = vshll.u32 %v1584, 16
      %v1726 = vrot.slane %v1724, 5
      %v1727 = vor.u32 %v1723, %v1726
      %v1728 = vrot.slane %v1727, 4
      %v1730 = vshll.u32 %v1585, 16
      %v1732 = vrot.slane %v1730, 5
      %v1733 = vsel %vm1012, %v1728, %v1732
      %v1734 = vshrl.u32 %v1585, 16
      %v1736 = vrot.slane %v1734, 4
      %v1737 = vor.u32 %v1736, %v1732
      %v1738 = vrot.slane %v1737, 4
      %v1740 = vshll.u32 %v1612, 16
      %v1742 = vrot.slane %v1740, 5
      %v1743 = vsel %vm1012, %v1738, %v1742
      %v1745 = vshrl.u32 %v1586, 16
      %v1747 = vrot.slane %v1745, 4
      %v1748 = vshll.u32 %v1586, 16
      %v1750 = vrot.slane %v1748, 5
      %v1751 = vor.u32 %v1747, %v1750
      %v1752 = vrot.slane %v1751, 4
      %v1754 = vshll.u32 %v1587, 16
      %v1756 = vrot.slane %v1754, 5
      %v1757 = vsel %vm1012, %v1752, %v1756
      %v1758 = vshrl.u32 %v1587, 16
      %v1760 = vrot.slane %v1758, 4
      %v1761 = vor.u32 %v1760, %v1756
      %v1762 = vrot.slane %v1761, 4
      %v1764 = vshll.u32 %v1613, 16
      %v1766 = vrot.slane %v1764, 5
      %v1767 = vsel %vm1012, %v1762, %v1766
      %v1769 = vshrl.u32 %v1588, 16
      %v1771 = vrot.slane %v1769, 4
      %v1772 = vshll.u32 %v1588, 16
      %v1774 = vrot.slane %v1772, 5
      %v1775 = vor.u32 %v1771, %v1774
      %v1776 = vrot.slane %v1775, 4
      %v1778 = vshll.u32 %v1589, 16
      %v1780 = vrot.slane %v1778, 5
      %v1781 = vsel %vm1012, %v1776, %v1780
      %v1782 = vshrl.u32 %v1589, 16
      %v1784 = vrot.slane %v1782, 4
      %v1785 = vor.u32 %v1784, %v1780
      %v1786 = vrot.slane %v1785, 4
      %v1788 = vshll.u32 %v1614, 16
      %v1790 = vrot.slane %v1788, 5
      %v1791 = vsel %vm1012, %v1786, %v1790
      %v1793 = vshrl.u32 %v1590, 16
      %v1795 = vrot.slane %v1793, 4
      %v1796 = vshll.u32 %v1590, 16
      %v1798 = vrot.slane %v1796, 5
      %v1799 = vor.u32 %v1795, %v1798
      %v1800 = vrot.slane %v1799, 4
      %v1802 = vshll.u32 %v1591, 16
      %v1804 = vrot.slane %v1802, 5
      %v1805 = vsel %vm1012, %v1800, %v1804
      %v1806 = vshrl.u32 %v1591, 16
      %v1808 = vrot.slane %v1806, 4
      %v1809 = vor.u32 %v1808, %v1804
      %v1810 = vrot.slane %v1809, 4
      %v1812 = vshll.u32 %v1615, 16
      %v1814 = vrot.slane %v1812, 5
      %v1815 = vsel %vm1012, %v1810, %v1814
      %v1817 = vshrl.u32 %v1592, 16
      %v1819 = vrot.slane %v1817, 4
      %v1820 = vshll.u32 %v1592, 16
      %v1822 = vrot.slane %v1820, 5
      %v1823 = vor.u32 %v1819, %v1822
      %v1824 = vrot.slane %v1823, 4
      %v1826 = vshll.u32 %v1593, 16
      %v1828 = vrot.slane %v1826, 5
      %v1829 = vsel %vm1012, %v1824, %v1828
      %v1830 = vshrl.u32 %v1593, 16
      %v1832 = vrot.slane %v1830, 4
      %v1833 = vor.u32 %v1832, %v1828
      %v1834 = vrot.slane %v1833, 4
      %v1836 = vshll.u32 %v1616, 16
      %v1838 = vrot.slane %v1836, 5
      %v1839 = vsel %vm1012, %v1834, %v1838
      %v1841 = vshrl.u32 %v1594, 16
      %v1843 = vrot.slane %v1841, 4
      %v1844 = vshll.u32 %v1594, 16
      %v1846 = vrot.slane %v1844, 5
      %v1847 = vor.u32 %v1843, %v1846
      %v1848 = vrot.slane %v1847, 4
      %v1850 = vshll.u32 %v1595, 16
      %v1852 = vrot.slane %v1850, 5
      %v1853 = vsel %vm1012, %v1848, %v1852
      %v1854 = vshrl.u32 %v1595, 16
      %v1856 = vrot.slane %v1854, 4
      %v1857 = vor.u32 %v1856, %v1852
      %v1858 = vrot.slane %v1857, 4
      %v1860 = vshll.u32 %v1617, 16
      %v1862 = vrot.slane %v1860, 5
      %v1863 = vsel %vm1012, %v1858, %v1862
      %v1865 = vshrl.u32 %v1596, 16
      %v1867 = vrot.slane %v1865, 4
      %v1868 = vshll.u32 %v1596, 16
      %v1870 = vrot.slane %v1868, 5
      %v1871 = vor.u32 %v1867, %v1870
      %v1872 = vrot.slane %v1871, 4
      %v1874 = vshll.u32 %v1597, 16
      %v1876 = vrot.slane %v1874, 5
      %v1877 = vsel %vm1012, %v1872, %v1876
      %v1878 = vshrl.u32 %v1597, 16
      %v1880 = vrot.slane %v1878, 4
      %v1881 = vor.u32 %v1880, %v1876
      %v1882 = vrot.slane %v1881, 4
      %v1884 = vshll.u32 %v1618, 16
      %v1886 = vrot.slane %v1884, 5
      %v1887 = vsel %vm1012, %v1882, %v1886
      %v1889 = vshrl.u32 %v1598, 16
      %v1891 = vrot.slane %v1889, 4
      %v1892 = vshll.u32 %v1598, 16
      %v1894 = vrot.slane %v1892, 5
      %v1895 = vor.u32 %v1891, %v1894
      %v1896 = vrot.slane %v1895, 4
      %v1898 = vshll.u32 %v1599, 16
      %v1900 = vrot.slane %v1898, 5
      %v1901 = vsel %vm1012, %v1896, %v1900
      %v1902 = vshrl.u32 %v1599, 16
      %v1904 = vrot.slane %v1902, 4
      %v1905 = vor.u32 %v1904, %v1900
      %v1906 = vrot.slane %v1905, 4
      %v1908 = vshll.u32 %v1619, 16
      %v1910 = vrot.slane %v1908, 5
      %v1911 = vsel %vm1012, %v1906, %v1910
      %v1913 = vshrl.u32 %v1600, 16
      %v1915 = vrot.slane %v1913, 4
      %v1916 = vshll.u32 %v1600, 16
      %v1918 = vrot.slane %v1916, 5
      %v1919 = vor.u32 %v1915, %v1918
      %v1920 = vrot.slane %v1919, 4
      %v1922 = vshll.u32 %v1601, 16
      %v1924 = vrot.slane %v1922, 5
      %v1925 = vsel %vm1012, %v1920, %v1924
      %v1926 = vshrl.u32 %v1601, 16
      %v1928 = vrot.slane %v1926, 4
      %v1929 = vor.u32 %v1928, %v1924
      %v1930 = vrot.slane %v1929, 4
      %v1932 = vshll.u32 %v1620, 16
      %v1934 = vrot.slane %v1932, 5
      %v1935 = vsel %vm1012, %v1930, %v1934
      %v1937 = vshrl.u32 %v1602, 16
      %v1939 = vrot.slane %v1937, 4
      %v1940 = vshll.u32 %v1602, 16
      %v1942 = vrot.slane %v1940, 5
      %v1943 = vor.u32 %v1939, %v1942
      %v1944 = vrot.slane %v1943, 4
      %v1946 = vshll.u32 %v1603, 16
      %v1948 = vrot.slane %v1946, 5
      %v1949 = vsel %vm1012, %v1944, %v1948
      %v1950 = vshrl.u32 %v1603, 16
      %v1952 = vrot.slane %v1950, 4
      %v1953 = vor.u32 %v1952, %v1948
      %v1954 = vrot.slane %v1953, 4
      %v1956 = vshll.u32 %v1621, 16
      %v1958 = vrot.slane %v1956, 5
      %v1959 = vsel %vm1012, %v1954, %v1958
      %v1961 = vshrl.u32 %v1604, 16
      %v1963 = vrot.slane %v1961, 4
      %v1964 = vshll.u32 %v1604, 16
      %v1966 = vrot.slane %v1964, 5
      %v1967 = vor.u32 %v1963, %v1966
      %v1968 = vrot.slane %v1967, 4
      %v1970 = vshll.u32 %v1605, 16
      %v1972 = vrot.slane %v1970, 5
      %v1973 = vsel %vm1012, %v1968, %v1972
      %v1974 = vshrl.u32 %v1605, 16
      %v1976 = vrot.slane %v1974, 4
      %v1977 = vor.u32 %v1976, %v1972
      %v1978 = vrot.slane %v1977, 4
      %v1980 = vshll.u32 %v1622, 16
      %v1982 = vrot.slane %v1980, 5
      %v1983 = vsel %vm1012, %v1978, %v1982
      %v1985 = vshrl.u32 %v1606, 16
      %v1987 = vrot.slane %v1985, 4
      %v1988 = vshll.u32 %v1606, 16
      %v1990 = vrot.slane %v1988, 5
      %v1991 = vor.u32 %v1987, %v1990
      %v1992 = vrot.slane %v1991, 4
      %v1994 = vshll.u32 %v1607, 16
      %v1996 = vrot.slane %v1994, 5
      %v1997 = vsel %vm1012, %v1992, %v1996
      %v1998 = vshrl.u32 %v1607, 16
      %v2000 = vrot.slane %v1998, 4
      %v2001 = vor.u32 %v2000, %v1996
      %v2002 = vrot.slane %v2001, 4
      %v2004 = vshll.u32 %v1623, 16
      %v2006 = vrot.slane %v2004, 5
      %v2007 = vsel %vm1012, %v2002, %v2006
      %v2008 = vld [vmem:[%s844] sm:$0xe]
      %v2009 = vld [vmem:[%s844 + $0xc] sm:$0xe]
      %v2010 = vld [vmem:[%s844 + $0x18] sm:$0xe]
      %v2011 = vld [vmem:[%s844 + $0x24] sm:$0xe]
      %v2012 = vld [vmem:[%s844 + $0x30] sm:$0xe]
      %v2013 = vld [vmem:[%s844 + $0x3c] sm:$0xe]
      %v2014 = vld [vmem:[%s844 + $0x48] sm:$0xe]
      %v2015 = vld [vmem:[%s844 + $0x54] sm:$0xe]
      %v2016 = vld [vmem:[%s844 + $0x60] sm:$0xe]
      %v2017 = vld [vmem:[%s844 + $0x6c] sm:$0xe]
      %v2018 = vld [vmem:[%s844 + $0x78] sm:$0xe]
      %v2019 = vld [vmem:[%s844 + $0x84] sm:$0xe]
      %v2020 = vld [vmem:[%s844 + $0x90] sm:$0xe]
      %v2021 = vld [vmem:[%s844 + $0x9c] sm:$0xe]
      %v2022 = vld [vmem:[%s844 + $0xa8] sm:$0xe]
      %v2023 = vld [vmem:[%s844 + $0xb4] sm:$0xe]
      %v2072 = vrot.slane %v2008, 5
      %v2073 = vrot.slane %v2072, 4
      %v2074 = vrot.slane %v1577, 5
      %v2075 = vsel %vm1463, %v2073, %v2074
      %v2076 = vrot.slane %v2074, 4
      %v2077 = vrot.slane %v1608, 5
      %v2078 = vsel %vm1463, %v2076, %v2077
      %v2079 = vrot.slane %v2009, 5
      %v2080 = vrot.slane %v2079, 4
      %v2081 = vrot.slane %v1579, 5
      %v2082 = vsel %vm1463, %v2080, %v2081
      %v2083 = vrot.slane %v2081, 4
      %v2084 = vrot.slane %v1609, 5
      %v2085 = vsel %vm1463, %v2083, %v2084
      %v2086 = vrot.slane %v2010, 5
      %v2087 = vrot.slane %v2086, 4
      %v2088 = vrot.slane %v1581, 5
      %v2089 = vsel %vm1463, %v2087, %v2088
      %v2090 = vrot.slane %v2088, 4
      %v2091 = vrot.slane %v1610, 5
      %v2092 = vsel %vm1463, %v2090, %v2091
      %v2093 = vrot.slane %v2011, 5
      %v2094 = vrot.slane %v2093, 4
      %v2095 = vrot.slane %v1583, 5
      %v2096 = vsel %vm1463, %v2094, %v2095
      %v2097 = vrot.slane %v2095, 4
      %v2098 = vrot.slane %v1611, 5
      %v2099 = vsel %vm1463, %v2097, %v2098
      %v2100 = vrot.slane %v2012, 5
      %v2101 = vrot.slane %v2100, 4
      %v2102 = vrot.slane %v1585, 5
      %v2103 = vsel %vm1463, %v2101, %v2102
      %v2104 = vrot.slane %v2102, 4
      %v2105 = vrot.slane %v1612, 5
      %v2106 = vsel %vm1463, %v2104, %v2105
      %v2107 = vrot.slane %v2013, 5
      %v2108 = vrot.slane %v2107, 4
      %v2109 = vrot.slane %v1587, 5
      %v2110 = vsel %vm1463, %v2108, %v2109
      %v2111 = vrot.slane %v2109, 4
      %v2112 = vrot.slane %v1613, 5
      %v2113 = vsel %vm1463, %v2111, %v2112
      %v2114 = vrot.slane %v2014, 5
      %v2115 = vrot.slane %v2114, 4
      %v2116 = vrot.slane %v1589, 5
      %v2117 = vsel %vm1463, %v2115, %v2116
      %v2118 = vrot.slane %v2116, 4
      %v2119 = vrot.slane %v1614, 5
      %v2120 = vsel %vm1463, %v2118, %v2119
      %v2121 = vrot.slane %v2015, 5
      %v2122 = vrot.slane %v2121, 4
      %v2123 = vrot.slane %v1591, 5
      %v2124 = vsel %vm1463, %v2122, %v2123
      %v2125 = vrot.slane %v2123, 4
      %v2126 = vrot.slane %v1615, 5
      %v2127 = vsel %vm1463, %v2125, %v2126
      %v2128 = vrot.slane %v2016, 5
      %v2129 = vrot.slane %v2128, 4
      %v2130 = vrot.slane %v1593, 5
      %v2131 = vsel %vm1463, %v2129, %v2130
      %v2132 = vrot.slane %v2130, 4
      %v2133 = vrot.slane %v1616, 5
      %v2134 = vsel %vm1463, %v2132, %v2133
      %v2135 = vrot.slane %v2017, 5
      %v2136 = vrot.slane %v2135, 4
      %v2137 = vrot.slane %v1595, 5
      %v2138 = vsel %vm1463, %v2136, %v2137
      %v2139 = vrot.slane %v2137, 4
      %v2140 = vrot.slane %v1617, 5
      %v2141 = vsel %vm1463, %v2139, %v2140
      %v2142 = vrot.slane %v2018, 5
      %v2143 = vrot.slane %v2142, 4
      %v2144 = vrot.slane %v1597, 5
      %v2145 = vsel %vm1463, %v2143, %v2144
      %v2146 = vrot.slane %v2144, 4
      %v2147 = vrot.slane %v1618, 5
      %v2148 = vsel %vm1463, %v2146, %v2147
      %v2149 = vrot.slane %v2019, 5
      %v2150 = vrot.slane %v2149, 4
      %v2151 = vrot.slane %v1599, 5
      %v2152 = vsel %vm1463, %v2150, %v2151
      %v2153 = vrot.slane %v2151, 4
      %v2154 = vrot.slane %v1619, 5
      %v2155 = vsel %vm1463, %v2153, %v2154
      %v2156 = vrot.slane %v2020, 5
      %v2157 = vrot.slane %v2156, 4
      %v2158 = vrot.slane %v1601, 5
      %v2159 = vsel %vm1463, %v2157, %v2158
      %v2160 = vrot.slane %v2158, 4
      %v2161 = vrot.slane %v1620, 5
      %v2162 = vsel %vm1463, %v2160, %v2161
      %v2163 = vrot.slane %v2021, 5
      %v2164 = vrot.slane %v2163, 4
      %v2165 = vrot.slane %v1603, 5
      %v2166 = vsel %vm1463, %v2164, %v2165
      %v2167 = vrot.slane %v2165, 4
      %v2168 = vrot.slane %v1621, 5
      %v2169 = vsel %vm1463, %v2167, %v2168
      %v2170 = vrot.slane %v2022, 5
      %v2171 = vrot.slane %v2170, 4
      %v2172 = vrot.slane %v1605, 5
      %v2173 = vsel %vm1463, %v2171, %v2172
      %v2174 = vrot.slane %v2172, 4
      %v2175 = vrot.slane %v1622, 5
      %v2176 = vsel %vm1463, %v2174, %v2175
      %v2177 = vrot.slane %v2023, 5
      %v2178 = vrot.slane %v2177, 4
      %v2179 = vrot.slane %v1607, 5
      %v2180 = vsel %vm1463, %v2178, %v2179
      %v2181 = vrot.slane %v2179, 4
      %v2182 = vrot.slane %v1623, 5
      %v2183 = vsel %vm1463, %v2181, %v2182
      %s2184 = scalar_lea.vmem [#allocation2], 24
      %v2185 = vld [vmem:[%s2184] sm:$0xf]
      %v2186 = vld [vmem:[%s2184 + $0x4] sm:$0xf]
      %v2187 = vld [vmem:[%s2184 + $0xc] sm:$0xf]
      %v2188 = vld [vmem:[%s2184 + $0x10] sm:$0xf]
      %v2189 = vld [vmem:[%s2184 + $0x18] sm:$0xf]
      %v2190 = vld [vmem:[%s2184 + $0x1c] sm:$0xf]
      %v2191 = vld [vmem:[%s2184 + $0x24] sm:$0xf]
      %v2192 = vld [vmem:[%s2184 + $0x28] sm:$0xf]
      %v2193 = vld [vmem:[%s2184 + $0x30] sm:$0xf]
      %v2194 = vld [vmem:[%s2184 + $0x34] sm:$0xf]
      %v2195 = vld [vmem:[%s2184 + $0x3c] sm:$0xf]
      %v2196 = vld [vmem:[%s2184 + $0x40] sm:$0xf]
      %v2197 = vld [vmem:[%s2184 + $0x48] sm:$0xf]
      %v2198 = vld [vmem:[%s2184 + $0x4c] sm:$0xf]
      %v2199 = vld [vmem:[%s2184 + $0x54] sm:$0xf]
      %v2200 = vld [vmem:[%s2184 + $0x58] sm:$0xf]
      %v2201 = vld [vmem:[%s2184 + $0x60] sm:$0xf]
      %v2202 = vld [vmem:[%s2184 + $0x64] sm:$0xf]
      %v2203 = vld [vmem:[%s2184 + $0x6c] sm:$0xf]
      %v2204 = vld [vmem:[%s2184 + $0x70] sm:$0xf]
      %v2205 = vld [vmem:[%s2184 + $0x78] sm:$0xf]
      %v2206 = vld [vmem:[%s2184 + $0x7c] sm:$0xf]
      %v2207 = vld [vmem:[%s2184 + $0x84] sm:$0xf]
      %v2208 = vld [vmem:[%s2184 + $0x88] sm:$0xf]
      %v2209 = vld [vmem:[%s2184 + $0x90] sm:$0xf]
      %v2210 = vld [vmem:[%s2184 + $0x94] sm:$0xf]
      %v2211 = vld [vmem:[%s2184 + $0x9c] sm:$0xf]
      %v2212 = vld [vmem:[%s2184 + $0xa0] sm:$0xf]
      %v2213 = vld [vmem:[%s2184 + $0xa8] sm:$0xf]
      %v2214 = vld [vmem:[%s2184 + $0xac] sm:$0xf]
      %v2215 = vld [vmem:[%s2184 + $0xb4] sm:$0xf]
      %v2216 = vld [vmem:[%s2184 + $0xb8] sm:$0xf]
      %v2217 = vld [vmem:[%s2184 + $0x8] sm:$0x1]
      %v2218 = vld [vmem:[%s2184 + $0x14] sm:$0x1]
      %v2219 = vld [vmem:[%s2184 + $0x20] sm:$0x1]
      %v2220 = vld [vmem:[%s2184 + $0x2c] sm:$0x1]
      %v2221 = vld [vmem:[%s2184 + $0x38] sm:$0x1]
      %v2222 = vld [vmem:[%s2184 + $0x44] sm:$0x1]
      %v2223 = vld [vmem:[%s2184 + $0x50] sm:$0x1]
      %v2224 = vld [vmem:[%s2184 + $0x5c] sm:$0x1]
      %v2225 = vld [vmem:[%s2184 + $0x68] sm:$0x1]
      %v2226 = vld [vmem:[%s2184 + $0x74] sm:$0x1]
      %v2227 = vld [vmem:[%s2184 + $0x80] sm:$0x1]
      %v2228 = vld [vmem:[%s2184 + $0x8c] sm:$0x1]
      %v2229 = vld [vmem:[%s2184 + $0x98] sm:$0x1]
      %v2230 = vld [vmem:[%s2184 + $0xa4] sm:$0x1]
      %v2231 = vld [vmem:[%s2184 + $0xb0] sm:$0x1]
      %v2232 = vld [vmem:[%s2184 + $0xbc] sm:$0x1]
      %v2234 = vshrl.u32 %v2185, 16
      %v2236 = vrot.slane %v2234, 4
      %v2237 = vshll.u32 %v2185, 16
      %v2239 = vrot.slane %v2237, 5
      %v2240 = vor.u32 %v2236, %v2239
      %v2241 = vrot.slane %v2240, 4
      %v2243 = vshll.u32 %v2186, 16
      %v2245 = vrot.slane %v2243, 5
      %v2246 = vsel %vm1012, %v2241, %v2245
      %v2247 = vshrl.u32 %v2186, 16
      %v2249 = vrot.slane %v2247, 4
      %v2250 = vor.u32 %v2249, %v2245
      %v2251 = vrot.slane %v2250, 4
      %v2253 = vshll.u32 %v2217, 16
      %v2255 = vrot.slane %v2253, 5
      %v2256 = vsel %vm1012, %v2251, %v2255
      %v2258 = vshrl.u32 %v2187, 16
      %v2260 = vrot.slane %v2258, 4
      %v2261 = vshll.u32 %v2187, 16
      %v2263 = vrot.slane %v2261, 5
      %v2264 = vor.u32 %v2260, %v2263
      %v2265 = vrot.slane %v2264, 4
      %v2267 = vshll.u32 %v2188, 16
      %v2269 = vrot.slane %v2267, 5
      %v2270 = vsel %vm1012, %v2265, %v2269
      %v2271 = vshrl.u32 %v2188, 16
      %v2273 = vrot.slane %v2271, 4
      %v2274 = vor.u32 %v2273, %v2269
      %v2275 = vrot.slane %v2274, 4
      %v2277 = vshll.u32 %v2218, 16
      %v2279 = vrot.slane %v2277, 5
      %v2280 = vsel %vm1012, %v2275, %v2279
      %v2282 = vshrl.u32 %v2189, 16
      %v2284 = vrot.slane %v2282, 4
      %v2285 = vshll.u32 %v2189, 16
      %v2287 = vrot.slane %v2285, 5
      %v2288 = vor.u32 %v2284, %v2287
      %v2289 = vrot.slane %v2288, 4
      %v2291 = vshll.u32 %v2190, 16
      %v2293 = vrot.slane %v2291, 5
      %v2294 = vsel %vm1012, %v2289, %v2293
      %v2295 = vshrl.u32 %v2190, 16
      %v2297 = vrot.slane %v2295, 4
      %v2298 = vor.u32 %v2297, %v2293
      %v2299 = vrot.slane %v2298, 4
      %v2301 = vshll.u32 %v2219, 16
      %v2303 = vrot.slane %v2301, 5
      %v2304 = vsel %vm1012, %v2299, %v2303
      %v2306 = vshrl.u32 %v2191, 16
      %v2308 = vrot.slane %v2306, 4
      %v2309 = vshll.u32 %v2191, 16
      %v2311 = vrot.slane %v2309, 5
      %v2312 = vor.u32 %v2308, %v2311
      %v2313 = vrot.slane %v2312, 4
      %v2315 = vshll.u32 %v2192, 16
      %v2317 = vrot.slane %v2315, 5
      %v2318 = vsel %vm1012, %v2313, %v2317
      %v2319 = vshrl.u32 %v2192, 16
      %v2321 = vrot.slane %v2319, 4
      %v2322 = vor.u32 %v2321, %v2317
      %v2323 = vrot.slane %v2322, 4
      %v2325 = vshll.u32 %v2220, 16
      %v2327 = vrot.slane %v2325, 5
      %v2328 = vsel %vm1012, %v2323, %v2327
      %v2330 = vshrl.u32 %v2193, 16
      %v2332 = vrot.slane %v2330, 4
      %v2333 = vshll.u32 %v2193, 16
      %v2335 = vrot.slane %v2333, 5
      %v2336 = vor.u32 %v2332, %v2335
      %v2337 = vrot.slane %v2336, 4
      %v2339 = vshll.u32 %v2194, 16
      %v2341 = vrot.slane %v2339, 5
      %v2342 = vsel %vm1012, %v2337, %v2341
      %v2343 = vshrl.u32 %v2194, 16
      %v2345 = vrot.slane %v2343, 4
      %v2346 = vor.u32 %v2345, %v2341
      %v2347 = vrot.slane %v2346, 4
      %v2349 = vshll.u32 %v2221, 16
      %v2351 = vrot.slane %v2349, 5
      %v2352 = vsel %vm1012, %v2347, %v2351
      %v2354 = vshrl.u32 %v2195, 16
      %v2356 = vrot.slane %v2354, 4
      %v2357 = vshll.u32 %v2195, 16
      %v2359 = vrot.slane %v2357, 5
      %v2360 = vor.u32 %v2356, %v2359
      %v2361 = vrot.slane %v2360, 4
      %v2363 = vshll.u32 %v2196, 16
      %v2365 = vrot.slane %v2363, 5
      %v2366 = vsel %vm1012, %v2361, %v2365
      %v2367 = vshrl.u32 %v2196, 16
      %v2369 = vrot.slane %v2367, 4
      %v2370 = vor.u32 %v2369, %v2365
      %v2371 = vrot.slane %v2370, 4
      %v2373 = vshll.u32 %v2222, 16
      %v2375 = vrot.slane %v2373, 5
      %v2376 = vsel %vm1012, %v2371, %v2375
      %v2378 = vshrl.u32 %v2197, 16
      %v2380 = vrot.slane %v2378, 4
      %v2381 = vshll.u32 %v2197, 16
      %v2383 = vrot.slane %v2381, 5
      %v2384 = vor.u32 %v2380, %v2383
      %v2385 = vrot.slane %v2384, 4
      %v2387 = vshll.u32 %v2198, 16
      %v2389 = vrot.slane %v2387, 5
      %v2390 = vsel %vm1012, %v2385, %v2389
      %v2391 = vshrl.u32 %v2198, 16
      %v2393 = vrot.slane %v2391, 4
      %v2394 = vor.u32 %v2393, %v2389
      %v2395 = vrot.slane %v2394, 4
      %v2397 = vshll.u32 %v2223, 16
      %v2399 = vrot.slane %v2397, 5
      %v2400 = vsel %vm1012, %v2395, %v2399
      %v2402 = vshrl.u32 %v2199, 16
      %v2404 = vrot.slane %v2402, 4
      %v2405 = vshll.u32 %v2199, 16
      %v2407 = vrot.slane %v2405, 5
      %v2408 = vor.u32 %v2404, %v2407
      %v2409 = vrot.slane %v2408, 4
      %v2411 = vshll.u32 %v2200, 16
      %v2413 = vrot.slane %v2411, 5
      %v2414 = vsel %vm1012, %v2409, %v2413
      %v2415 = vshrl.u32 %v2200, 16
      %v2417 = vrot.slane %v2415, 4
      %v2418 = vor.u32 %v2417, %v2413
      %v2419 = vrot.slane %v2418, 4
      %v2421 = vshll.u32 %v2224, 16
      %v2423 = vrot.slane %v2421, 5
      %v2424 = vsel %vm1012, %v2419, %v2423
      %v2426 = vshrl.u32 %v2201, 16
      %v2428 = vrot.slane %v2426, 4
      %v2429 = vshll.u32 %v2201, 16
      %v2431 = vrot.slane %v2429, 5
      %v2432 = vor.u32 %v2428, %v2431
      %v2433 = vrot.slane %v2432, 4
      %v2435 = vshll.u32 %v2202, 16
      %v2437 = vrot.slane %v2435, 5
      %v2438 = vsel %vm1012, %v2433, %v2437
      %v2439 = vshrl.u32 %v2202, 16
      %v2441 = vrot.slane %v2439, 4
      %v2442 = vor.u32 %v2441, %v2437
      %v2443 = vrot.slane %v2442, 4
      %v2445 = vshll.u32 %v2225, 16
      %v2447 = vrot.slane %v2445, 5
      %v2448 = vsel %vm1012, %v2443, %v2447
      %v2450 = vshrl.u32 %v2203, 16
      %v2452 = vrot.slane %v2450, 4
      %v2453 = vshll.u32 %v2203, 16
      %v2455 = vrot.slane %v2453, 5
      %v2456 = vor.u32 %v2452, %v2455
      %v2457 = vrot.slane %v2456, 4
      %v2459 = vshll.u32 %v2204, 16
      %v2461 = vrot.slane %v2459, 5
      %v2462 = vsel %vm1012, %v2457, %v2461
      %v2463 = vshrl.u32 %v2204, 16
      %v2465 = vrot.slane %v2463, 4
      %v2466 = vor.u32 %v2465, %v2461
      %v2467 = vrot.slane %v2466, 4
      %v2469 = vshll.u32 %v2226, 16
      %v2471 = vrot.slane %v2469, 5
      %v2472 = vsel %vm1012, %v2467, %v2471
      %v2474 = vshrl.u32 %v2205, 16
      %v2476 = vrot.slane %v2474, 4
      %v2477 = vshll.u32 %v2205, 16
      %v2479 = vrot.slane %v2477, 5
      %v2480 = vor.u32 %v2476, %v2479
      %v2481 = vrot.slane %v2480, 4
      %v2483 = vshll.u32 %v2206, 16
      %v2485 = vrot.slane %v2483, 5
      %v2486 = vsel %vm1012, %v2481, %v2485
      %v2487 = vshrl.u32 %v2206, 16
      %v2489 = vrot.slane %v2487, 4
      %v2490 = vor.u32 %v2489, %v2485
      %v2491 = vrot.slane %v2490, 4
      %v2493 = vshll.u32 %v2227, 16
      %v2495 = vrot.slane %v2493, 5
      %v2496 = vsel %vm1012, %v2491, %v2495
      %v2498 = vshrl.u32 %v2207, 16
      %v2500 = vrot.slane %v2498, 4
      %v2501 = vshll.u32 %v2207, 16
      %v2503 = vrot.slane %v2501, 5
      %v2504 = vor.u32 %v2500, %v2503
      %v2505 = vrot.slane %v2504, 4
      %v2507 = vshll.u32 %v2208, 16
      %v2509 = vrot.slane %v2507, 5
      %v2510 = vsel %vm1012, %v2505, %v2509
      %v2511 = vshrl.u32 %v2208, 16
      %v2513 = vrot.slane %v2511, 4
      %v2514 = vor.u32 %v2513, %v2509
      %v2515 = vrot.slane %v2514, 4
      %v2517 = vshll.u32 %v2228, 16
      %v2519 = vrot.slane %v2517, 5
      %v2520 = vsel %vm1012, %v2515, %v2519
      %v2522 = vshrl.u32 %v2209, 16
      %v2524 = vrot.slane %v2522, 4
      %v2525 = vshll.u32 %v2209, 16
      %v2527 = vrot.slane %v2525, 5
      %v2528 = vor.u32 %v2524, %v2527
      %v2529 = vrot.slane %v2528, 4
      %v2531 = vshll.u32 %v2210, 16
      %v2533 = vrot.slane %v2531, 5
      %v2534 = vsel %vm1012, %v2529, %v2533
      %v2535 = vshrl.u32 %v2210, 16
      %v2537 = vrot.slane %v2535, 4
      %v2538 = vor.u32 %v2537, %v2533
      %v2539 = vrot.slane %v2538, 4
      %v2541 = vshll.u32 %v2229, 16
      %v2543 = vrot.slane %v2541, 5
      %v2544 = vsel %vm1012, %v2539, %v2543
      %v2546 = vshrl.u32 %v2211, 16
      %v2548 = vrot.slane %v2546, 4
      %v2549 = vshll.u32 %v2211, 16
      %v2551 = vrot.slane %v2549, 5
      %v2552 = vor.u32 %v2548, %v2551
      %v2553 = vrot.slane %v2552, 4
      %v2555 = vshll.u32 %v2212, 16
      %v2557 = vrot.slane %v2555, 5
      %v2558 = vsel %vm1012, %v2553, %v2557
      %v2559 = vshrl.u32 %v2212, 16
      %v2561 = vrot.slane %v2559, 4
      %v2562 = vor.u32 %v2561, %v2557
      %v2563 = vrot.slane %v2562, 4
      %v2565 = vshll.u32 %v2230, 16
      %v2567 = vrot.slane %v2565, 5
      %v2568 = vsel %vm1012, %v2563, %v2567
      %v2570 = vshrl.u32 %v2213, 16
      %v2572 = vrot.slane %v2570, 4
      %v2573 = vshll.u32 %v2213, 16
      %v2575 = vrot.slane %v2573, 5
      %v2576 = vor.u32 %v2572, %v2575
      %v2577 = vrot.slane %v2576, 4
      %v2579 = vshll.u32 %v2214, 16
      %v2581 = vrot.slane %v2579, 5
      %v2582 = vsel %vm1012, %v2577, %v2581
      %v2583 = vshrl.u32 %v2214, 16
      %v2585 = vrot.slane %v2583, 4
      %v2586 = vor.u32 %v2585, %v2581
      %v2587 = vrot.slane %v2586, 4
      %v2589 = vshll.u32 %v2231, 16
      %v2591 = vrot.slane %v2589, 5
      %v2592 = vsel %vm1012, %v2587, %v2591
      %v2594 = vshrl.u32 %v2215, 16
      %v2596 = vrot.slane %v2594, 4
      %v2597 = vshll.u32 %v2215, 16
      %v2599 = vrot.slane %v2597, 5
      %v2600 = vor.u32 %v2596, %v2599
      %v2601 = vrot.slane %v2600, 4
      %v2603 = vshll.u32 %v2216, 16
      %v2605 = vrot.slane %v2603, 5
      %v2606 = vsel %vm1012, %v2601, %v2605
      %v2607 = vshrl.u32 %v2216, 16
      %v2609 = vrot.slane %v2607, 4
      %v2610 = vor.u32 %v2609, %v2605
      %v2611 = vrot.slane %v2610, 4
      %v2613 = vshll.u32 %v2232, 16
      %v2615 = vrot.slane %v2613, 5
      %v2616 = vsel %vm1012, %v2611, %v2615
      %v2617 = vld [vmem:[%s2184] sm:$0xe]
      %v2618 = vld [vmem:[%s2184 + $0xc] sm:$0xe]
      %v2619 = vld [vmem:[%s2184 + $0x18] sm:$0xe]
      %v2620 = vld [vmem:[%s2184 + $0x24] sm:$0xe]
      %v2621 = vld [vmem:[%s2184 + $0x30] sm:$0xe]
      %v2622 = vld [vmem:[%s2184 + $0x3c] sm:$0xe]
      %v2623 = vld [vmem:[%s2184 + $0x48] sm:$0xe]
      %v2624 = vld [vmem:[%s2184 + $0x54] sm:$0xe]
      %v2625 = vld [vmem:[%s2184 + $0x60] sm:$0xe]
      %v2626 = vld [vmem:[%s2184 + $0x6c] sm:$0xe]
      %v2627 = vld [vmem:[%s2184 + $0x78] sm:$0xe]
      %v2628 = vld [vmem:[%s2184 + $0x84] sm:$0xe]
      %v2629 = vld [vmem:[%s2184 + $0x90] sm:$0xe]
      %v2630 = vld [vmem:[%s2184 + $0x9c] sm:$0xe]
      %v2631 = vld [vmem:[%s2184 + $0xa8] sm:$0xe]
      %v2632 = vld [vmem:[%s2184 + $0xb4] sm:$0xe]
      %v2681 = vrot.slane %v2617, 5
      %v2682 = vrot.slane %v2681, 4
      %v2683 = vrot.slane %v2186, 5
      %v2684 = vsel %vm1463, %v2682, %v2683
      %v2685 = vrot.slane %v2683, 4
      %v2686 = vrot.slane %v2217, 5
      %v2687 = vsel %vm1463, %v2685, %v2686
      %v2688 = vrot.slane %v2618, 5
      %v2689 = vrot.slane %v2688, 4
      %v2690 = vrot.slane %v2188, 5
      %v2691 = vsel %vm1463, %v2689, %v2690
      %v2692 = vrot.slane %v2690, 4
      %v2693 = vrot.slane %v2218, 5
      %v2694 = vsel %vm1463, %v2692, %v2693
      %v2695 = vrot.slane %v2619, 5
      %v2696 = vrot.slane %v2695, 4
      %v2697 = vrot.slane %v2190, 5
      %v2698 = vsel %vm1463, %v2696, %v2697
      %v2699 = vrot.slane %v2697, 4
      %v2700 = vrot.slane %v2219, 5
      %v2701 = vsel %vm1463, %v2699, %v2700
      %v2702 = vrot.slane %v2620, 5
      %v2703 = vrot.slane %v2702, 4
      %v2704 = vrot.slane %v2192, 5
      %v2705 = vsel %vm1463, %v2703, %v2704
      %v2706 = vrot.slane %v2704, 4
      %v2707 = vrot.slane %v2220, 5
      %v2708 = vsel %vm1463, %v2706, %v2707
      %v2709 = vrot.slane %v2621, 5
      %v2710 = vrot.slane %v2709, 4
      %v2711 = vrot.slane %v2194, 5
      %v2712 = vsel %vm1463, %v2710, %v2711
      %v2713 = vrot.slane %v2711, 4
      %v2714 = vrot.slane %v2221, 5
      %v2715 = vsel %vm1463, %v2713, %v2714
      %v2716 = vrot.slane %v2622, 5
      %v2717 = vrot.slane %v2716, 4
      %v2718 = vrot.slane %v2196, 5
      %v2719 = vsel %vm1463, %v2717, %v2718
      %v2720 = vrot.slane %v2718, 4
      %v2721 = vrot.slane %v2222, 5
      %v2722 = vsel %vm1463, %v2720, %v2721
      %v2723 = vrot.slane %v2623, 5
      %v2724 = vrot.slane %v2723, 4
      %v2725 = vrot.slane %v2198, 5
      %v2726 = vsel %vm1463, %v2724, %v2725
      %v2727 = vrot.slane %v2725, 4
      %v2728 = vrot.slane %v2223, 5
      %v2729 = vsel %vm1463, %v2727, %v2728
      %v2730 = vrot.slane %v2624, 5
      %v2731 = vrot.slane %v2730, 4
      %v2732 = vrot.slane %v2200, 5
      %v2733 = vsel %vm1463, %v2731, %v2732
      %v2734 = vrot.slane %v2732, 4
      %v2735 = vrot.slane %v2224, 5
      %v2736 = vsel %vm1463, %v2734, %v2735
      %v2737 = vrot.slane %v2625, 5
      %v2738 = vrot.slane %v2737, 4
      %v2739 = vrot.slane %v2202, 5
      %v2740 = vsel %vm1463, %v2738, %v2739
      %v2741 = vrot.slane %v2739, 4
      %v2742 = vrot.slane %v2225, 5
      %v2743 = vsel %vm1463, %v2741, %v2742
      %v2744 = vrot.slane %v2626, 5
      %v2745 = vrot.slane %v2744, 4
      %v2746 = vrot.slane %v2204, 5
      %v2747 = vsel %vm1463, %v2745, %v2746
      %v2748 = vrot.slane %v2746, 4
      %v2749 = vrot.slane %v2226, 5
      %v2750 = vsel %vm1463, %v2748, %v2749
      %v2751 = vrot.slane %v2627, 5
      %v2752 = vrot.slane %v2751, 4
      %v2753 = vrot.slane %v2206, 5
      %v2754 = vsel %vm1463, %v2752, %v2753
      %v2755 = vrot.slane %v2753, 4
      %v2756 = vrot.slane %v2227, 5
      %v2757 = vsel %vm1463, %v2755, %v2756
      %v2758 = vrot.slane %v2628, 5
      %v2759 = vrot.slane %v2758, 4
      %v2760 = vrot.slane %v2208, 5
      %v2761 = vsel %vm1463, %v2759, %v2760
      %v2762 = vrot.slane %v2760, 4
      %v2763 = vrot.slane %v2228, 5
      %v2764 = vsel %vm1463, %v2762, %v2763
      %v2765 = vrot.slane %v2629, 5
      %v2766 = vrot.slane %v2765, 4
      %v2767 = vrot.slane %v2210, 5
      %v2768 = vsel %vm1463, %v2766, %v2767
      %v2769 = vrot.slane %v2767, 4
      %v2770 = vrot.slane %v2229, 5
      %v2771 = vsel %vm1463, %v2769, %v2770
      %v2772 = vrot.slane %v2630, 5
      %v2773 = vrot.slane %v2772, 4
      %v2774 = vrot.slane %v2212, 5
      %v2775 = vsel %vm1463, %v2773, %v2774
      %v2776 = vrot.slane %v2774, 4
      %v2777 = vrot.slane %v2230, 5
      %v2778 = vsel %vm1463, %v2776, %v2777
      %v2779 = vrot.slane %v2631, 5
      %v2780 = vrot.slane %v2779, 4
      %v2781 = vrot.slane %v2214, 5
      %v2782 = vsel %vm1463, %v2780, %v2781
      %v2783 = vrot.slane %v2781, 4
      %v2784 = vrot.slane %v2231, 5
      %v2785 = vsel %vm1463, %v2783, %v2784
      %v2786 = vrot.slane %v2632, 5
      %v2787 = vrot.slane %v2786, 4
      %v2788 = vrot.slane %v2216, 5
      %v2789 = vsel %vm1463, %v2787, %v2788
      %v2790 = vrot.slane %v2788, 4
      %v2791 = vrot.slane %v2232, 5
      %v2792 = vsel %vm1463, %v2790, %v2791
      %v2809 = vunpack.c.l.b16 %v962
      %v2810 = vunpack.c.l.b16 %v963
      %v2811 = vunpack.c.l.b16 %v964
      %v2812 = vunpack.c.l.b16 %v965
      %v2813 = vunpack.c.l.b16 %v966
      %v2814 = vunpack.c.l.b16 %v967
      %v2815 = vunpack.c.l.b16 %v968
      %v2816 = vunpack.c.l.b16 %v969
      %v2817 = vunpack.c.l.b16 %v970
      %v2818 = vunpack.c.l.b16 %v971
      %v2819 = vunpack.c.l.b16 %v972
      %v2820 = vunpack.c.l.b16 %v973
      %v2821 = vunpack.c.l.b16 %v974
      %v2822 = vunpack.c.l.b16 %v975
      %v2823 = vunpack.c.l.b16 %v976
      %v2824 = vunpack.c.l.b16 %v977
      %v2825 = vunpack.c.l.b16 %v978
      %v2826 = vunpack.c.l.b16 %v979
      %v2827 = vunpack.c.l.b16 %v980
      %v2828 = vunpack.c.l.b16 %v981
      %v2829 = vunpack.c.l.b16 %v982
      %v2830 = vunpack.c.l.b16 %v983
      %v2831 = vunpack.c.l.b16 %v984
      %v2832 = vunpack.c.l.b16 %v985
      %v2833 = vunpack.c.l.b16 %v986
      %v2834 = vunpack.c.l.b16 %v987
      %v2835 = vunpack.c.l.b16 %v988
      %v2836 = vunpack.c.l.b16 %v989
      %v2837 = vunpack.c.l.b16 %v990
      %v2838 = vunpack.c.l.b16 %v991
      %v2839 = vunpack.c.l.b16 %v992
      %v2840 = vunpack.c.l.b16 %v993
      %v2841 = vpack.c.b16 %v2810, %v2809
      %v2842 = vpack.c.b16 %v2812, %v2811
      %v2843 = vpack.c.b16 %v2814, %v2813
      %v2844 = vpack.c.b16 %v2816, %v2815
      %v2845 = vpack.c.b16 %v2818, %v2817
      %v2846 = vpack.c.b16 %v2820, %v2819
      %v2847 = vpack.c.b16 %v2822, %v2821
      %v2848 = vpack.c.b16 %v2824, %v2823
      %v2849 = vpack.c.b16 %v2826, %v2825
      %v2850 = vpack.c.b16 %v2828, %v2827
      %v2851 = vpack.c.b16 %v2830, %v2829
      %v2852 = vpack.c.b16 %v2832, %v2831
      %v2853 = vpack.c.b16 %v2834, %v2833
      %v2854 = vpack.c.b16 %v2836, %v2835
      %v2855 = vpack.c.b16 %v2838, %v2837
      %v2856 = vpack.c.b16 %v2840, %v2839
      %v2873 = vunpack.c.l.b16 %v1026
      %v2874 = vunpack.c.l.b16 %v1036
      %v2875 = vunpack.c.l.b16 %v1050
      %v2876 = vunpack.c.l.b16 %v1060
      %v2877 = vunpack.c.l.b16 %v1074
      %v2878 = vunpack.c.l.b16 %v1084
      %v2879 = vunpack.c.l.b16 %v1098
      %v2880 = vunpack.c.l.b16 %v1108
      %v2881 = vunpack.c.l.b16 %v1122
      %v2882 = vunpack.c.l.b16 %v1132
      %v2883 = vunpack.c.l.b16 %v1146
      %v2884 = vunpack.c.l.b16 %v1156
      %v2885 = vunpack.c.l.b16 %v1170
      %v2886 = vunpack.c.l.b16 %v1180
      %v2887 = vunpack.c.l.b16 %v1194
      %v2888 = vunpack.c.l.b16 %v1204
      %v2889 = vunpack.c.l.b16 %v1218
      %v2890 = vunpack.c.l.b16 %v1228
      %v2891 = vunpack.c.l.b16 %v1242
      %v2892 = vunpack.c.l.b16 %v1252
      %v2893 = vunpack.c.l.b16 %v1266
      %v2894 = vunpack.c.l.b16 %v1276
      %v2895 = vunpack.c.l.b16 %v1290
      %v2896 = vunpack.c.l.b16 %v1300
      %v2897 = vunpack.c.l.b16 %v1314
      %v2898 = vunpack.c.l.b16 %v1324
      %v2899 = vunpack.c.l.b16 %v1338
      %v2900 = vunpack.c.l.b16 %v1348
      %v2901 = vunpack.c.l.b16 %v1362
      %v2902 = vunpack.c.l.b16 %v1372
      %v2903 = vunpack.c.l.b16 %v1386
      %v2904 = vunpack.c.l.b16 %v1396
      %v2905 = vpack.c.b16 %v2874, %v2873
      %v2906 = vpack.c.b16 %v2876, %v2875
      %v2907 = vpack.c.b16 %v2878, %v2877
      %v2908 = vpack.c.b16 %v2880, %v2879
      %v2909 = vpack.c.b16 %v2882, %v2881
      %v2910 = vpack.c.b16 %v2884, %v2883
      %v2911 = vpack.c.b16 %v2886, %v2885
      %v2912 = vpack.c.b16 %v2888, %v2887
      %v2913 = vpack.c.b16 %v2890, %v2889
      %v2914 = vpack.c.b16 %v2892, %v2891
      %v2915 = vpack.c.b16 %v2894, %v2893
      %v2916 = vpack.c.b16 %v2896, %v2895
      %v2917 = vpack.c.b16 %v2898, %v2897
      %v2918 = vpack.c.b16 %v2900, %v2899
      %v2919 = vpack.c.b16 %v2902, %v2901
      %v2920 = vpack.c.b16 %v2904, %v2903
      %v2937 = vunpack.c.l.b16 %v1467
      %v2938 = vunpack.c.l.b16 %v1470
      %v2939 = vunpack.c.l.b16 %v1474
      %v2940 = vunpack.c.l.b16 %v1477
      %v2941 = vunpack.c.l.b16 %v1481
      %v2942 = vunpack.c.l.b16 %v1484
      %v2943 = vunpack.c.l.b16 %v1488
      %v2944 = vunpack.c.l.b16 %v1491
      %v2945 = vunpack.c.l.b16 %v1495
      %v2946 = vunpack.c.l.b16 %v1498
      %v2947 = vunpack.c.l.b16 %v1502
      %v2948 = vunpack.c.l.b16 %v1505
      %v2949 = vunpack.c.l.b16 %v1509
      %v2950 = vunpack.c.l.b16 %v1512
      %v2951 = vunpack.c.l.b16 %v1516
      %v2952 = vunpack.c.l.b16 %v1519
      %v2953 = vunpack.c.l.b16 %v1523
      %v2954 = vunpack.c.l.b16 %v1526
      %v2955 = vunpack.c.l.b16 %v1530
      %v2956 = vunpack.c.l.b16 %v1533
      %v2957 = vunpack.c.l.b16 %v1537
      %v2958 = vunpack.c.l.b16 %v1540
      %v2959 = vunpack.c.l.b16 %v1544
      %v2960 = vunpack.c.l.b16 %v1547
      %v2961 = vunpack.c.l.b16 %v1551
      %v2962 = vunpack.c.l.b16 %v1554
      %v2963 = vunpack.c.l.b16 %v1558
      %v2964 = vunpack.c.l.b16 %v1561
      %v2965 = vunpack.c.l.b16 %v1565
      %v2966 = vunpack.c.l.b16 %v1568
      %v2967 = vunpack.c.l.b16 %v1572
      %v2968 = vunpack.c.l.b16 %v1575
      %v2969 = vpack.c.b16 %v2938, %v2937
      %v2970 = vpack.c.b16 %v2940, %v2939
      %v2971 = vpack.c.b16 %v2942, %v2941
      %v2972 = vpack.c.b16 %v2944, %v2943
      %v2973 = vpack.c.b16 %v2946, %v2945
      %v2974 = vpack.c.b16 %v2948, %v2947
      %v2975 = vpack.c.b16 %v2950, %v2949
      %v2976 = vpack.c.b16 %v2952, %v2951
      %v2977 = vpack.c.b16 %v2954, %v2953
      %v2978 = vpack.c.b16 %v2956, %v2955
      %v2979 = vpack.c.b16 %v2958, %v2957
      %v2980 = vpack.c.b16 %v2960, %v2959
      %v2981 = vpack.c.b16 %v2962, %v2961
      %v2982 = vpack.c.b16 %v2964, %v2963
      %v2983 = vpack.c.b16 %v2966, %v2965
      %v2984 = vpack.c.b16 %v2968, %v2967
      %v3017 = vunpack.c.l.b16 %v1576
      %v3018 = vunpack.c.l.b16 %v1577
      %v3019 = vunpack.c.l.b16 %v1578
      %v3020 = vunpack.c.l.b16 %v1579
      %v3021 = vunpack.c.l.b16 %v1580
      %v3022 = vunpack.c.l.b16 %v1581
      %v3023 = vunpack.c.l.b16 %v1582
      %v3024 = vunpack.c.l.b16 %v1583
      %v3025 = vunpack.c.l.b16 %v1584
      %v3026 = vunpack.c.l.b16 %v1585
      %v3027 = vunpack.c.l.b16 %v1586
      %v3028 = vunpack.c.l.b16 %v1587
      %v3029 = vunpack.c.l.b16 %v1588
      %v3030 = vunpack.c.l.b16 %v1589
      %v3031 = vunpack.c.l.b16 %v1590
      %v3032 = vunpack.c.l.b16 %v1591
      %v3033 = vunpack.c.l.b16 %v1592
      %v3034 = vunpack.c.l.b16 %v1593
      %v3035 = vunpack.c.l.b16 %v1594
      %v3036 = vunpack.c.l.b16 %v1595
      %v3037 = vunpack.c.l.b16 %v1596
      %v3038 = vunpack.c.l.b16 %v1597
      %v3039 = vunpack.c.l.b16 %v1598
      %v3040 = vunpack.c.l.b16 %v1599
      %v3041 = vunpack.c.l.b16 %v1600
      %v3042 = vunpack.c.l.b16 %v1601
      %v3043 = vunpack.c.l.b16 %v1602
      %v3044 = vunpack.c.l.b16 %v1603
      %v3045 = vunpack.c.l.b16 %v1604
      %v3046 = vunpack.c.l.b16 %v1605
      %v3047 = vunpack.c.l.b16 %v1606
      %v3048 = vunpack.c.l.b16 %v1607
      %v3049 = vpack.c.b16 %v3018, %v3017
      %v3050 = vpack.c.b16 %v3020, %v3019
      %v3051 = vpack.c.b16 %v3022, %v3021
      %v3052 = vpack.c.b16 %v3024, %v3023
      %v3053 = vpack.c.b16 %v3026, %v3025
      %v3054 = vpack.c.b16 %v3028, %v3027
      %v3055 = vpack.c.b16 %v3030, %v3029
      %v3056 = vpack.c.b16 %v3032, %v3031
      %v3057 = vpack.c.b16 %v3034, %v3033
      %v3058 = vpack.c.b16 %v3036, %v3035
      %v3059 = vpack.c.b16 %v3038, %v3037
      %v3060 = vpack.c.b16 %v3040, %v3039
      %v3061 = vpack.c.b16 %v3042, %v3041
      %v3062 = vpack.c.b16 %v3044, %v3043
      %v3063 = vpack.c.b16 %v3046, %v3045
      %v3064 = vpack.c.b16 %v3048, %v3047
      %v3081 = vunpack.c.l.b16 %v1637
      %v3082 = vunpack.c.l.b16 %v1647
      %v3083 = vunpack.c.l.b16 %v1661
      %v3084 = vunpack.c.l.b16 %v1671
      %v3085 = vunpack.c.l.b16 %v1685
      %v3086 = vunpack.c.l.b16 %v1695
      %v3087 = vunpack.c.l.b16 %v1709
      %v3088 = vunpack.c.l.b16 %v1719
      %v3089 = vunpack.c.l.b16 %v1733
      %v3090 = vunpack.c.l.b16 %v1743
      %v3091 = vunpack.c.l.b16 %v1757
      %v3092 = vunpack.c.l.b16 %v1767
      %v3093 = vunpack.c.l.b16 %v1781
      %v3094 = vunpack.c.l.b16 %v1791
      %v3095 = vunpack.c.l.b16 %v1805
      %v3096 = vunpack.c.l.b16 %v1815
      %v3097 = vunpack.c.l.b16 %v1829
      %v3098 = vunpack.c.l.b16 %v1839
      %v3099 = vunpack.c.l.b16 %v1853
      %v3100 = vunpack.c.l.b16 %v1863
      %v3101 = vunpack.c.l.b16 %v1877
      %v3102 = vunpack.c.l.b16 %v1887
      %v3103 = vunpack.c.l.b16 %v1901
      %v3104 = vunpack.c.l.b16 %v1911
      %v3105 = vunpack.c.l.b16 %v1925
      %v3106 = vunpack.c.l.b16 %v1935
      %v3107 = vunpack.c.l.b16 %v1949
      %v3108 = vunpack.c.l.b16 %v1959
      %v3109 = vunpack.c.l.b16 %v1973
      %v3110 = vunpack.c.l.b16 %v1983
      %v3111 = vunpack.c.l.b16 %v1997
      %v3112 = vunpack.c.l.b16 %v2007
      %v3113 = vpack.c.b16 %v3082, %v3081
      %v3114 = vpack.c.b16 %v3084, %v3083
      %v3115 = vpack.c.b16 %v3086, %v3085
      %v3116 = vpack.c.b16 %v3088, %v3087
      %v3117 = vpack.c.b16 %v3090, %v3089
      %v3118 = vpack.c.b16 %v3092, %v3091
      %v3119 = vpack.c.b16 %v3094, %v3093
      %v3120 = vpack.c.b16 %v3096, %v3095
      %v3121 = vpack.c.b16 %v3098, %v3097
      %v3122 = vpack.c.b16 %v3100, %v3099
      %v3123 = vpack.c.b16 %v3102, %v3101
      %v3124 = vpack.c.b16 %v3104, %v3103
      %v3125 = vpack.c.b16 %v3106, %v3105
      %v3126 = vpack.c.b16 %v3108, %v3107
      %v3127 = vpack.c.b16 %v3110, %v3109
      %v3128 = vpack.c.b16 %v3112, %v3111
      %v3145 = vunpack.c.l.b16 %v2075
      %v3146 = vunpack.c.l.b16 %v2078
      %v3147 = vunpack.c.l.b16 %v2082
      %v3148 = vunpack.c.l.b16 %v2085
      %v3149 = vunpack.c.l.b16 %v2089
      %v3150 = vunpack.c.l.b16 %v2092
      %v3151 = vunpack.c.l.b16 %v2096
      %v3152 = vunpack.c.l.b16 %v2099
      %v3153 = vunpack.c.l.b16 %v2103
      %v3154 = vunpack.c.l.b16 %v2106
      %v3155 = vunpack.c.l.b16 %v2110
      %v3156 = vunpack.c.l.b16 %v2113
      %v3157 = vunpack.c.l.b16 %v2117
      %v3158 = vunpack.c.l.b16 %v2120
      %v3159 = vunpack.c.l.b16 %v2124
      %v3160 = vunpack.c.l.b16 %v2127
      %v3161 = vunpack.c.l.b16 %v2131
      %v3162 = vunpack.c.l.b16 %v2134
      %v3163 = vunpack.c.l.b16 %v2138
      %v3164 = vunpack.c.l.b16 %v2141
      %v3165 = vunpack.c.l.b16 %v2145
      %v3166 = vunpack.c.l.b16 %v2148
      %v3167 = vunpack.c.l.b16 %v2152
      %v3168 = vunpack.c.l.b16 %v2155
      %v3169 = vunpack.c.l.b16 %v2159
      %v3170 = vunpack.c.l.b16 %v2162
      %v3171 = vunpack.c.l.b16 %v2166
      %v3172 = vunpack.c.l.b16 %v2169
      %v3173 = vunpack.c.l.b16 %v2173
      %v3174 = vunpack.c.l.b16 %v2176
      %v3175 = vunpack.c.l.b16 %v2180
      %v3176 = vunpack.c.l.b16 %v2183
      %v3177 = vpack.c.b16 %v3146, %v3145
      %v3178 = vpack.c.b16 %v3148, %v3147
      %v3179 = vpack.c.b16 %v3150, %v3149
      %v3180 = vpack.c.b16 %v3152, %v3151
      %v3181 = vpack.c.b16 %v3154, %v3153
      %v3182 = vpack.c.b16 %v3156, %v3155
      %v3183 = vpack.c.b16 %v3158, %v3157
      %v3184 = vpack.c.b16 %v3160, %v3159
      %v3185 = vpack.c.b16 %v3162, %v3161
      %v3186 = vpack.c.b16 %v3164, %v3163
      %v3187 = vpack.c.b16 %v3166, %v3165
      %v3188 = vpack.c.b16 %v3168, %v3167
      %v3189 = vpack.c.b16 %v3170, %v3169
      %v3190 = vpack.c.b16 %v3172, %v3171
      %v3191 = vpack.c.b16 %v3174, %v3173
      %v3192 = vpack.c.b16 %v3176, %v3175
      %v3225 = vunpack.c.l.b16 %v2185
      %v3226 = vunpack.c.l.b16 %v2186
      %v3227 = vunpack.c.l.b16 %v2187
      %v3228 = vunpack.c.l.b16 %v2188
      %v3229 = vunpack.c.l.b16 %v2189
      %v3230 = vunpack.c.l.b16 %v2190
      %v3231 = vunpack.c.l.b16 %v2191
      %v3232 = vunpack.c.l.b16 %v2192
      %v3233 = vunpack.c.l.b16 %v2193
      %v3234 = vunpack.c.l.b16 %v2194
      %v3235 = vunpack.c.l.b16 %v2195
      %v3236 = vunpack.c.l.b16 %v2196
      %v3237 = vunpack.c.l.b16 %v2197
      %v3238 = vunpack.c.l.b16 %v2198
      %v3239 = vunpack.c.l.b16 %v2199
      %v3240 = vunpack.c.l.b16 %v2200
      %v3241 = vunpack.c.l.b16 %v2201
      %v3242 = vunpack.c.l.b16 %v2202
      %v3243 = vunpack.c.l.b16 %v2203
      %v3244 = vunpack.c.l.b16 %v2204
      %v3245 = vunpack.c.l.b16 %v2205
      %v3246 = vunpack.c.l.b16 %v2206
      %v3247 = vunpack.c.l.b16 %v2207
      %v3248 = vunpack.c.l.b16 %v2208
      %v3249 = vunpack.c.l.b16 %v2209
      %v3250 = vunpack.c.l.b16 %v2210
      %v3251 = vunpack.c.l.b16 %v2211
      %v3252 = vunpack.c.l.b16 %v2212
      %v3253 = vunpack.c.l.b16 %v2213
      %v3254 = vunpack.c.l.b16 %v2214
      %v3255 = vunpack.c.l.b16 %v2215
      %v3256 = vunpack.c.l.b16 %v2216
      %v3257 = vpack.c.b16 %v3226, %v3225
      %v3258 = vpack.c.b16 %v3228, %v3227
      %v3259 = vpack.c.b16 %v3230, %v3229
      %v3260 = vpack.c.b16 %v3232, %v3231
      %v3261 = vpack.c.b16 %v3234, %v3233
      %v3262 = vpack.c.b16 %v3236, %v3235
      %v3263 = vpack.c.b16 %v3238, %v3237
      %v3264 = vpack.c.b16 %v3240, %v3239
      %v3265 = vpack.c.b16 %v3242, %v3241
      %v3266 = vpack.c.b16 %v3244, %v3243
      %v3267 = vpack.c.b16 %v3246, %v3245
      %v3268 = vpack.c.b16 %v3248, %v3247
      %v3269 = vpack.c.b16 %v3250, %v3249
      %v3270 = vpack.c.b16 %v3252, %v3251
      %v3271 = vpack.c.b16 %v3254, %v3253
      %v3272 = vpack.c.b16 %v3256, %v3255
      %v3289 = vunpack.c.l.b16 %v2246
      %v3290 = vunpack.c.l.b16 %v2256
      %v3291 = vunpack.c.l.b16 %v2270
      %v3292 = vunpack.c.l.b16 %v2280
      %v3293 = vunpack.c.l.b16 %v2294
      %v3294 = vunpack.c.l.b16 %v2304
      %v3295 = vunpack.c.l.b16 %v2318
      %v3296 = vunpack.c.l.b16 %v2328
      %v3297 = vunpack.c.l.b16 %v2342
      %v3298 = vunpack.c.l.b16 %v2352
      %v3299 = vunpack.c.l.b16 %v2366
      %v3300 = vunpack.c.l.b16 %v2376
      %v3301 = vunpack.c.l.b16 %v2390
      %v3302 = vunpack.c.l.b16 %v2400
      %v3303 = vunpack.c.l.b16 %v2414
      %v3304 = vunpack.c.l.b16 %v2424
      %v3305 = vunpack.c.l.b16 %v2438
      %v3306 = vunpack.c.l.b16 %v2448
      %v3307 = vunpack.c.l.b16 %v2462
      %v3308 = vunpack.c.l.b16 %v2472
      %v3309 = vunpack.c.l.b16 %v2486
      %v3310 = vunpack.c.l.b16 %v2496
      %v3311 = vunpack.c.l.b16 %v2510
      %v3312 = vunpack.c.l.b16 %v2520
      %v3313 = vunpack.c.l.b16 %v2534
      %v3314 = vunpack.c.l.b16 %v2544
      %v3315 = vunpack.c.l.b16 %v2558
      %v3316 = vunpack.c.l.b16 %v2568
      %v3317 = vunpack.c.l.b16 %v2582
      %v3318 = vunpack.c.l.b16 %v2592
      %v3319 = vunpack.c.l.b16 %v2606
      %v3320 = vunpack.c.l.b16 %v2616
      %v3321 = vpack.c.b16 %v3290, %v3289
      %v3322 = vpack.c.b16 %v3292, %v3291
      %v3323 = vpack.c.b16 %v3294, %v3293
      %v3324 = vpack.c.b16 %v3296, %v3295
      %v3325 = vpack.c.b16 %v3298, %v3297
      %v3326 = vpack.c.b16 %v3300, %v3299
      %v3327 = vpack.c.b16 %v3302, %v3301
      %v3328 = vpack.c.b16 %v3304, %v3303
      %v3329 = vpack.c.b16 %v3306, %v3305
      %v3330 = vpack.c.b16 %v3308, %v3307
      %v3331 = vpack.c.b16 %v3310, %v3309
      %v3332 = vpack.c.b16 %v3312, %v3311
      %v3333 = vpack.c.b16 %v3314, %v3313
      %v3334 = vpack.c.b16 %v3316, %v3315
      %v3335 = vpack.c.b16 %v3318, %v3317
      %v3336 = vpack.c.b16 %v3320, %v3319
      %v3353 = vunpack.c.l.b16 %v2684
      %v3354 = vunpack.c.l.b16 %v2687
      %v3355 = vunpack.c.l.b16 %v2691
      %v3356 = vunpack.c.l.b16 %v2694
      %v3357 = vunpack.c.l.b16 %v2698
      %v3358 = vunpack.c.l.b16 %v2701
      %v3359 = vunpack.c.l.b16 %v2705
      %v3360 = vunpack.c.l.b16 %v2708
      %v3361 = vunpack.c.l.b16 %v2712
      %v3362 = vunpack.c.l.b16 %v2715
      %v3363 = vunpack.c.l.b16 %v2719
      %v3364 = vunpack.c.l.b16 %v2722
      %v3365 = vunpack.c.l.b16 %v2726
      %v3366 = vunpack.c.l.b16 %v2729
      %v3367 = vunpack.c.l.b16 %v2733
      %v3368 = vunpack.c.l.b16 %v2736
      %v3369 = vunpack.c.l.b16 %v2740
      %v3370 = vunpack.c.l.b16 %v2743
      %v3371 = vunpack.c.l.b16 %v2747
      %v3372 = vunpack.c.l.b16 %v2750
      %v3373 = vunpack.c.l.b16 %v2754
      %v3374 = vunpack.c.l.b16 %v2757
      %v3375 = vunpack.c.l.b16 %v2761
      %v3376 = vunpack.c.l.b16 %v2764
      %v3377 = vunpack.c.l.b16 %v2768
      %v3378 = vunpack.c.l.b16 %v2771
      %v3379 = vunpack.c.l.b16 %v2775
      %v3380 = vunpack.c.l.b16 %v2778
      %v3381 = vunpack.c.l.b16 %v2782
      %v3382 = vunpack.c.l.b16 %v2785
      %v3383 = vunpack.c.l.b16 %v2789
      %v3384 = vunpack.c.l.b16 %v2792
      %v3385 = vpack.c.b16 %v3354, %v3353
      %v3386 = vpack.c.b16 %v3356, %v3355
      %v3387 = vpack.c.b16 %v3358, %v3357
      %v3388 = vpack.c.b16 %v3360, %v3359
      %v3389 = vpack.c.b16 %v3362, %v3361
      %v3390 = vpack.c.b16 %v3364, %v3363
      %v3391 = vpack.c.b16 %v3366, %v3365
      %v3392 = vpack.c.b16 %v3368, %v3367
      %v3393 = vpack.c.b16 %v3370, %v3369
      %v3394 = vpack.c.b16 %v3372, %v3371
      %v3395 = vpack.c.b16 %v3374, %v3373
      %v3396 = vpack.c.b16 %v3376, %v3375
      %v3397 = vpack.c.b16 %v3378, %v3377
      %v3398 = vpack.c.b16 %v3380, %v3379
      %v3399 = vpack.c.b16 %v3382, %v3381
      %v3400 = vpack.c.b16 %v3384, %v3383
      %v3417 = vld [vmem:[%s3] sm:$0xf]
      %v3418 = vld [vmem:[%s3 + $0x4] sm:$0xf]
      %v3419 = vld [vmem:[%s3 + $0x8] sm:$0xf]
      %v3420 = vld [vmem:[%s3 + $0xc] sm:$0xf]
      %v3421 = vld [vmem:[%s3 + $0x10] sm:$0xf]
      %v3422 = vld [vmem:[%s3 + $0x14] sm:$0xf]
      %v3423 = vld [vmem:[%s3 + $0x18] sm:$0xf]
      %v3424 = vld [vmem:[%s3 + $0x1c] sm:$0xf]
      %v3425 = vld [vmem:[%s3 + $0x20] sm:$0xf]
      %v3426 = vld [vmem:[%s3 + $0x24] sm:$0xf]
      %v3427 = vld [vmem:[%s3 + $0x28] sm:$0xf]
      %v3428 = vld [vmem:[%s3 + $0x2c] sm:$0xf]
      %v3429 = vld [vmem:[%s3 + $0x30] sm:$0xf]
      %v3430 = vld [vmem:[%s3 + $0x34] sm:$0xf]
      %v3431 = vld [vmem:[%s3 + $0x38] sm:$0xf]
      %v3432 = vld [vmem:[%s3 + $0x3c] sm:$0xf]
      %v3433 = vld [vmem:[%s3 + $0x40] sm:$0xf]
      %v3434 = vld [vmem:[%s3 + $0x44] sm:$0xf]
      %v3435 = vld [vmem:[%s3 + $0x48] sm:$0xf]
      %v3436 = vld [vmem:[%s3 + $0x4c] sm:$0xf]
      %v3437 = vld [vmem:[%s3 + $0x50] sm:$0xf]
      %v3438 = vld [vmem:[%s3 + $0x54] sm:$0xf]
      %v3439 = vld [vmem:[%s3 + $0x58] sm:$0xf]
      %v3440 = vld [vmem:[%s3 + $0x5c] sm:$0xf]
      %v3441 = vld [vmem:[%s3 + $0x60] sm:$0xf]
      %v3442 = vld [vmem:[%s3 + $0x64] sm:$0xf]
      %v3443 = vld [vmem:[%s3 + $0x68] sm:$0xf]
      %v3444 = vld [vmem:[%s3 + $0x6c] sm:$0xf]
      %v3445 = vld [vmem:[%s3 + $0x70] sm:$0xf]
      %v3446 = vld [vmem:[%s3 + $0x74] sm:$0xf]
      %v3447 = vld [vmem:[%s3 + $0x78] sm:$0xf]
      %v3448 = vld [vmem:[%s3 + $0x7c] sm:$0xf]
      %v3449 = vld [vmem:[%s3 + $0x80] sm:$0xf]
      %v3450 = vld [vmem:[%s3 + $0x84] sm:$0xf]
      %v3451 = vld [vmem:[%s3 + $0x88] sm:$0xf]
      %v3452 = vld [vmem:[%s3 + $0x8c] sm:$0xf]
      %v3453 = vld [vmem:[%s3 + $0x90] sm:$0xf]
      %v3454 = vld [vmem:[%s3 + $0x94] sm:$0xf]
      %v3455 = vld [vmem:[%s3 + $0x98] sm:$0xf]
      %v3456 = vld [vmem:[%s3 + $0x9c] sm:$0xf]
      %v3457 = vld [vmem:[%s3 + $0xa0] sm:$0xf]
      %v3458 = vld [vmem:[%s3 + $0xa4] sm:$0xf]
      %v3459 = vld [vmem:[%s3 + $0xa8] sm:$0xf]
      %v3460 = vld [vmem:[%s3 + $0xac] sm:$0xf]
      %v3461 = vld [vmem:[%s3 + $0xb0] sm:$0xf]
      %v3462 = vld [vmem:[%s3 + $0xb4] sm:$0xf]
      %v3463 = vld [vmem:[%s3 + $0xb8] sm:$0xf]
      %v3464 = vld [vmem:[%s3 + $0xbc] sm:$0xf]
      %v3465 = vld [vmem:[%s3 + $0xc0] sm:$0xf]
      %v3466 = vld [vmem:[%s3 + $0xc4] sm:$0xf]
      %v3467 = vld [vmem:[%s3 + $0xc8] sm:$0xf]
      %v3468 = vld [vmem:[%s3 + $0xcc] sm:$0xf]
      %v3469 = vld [vmem:[%s3 + $0xd0] sm:$0xf]
      %v3470 = vld [vmem:[%s3 + $0xd4] sm:$0xf]
      %v3471 = vld [vmem:[%s3 + $0xd8] sm:$0xf]
      %v3472 = vld [vmem:[%s3 + $0xdc] sm:$0xf]
      %v3473 = vld [vmem:[%s3 + $0xe0] sm:$0xf]
      %v3474 = vld [vmem:[%s3 + $0xe4] sm:$0xf]
      %v3475 = vld [vmem:[%s3 + $0xe8] sm:$0xf]
      %v3476 = vld [vmem:[%s3 + $0xec] sm:$0xf]
      %v3477 = vld [vmem:[%s3 + $0xf0] sm:$0xf]
      %v3478 = vld [vmem:[%s3 + $0xf4] sm:$0xf]
      %v3479 = vld [vmem:[%s3 + $0xf8] sm:$0xf]
      %v3480 = vld [vmem:[%s3 + $0xfc] sm:$0xf]
      %v3481 = vld [vmem:[%s3 + $0x100] sm:$0xf]
      %v3482 = vld [vmem:[%s3 + $0x104] sm:$0xf]
      %v3483 = vld [vmem:[%s3 + $0x108] sm:$0xf]
      %v3484 = vld [vmem:[%s3 + $0x10c] sm:$0xf]
      %v3485 = vld [vmem:[%s3 + $0x110] sm:$0xf]
      %v3486 = vld [vmem:[%s3 + $0x114] sm:$0xf]
      %v3487 = vld [vmem:[%s3 + $0x118] sm:$0xf]
      %v3488 = vld [vmem:[%s3 + $0x11c] sm:$0xf]
      %v3489 = vld [vmem:[%s3 + $0x120] sm:$0xf]
      %v3490 = vld [vmem:[%s3 + $0x124] sm:$0xf]
      %v3491 = vld [vmem:[%s3 + $0x128] sm:$0xf]
      %v3492 = vld [vmem:[%s3 + $0x12c] sm:$0xf]
      %v3493 = vld [vmem:[%s3 + $0x130] sm:$0xf]
      %v3494 = vld [vmem:[%s3 + $0x134] sm:$0xf]
      %v3495 = vld [vmem:[%s3 + $0x138] sm:$0xf]
      %v3496 = vld [vmem:[%s3 + $0x13c] sm:$0xf]
      %v3497 = vld [vmem:[%s3 + $0x140] sm:$0xf]
      %v3498 = vld [vmem:[%s3 + $0x144] sm:$0xf]
      %v3499 = vld [vmem:[%s3 + $0x148] sm:$0xf]
      %v3500 = vld [vmem:[%s3 + $0x14c] sm:$0xf]
      %v3501 = vld [vmem:[%s3 + $0x150] sm:$0xf]
      %v3502 = vld [vmem:[%s3 + $0x154] sm:$0xf]
      %v3503 = vld [vmem:[%s3 + $0x158] sm:$0xf]
      %v3504 = vld [vmem:[%s3 + $0x15c] sm:$0xf]
      %v3505 = vld [vmem:[%s3 + $0x160] sm:$0xf]
      %v3506 = vld [vmem:[%s3 + $0x164] sm:$0xf]
      %v3507 = vld [vmem:[%s3 + $0x168] sm:$0xf]
      %v3508 = vld [vmem:[%s3 + $0x16c] sm:$0xf]
      %v3509 = vld [vmem:[%s3 + $0x170] sm:$0xf]
      %v3510 = vld [vmem:[%s3 + $0x174] sm:$0xf]
      %v3511 = vld [vmem:[%s3 + $0x178] sm:$0xf]
      %v3512 = vld [vmem:[%s3 + $0x17c] sm:$0xf]
      %v3513 = vld [vmem:[%s3 + $0x180] sm:$0xf]
      %v3514 = vld [vmem:[%s3 + $0x184] sm:$0xf]
      %v3515 = vld [vmem:[%s3 + $0x188] sm:$0xf]
      %v3516 = vld [vmem:[%s3 + $0x18c] sm:$0xf]
      %v3517 = vld [vmem:[%s3 + $0x190] sm:$0xf]
      %v3518 = vld [vmem:[%s3 + $0x194] sm:$0xf]
      %v3519 = vld [vmem:[%s3 + $0x198] sm:$0xf]
      %v3520 = vld [vmem:[%s3 + $0x19c] sm:$0xf]
      %v3521 = vld [vmem:[%s3 + $0x1a0] sm:$0xf]
      %v3522 = vld [vmem:[%s3 + $0x1a4] sm:$0xf]
      %v3523 = vld [vmem:[%s3 + $0x1a8] sm:$0xf]
      %v3524 = vld [vmem:[%s3 + $0x1ac] sm:$0xf]
      %v3525 = vld [vmem:[%s3 + $0x1b0] sm:$0xf]
      %v3526 = vld [vmem:[%s3 + $0x1b4] sm:$0xf]
      %v3527 = vld [vmem:[%s3 + $0x1b8] sm:$0xf]
      %v3528 = vld [vmem:[%s3 + $0x1bc] sm:$0xf]
      %v3529 = vld [vmem:[%s3 + $0x1c0] sm:$0xf]
      %v3530 = vld [vmem:[%s3 + $0x1c4] sm:$0xf]
      %v3531 = vld [vmem:[%s3 + $0x1c8] sm:$0xf]
      %v3532 = vld [vmem:[%s3 + $0x1cc] sm:$0xf]
      %v3533 = vld [vmem:[%s3 + $0x1d0] sm:$0xf]
      %v3534 = vld [vmem:[%s3 + $0x1d4] sm:$0xf]
      %v3535 = vld [vmem:[%s3 + $0x1d8] sm:$0xf]
      %v3536 = vld [vmem:[%s3 + $0x1dc] sm:$0xf]
      %v3537 = vld [vmem:[%s3 + $0x1e0] sm:$0xf]
      %v3538 = vld [vmem:[%s3 + $0x1e4] sm:$0xf]
      %v3539 = vld [vmem:[%s3 + $0x1e8] sm:$0xf]
      %v3540 = vld [vmem:[%s3 + $0x1ec] sm:$0xf]
      %v3541 = vld [vmem:[%s3 + $0x1f0] sm:$0xf]
      %v3542 = vld [vmem:[%s3 + $0x1f4] sm:$0xf]
      %v3543 = vld [vmem:[%s3 + $0x1f8] sm:$0xf]
      %v3544 = vld [vmem:[%s3 + $0x1fc] sm:$0xf]
      %v3545 = vld [vmem:[%s3 + $0x200] sm:$0xf]
      %v3546 = vld [vmem:[%s3 + $0x204] sm:$0xf]
      %v3547 = vld [vmem:[%s3 + $0x208] sm:$0xf]
      %v3548 = vld [vmem:[%s3 + $0x20c] sm:$0xf]
      %v3549 = vld [vmem:[%s3 + $0x210] sm:$0xf]
      %v3550 = vld [vmem:[%s3 + $0x214] sm:$0xf]
      %v3551 = vld [vmem:[%s3 + $0x218] sm:$0xf]
      %v3552 = vld [vmem:[%s3 + $0x21c] sm:$0xf]
      %v3553 = vld [vmem:[%s3 + $0x220] sm:$0xf]
      %v3554 = vld [vmem:[%s3 + $0x224] sm:$0xf]
      %v3555 = vld [vmem:[%s3 + $0x228] sm:$0xf]
      %v3556 = vld [vmem:[%s3 + $0x22c] sm:$0xf]
      %v3557 = vld [vmem:[%s3 + $0x230] sm:$0xf]
      %v3558 = vld [vmem:[%s3 + $0x234] sm:$0xf]
      %v3559 = vld [vmem:[%s3 + $0x238] sm:$0xf]
      %v3560 = vld [vmem:[%s3 + $0x23c] sm:$0xf]
      %v3705 = vunpack.c.l.b16 %v3417
      %v3706 = vunpack.c.l.b16 %v3418
      %v3707 = vunpack.c.l.b16 %v3419
      %v3708 = vunpack.c.l.b16 %v3420
      %v3709 = vunpack.c.l.b16 %v3421
      %v3710 = vunpack.c.l.b16 %v3422
      %v3711 = vunpack.c.l.b16 %v3423
      %v3712 = vunpack.c.l.b16 %v3424
      %v3713 = vunpack.c.l.b16 %v3425
      %v3714 = vunpack.c.l.b16 %v3426
      %v3715 = vunpack.c.l.b16 %v3427
      %v3716 = vunpack.c.l.b16 %v3428
      %v3717 = vunpack.c.l.b16 %v3429
      %v3718 = vunpack.c.l.b16 %v3430
      %v3719 = vunpack.c.l.b16 %v3431
      %v3720 = vunpack.c.l.b16 %v3432
      %v3721 = vunpack.c.l.b16 %v3433
      %v3722 = vunpack.c.l.b16 %v3434
      %v3723 = vunpack.c.l.b16 %v3435
      %v3724 = vunpack.c.l.b16 %v3436
      %v3725 = vunpack.c.l.b16 %v3437
      %v3726 = vunpack.c.l.b16 %v3438
      %v3727 = vunpack.c.l.b16 %v3439
      %v3728 = vunpack.c.l.b16 %v3440
      %v3729 = vunpack.c.l.b16 %v3441
      %v3730 = vunpack.c.l.b16 %v3442
      %v3731 = vunpack.c.l.b16 %v3443
      %v3732 = vunpack.c.l.b16 %v3444
      %v3733 = vunpack.c.l.b16 %v3445
      %v3734 = vunpack.c.l.b16 %v3446
      %v3735 = vunpack.c.l.b16 %v3447
      %v3736 = vunpack.c.l.b16 %v3448
      %v3737 = vunpack.c.l.b16 %v3449
      %v3738 = vunpack.c.l.b16 %v3450
      %v3739 = vunpack.c.l.b16 %v3451
      %v3740 = vunpack.c.l.b16 %v3452
      %v3741 = vunpack.c.l.b16 %v3453
      %v3742 = vunpack.c.l.b16 %v3454
      %v3743 = vunpack.c.l.b16 %v3455
      %v3744 = vunpack.c.l.b16 %v3456
      %v3745 = vunpack.c.l.b16 %v3457
      %v3746 = vunpack.c.l.b16 %v3458
      %v3747 = vunpack.c.l.b16 %v3459
      %v3748 = vunpack.c.l.b16 %v3460
      %v3749 = vunpack.c.l.b16 %v3461
      %v3750 = vunpack.c.l.b16 %v3462
      %v3751 = vunpack.c.l.b16 %v3463
      %v3752 = vunpack.c.l.b16 %v3464
      %v3753 = vunpack.c.l.b16 %v3465
      %v3754 = vunpack.c.l.b16 %v3466
      %v3755 = vunpack.c.l.b16 %v3467
      %v3756 = vunpack.c.l.b16 %v3468
      %v3757 = vunpack.c.l.b16 %v3469
      %v3758 = vunpack.c.l.b16 %v3470
      %v3759 = vunpack.c.l.b16 %v3471
      %v3760 = vunpack.c.l.b16 %v3472
      %v3761 = vunpack.c.l.b16 %v3473
      %v3762 = vunpack.c.l.b16 %v3474
      %v3763 = vunpack.c.l.b16 %v3475
      %v3764 = vunpack.c.l.b16 %v3476
      %v3765 = vunpack.c.l.b16 %v3477
      %v3766 = vunpack.c.l.b16 %v3478
      %v3767 = vunpack.c.l.b16 %v3479
      %v3768 = vunpack.c.l.b16 %v3480
      %v3769 = vunpack.c.l.b16 %v3481
      %v3770 = vunpack.c.l.b16 %v3482
      %v3771 = vunpack.c.l.b16 %v3483
      %v3772 = vunpack.c.l.b16 %v3484
      %v3773 = vunpack.c.l.b16 %v3485
      %v3774 = vunpack.c.l.b16 %v3486
      %v3775 = vunpack.c.l.b16 %v3487
      %v3776 = vunpack.c.l.b16 %v3488
      %v3777 = vunpack.c.l.b16 %v3489
      %v3778 = vunpack.c.l.b16 %v3490
      %v3779 = vunpack.c.l.b16 %v3491
      %v3780 = vunpack.c.l.b16 %v3492
      %v3781 = vunpack.c.l.b16 %v3493
      %v3782 = vunpack.c.l.b16 %v3494
      %v3783 = vunpack.c.l.b16 %v3495
      %v3784 = vunpack.c.l.b16 %v3496
      %v3785 = vunpack.c.l.b16 %v3497
      %v3786 = vunpack.c.l.b16 %v3498
      %v3787 = vunpack.c.l.b16 %v3499
      %v3788 = vunpack.c.l.b16 %v3500
      %v3789 = vunpack.c.l.b16 %v3501
      %v3790 = vunpack.c.l.b16 %v3502
      %v3791 = vunpack.c.l.b16 %v3503
      %v3792 = vunpack.c.l.b16 %v3504
      %v3793 = vunpack.c.l.b16 %v3505
      %v3794 = vunpack.c.l.b16 %v3506
      %v3795 = vunpack.c.l.b16 %v3507
      %v3796 = vunpack.c.l.b16 %v3508
      %v3797 = vunpack.c.l.b16 %v3509
      %v3798 = vunpack.c.l.b16 %v3510
      %v3799 = vunpack.c.l.b16 %v3511
      %v3800 = vunpack.c.l.b16 %v3512
      %v3801 = vunpack.c.l.b16 %v3513
      %v3802 = vunpack.c.l.b16 %v3514
      %v3803 = vunpack.c.l.b16 %v3515
      %v3804 = vunpack.c.l.b16 %v3516
      %v3805 = vunpack.c.l.b16 %v3517
      %v3806 = vunpack.c.l.b16 %v3518
      %v3807 = vunpack.c.l.b16 %v3519
      %v3808 = vunpack.c.l.b16 %v3520
      %v3809 = vunpack.c.l.b16 %v3521
      %v3810 = vunpack.c.l.b16 %v3522
      %v3811 = vunpack.c.l.b16 %v3523
      %v3812 = vunpack.c.l.b16 %v3524
      %v3813 = vunpack.c.l.b16 %v3525
      %v3814 = vunpack.c.l.b16 %v3526
      %v3815 = vunpack.c.l.b16 %v3527
      %v3816 = vunpack.c.l.b16 %v3528
      %v3817 = vunpack.c.l.b16 %v3529
      %v3818 = vunpack.c.l.b16 %v3530
      %v3819 = vunpack.c.l.b16 %v3531
      %v3820 = vunpack.c.l.b16 %v3532
      %v3821 = vunpack.c.l.b16 %v3533
      %v3822 = vunpack.c.l.b16 %v3534
      %v3823 = vunpack.c.l.b16 %v3535
      %v3824 = vunpack.c.l.b16 %v3536
      %v3825 = vunpack.c.l.b16 %v3537
      %v3826 = vunpack.c.l.b16 %v3538
      %v3827 = vunpack.c.l.b16 %v3539
      %v3828 = vunpack.c.l.b16 %v3540
      %v3829 = vunpack.c.l.b16 %v3541
      %v3830 = vunpack.c.l.b16 %v3542
      %v3831 = vunpack.c.l.b16 %v3543
      %v3832 = vunpack.c.l.b16 %v3544
      %v3833 = vunpack.c.l.b16 %v3545
      %v3834 = vunpack.c.l.b16 %v3546
      %v3835 = vunpack.c.l.b16 %v3547
      %v3836 = vunpack.c.l.b16 %v3548
      %v3837 = vunpack.c.l.b16 %v3549
      %v3838 = vunpack.c.l.b16 %v3550
      %v3839 = vunpack.c.l.b16 %v3551
      %v3840 = vunpack.c.l.b16 %v3552
      %v3841 = vunpack.c.l.b16 %v3553
      %v3842 = vunpack.c.l.b16 %v3554
      %v3843 = vunpack.c.l.b16 %v3555
      %v3844 = vunpack.c.l.b16 %v3556
      %v3845 = vunpack.c.l.b16 %v3557
      %v3846 = vunpack.c.l.b16 %v3558
      %v3847 = vunpack.c.l.b16 %v3559
      %v3848 = vunpack.c.l.b16 %v3560
      %v3849 = vpack.c.b16 %v3706, %v3705
      %v3850 = vpack.c.b16 %v3708, %v3707
      %v3851 = vpack.c.b16 %v3710, %v3709
      %v3852 = vpack.c.b16 %v3712, %v3711
      %v3853 = vpack.c.b16 %v3714, %v3713
      %v3854 = vpack.c.b16 %v3716, %v3715
      %v3855 = vpack.c.b16 %v3718, %v3717
      %v3856 = vpack.c.b16 %v3720, %v3719
      %v3857 = vpack.c.b16 %v3722, %v3721
      %v3858 = vpack.c.b16 %v3724, %v3723
      %v3859 = vpack.c.b16 %v3726, %v3725
      %v3860 = vpack.c.b16 %v3728, %v3727
      %v3861 = vpack.c.b16 %v3730, %v3729
      %v3862 = vpack.c.b16 %v3732, %v3731
      %v3863 = vpack.c.b16 %v3734, %v3733
      %v3864 = vpack.c.b16 %v3736, %v3735
      %v3865 = vpack.c.b16 %v3738, %v3737
      %v3866 = vpack.c.b16 %v3740, %v3739
      %v3867 = vpack.c.b16 %v3742, %v3741
      %v3868 = vpack.c.b16 %v3744, %v3743
      %v3869 = vpack.c.b16 %v3746, %v3745
      %v3870 = vpack.c.b16 %v3748, %v3747
      %v3871 = vpack.c.b16 %v3750, %v3749
      %v3872 = vpack.c.b16 %v3752, %v3751
      %v3873 = vpack.c.b16 %v3754, %v3753
      %v3874 = vpack.c.b16 %v3756, %v3755
      %v3875 = vpack.c.b16 %v3758, %v3757
      %v3876 = vpack.c.b16 %v3760, %v3759
      %v3877 = vpack.c.b16 %v3762, %v3761
      %v3878 = vpack.c.b16 %v3764, %v3763
      %v3879 = vpack.c.b16 %v3766, %v3765
      %v3880 = vpack.c.b16 %v3768, %v3767
      %v3881 = vpack.c.b16 %v3770, %v3769
      %v3882 = vpack.c.b16 %v3772, %v3771
      %v3883 = vpack.c.b16 %v3774, %v3773
      %v3884 = vpack.c.b16 %v3776, %v3775
      %v3885 = vpack.c.b16 %v3778, %v3777
      %v3886 = vpack.c.b16 %v3780, %v3779
      %v3887 = vpack.c.b16 %v3782, %v3781
      %v3888 = vpack.c.b16 %v3784, %v3783
      %v3889 = vpack.c.b16 %v3786, %v3785
      %v3890 = vpack.c.b16 %v3788, %v3787
      %v3891 = vpack.c.b16 %v3790, %v3789
      %v3892 = vpack.c.b16 %v3792, %v3791
      %v3893 = vpack.c.b16 %v3794, %v3793
      %v3894 = vpack.c.b16 %v3796, %v3795
      %v3895 = vpack.c.b16 %v3798, %v3797
      %v3896 = vpack.c.b16 %v3800, %v3799
      %v3897 = vpack.c.b16 %v3802, %v3801
      %v3898 = vpack.c.b16 %v3804, %v3803
      %v3899 = vpack.c.b16 %v3806, %v3805
      %v3900 = vpack.c.b16 %v3808, %v3807
      %v3901 = vpack.c.b16 %v3810, %v3809
      %v3902 = vpack.c.b16 %v3812, %v3811
      %v3903 = vpack.c.b16 %v3814, %v3813
      %v3904 = vpack.c.b16 %v3816, %v3815
      %v3905 = vpack.c.b16 %v3818, %v3817
      %v3906 = vpack.c.b16 %v3820, %v3819
      %v3907 = vpack.c.b16 %v3822, %v3821
      %v3908 = vpack.c.b16 %v3824, %v3823
      %v3909 = vpack.c.b16 %v3826, %v3825
      %v3910 = vpack.c.b16 %v3828, %v3827
      %v3911 = vpack.c.b16 %v3830, %v3829
      %v3912 = vpack.c.b16 %v3832, %v3831
      %v3913 = vpack.c.b16 %v3834, %v3833
      %v3914 = vpack.c.b16 %v3836, %v3835
      %v3915 = vpack.c.b16 %v3838, %v3837
      %v3916 = vpack.c.b16 %v3840, %v3839
      %v3917 = vpack.c.b16 %v3842, %v3841
      %v3918 = vpack.c.b16 %v3844, %v3843
      %v3919 = vpack.c.b16 %v3846, %v3845
      %v3920 = vpack.c.b16 %v3848, %v3847
      %3993 = vmatprep.subr.bf16.mxu0 0
      %3994 = vmatpush1.bf16.msra.mxu0 %v3849
      %3995 = vmatprep.subr.bf16.mxu0 0
      %3996 = vmatpush1.bf16.msra.mxu0 %v3850
      %3997 = vmatprep.subr.bf16.mxu0 0
      %3998 = vmatpush1.bf16.msra.mxu0 %v3851
      %3999 = vmatprep.subr.bf16.mxu0 0
      %4000 = vmatpush1.bf16.msra.mxu0 %v3852
      %4001 = vmatprep.subr.bf16.mxu0 0
      %4002 = vmatpush1.bf16.msra.mxu0 %v3853
      %4003 = vmatprep.subr.bf16.mxu0 0
      %4004 = vmatpush1.bf16.msra.mxu0 %v3854
      %4005 = vmatprep.subr.bf16.mxu0 0
      %4006 = vmatpush1.bf16.msra.mxu0 %v3855
      %4007 = vmatprep.subr.bf16.mxu0 0
      %4008 = vmatpush1.bf16.msra.mxu0 %v3856
      %4009 = vmatprep.subr.bf16.mxu0 0
      %4010 = vmatpush1.bf16.msra.mxu0 %v3857
      %4011 = vmatprep.subr.bf16.mxu0 0
      %4012 = vmatpush1.bf16.msra.mxu0 %v3858
      %4013 = vmatprep.subr.bf16.mxu0 0
      %4014 = vmatpush1.bf16.msra.mxu0 %v3859
      %4015 = vmatprep.subr.bf16.mxu0 0
      %4016 = vmatpush1.bf16.msra.mxu0 %v3860
      %4017 = vmatprep.subr.bf16.mxu0 0
      %4018 = vmatpush1.bf16.msra.mxu0 %v3861
      %4019 = vmatprep.subr.bf16.mxu0 0
      %4020 = vmatpush1.bf16.msra.mxu0 %v3862
      %4021 = vmatprep.subr.bf16.mxu0 0
      %4022 = vmatpush1.bf16.msra.mxu0 %v3863
      %4023 = vmatprep.subr.bf16.mxu0 0
      %4024 = vmatpush1.bf16.msra.mxu0 %v3864
      %4025 = vmatprep.mubr.bf16.mxu0 %v2905
      %4026 = vmatmul.mubr.bf16.gmra.mrb[0].mxu0 %v2841
      %v4027 = vpop.f32.mrb[0].mxu0
      %v4028 = vadd.f32 0.0, %v4027
      %v4029 = vpop.f32.mrb[0].mxu0
      %v4030 = vpop.f32.mrb[0].mxu0
      %v4031 = vadd.f32 0.0, %v4030
      %v4032 = vpop.f32.mrb[0].mxu0
      %4033 = vmatprep.mubr.bf16.mxu0 %v2906
      %4034 = vmatmul.mubr.bf16.gmra.mrb[0].mxu0 %v2842
      %v4035 = vpop.f32.mrb[0].mxu0
      %v4036 = vadd.f32 0.0, %v4035
      %v4037 = vpop.f32.mrb[0].mxu0
      %v4038 = vpop.f32.mrb[0].mxu0
      %v4039 = vadd.f32 0.0, %v4038
      %v4040 = vpop.f32.mrb[0].mxu0
      %4041 = vmatprep.mubr.bf16.mxu0 %v2907
      %4042 = vmatmul.mubr.bf16.gmra.mrb[0].mxu0 %v2843
      %v4043 = vpop.f32.mrb[0].mxu0
      %v4044 = vadd.f32 0.0, %v4043
      %v4045 = vpop.f32.mrb[0].mxu0
      %v4046 = vpop.f32.mrb[0].mxu0
      %v4047 = vadd.f32 0.0, %v4046
      %v4048 = vpop.f32.mrb[0].mxu0
      %4049 = vmatprep.mubr.bf16.mxu0 %v2908
      %4050 = vmatmul.mubr.bf16.gmra.mrb[0].mxu0 %v2844
      %v4051 = vpop.f32.mrb[0].mxu0
      %v4052 = vadd.f32 0.0, %v4051
      %v4053 = vpop.f32.mrb[0].mxu0
      %v4054 = vpop.f32.mrb[0].mxu0
      %v4055 = vadd.f32 0.0, %v4054
      %v4056 = vpop.f32.mrb[0].mxu0
      %4057 = vmatprep.mubr.bf16.mxu0 %v2909
      %4058 = vmatmul.mubr.bf16.gmra.mrb[0].mxu0 %v2845
      %v4059 = vpop.f32.mrb[0].mxu0
      %v4060 = vadd.f32 0.0, %v4059
      %v4061 = vpop.f32.mrb[0].mxu0
      %v4062 = vpop.f32.mrb[0].mxu0
      %v4063 = vadd.f32 0.0, %v4062
      %v4064 = vpop.f32.mrb[0].mxu0
      %4065 = vmatprep.mubr.bf16.mxu0 %v2910
      %4066 = vmatmul.mubr.bf16.gmra.mrb[0].mxu0 %v2846
      %v4067 = vpop.f32.mrb[0].mxu0
      %v4068 = vadd.f32 0.0, %v4067
      %v4069 = vpop.f32.mrb[0].mxu0
      %v4070 = vpop.f32.mrb[0].mxu0
      %v4071 = vadd.f32 0.0, %v4070
      %v4072 = vpop.f32.mrb[0].mxu0
      %4073 = vmatprep.mubr.bf16.mxu0 %v2911
      %4074 = vmatmul.mubr.bf16.gmra.mrb[0].mxu0 %v2847
      %v4075 = vpop.f32.mrb[0].mxu0
      %v4076 = vadd.f32 0.0, %v4075
      %v4077 = vpop.f32.mrb[0].mxu0
      %v4078 = vpop.f32.mrb[0].mxu0
      %v4079 = vadd.f32 0.0, %v4078
      %v4080 = vpop.f32.mrb[0].mxu0
      %4081 = vmatprep.mubr.bf16.mxu0 %v2912
      %4082 = vmatmul.mubr.bf16.gmra.mrb[0].mxu0 %v2848
      %v4083 = vpop.f32.mrb[0].mxu0
      %v4084 = vadd.f32 0.0, %v4083
      %v4085 = vpop.f32.mrb[0].mxu0
      %v4086 = vpop.f32.mrb[0].mxu0
      %v4087 = vadd.f32 0.0, %v4086
      %v4088 = vpop.f32.mrb[0].mxu0
      %4089 = vmatprep.mubr.bf16.mxu0 %v2913
      %4090 = vmatmul.mubr.bf16.gmra.mrb[0].mxu0 %v2849
      %v4091 = vpop.f32.mrb[0].mxu0
      %v4092 = vadd.f32 0.0, %v4091
      %v4093 = vpop.f32.mrb[0].mxu0
      %v4094 = vpop.f32.mrb[0].mxu0
      %v4095 = vadd.f32 0.0, %v4094
      %v4096 = vpop.f32.mrb[0].mxu0
      %4097 = vmatprep.mubr.bf16.mxu0 %v2914
      %4098 = vmatmul.mubr.bf16.gmra.mrb[0].mxu0 %v2850
      %v4099 = vpop.f32.mrb[0].mxu0
      %v4100 = vadd.f32 0.0, %v4099
      %v4101 = vpop.f32.mrb[0].mxu0
      %v4102 = vpop.f32.mrb[0].mxu0
      %v4103 = vadd.f32 0.0, %v4102
      %v4104 = vpop.f32.mrb[0].mxu0
      %4105 = vmatprep.mubr.bf16.mxu0 %v2915
      %4106 = vmatmul.mubr.bf16.gmra.mrb[0].mxu0 %v2851
      %v4107 = vpop.f32.mrb[0].mxu0
      %v4108 = vadd.f32 0.0, %v4107
      %v4109 = vpop.f32.mrb[0].mxu0
      %v4110 = vpop.f32.mrb[0].mxu0
      %v4111 = vadd.f32 0.0, %v4110
      %v4112 = vpop.f32.mrb[0].mxu0
      %4113 = vmatprep.mubr.bf16.mxu0 %v2916
      %4114 = vmatmul.mubr.bf16.gmra.mrb[0].mxu0 %v2852
      %v4115 = vpop.f32.mrb[0].mxu0
      %v4116 = vadd.f32 0.0, %v4115
      %v4117 = vpop.f32.mrb[0].mxu0
      %v4118 = vpop.f32.mrb[0].mxu0
      %v4119 = vadd.f32 0.0, %v4118
      %v4120 = vpop.f32.mrb[0].mxu0
      %4121 = vmatprep.mubr.bf16.mxu0 %v2917
      %4122 = vmatmul.mubr.bf16.gmra.mrb[0].mxu0 %v2853
      %v4123 = vpop.f32.mrb[0].mxu0
      %v4124 = vadd.f32 0.0, %v4123
      %v4125 = vpop.f32.mrb[0].mxu0
      %v4126 = vpop.f32.mrb[0].mxu0
      %v4127 = vadd.f32 0.0, %v4126
      %v4128 = vpop.f32.mrb[0].mxu0
      %4129 = vmatprep.mubr.bf16.mxu0 %v2918
      %4130 = vmatmul.mubr.bf16.gmra.mrb[0].mxu0 %v2854
      %v4131 = vpop.f32.mrb[0].mxu0
      %v4132 = vadd.f32 0.0, %v4131
      %v4133 = vpop.f32.mrb[0].mxu0
      %v4134 = vpop.f32.mrb[0].mxu0
      %v4135 = vadd.f32 0.0, %v4134
      %v4136 = vpop.f32.mrb[0].mxu0
      %4137 = vmatprep.mubr.bf16.mxu0 %v2919
      %4138 = vmatmul.mubr.bf16.gmra.mrb[0].mxu0 %v2855
      %v4139 = vpop.f32.mrb[0].mxu0
      %v4140 = vadd.f32 0.0, %v4139
      %v4141 = vpop.f32.mrb[0].mxu0
      %v4142 = vpop.f32.mrb[0].mxu0
      %v4143 = vadd.f32 0.0, %v4142
      %v4144 = vpop.f32.mrb[0].mxu0
      %4145 = vmatprep.mubr.bf16.mxu0 %v2920
      %4146 = vmatmul.mubr.bf16.gmra.mrb[0].mxu0 %v2856
      %v4147 = vpop.f32.mrb[0].mxu0
      %v4148 = vadd.f32 0.0, %v4147
      %v4149 = vpop.f32.mrb[0].mxu0
      %v4150 = vpop.f32.mrb[0].mxu0
      %v4151 = vadd.f32 0.0, %v4150
      %v4152 = vpop.f32.mrb[0].mxu0
      %4153 = vdwg.mxu0
      %4154 = vmatprep.subr.bf16.mxu0 0
      %4155 = vmatpush1.bf16.msra.mxu0 %v3865
      %4156 = vmatprep.subr.bf16.mxu0 0
      %4157 = vmatpush1.bf16.msra.mxu0 %v3866
      %4158 = vmatprep.subr.bf16.mxu0 0
      %4159 = vmatpush1.bf16.msra.mxu0 %v3867
      %4160 = vmatprep.subr.bf16.mxu0 0
      %4161 = vmatpush1.bf16.msra.mxu0 %v3868
      %4162 = vmatprep.subr.bf16.mxu0 0
      %4163 = vmatpush1.bf16.msra.mxu0 %v3869
      %4164 = vmatprep.subr.bf16.mxu0 0
      %4165 = vmatpush1.bf16.msra.mxu0 %v3870
      %4166 = vmatprep.subr.bf16.mxu0 0
      %4167 = vmatpush1.bf16.msra.mxu0 %v3871
      %4168 = vmatprep.subr.bf16.mxu0 0
      %4169 = vmatpush1.bf16.msra.mxu0 %v3872
      %4170 = vmatprep.subr.bf16.mxu0 0
      %4171 = vmatpush1.bf16.msra.mxu0 %v3873
      %4172 = vmatprep.subr.bf16.mxu0 0
      %4173 = vmatpush1.bf16.msra.mxu0 %v3874
      %4174 = vmatprep.subr.bf16.mxu0 0
      %4175 = vmatpush1.bf16.msra.mxu0 %v3875
      %4176 = vmatprep.subr.bf16.mxu0 0
      %4177 = vmatpush1.bf16.msra.mxu0 %v3876
      %4178 = vmatprep.subr.bf16.mxu0 0
      %4179 = vmatpush1.bf16.msra.mxu0 %v3877
      %4180 = vmatprep.subr.bf16.mxu0 0
      %4181 = vmatpush1.bf16.msra.mxu0 %v3878
      %4182 = vmatprep.subr.bf16.mxu0 0
      %4183 = vmatpush1.bf16.msra.mxu0 %v3879
      %4184 = vmatprep.subr.bf16.mxu0 0
      %4185 = vmatpush1.bf16.msra.mxu0 %v3880
      %4186 = vmatprep.mubr.bf16.mxu0 %v3049
      %4187 = vmatmul.mubr.bf16.gmra.mrb[0].mxu0 %v2969
      %v4188 = vpop.f32.mrb[0].mxu0
      %v4189 = vadd.f32 %v4028, %v4188
      %v4190 = vpop.f32.mrb[0].mxu0
      %v4191 = vpop.f32.mrb[0].mxu0
      %v4192 = vadd.f32 %v4031, %v4191
      %v4193 = vpop.f32.mrb[0].mxu0
      %4194 = vmatprep.mubr.bf16.mxu0 %v3050
      %4195 = vmatmul.mubr.bf16.gmra.mrb[0].mxu0 %v2970
      %v4196 = vpop.f32.mrb[0].mxu0
      %v4197 = vadd.f32 %v4036, %v4196
      %v4198 = vpop.f32.mrb[0].mxu0
      %v4199 = vpop.f32.mrb[0].mxu0
      %v4200 = vadd.f32 %v4039, %v4199
      %v4201 = vpop.f32.mrb[0].mxu0
      %4202 = vmatprep.mubr.bf16.mxu0 %v3051
      %4203 = vmatmul.mubr.bf16.gmra.mrb[0].mxu0 %v2971
      %v4204 = vpop.f32.mrb[0].mxu0
      %v4205 = vadd.f32 %v4044, %v4204
      %v4206 = vpop.f32.mrb[0].mxu0
      %v4207 = vpop.f32.mrb[0].mxu0
      %v4208 = vadd.f32 %v4047, %v4207
      %v4209 = vpop.f32.mrb[0].mxu0
      %4210 = vmatprep.mubr.bf16.mxu0 %v3052
      %4211 = vmatmul.mubr.bf16.gmra.mrb[0].mxu0 %v2972
      %v4212 = vpop.f32.mrb[0].mxu0
      %v4213 = vadd.f32 %v4052, %v4212
      %v4214 = vpop.f32.mrb[0].mxu0
      %v4215 = vpop.f32.mrb[0].mxu0
      %v4216 = vadd.f32 %v4055, %v4215
      %v4217 = vpop.f32.mrb[0].mxu0
      %4218 = vmatprep.mubr.bf16.mxu0 %v3053
      %4219 = vmatmul.mubr.bf16.gmra.mrb[0].mxu0 %v2973
      %v4220 = vpop.f32.mrb[0].mxu0
      %v4221 = vadd.f32 %v4060, %v4220
      %v4222 = vpop.f32.mrb[0].mxu0
      %v4223 = vpop.f32.mrb[0].mxu0
      %v4224 = vadd.f32 %v4063, %v4223
      %v4225 = vpop.f32.mrb[0].mxu0
      %4226 = vmatprep.mubr.bf16.mxu0 %v3054
      %4227 = vmatmul.mubr.bf16.gmra.mrb[0].mxu0 %v2974
      %v4228 = vpop.f32.mrb[0].mxu0
      %v4229 = vadd.f32 %v4068, %v4228
      %v4230 = vpop.f32.mrb[0].mxu0
      %v4231 = vpop.f32.mrb[0].mxu0
      %v4232 = vadd.f32 %v4071, %v4231
      %v4233 = vpop.f32.mrb[0].mxu0
      %4234 = vmatprep.mubr.bf16.mxu0 %v3055
      %4235 = vmatmul.mubr.bf16.gmra.mrb[0].mxu0 %v2975
      %v4236 = vpop.f32.mrb[0].mxu0
      %v4237 = vadd.f32 %v4076, %v4236
      %v4238 = vpop.f32.mrb[0].mxu0
      %v4239 = vpop.f32.mrb[0].mxu0
      %v4240 = vadd.f32 %v4079, %v4239
      %v4241 = vpop.f32.mrb[0].mxu0
      %4242 = vmatprep.mubr.bf16.mxu0 %v3056
      %4243 = vmatmul.mubr.bf16.gmra.mrb[0].mxu0 %v2976
      %v4244 = vpop.f32.mrb[0].mxu0
      %v4245 = vadd.f32 %v4084, %v4244
      %v4246 = vpop.f32.mrb[0].mxu0
      %v4247 = vpop.f32.mrb[0].mxu0
      %v4248 = vadd.f32 %v4087, %v4247
      %v4249 = vpop.f32.mrb[0].mxu0
      %4250 = vmatprep.mubr.bf16.mxu0 %v3057
      %4251 = vmatmul.mubr.bf16.gmra.mrb[0].mxu0 %v2977
      %v4252 = vpop.f32.mrb[0].mxu0
      %v4253 = vadd.f32 %v4092, %v4252
      %v4254 = vpop.f32.mrb[0].mxu0
      %v4255 = vpop.f32.mrb[0].mxu0
      %v4256 = vadd.f32 %v4095, %v4255
      %v4257 = vpop.f32.mrb[0].mxu0
      %4258 = vmatprep.mubr.bf16.mxu0 %v3058
      %4259 = vmatmul.mubr.bf16.gmra.mrb[0].mxu0 %v2978
      %v4260 = vpop.f32.mrb[0].mxu0
      %v4261 = vadd.f32 %v4100, %v4260
      %v4262 = vpop.f32.mrb[0].mxu0
      %v4263 = vpop.f32.mrb[0].mxu0
      %v4264 = vadd.f32 %v4103, %v4263
      %v4265 = vpop.f32.mrb[0].mxu0
      %4266 = vmatprep.mubr.bf16.mxu0 %v3059
      %4267 = vmatmul.mubr.bf16.gmra.mrb[0].mxu0 %v2979
      %v4268 = vpop.f32.mrb[0].mxu0
      %v4269 = vadd.f32 %v4108, %v4268
      %v4270 = vpop.f32.mrb[0].mxu0
      %v4271 = vpop.f32.mrb[0].mxu0
      %v4272 = vadd.f32 %v4111, %v4271
      %v4273 = vpop.f32.mrb[0].mxu0
      %4274 = vmatprep.mubr.bf16.mxu0 %v3060
      %4275 = vmatmul.mubr.bf16.gmra.mrb[0].mxu0 %v2980
      %v4276 = vpop.f32.mrb[0].mxu0
      %v4277 = vadd.f32 %v4116, %v4276
      %v4278 = vpop.f32.mrb[0].mxu0
      %v4279 = vpop.f32.mrb[0].mxu0
      %v4280 = vadd.f32 %v4119, %v4279
      %v4281 = vpop.f32.mrb[0].mxu0
      %4282 = vmatprep.mubr.bf16.mxu0 %v3061
      %4283 = vmatmul.mubr.bf16.gmra.mrb[0].mxu0 %v2981
      %v4284 = vpop.f32.mrb[0].mxu0
      %v4285 = vadd.f32 %v4124, %v4284
      %v4286 = vpop.f32.mrb[0].mxu0
      %v4287 = vpop.f32.mrb[0].mxu0
      %v4288 = vadd.f32 %v4127, %v4287
      %v4289 = vpop.f32.mrb[0].mxu0
      %4290 = vmatprep.mubr.bf16.mxu0 %v3062
      %4291 = vmatmul.mubr.bf16.gmra.mrb[0].mxu0 %v2982
      %v4292 = vpop.f32.mrb[0].mxu0
      %v4293 = vadd.f32 %v4132, %v4292
      %v4294 = vpop.f32.mrb[0].mxu0
      %v4295 = vpop.f32.mrb[0].mxu0
      %v4296 = vadd.f32 %v4135, %v4295
      %v4297 = vpop.f32.mrb[0].mxu0
      %4298 = vmatprep.mubr.bf16.mxu0 %v3063
      %4299 = vmatmul.mubr.bf16.gmra.mrb[0].mxu0 %v2983
      %v4300 = vpop.f32.mrb[0].mxu0
      %v4301 = vadd.f32 %v4140, %v4300
      %v4302 = vpop.f32.mrb[0].mxu0
      %v4303 = vpop.f32.mrb[0].mxu0
      %v4304 = vadd.f32 %v4143, %v4303
      %v4305 = vpop.f32.mrb[0].mxu0
      %4306 = vmatprep.mubr.bf16.mxu0 %v3064
      %4307 = vmatmul.mubr.bf16.gmra.mrb[0].mxu0 %v2984
      %v4308 = vpop.f32.mrb[0].mxu0
      %v4309 = vadd.f32 %v4148, %v4308
      %v4310 = vpop.f32.mrb[0].mxu0
      %v4311 = vpop.f32.mrb[0].mxu0
      %v4312 = vadd.f32 %v4151, %v4311
      %v4313 = vpop.f32.mrb[0].mxu0
      %4314 = vdwg.mxu0
      %4315 = vmatprep.subr.bf16.mxu0 0
      %4316 = vmatpush1.bf16.msra.mxu0 %v3881
      %4317 = vmatprep.subr.bf16.mxu0 0
      %4318 = vmatpush1.bf16.msra.mxu0 %v3882
      %4319 = vmatprep.subr.bf16.mxu0 0
      %4320 = vmatpush1.bf16.msra.mxu0 %v3883
      %4321 = vmatprep.subr.bf16.mxu0 0
      %4322 = vmatpush1.bf16.msra.mxu0 %v3884
      %4323 = vmatprep.subr.bf16.mxu0 0
      %4324 = vmatpush1.bf16.msra.mxu0 %v3885
      %4325 = vmatprep.subr.bf16.mxu0 0
      %4326 = vmatpush1.bf16.msra.mxu0 %v3886
      %4327 = vmatprep.subr.bf16.mxu0 0
      %4328 = vmatpush1.bf16.msra.mxu0 %v3887
      %4329 = vmatprep.subr.bf16.mxu0 0
      %4330 = vmatpush1.bf16.msra.mxu0 %v3888
      %4331 = vmatprep.subr.bf16.mxu0 0
      %4332 = vmatpush1.bf16.msra.mxu0 %v3889
      %4333 = vmatprep.subr.bf16.mxu0 0
      %4334 = vmatpush1.bf16.msra.mxu0 %v3890
      %4335 = vmatprep.subr.bf16.mxu0 0
      %4336 = vmatpush1.bf16.msra.mxu0 %v3891
      %4337 = vmatprep.subr.bf16.mxu0 0
      %4338 = vmatpush1.bf16.msra.mxu0 %v3892
      %4339 = vmatprep.subr.bf16.mxu0 0
      %4340 = vmatpush1.bf16.msra.mxu0 %v3893
      %4341 = vmatprep.subr.bf16.mxu0 0
      %4342 = vmatpush1.bf16.msra.mxu0 %v3894
      %4343 = vmatprep.subr.bf16.mxu0 0
      %4344 = vmatpush1.bf16.msra.mxu0 %v3895
      %4345 = vmatprep.subr.bf16.mxu0 0
      %4346 = vmatpush1.bf16.msra.mxu0 %v3896
      %4347 = vmatprep.mubr.bf16.mxu0 %v3177
      %4348 = vmatmul.mubr.bf16.gmra.mrb[0].mxu0 %v3113
      %v4349 = vpop.f32.mrb[0].mxu0
      %v4350 = vadd.f32 %v4189, %v4349
      %v4351 = vpop.f32.mrb[0].mxu0
      %v4352 = vpop.f32.mrb[0].mxu0
      %v4353 = vadd.f32 %v4192, %v4352
      %v4354 = vpop.f32.mrb[0].mxu0
      %4355 = vmatprep.mubr.bf16.mxu0 %v3178
      %4356 = vmatmul.mubr.bf16.gmra.mrb[0].mxu0 %v3114
      %v4357 = vpop.f32.mrb[0].mxu0
      %v4358 = vadd.f32 %v4197, %v4357
      %v4359 = vpop.f32.mrb[0].mxu0
      %v4360 = vpop.f32.mrb[0].mxu0
      %v4361 = vadd.f32 %v4200, %v4360
      %v4362 = vpop.f32.mrb[0].mxu0
      %4363 = vmatprep.mubr.bf16.mxu0 %v3179
      %4364 = vmatmul.mubr.bf16.gmra.mrb[0].mxu0 %v3115
      %v4365 = vpop.f32.mrb[0].mxu0
      %v4366 = vadd.f32 %v4205, %v4365
      %v4367 = vpop.f32.mrb[0].mxu0
      %v4368 = vpop.f32.mrb[0].mxu0
      %v4369 = vadd.f32 %v4208, %v4368
      %v4370 = vpop.f32.mrb[0].mxu0
      %4371 = vmatprep.mubr.bf16.mxu0 %v3180
      %4372 = vmatmul.mubr.bf16.gmra.mrb[0].mxu0 %v3116
      %v4373 = vpop.f32.mrb[0].mxu0
      %v4374 = vadd.f32 %v4213, %v4373
      %v4375 = vpop.f32.mrb[0].mxu0
      %v4376 = vpop.f32.mrb[0].mxu0
      %v4377 = vadd.f32 %v4216, %v4376
      %v4378 = vpop.f32.mrb[0].mxu0
      %4379 = vmatprep.mubr.bf16.mxu0 %v3181
      %4380 = vmatmul.mubr.bf16.gmra.mrb[0].mxu0 %v3117
      %v4381 = vpop.f32.mrb[0].mxu0
      %v4382 = vadd.f32 %v4221, %v4381
      %v4383 = vpop.f32.mrb[0].mxu0
      %v4384 = vpop.f32.mrb[0].mxu0
      %v4385 = vadd.f32 %v4224, %v4384
      %v4386 = vpop.f32.mrb[0].mxu0
      %4387 = vmatprep.mubr.bf16.mxu0 %v3182
      %4388 = vmatmul.mubr.bf16.gmra.mrb[0].mxu0 %v3118
      %v4389 = vpop.f32.mrb[0].mxu0
      %v4390 = vadd.f32 %v4229, %v4389
      %v4391 = vpop.f32.mrb[0].mxu0
      %v4392 = vpop.f32.mrb[0].mxu0
      %v4393 = vadd.f32 %v4232, %v4392
      %v4394 = vpop.f32.mrb[0].mxu0
      %4395 = vmatprep.mubr.bf16.mxu0 %v3183
      %4396 = vmatmul.mubr.bf16.gmra.mrb[0].mxu0 %v3119
      %v4397 = vpop.f32.mrb[0].mxu0
      %v4398 = vadd.f32 %v4237, %v4397
      %v4399 = vpop.f32.mrb[0].mxu0
      %v4400 = vpop.f32.mrb[0].mxu0
      %v4401 = vadd.f32 %v4240, %v4400
      %v4402 = vpop.f32.mrb[0].mxu0
      %4403 = vmatprep.mubr.bf16.mxu0 %v3184
      %4404 = vmatmul.mubr.bf16.gmra.mrb[0].mxu0 %v3120
      %v4405 = vpop.f32.mrb[0].mxu0
      %v4406 = vadd.f32 %v4245, %v4405
      %v4407 = vpop.f32.mrb[0].mxu0
      %v4408 = vpop.f32.mrb[0].mxu0
      %v4409 = vadd.f32 %v4248, %v4408
      %v4410 = vpop.f32.mrb[0].mxu0
      %4411 = vmatprep.mubr.bf16.mxu0 %v3185
      %4412 = vmatmul.mubr.bf16.gmra.mrb[0].mxu0 %v3121
      %v4413 = vpop.f32.mrb[0].mxu0
      %v4414 = vadd.f32 %v4253, %v4413
      %v4415 = vpop.f32.mrb[0].mxu0
      %v4416 = vpop.f32.mrb[0].mxu0
      %v4417 = vadd.f32 %v4256, %v4416
      %v4418 = vpop.f32.mrb[0].mxu0
      %4419 = vmatprep.mubr.bf16.mxu0 %v3186
      %4420 = vmatmul.mubr.bf16.gmra.mrb[0].mxu0 %v3122
      %v4421 = vpop.f32.mrb[0].mxu0
      %v4422 = vadd.f32 %v4261, %v4421
      %v4423 = vpop.f32.mrb[0].mxu0
      %v4424 = vpop.f32.mrb[0].mxu0
      %v4425 = vadd.f32 %v4264, %v4424
      %v4426 = vpop.f32.mrb[0].mxu0
      %4427 = vmatprep.mubr.bf16.mxu0 %v3187
      %4428 = vmatmul.mubr.bf16.gmra.mrb[0].mxu0 %v3123
      %v4429 = vpop.f32.mrb[0].mxu0
      %v4430 = vadd.f32 %v4269, %v4429
      %v4431 = vpop.f32.mrb[0].mxu0
      %v4432 = vpop.f32.mrb[0].mxu0
      %v4433 = vadd.f32 %v4272, %v4432
      %v4434 = vpop.f32.mrb[0].mxu0
      %4435 = vmatprep.mubr.bf16.mxu0 %v3188
      %4436 = vmatmul.mubr.bf16.gmra.mrb[0].mxu0 %v3124
      %v4437 = vpop.f32.mrb[0].mxu0
      %v4438 = vadd.f32 %v4277, %v4437
      %v4439 = vpop.f32.mrb[0].mxu0
      %v4440 = vpop.f32.mrb[0].mxu0
      %v4441 = vadd.f32 %v4280, %v4440
      %v4442 = vpop.f32.mrb[0].mxu0
      %4443 = vmatprep.mubr.bf16.mxu0 %v3189
      %4444 = vmatmul.mubr.bf16.gmra.mrb[0].mxu0 %v3125
      %v4445 = vpop.f32.mrb[0].mxu0
      %v4446 = vadd.f32 %v4285, %v4445
      %v4447 = vpop.f32.mrb[0].mxu0
      %v4448 = vpop.f32.mrb[0].mxu0
      %v4449 = vadd.f32 %v4288, %v4448
      %v4450 = vpop.f32.mrb[0].mxu0
      %4451 = vmatprep.mubr.bf16.mxu0 %v3190
      %4452 = vmatmul.mubr.bf16.gmra.mrb[0].mxu0 %v3126
      %v4453 = vpop.f32.mrb[0].mxu0
      %v4454 = vadd.f32 %v4293, %v4453
      %v4455 = vpop.f32.mrb[0].mxu0
      %v4456 = vpop.f32.mrb[0].mxu0
      %v4457 = vadd.f32 %v4296, %v4456
      %v4458 = vpop.f32.mrb[0].mxu0
      %4459 = vmatprep.mubr.bf16.mxu0 %v3191
      %4460 = vmatmul.mubr.bf16.gmra.mrb[0].mxu0 %v3127
      %v4461 = vpop.f32.mrb[0].mxu0
      %v4462 = vadd.f32 %v4301, %v4461
      %v4463 = vpop.f32.mrb[0].mxu0
      %v4464 = vpop.f32.mrb[0].mxu0
      %v4465 = vadd.f32 %v4304, %v4464
      %v4466 = vpop.f32.mrb[0].mxu0
      %4467 = vmatprep.mubr.bf16.mxu0 %v3192
      %4468 = vmatmul.mubr.bf16.gmra.mrb[0].mxu0 %v3128
      %v4469 = vpop.f32.mrb[0].mxu0
      %v4470 = vadd.f32 %v4309, %v4469
      %v4471 = vpop.f32.mrb[0].mxu0
      %v4472 = vpop.f32.mrb[0].mxu0
      %v4473 = vadd.f32 %v4312, %v4472
      %v4474 = vpop.f32.mrb[0].mxu0
      %4475 = vdwg.mxu0
      %4476 = vmatprep.subr.bf16.mxu0 0
      %4477 = vmatpush1.bf16.msra.mxu0 %v3897
      %4478 = vmatprep.subr.bf16.mxu0 0
      %4479 = vmatpush1.bf16.msra.mxu0 %v3898
      %4480 = vmatprep.subr.bf16.mxu0 0
      %4481 = vmatpush1.bf16.msra.mxu0 %v3899
      %4482 = vmatprep.subr.bf16.mxu0 0
      %4483 = vmatpush1.bf16.msra.mxu0 %v3900
      %4484 = vmatprep.subr.bf16.mxu0 0
      %4485 = vmatpush1.bf16.msra.mxu0 %v3901
      %4486 = vmatprep.subr.bf16.mxu0 0
      %4487 = vmatpush1.bf16.msra.mxu0 %v3902
      %4488 = vmatprep.subr.bf16.mxu0 0
      %4489 = vmatpush1.bf16.msra.mxu0 %v3903
      %4490 = vmatprep.subr.bf16.mxu0 0
      %4491 = vmatpush1.bf16.msra.mxu0 %v3904
      %4492 = vmatprep.subr.bf16.mxu0 0
      %4493 = vmatpush1.bf16.msra.mxu0 %v3905
      %4494 = vmatprep.subr.bf16.mxu0 0
      %4495 = vmatpush1.bf16.msra.mxu0 %v3906
      %4496 = vmatprep.subr.bf16.mxu0 0
      %4497 = vmatpush1.bf16.msra.mxu0 %v3907
      %4498 = vmatprep.subr.bf16.mxu0 0
      %4499 = vmatpush1.bf16.msra.mxu0 %v3908
      %4500 = vmatprep.subr.bf16.mxu0 0
      %4501 = vmatpush1.bf16.msra.mxu0 %v3909
      %4502 = vmatprep.subr.bf16.mxu0 0
      %4503 = vmatpush1.bf16.msra.mxu0 %v3910
      %4504 = vmatprep.subr.bf16.mxu0 0
      %4505 = vmatpush1.bf16.msra.mxu0 %v3911
      %4506 = vmatprep.subr.bf16.mxu0 0
      %4507 = vmatpush1.bf16.msra.mxu0 %v3912
      %4508 = vmatprep.mubr.bf16.mxu0 %v3321
      %4509 = vmatmul.mubr.bf16.gmra.mrb[0].mxu0 %v3257
      %v4510 = vpop.f32.mrb[0].mxu0
      %v4511 = vadd.f32 %v4350, %v4510
      %v4512 = vpop.f32.mrb[0].mxu0
      %v4513 = vpop.f32.mrb[0].mxu0
      %v4514 = vadd.f32 %v4353, %v4513
      %v4515 = vpop.f32.mrb[0].mxu0
      %4516 = vmatprep.mubr.bf16.mxu0 %v3322
      %4517 = vmatmul.mubr.bf16.gmra.mrb[0].mxu0 %v3258
      %v4518 = vpop.f32.mrb[0].mxu0
      %v4519 = vadd.f32 %v4358, %v4518
      %v4520 = vpop.f32.mrb[0].mxu0
      %v4521 = vpop.f32.mrb[0].mxu0
      %v4522 = vadd.f32 %v4361, %v4521
      %v4523 = vpop.f32.mrb[0].mxu0
      %4524 = vmatprep.mubr.bf16.mxu0 %v3323
      %4525 = vmatmul.mubr.bf16.gmra.mrb[0].mxu0 %v3259
      %v4526 = vpop.f32.mrb[0].mxu0
      %v4527 = vadd.f32 %v4366, %v4526
      %v4528 = vpop.f32.mrb[0].mxu0
      %v4529 = vpop.f32.mrb[0].mxu0
      %v4530 = vadd.f32 %v4369, %v4529
      %v4531 = vpop.f32.mrb[0].mxu0
      %4532 = vmatprep.mubr.bf16.mxu0 %v3324
      %4533 = vmatmul.mubr.bf16.gmra.mrb[0].mxu0 %v3260
      %v4534 = vpop.f32.mrb[0].mxu0
      %v4535 = vadd.f32 %v4374, %v4534
      %v4536 = vpop.f32.mrb[0].mxu0
      %v4537 = vpop.f32.mrb[0].mxu0
      %v4538 = vadd.f32 %v4377, %v4537
      %v4539 = vpop.f32.mrb[0].mxu0
      %4540 = vmatprep.mubr.bf16.mxu0 %v3325
      %4541 = vmatmul.mubr.bf16.gmra.mrb[0].mxu0 %v3261
      %v4542 = vpop.f32.mrb[0].mxu0
      %v4543 = vadd.f32 %v4382, %v4542
      %v4544 = vpop.f32.mrb[0].mxu0
      %v4545 = vpop.f32.mrb[0].mxu0
      %v4546 = vadd.f32 %v4385, %v4545
      %v4547 = vpop.f32.mrb[0].mxu0
      %4548 = vmatprep.mubr.bf16.mxu0 %v3326
      %4549 = vmatmul.mubr.bf16.gmra.mrb[0].mxu0 %v3262
      %v4550 = vpop.f32.mrb[0].mxu0
      %v4551 = vadd.f32 %v4390, %v4550
      %v4552 = vpop.f32.mrb[0].mxu0
      %v4553 = vpop.f32.mrb[0].mxu0
      %v4554 = vadd.f32 %v4393, %v4553
      %v4555 = vpop.f32.mrb[0].mxu0
      %4556 = vmatprep.mubr.bf16.mxu0 %v3327
      %4557 = vmatmul.mubr.bf16.gmra.mrb[0].mxu0 %v3263
      %v4558 = vpop.f32.mrb[0].mxu0
      %v4559 = vadd.f32 %v4398, %v4558
      %v4560 = vpop.f32.mrb[0].mxu0
      %v4561 = vpop.f32.mrb[0].mxu0
      %v4562 = vadd.f32 %v4401, %v4561
      %v4563 = vpop.f32.mrb[0].mxu0
      %4564 = vmatprep.mubr.bf16.mxu0 %v3328
      %4565 = vmatmul.mubr.bf16.gmra.mrb[0].mxu0 %v3264
      %v4566 = vpop.f32.mrb[0].mxu0
      %v4567 = vadd.f32 %v4406, %v4566
      %v4568 = vpop.f32.mrb[0].mxu0
      %v4569 = vpop.f32.mrb[0].mxu0
      %v4570 = vadd.f32 %v4409, %v4569
      %v4571 = vpop.f32.mrb[0].mxu0
      %4572 = vmatprep.mubr.bf16.mxu0 %v3329
      %4573 = vmatmul.mubr.bf16.gmra.mrb[0].mxu0 %v3265
      %v4574 = vpop.f32.mrb[0].mxu0
      %v4575 = vadd.f32 %v4414, %v4574
      %v4576 = vpop.f32.mrb[0].mxu0
      %v4577 = vpop.f32.mrb[0].mxu0
      %v4578 = vadd.f32 %v4417, %v4577
      %v4579 = vpop.f32.mrb[0].mxu0
      %4580 = vmatprep.mubr.bf16.mxu0 %v3330
      %4581 = vmatmul.mubr.bf16.gmra.mrb[0].mxu0 %v3266
      %v4582 = vpop.f32.mrb[0].mxu0
      %v4583 = vadd.f32 %v4422, %v4582
      %v4584 = vpop.f32.mrb[0].mxu0
      %v4585 = vpop.f32.mrb[0].mxu0
      %v4586 = vadd.f32 %v4425, %v4585
      %v4587 = vpop.f32.mrb[0].mxu0
      %4588 = vmatprep.mubr.bf16.mxu0 %v3331
      %4589 = vmatmul.mubr.bf16.gmra.mrb[0].mxu0 %v3267
      %v4590 = vpop.f32.mrb[0].mxu0
      %v4591 = vadd.f32 %v4430, %v4590
      %v4592 = vpop.f32.mrb[0].mxu0
      %v4593 = vpop.f32.mrb[0].mxu0
      %v4594 = vadd.f32 %v4433, %v4593
      %v4595 = vpop.f32.mrb[0].mxu0
      %4596 = vmatprep.mubr.bf16.mxu0 %v3332
      %4597 = vmatmul.mubr.bf16.gmra.mrb[0].mxu0 %v3268
      %v4598 = vpop.f32.mrb[0].mxu0
      %v4599 = vadd.f32 %v4438, %v4598
      %v4600 = vpop.f32.mrb[0].mxu0
      %v4601 = vpop.f32.mrb[0].mxu0
      %v4602 = vadd.f32 %v4441, %v4601
      %v4603 = vpop.f32.mrb[0].mxu0
      %4604 = vmatprep.mubr.bf16.mxu0 %v3333
      %4605 = vmatmul.mubr.bf16.gmra.mrb[0].mxu0 %v3269
      %v4606 = vpop.f32.mrb[0].mxu0
      %v4607 = vadd.f32 %v4446, %v4606
      %v4608 = vpop.f32.mrb[0].mxu0
      %v4609 = vpop.f32.mrb[0].mxu0
      %v4610 = vadd.f32 %v4449, %v4609
      %v4611 = vpop.f32.mrb[0].mxu0
      %4612 = vmatprep.mubr.bf16.mxu0 %v3334
      %4613 = vmatmul.mubr.bf16.gmra.mrb[0].mxu0 %v3270
      %v4614 = vpop.f32.mrb[0].mxu0
      %v4615 = vadd.f32 %v4454, %v4614
      %v4616 = vpop.f32.mrb[0].mxu0
      %v4617 = vpop.f32.mrb[0].mxu0
      %v4618 = vadd.f32 %v4457, %v4617
      %v4619 = vpop.f32.mrb[0].mxu0
      %4620 = vmatprep.mubr.bf16.mxu0 %v3335
      %4621 = vmatmul.mubr.bf16.gmra.mrb[0].mxu0 %v3271
      %v4622 = vpop.f32.mrb[0].mxu0
      %v4623 = vadd.f32 %v4462, %v4622
      %v4624 = vpop.f32.mrb[0].mxu0
      %v4625 = vpop.f32.mrb[0].mxu0
      %v4626 = vadd.f32 %v4465, %v4625
      %v4627 = vpop.f32.mrb[0].mxu0
      %4628 = vmatprep.mubr.bf16.mxu0 %v3336
      %4629 = vmatmul.mubr.bf16.gmra.mrb[0].mxu0 %v3272
      %v4630 = vpop.f32.mrb[0].mxu0
      %v4631 = vadd.f32 %v4470, %v4630
      %v4632 = vpop.f32.mrb[0].mxu0
      %v4633 = vpop.f32.mrb[0].mxu0
      %v4634 = vadd.f32 %v4473, %v4633
      %v4635 = vpop.f32.mrb[0].mxu0
      %4636 = vdwg.mxu0
      %4637 = vmatprep.subr.bf16.mxu0 0
      %4638 = vmatpush1.bf16.msra.mxu0 %v3913
      %4639 = vmatprep.subr.bf16.mxu0 0
      %4640 = vmatpush1.bf16.msra.mxu0 %v3914
      %4641 = vmatprep.subr.bf16.mxu0 0
      %4642 = vmatpush1.bf16.msra.mxu0 %v3915
      %4643 = vmatprep.subr.bf16.mxu0 0
      %4644 = vmatpush1.bf16.msra.mxu0 %v3916
      %4645 = vmatprep.subr.bf16.mxu0 0
      %4646 = vmatpush1.bf16.msra.mxu0 %v3917
      %4647 = vmatprep.subr.bf16.mxu0 0
      %4648 = vmatpush1.bf16.msra.mxu0 %v3918
      %4649 = vmatprep.subr.bf16.mxu0 0
      %4650 = vmatpush1.bf16.msra.mxu0 %v3919
      %4651 = vmatprep.subr.bf16.mxu0 0
      %4652 = vmatpush1.bf16.msra.mxu0 %v3920
      %4653 = vmatprep.subr.bf16.mxu0 0
      %4654 = vmatpush1.bf16.msra.mxu0 0
      %4655 = vmatprep.subr.bf16.mxu0 0
      %4656 = vmatpush1.bf16.msra.mxu0 0
      %4657 = vmatprep.subr.bf16.mxu0 0
      %4658 = vmatpush1.bf16.msra.mxu0 0
      %4659 = vmatprep.subr.bf16.mxu0 0
      %4660 = vmatpush1.bf16.msra.mxu0 0
      %4661 = vmatprep.subr.bf16.mxu0 0
      %4662 = vmatpush1.bf16.msra.mxu0 0
      %4663 = vmatprep.subr.bf16.mxu0 0
      %4664 = vmatpush1.bf16.msra.mxu0 0
      %4665 = vmatprep.subr.bf16.mxu0 0
      %4666 = vmatpush1.bf16.msra.mxu0 0
      %4667 = vmatprep.subr.bf16.mxu0 0
      %4668 = vmatpush1.bf16.msra.mxu0 0
      %4669 = vmatprep.mubr.bf16.mxu0 0
      %4670 = vmatmul.mubr.bf16.gmra.mrb[0].mxu0 %v3385
      %v4671 = vpop.f32.mrb[0].mxu0
      %v4672 = vadd.f32 %v4511, %v4671
      %v4673 = vpop.f32.mrb[0].mxu0
      %v4674 = vpop.f32.mrb[0].mxu0
      %v4675 = vadd.f32 %v4514, %v4674
      %v4676 = vpop.f32.mrb[0].mxu0
      %4677 = vmatprep.mubr.bf16.mxu0 0
      %4678 = vmatmul.mubr.bf16.gmra.mrb[0].mxu0 %v3386
      %v4679 = vpop.f32.mrb[0].mxu0
      %v4680 = vadd.f32 %v4519, %v4679
      %v4681 = vpop.f32.mrb[0].mxu0
      %v4682 = vpop.f32.mrb[0].mxu0
      %v4683 = vadd.f32 %v4522, %v4682
      %v4684 = vpop.f32.mrb[0].mxu0
      %4685 = vmatprep.mubr.bf16.mxu0 0
      %4686 = vmatmul.mubr.bf16.gmra.mrb[0].mxu0 %v3387
      %v4687 = vpop.f32.mrb[0].mxu0
      %v4688 = vadd.f32 %v4527, %v4687
      %v4689 = vpop.f32.mrb[0].mxu0
      %v4690 = vpop.f32.mrb[0].mxu0
      %v4691 = vadd.f32 %v4530, %v4690
      %v4692 = vpop.f32.mrb[0].mxu0
      %4693 = vmatprep.mubr.bf16.mxu0 0
      %4694 = vmatmul.mubr.bf16.gmra.mrb[0].mxu0 %v3388
      %v4695 = vpop.f32.mrb[0].mxu0
      %v4696 = vadd.f32 %v4535, %v4695
      %v4697 = vpop.f32.mrb[0].mxu0
      %v4698 = vpop.f32.mrb[0].mxu0
      %v4699 = vadd.f32 %v4538, %v4698
      %v4700 = vpop.f32.mrb[0].mxu0
      %4701 = vmatprep.mubr.bf16.mxu0 0
      %4702 = vmatmul.mubr.bf16.gmra.mrb[0].mxu0 %v3389
      %v4703 = vpop.f32.mrb[0].mxu0
      %v4704 = vadd.f32 %v4543, %v4703
      %v4705 = vpop.f32.mrb[0].mxu0
      %v4706 = vpop.f32.mrb[0].mxu0
      %v4707 = vadd.f32 %v4546, %v4706
      %v4708 = vpop.f32.mrb[0].mxu0
      %4709 = vmatprep.mubr.bf16.mxu0 0
      %4710 = vmatmul.mubr.bf16.gmra.mrb[0].mxu0 %v3390
      %v4711 = vpop.f32.mrb[0].mxu0
      %v4712 = vadd.f32 %v4551, %v4711
      %v4713 = vpop.f32.mrb[0].mxu0
      %v4714 = vpop.f32.mrb[0].mxu0
      %v4715 = vadd.f32 %v4554, %v4714
      %v4716 = vpop.f32.mrb[0].mxu0
      %4717 = vmatprep.mubr.bf16.mxu0 0
      %4718 = vmatmul.mubr.bf16.gmra.mrb[0].mxu0 %v3391
      %v4719 = vpop.f32.mrb[0].mxu0
      %v4720 = vadd.f32 %v4559, %v4719
      %v4721 = vpop.f32.mrb[0].mxu0
      %v4722 = vpop.f32.mrb[0].mxu0
      %v4723 = vadd.f32 %v4562, %v4722
      %v4724 = vpop.f32.mrb[0].mxu0
      %4725 = vmatprep.mubr.bf16.mxu0 0
      %4726 = vmatmul.mubr.bf16.gmra.mrb[0].mxu0 %v3392
      %v4727 = vpop.f32.mrb[0].mxu0
      %v4728 = vadd.f32 %v4567, %v4727
      %v4729 = vpop.f32.mrb[0].mxu0
      %v4730 = vpop.f32.mrb[0].mxu0
      %v4731 = vadd.f32 %v4570, %v4730
      %v4732 = vpop.f32.mrb[0].mxu0
      %4733 = vmatprep.mubr.bf16.mxu0 0
      %4734 = vmatmul.mubr.bf16.gmra.mrb[0].mxu0 %v3393
      %v4735 = vpop.f32.mrb[0].mxu0
      %v4736 = vadd.f32 %v4575, %v4735
      %v4737 = vpop.f32.mrb[0].mxu0
      %v4738 = vpop.f32.mrb[0].mxu0
      %v4739 = vadd.f32 %v4578, %v4738
      %v4740 = vpop.f32.mrb[0].mxu0
      %4741 = vmatprep.mubr.bf16.mxu0 0
      %4742 = vmatmul.mubr.bf16.gmra.mrb[0].mxu0 %v3394
      %v4743 = vpop.f32.mrb[0].mxu0
      %v4744 = vadd.f32 %v4583, %v4743
      %v4745 = vpop.f32.mrb[0].mxu0
      %v4746 = vpop.f32.mrb[0].mxu0
      %v4747 = vadd.f32 %v4586, %v4746
      %v4748 = vpop.f32.mrb[0].mxu0
      %4749 = vmatprep.mubr.bf16.mxu0 0
      %4750 = vmatmul.mubr.bf16.gmra.mrb[0].mxu0 %v3395
      %v4751 = vpop.f32.mrb[0].mxu0
      %v4752 = vadd.f32 %v4591, %v4751
      %v4753 = vpop.f32.mrb[0].mxu0
      %v4754 = vpop.f32.mrb[0].mxu0
      %v4755 = vadd.f32 %v4594, %v4754
      %v4756 = vpop.f32.mrb[0].mxu0
      %4757 = vmatprep.mubr.bf16.mxu0 0
      %4758 = vmatmul.mubr.bf16.gmra.mrb[0].mxu0 %v3396
      %v4759 = vpop.f32.mrb[0].mxu0
      %v4760 = vadd.f32 %v4599, %v4759
      %v4761 = vpop.f32.mrb[0].mxu0
      %v4762 = vpop.f32.mrb[0].mxu0
      %v4763 = vadd.f32 %v4602, %v4762
      %v4764 = vpop.f32.mrb[0].mxu0
      %4765 = vmatprep.mubr.bf16.mxu0 0
      %4766 = vmatmul.mubr.bf16.gmra.mrb[0].mxu0 %v3397
      %v4767 = vpop.f32.mrb[0].mxu0
      %v4768 = vadd.f32 %v4607, %v4767
      %v4769 = vpop.f32.mrb[0].mxu0
      %v4770 = vpop.f32.mrb[0].mxu0
      %v4771 = vadd.f32 %v4610, %v4770
      %v4772 = vpop.f32.mrb[0].mxu0
      %4773 = vmatprep.mubr.bf16.mxu0 0
      %4774 = vmatmul.mubr.bf16.gmra.mrb[0].mxu0 %v3398
      %v4775 = vpop.f32.mrb[0].mxu0
      %v4776 = vadd.f32 %v4615, %v4775
      %v4777 = vpop.f32.mrb[0].mxu0
      %v4778 = vpop.f32.mrb[0].mxu0
      %v4779 = vadd.f32 %v4618, %v4778
      %v4780 = vpop.f32.mrb[0].mxu0
      %4781 = vmatprep.mubr.bf16.mxu0 0
      %4782 = vmatmul.mubr.bf16.gmra.mrb[0].mxu0 %v3399
      %v4783 = vpop.f32.mrb[0].mxu0
      %v4784 = vadd.f32 %v4623, %v4783
      %v4785 = vpop.f32.mrb[0].mxu0
      %v4786 = vpop.f32.mrb[0].mxu0
      %v4787 = vadd.f32 %v4626, %v4786
      %v4788 = vpop.f32.mrb[0].mxu0
      %4789 = vmatprep.mubr.bf16.mxu0 0
      %4790 = vmatmul.mubr.bf16.gmra.mrb[0].mxu0 %v3400
      %v4791 = vpop.f32.mrb[0].mxu0
      %v4792 = vadd.f32 %v4631, %v4791
      %v4793 = vpop.f32.mrb[0].mxu0
      %v4794 = vpop.f32.mrb[0].mxu0
      %v4795 = vadd.f32 %v4634, %v4794
      %v4796 = vpop.f32.mrb[0].mxu0
      %4797 = vdwg.mxu0
      %4798 = vst [vmem:[%s222] sm:$0xff] %v4672
      %4799 = vst [vmem:[%s222 + $0x8] sm:$0xff] %v4675
      %4800 = vst [vmem:[%s222 + $0x10] sm:$0xff] %v4680
      %4801 = vst [vmem:[%s222 + $0x18] sm:$0xff] %v4683
      %4802 = vst [vmem:[%s222 + $0x20] sm:$0xff] %v4688
      %4803 = vst [vmem:[%s222 + $0x28] sm:$0xff] %v4691
      %4804 = vst [vmem:[%s222 + $0x30] sm:$0xff] %v4696
      %4805 = vst [vmem:[%s222 + $0x38] sm:$0xff] %v4699
      %4806 = vst [vmem:[%s222 + $0x40] sm:$0xff] %v4704
      %4807 = vst [vmem:[%s222 + $0x48] sm:$0xff] %v4707
      %4808 = vst [vmem:[%s222 + $0x50] sm:$0xff] %v4712
      %4809 = vst [vmem:[%s222 + $0x58] sm:$0xff] %v4715
      %4810 = vst [vmem:[%s222 + $0x60] sm:$0xff] %v4720
      %4811 = vst [vmem:[%s222 + $0x68] sm:$0xff] %v4723
      %4812 = vst [vmem:[%s222 + $0x70] sm:$0xff] %v4728
      %4813 = vst [vmem:[%s222 + $0x78] sm:$0xff] %v4731
      %4814 = vst [vmem:[%s222 + $0x80] sm:$0xff] %v4736
      %4815 = vst [vmem:[%s222 + $0x88] sm:$0xff] %v4739
      %4816 = vst [vmem:[%s222 + $0x90] sm:$0xff] %v4744
      %4817 = vst [vmem:[%s222 + $0x98] sm:$0xff] %v4747
      %4818 = vst [vmem:[%s222 + $0xa0] sm:$0xff] %v4752
      %4819 = vst [vmem:[%s222 + $0xa8] sm:$0xff] %v4755
      %4820 = vst [vmem:[%s222 + $0xb0] sm:$0xff] %v4760
      %4821 = vst [vmem:[%s222 + $0xb8] sm:$0xff] %v4763
      %4822 = vst [vmem:[%s222 + $0xc0] sm:$0xff] %v4768
      %4823 = vst [vmem:[%s222 + $0xc8] sm:$0xff] %v4771
      %4824 = vst [vmem:[%s222 + $0xd0] sm:$0xff] %v4776
      %4825 = vst [vmem:[%s222 + $0xd8] sm:$0xff] %v4779
      %4826 = vst [vmem:[%s222 + $0xe0] sm:$0xff] %v4784
      %4827 = vst [vmem:[%s222 + $0xe8] sm:$0xff] %v4787
      %4828 = vst [vmem:[%s222 + $0xf0] sm:$0xff] %v4792
      %4829 = vst [vmem:[%s222 + $0xf8] sm:$0xff] %v4795
      %v4830 = vadd.f32 %v4672, %v4675
      %v4831 = vadd.f32 %v4830, %v4680
      %v4832 = vadd.f32 %v4831, %v4683
      %v4833 = vadd.f32 %v4832, %v4688
      %v4834 = vadd.f32 %v4833, %v4691
      %v4835 = vadd.f32 %v4834, %v4696
      %v4836 = vadd.f32 %v4835, %v4699
      %v4837 = vadd.f32 %v4836, %v4704
      %v4838 = vadd.f32 %v4837, %v4707
      %v4839 = vadd.f32 %v4838, %v4712
      %v4840 = vadd.f32 %v4839, %v4715
      %v4841 = vadd.f32 %v4840, %v4720
      %v4842 = vadd.f32 %v4841, %v4723
      %v4843 = vadd.f32 %v4842, %v4728
      %v4844 = vadd.f32 %v4843, %v4731
      %v4845 = vadd.f32 %v4844, %v4736
      %v4846 = vadd.f32 %v4845, %v4739
      %v4847 = vadd.f32 %v4846, %v4744
      %v4848 = vadd.f32 %v4847, %v4747
      %v4849 = vadd.f32 %v4848, %v4752
      %v4850 = vadd.f32 %v4849, %v4755
      %v4851 = vadd.f32 %v4850, %v4760
      %v4852 = vadd.f32 %v4851, %v4763
      %v4853 = vadd.f32 %v4852, %v4768
      %v4854 = vadd.f32 %v4853, %v4771
      %v4855 = vadd.f32 %v4854, %v4776
      %v4856 = vadd.f32 %v4855, %v4779
      %v4857 = vadd.f32 %v4856, %v4784
      %v4858 = vadd.f32 %v4857, %v4787
      %v4859 = vadd.f32 %v4858, %v4792
      %v4860 = vadd.f32 %v4859, %v4795
      %v4861 = vrot.slane %v4860, 4
      %v4862 = vadd.f32 %v4860, %v4861
      %v4863 = vrot.slane %v4862, 2
      %v4864 = vadd.f32 %v4862, %v4863
      %v4865 = vrot.slane %v4864, 1
      %v4866 = vadd.f32 %v4864, %v4865
      %v4867 = vmul.f32 %v4672, %v4672
      %v4868 = vmul.f32 %v4675, %v4675
      %v4869 = vmul.f32 %v4680, %v4680
      %v4870 = vmul.f32 %v4683, %v4683
      %v4871 = vmul.f32 %v4688, %v4688
      %v4872 = vmul.f32 %v4691, %v4691
      %v4873 = vmul.f32 %v4696, %v4696
      %v4874 = vmul.f32 %v4699, %v4699
      %v4875 = vmul.f32 %v4704, %v4704
      %v4876 = vmul.f32 %v4707, %v4707
      %v4877 = vmul.f32 %v4712, %v4712
      %v4878 = vmul.f32 %v4715, %v4715
      %v4879 = vmul.f32 %v4720, %v4720
      %v4880 = vmul.f32 %v4723, %v4723
      %v4881 = vmul.f32 %v4728, %v4728
      %v4882 = vmul.f32 %v4731, %v4731
      %v4883 = vmul.f32 %v4736, %v4736
      %v4884 = vmul.f32 %v4739, %v4739
      %v4885 = vmul.f32 %v4744, %v4744
      %v4886 = vmul.f32 %v4747, %v4747
      %v4887 = vmul.f32 %v4752, %v4752
      %v4888 = vmul.f32 %v4755, %v4755
      %v4889 = vmul.f32 %v4760, %v4760
      %v4890 = vmul.f32 %v4763, %v4763
      %v4891 = vmul.f32 %v4768, %v4768
      %v4892 = vmul.f32 %v4771, %v4771
      %v4893 = vmul.f32 %v4776, %v4776
      %v4894 = vmul.f32 %v4779, %v4779
      %v4895 = vmul.f32 %v4784, %v4784
      %v4896 = vmul.f32 %v4787, %v4787
      %v4897 = vmul.f32 %v4792, %v4792
      %v4898 = vmul.f32 %v4795, %v4795
      %v4899 = vadd.f32 %v4867, %v4868
      %v4900 = vadd.f32 %v4899, %v4869
      %v4901 = vadd.f32 %v4900, %v4870
      %v4902 = vadd.f32 %v4901, %v4871
      %v4903 = vadd.f32 %v4902, %v4872
      %v4904 = vadd.f32 %v4903, %v4873
      %v4905 = vadd.f32 %v4904, %v4874
      %v4906 = vadd.f32 %v4905, %v4875
      %v4907 = vadd.f32 %v4906, %v4876
      %v4908 = vadd.f32 %v4907, %v4877
      %v4909 = vadd.f32 %v4908, %v4878
      %v4910 = vadd.f32 %v4909, %v4879
      %v4911 = vadd.f32 %v4910, %v4880
      %v4912 = vadd.f32 %v4911, %v4881
      %v4913 = vadd.f32 %v4912, %v4882
      %v4914 = vadd.f32 %v4913, %v4883
      %v4915 = vadd.f32 %v4914, %v4884
      %v4916 = vadd.f32 %v4915, %v4885
      %v4917 = vadd.f32 %v4916, %v4886
      %v4918 = vadd.f32 %v4917, %v4887
      %v4919 = vadd.f32 %v4918, %v4888
      %v4920 = vadd.f32 %v4919, %v4889
      %v4921 = vadd.f32 %v4920, %v4890
      %v4922 = vadd.f32 %v4921, %v4891
      %v4923 = vadd.f32 %v4922, %v4892
      %v4924 = vadd.f32 %v4923, %v4893
      %v4925 = vadd.f32 %v4924, %v4894
      %v4926 = vadd.f32 %v4925, %v4895
      %v4927 = vadd.f32 %v4926, %v4896
      %v4928 = vadd.f32 %v4927, %v4897
      %v4929 = vadd.f32 %v4928, %v4898
      %v4930 = vrot.slane %v4929, 4
      %v4931 = vadd.f32 %v4929, %v4930
      %v4932 = vrot.slane %v4931, 2
      %v4933 = vadd.f32 %v4931, %v4932
      %v4934 = vrot.slane %v4933, 1
      %v4935 = vadd.f32 %v4933, %v4934
      %vm4936 = vcmask 1040384
      %v4937 = vsel %vm4936, %v4866, %v4935
      %vm4938 = vcmask 1041408
      %v4939 = vsel %vm4938, %v4937, 0.0
      %v4940 = vld [vmem:[%s5] sm:$0xff]
      %v4941 = vadd.f32 %v4940, %v4939
      %4942 = vst [vmem:[%s5] sm:$0xff] %v4941
      %p4943 = scmp.lt.s32.totalorder %s17, 1
      %s4944 = scalar_select %p4943, %s17, 1
      %s4945 = smul.addr %s4944, 32
      %s4946 = smul.addr %s4945, 8
      %s4947 = scalar_lea.vmem %s4, %s4946
      // Predicated region
      $region41: #{basic_block_forward.4} parent=35 // pred_check
        %p4948 = pneg %p124
      $region42: #{basic_block_forward.4} parent=35 // pred_check_branch
        %4950 = sbr.rel (%p4948) target = $region44
      $region43: #{basic_block_forward.4} parent=35 // pred_region
        _
      $region44: #{basic_block_forward.4} parent=35 // pred_fallthru
        _
      // Predicated region
      $region45: #{basic_block_forward.4} parent=35 // pred_check
        %p4951 = pneg %p145
      $region46: #{basic_block_forward.4} parent=35 // pred_check_branch
        %4953 = sbr.rel (%p4951) target = $region48
      $region47: #{basic_block_forward.4} parent=35 // pred_region
        _
      $region48: #{basic_block_forward.4} parent=35 // pred_fallthru
        _
      // Predicated region
      $region49: #{basic_block_forward.4} parent=35 // pred_check
        %p4954 = pneg %p145
      $region50: #{basic_block_forward.4} parent=35 // pred_check_branch
        %4956 = sbr.rel (%p4954) target = $region52
      $region51: #{basic_block_forward.4} parent=35 // pred_region
        _
      $region52: #{basic_block_forward.4} parent=35 // pred_fallthru
        _
    $region36: #{basic_block_forward.4} parent=5 // pred_fallthru
      _
    %p4957 = scmp.le.s32.totalorder 2, %s12
    // Predicated region
    $region53: #{basic_block_forward.4} parent=5 // pred_check
      %p4958 = pneg %p4957
    $region54: #{basic_block_forward.4} parent=5 // pred_check_branch
      %4960 = sbr.rel (%p4958) target = $region56
    $region55: #{basic_block_forward.4} parent=5 // pred_region
      %s4961 = ssub.s32 %s12, 2
      // Predicated region
      $region57: #{basic_block_forward.4} parent=55 // pred_check
        %p4962 = pneg %p130
      $region58: #{basic_block_forward.4} parent=55 // pred_check_branch
        %4964 = sbr.rel (%p4962) target = $region60
      $region59: #{basic_block_forward.4} parent=55 // pred_region
        %p4965 = scmp.lt.s32.totalorder %s18, 1
        %s4966 = scalar_select %p4965, %s18, 1
        %s4967 = smul.addr %s4966, 32
        %s4968 = smul.addr %s4967, 8
        %s4969 = scalar_lea.vmem %s4, %s4968
      $region60: #{basic_block_forward.4} parent=55 // pred_fallthru
        _
    $region56: #{basic_block_forward.4} parent=5 // pred_fallthru
      _
  $region6: #{basic_block_forward.4} parent=0 // loop_footer
    %s16 = sadd.s32 1, %s12
  $region7: #{basic_block_forward.4} parent=0 // loop_footer_branch
    %11 = sbr.rel target = $region3
  $region8: #{basic_block_forward.4} parent=0 // loop_exit
    _

</llo_original>
